<compile_context>
chip_gen: v7x
topology: tpu7x:2x2x1
jax: 0.10.0
libtpu: 0.0.40
codegen_flags: <defaults>
</compile_context>

<pallas_src>
import functools

import jax
import jax.numpy as jnp
from jax.experimental import pallas as pl
from jax.experimental.pallas import tpu as pltpu


def _round_up(x, m):
    return (x + m - 1) // m * m


def _cdiv(a, b):
    return (a + b - 1) // b


# ----------------------------------------------------------------------------
# Pallas kernels
# ----------------------------------------------------------------------------
def _mm_bias_relu_kernel(x_ref, w_ref, b_ref, o_ref):
    """o = relu(x @ w + b).  bf16 operands on the MXU, f32 accumulation."""
    acc = jnp.dot(x_ref[...], w_ref[...], preferred_element_type=jnp.float32)
    o_ref[...] = jnp.maximum(acc + b_ref[...], 0.0).astype(o_ref.dtype)


def _fused_tail_kernel(p3_ref, w3_ref, b3_ref, w4_ref, b4_ref, w5_ref, b5_ref,
                       o_ref, h3_ref, *, n_pos, bp):
    """conv3 + fc4(ReLU) + fc5, fused; intermediate activations stay in VMEM.

    p3_ref : (n_pos*bp, 576) conv3 im2col patches, rows ordered (position, batch)
    w4_ref : (n_pos, 64, 512) fc4 weight, exposed per conv3 spatial position
    """
    # conv3: one (n_pos*bp, 576) @ (576, 64) matmul + bias + ReLU.
    h3 = jnp.dot(p3_ref[...], w3_ref[...], preferred_element_type=jnp.float32)
    h3_ref[...] = jnp.maximum(h3 + b3_ref[...], 0.0).astype(h3_ref.dtype)

    # fc4 == a 7x7 VALID conv over the (7,7,64) conv3 activation: accumulate one
    # small (bp,64)x(64,512) matmul per spatial position.  This avoids the
    # (rows -> lanes) relayout that a flatten to (batch, 3136) would need.
    acc = jnp.zeros((bp, w4_ref.shape[2]), dtype=jnp.float32)
    for r in range(n_pos):
        lhs = h3_ref[pl.ds(r * bp, bp), :]              # (bp, 64) bf16, aligned
        acc += jnp.dot(lhs, w4_ref[r], preferred_element_type=jnp.float32)
    h4 = jnp.maximum(acc + b4_ref[...], 0.0)            # (bp, 512) f32

    # fc5: tiny matmul kept in f32 for Q-value fidelity.
    out = jnp.dot(h4, w5_ref[...].astype(jnp.float32),
                  preferred_element_type=jnp.float32)
    o_ref[...] = out + b5_ref[...]


# ----------------------------------------------------------------------------
# Pallas wrappers
# ----------------------------------------------------------------------------
def pallas_matmul_bias_relu(x, w, b, *, n_valid, out_dtype, max_tile_rows=512):
    """relu(x @ w + b) with M split into near-equal 8-aligned tiles.

    x:(M,K); w:(K,Np) bf16 with Np % 128 == 0; b:(1,Np) f32 -> (M, n_valid).
    """
    M, K = x.shape
    Kw, Np = w.shape
    assert K == Kw and Np % 128 == 0
    num_tiles = max(1, _cdiv(M, max_tile_rows))
    tm = _round_up(_cdiv(M, num_tiles), 8)
    mp = tm * num_tiles                                  # mp - M <= 7*num_tiles
    xb = x if x.dtype == jnp.bfloat16 else x.astype(jnp.bfloat16)
    if mp != M:
        xb = jnp.pad(xb, ((0, mp - M), (0, 0)))
    out = pl.pallas_call(
        _mm_bias_relu_kernel,
        out_shape=jax.ShapeDtypeStruct((mp, Np), out_dtype),
        grid=(num_tiles,),
        in_specs=[
            pl.BlockSpec((tm, K), lambda i: (i, 0)),
            pl.BlockSpec((K, Np), lambda i: (0, 0)),
            pl.BlockSpec((1, Np), lambda i: (0, 0)),
        ],
        out_specs=pl.BlockSpec((tm, Np), lambda i: (i, 0)),
        compiler_params=pltpu.CompilerParams(
            dimension_semantics=("parallel",)),
    )(xb, w, b)
    return out[:M, :n_valid]


def pallas_fused_tail(p3, w3, b3, w4_3d, b4, w5, b5, *, batch, bp, n_out):
    """Fused conv3 + fc4 + fc5.  p3 rows ordered (spatial position, batch)."""
    mp, k3 = p3.shape
    n_pos = w4_3d.shape[0]
    assert mp == n_pos * bp
    out = pl.pallas_call(
        functools.partial(_fused_tail_kernel, n_pos=n_pos, bp=bp),
        out_shape=jax.ShapeDtypeStruct((bp, w5.shape[1]), jnp.float32),
        grid=(1,),
        in_specs=[
            pl.BlockSpec((mp, k3), lambda i: (0, 0)),
            pl.BlockSpec(w3.shape, lambda i: (0, 0)),
            pl.BlockSpec(b3.shape, lambda i: (0, 0)),
            pl.BlockSpec(w4_3d.shape, lambda i: (0, 0, 0)),
            pl.BlockSpec(b4.shape, lambda i: (0, 0)),
            pl.BlockSpec(w5.shape, lambda i: (0, 0)),
            pl.BlockSpec(b5.shape, lambda i: (0, 0)),
        ],
        out_specs=pl.BlockSpec((bp, w5.shape[1]), lambda i: (0, 0)),
        scratch_shapes=[pltpu.VMEM((mp, w3.shape[1]), jnp.bfloat16)],
        compiler_params=pltpu.CompilerParams(
            dimension_semantics=("arbitrary",)),
    )(p3, w3, b3, w4_3d, b4, w5, b5)
    return out[:batch, :n_out]


# ----------------------------------------------------------------------------
# Conv layer: XLA patch extraction (channel-major, matches torch) + MXU matmul
# ----------------------------------------------------------------------------
def conv_layer(x_nhwc, wmat, bvec, *, oc, ksize, stride):
    B, H, W, C = x_nhwc.shape
    OH = (H - ksize) // stride + 1
    OW = (W - ksize) // stride + 1
    # Patch feature order is (c, kh, kw) == torch weight.reshape(OC, IC*K*K).
    patches = jax.lax.conv_general_dilated_patches(
        x_nhwc, (ksize, ksize), (stride, stride), "VALID",
        dimension_numbers=("NHWC", "HWIO", "NHWC"))
    p = patches.reshape(B * OH * OW, C * ksize * ksize)
    out = pallas_matmul_bias_relu(p, wmat, bvec, n_valid=oc,
                                  out_dtype=jnp.bfloat16)
    return out.reshape(B, OH, OW, oc)


# ----------------------------------------------------------------------------
# Parameters: torch-layout init + one-time repack into matmul layout
# ----------------------------------------------------------------------------
def init_params(key):
    keys = jax.random.split(key, 10)

    def u(k, shape, fan_in):
        bound = 1.0 / jnp.sqrt(fan_in)
        return jax.random.uniform(k, shape, jnp.float32, -bound, bound)

    return {
        "conv1_w": u(keys[0], (32, 4, 8, 8), 4 * 8 * 8),
        "conv1_b": u(keys[1], (32,), 4 * 8 * 8),
        "conv2_w": u(keys[2], (64, 32, 4, 4), 32 * 4 * 4),
        "conv2_b": u(keys[3], (64,), 32 * 4 * 4),
        "conv3_w": u(keys[4], (64, 64, 3, 3), 64 * 3 * 3),
        "conv3_b": u(keys[5], (64,), 64 * 3 * 3),
        "fc4_w": u(keys[6], (512, 3136), 3136),   # torch Linear: (out, in)
        "fc4_b": u(keys[7], (512,), 3136),
        "fc5_w": u(keys[8], (2, 512), 512),
        "fc5_b": u(keys[9], (2,), 512),
    }


def prepare_params(p):
    """One-time repack: pre-transposed, lane-padded, bf16 matmul weights."""
    def conv_w_padded(w):                # (OC,IC,K,K) -> (IC*K*K, OC_pad) bf16
        oc = w.shape[0]
        wm = w.reshape(oc, -1).T
        ocp = _round_up(oc, 128)
        return jnp.pad(wm, ((0, 0), (0, ocp - oc))).astype(jnp.bfloat16)

    def conv_b_padded(b):                # (OC,) -> (1, OC_pad) f32
        oc = b.shape[0]
        ocp = _round_up(oc, 128)
        return jnp.pad(b, (0, ocp - oc)).reshape(1, ocp).astype(jnp.float32)

    # conv3 feeds the fused tail kernel; its output never leaves VMEM, so the
    # output channels need no lane padding.
    w3 = p["conv3_w"].reshape(64, -1).T.astype(jnp.bfloat16)       # (576, 64)
    b3 = p["conv3_b"].reshape(1, 64).astype(jnp.float32)

    # fc4: permute input columns from NCHW flatten (c,h,w) to NHWC flatten
    # (h,w,c), then expose the (49 spatial, 64 channel, 512 out) structure for
    # the in-kernel per-position contraction.
    w4 = (p["fc4_w"].reshape(512, 64, 7, 7)
          .transpose(0, 2, 3, 1).reshape(512, 3136).T)             # rows (h,w,c)
    w4_3d = w4.reshape(49, 64, 512).astype(jnp.bfloat16)

    # fc5: pre-transpose and zero-pad the 2-wide output to a lane-dense 128.
    w5 = jnp.pad(p["fc5_w"].T, ((0, 0), (0, 126))).astype(jnp.bfloat16)
    b5 = jnp.pad(p["fc5_b"], (0, 126)).reshape(1, 128).astype(jnp.float32)

    return {
        "c1_w": conv_w_padded(p["conv1_w"]), "c1_b": conv_b_padded(p["conv1_b"]),
        "c2_w": conv_w_padded(p["conv2_w"]), "c2_b": conv_b_padded(p["conv2_b"]),
        "c3_w": w3, "c3_b": b3,
        "fc4_w3d": w4_3d,
        "fc4_b": p["fc4_b"].reshape(1, 512).astype(jnp.float32),
        "fc5_w": w5, "fc5_b": b5,
    }


# ----------------------------------------------------------------------------
# Forward pass (mirrors NeuralNetwork.forward) and pure-JAX f32 reference
# ----------------------------------------------------------------------------
def forward(pp, x_nchw):
    B = x_nchw.shape[0]
    # Single NCHW->NHWC transpose + single bf16 cast; everything downstream
    # stays NHWC / bf16 (no per-layer layout or dtype shuffles).
    x = jnp.transpose(x_nchw.astype(jnp.bfloat16), (0, 2, 3, 1))
    x = conv_layer(x, pp["c1_w"], pp["c1_b"], oc=32, ksize=8, stride=4)  # (B,20,20,32)
    x = conv_layer(x, pp["c2_w"], pp["c2_b"], oc=64, ksize=4, stride=2)  # (B,9,9,64)

    # conv3 + fc4 + fc5 run fused in a single Pallas kernel.  Patch rows are
    # reordered to (spatial position, batch) with batch padded to a full 8-row
    # sublane tile so the in-kernel fc4 contraction uses aligned slices.
    p3 = jax.lax.conv_general_dilated_patches(
        x, (3, 3), (1, 1), "VALID",
        dimension_numbers=("NHWC", "HWIO", "NHWC"))                      # (B,7,7,576)
    bp = _round_up(B, 8)
    p3 = jnp.transpose(p3, (1, 2, 0, 3))                                 # (7,7,B,576)
    if bp != B:
        p3 = jnp.pad(p3, ((0, 0), (0, 0), (0, bp - B), (0, 0)))
    p3 = p3.reshape(7 * 7 * bp, 64 * 3 * 3)
    return pallas_fused_tail(p3, pp["c3_w"], pp["c3_b"], pp["fc4_w3d"],
                             pp["fc4_b"], pp["fc5_w"], pp["fc5_b"],
                             batch=B, bp=bp, n_out=2)                    # (B, 2)


def forward_ref(p, x_nchw):
    def conv(x, w, b, s):
        o = jax.lax.conv_general_dilated(
            x, w, (s, s), "VALID", dimension_numbers=("NCHW", "OIHW", "NCHW"))
        return jnp.maximum(o + b[None, :, None, None], 0.0)

    B = x_nchw.shape[0]
    o = conv(x_nchw, p["conv1_w"], p["conv1_b"], 4)
    o = conv(o, p["conv2_w"], p["conv2_b"], 2)
    o = conv(o, p["conv3_w"], p["conv3_b"], 1)
    o = o.reshape(B, -1)
    o = jnp.maximum(o @ p["fc4_w"].T + p["fc4_b"], 0.0)
    return o @ p["fc5_w"].T + p["fc5_b"]


if __name__ == "__main__":
    key = jax.random.PRNGKey(0)
    pkey, xkey = jax.random.split(key)
    params = init_params(pkey)
    prepped = prepare_params(params)      # one-time weight repack (not per call)

    # fc4 expects 3136 = 64*7*7 features, which pins the spatial size to 84x84.
    B = 2
    x = jax.random.normal(xkey, (B, 4, 84, 84), jnp.float32)

    out = jax.block_until_ready(jax.jit(forward)(prepped, x))
    ref = jax.block_until_ready(jax.jit(forward_ref)(params, x))

    assert out.shape == (B, 2), out.shape
    max_diff = float(jnp.max(jnp.abs(out - ref)))
    assert jnp.allclose(out, ref, atol=2.5e-2, rtol=2.5e-2), (
        f"mismatch vs reference, max abs diff={max_diff}")
    print("KERNEL_OK")
</pallas_src>

<mosaic_0001>
module attributes {stable_mosaic.version = 11 : i64} {
  func.func @_mm_bias_relu_kernel(%arg0: i32, %arg1: memref<400x256xbf16, #tpu.memory_space<vmem>>, %arg2: memref<256x128xbf16, #tpu.memory_space<vmem>>, %arg3: memref<1x128xf32, #tpu.memory_space<vmem>>, %arg4: memref<400x128xbf16, #tpu.memory_space<vmem>>) attributes {dimension_semantics = [#tpu.dimension_semantics<parallel>], iteration_bounds = array<i64: 2>, scalar_prefetch = 0 : i64, scratch_operands = 0 : i64, tpu.core_type = #tpu.core_type<tc>, window_params = [{transform_indices = @transform_0, window_bounds = array<i64: 400, 256>}, {pipeline_mode = #tpu.pipeline_mode<synchronous>, transform_indices = @transform_1, window_bounds = array<i64: 256, 128>}, {pipeline_mode = #tpu.pipeline_mode<synchronous>, transform_indices = @transform_2, window_bounds = array<i64: 1, 128>}, {transform_indices = @transform_3, window_bounds = array<i64: 400, 128>}]} {
    %c0 = arith.constant 0 : index
    %c0_0 = arith.constant 0 : index
    %0 = vector.load %arg1[%c0, %c0_0] : memref<400x256xbf16, #tpu.memory_space<vmem>>, vector<400x256xbf16>
    %c0_1 = arith.constant 0 : index
    %c0_2 = arith.constant 0 : index
    %1 = vector.load %arg2[%c0_1, %c0_2] : memref<256x128xbf16, #tpu.memory_space<vmem>>, vector<256x128xbf16>
    %cst = arith.constant dense<0.000000e+00> : vector<400x128xf32>
    %2 = tpu.matmul %0, %1, %cst {dimension_numbers = #tpu.dot_dimension_numbers<[1], [0], [0], [1], [0, 0, 1, 1], [], []>} : vector<400x256xbf16>, vector<256x128xbf16>, vector<400x128xf32> -> vector<400x128xf32>
    %c0_3 = arith.constant 0 : index
    %c0_4 = arith.constant 0 : index
    %3 = vector.load %arg3[%c0_3, %c0_4] : memref<1x128xf32, #tpu.memory_space<vmem>>, vector<1x128xf32>
    %4 = vector.broadcast %3 : vector<1x128xf32> to vector<400x128xf32>
    %5 = arith.addf %2, %4 : vector<400x128xf32>
    %cst_5 = arith.constant 0.000000e+00 : f32
    %6 = vector.broadcast %cst_5 : f32 to vector<400x128xf32>
    %7 = arith.maximumf %5, %6 : vector<400x128xf32>
    %8 = arith.truncf %7 : vector<400x128xf32> to vector<400x128xbf16>
    %c0_6 = arith.constant 0 : index
    %c0_7 = arith.constant 0 : index
    %9 = vector.load %arg4[%c0_6, %c0_7] : memref<400x128xbf16, #tpu.memory_space<vmem>>, vector<400x128xbf16>
    tpu.vector_store %arg4[%c0_6, %c0_7], %8 {strides = array<i32>} : memref<400x128xbf16, #tpu.memory_space<vmem>>, vector<400x128xbf16>,
    return
  }
  func.func @transform_0(%arg0: i32) -> (i32, i32) {
    %c0_i32 = arith.constant 0 : i32
    %c0_i32_0 = arith.constant 0 : i32
    return %arg0, %c0_i32 : i32, i32
  }
  func.func @transform_1(%arg0: i32) -> (i32, i32) {
    %c0_i32 = arith.constant 0 : i32
    %c0_i32_0 = arith.constant 0 : i32
    %c0_i32_1 = arith.constant 0 : i32
    return %c0_i32, %c0_i32_0 : i32, i32
  }
  func.func @transform_2(%arg0: i32) -> (i32, i32) {
    %c0_i32 = arith.constant 0 : i32
    %c0_i32_0 = arith.constant 0 : i32
    %c0_i32_1 = arith.constant 0 : i32
    return %c0_i32, %c0_i32_0 : i32, i32
  }
  func.func @transform_3(%arg0: i32) -> (i32, i32) {
    %c0_i32 = arith.constant 0 : i32
    %c0_i32_0 = arith.constant 0 : i32
    return %arg0, %c0_i32 : i32, i32
  }
}

module attributes {stable_mosaic.version = 11 : i64} {
  func.func @_mm_bias_relu_kernel(%arg0: i32, %arg1: memref<168x512xbf16, #tpu.memory_space<vmem>>, %arg2: memref<512x128xbf16, #tpu.memory_space<vmem>>, %arg3: memref<1x128xf32, #tpu.memory_space<vmem>>, %arg4: memref<168x128xbf16, #tpu.memory_space<vmem>>) attributes {dimension_semantics = [#tpu.dimension_semantics<parallel>], iteration_bounds = array<i64: 1>, scalar_prefetch = 0 : i64, scratch_operands = 0 : i64, tpu.core_type = #tpu.core_type<tc>, window_params = [{transform_indices = @transform_0, window_bounds = array<i64: 168, 512>}, {pipeline_mode = #tpu.pipeline_mode<synchronous>, transform_indices = @transform_1, window_bounds = array<i64: 512, 128>}, {pipeline_mode = #tpu.pipeline_mode<synchronous>, transform_indices = @transform_2, window_bounds = array<i64: 1, 128>}, {transform_indices = @transform_3, window_bounds = array<i64: 168, 128>}]} {
    %c0 = arith.constant 0 : index
    %c0_0 = arith.constant 0 : index
    %0 = vector.load %arg1[%c0, %c0_0] : memref<168x512xbf16, #tpu.memory_space<vmem>>, vector<168x512xbf16>
    %c0_1 = arith.constant 0 : index
    %c0_2 = arith.constant 0 : index
    %1 = vector.load %arg2[%c0_1, %c0_2] : memref<512x128xbf16, #tpu.memory_space<vmem>>, vector<512x128xbf16>
    %cst = arith.constant dense<0.000000e+00> : vector<168x128xf32>
    %2 = tpu.matmul %0, %1, %cst {dimension_numbers = #tpu.dot_dimension_numbers<[1], [0], [0], [1], [0, 0, 1, 1], [], []>} : vector<168x512xbf16>, vector<512x128xbf16>, vector<168x128xf32> -> vector<168x128xf32>
    %c0_3 = arith.constant 0 : index
    %c0_4 = arith.constant 0 : index
    %3 = vector.load %arg3[%c0_3, %c0_4] : memref<1x128xf32, #tpu.memory_space<vmem>>, vector<1x128xf32>
    %4 = vector.broadcast %3 : vector<1x128xf32> to vector<168x128xf32>
    %5 = arith.addf %2, %4 : vector<168x128xf32>
    %cst_5 = arith.constant 0.000000e+00 : f32
    %6 = vector.broadcast %cst_5 : f32 to vector<168x128xf32>
    %7 = arith.maximumf %5, %6 : vector<168x128xf32>
    %8 = arith.truncf %7 : vector<168x128xf32> to vector<168x128xbf16>
    %c0_6 = arith.constant 0 : index
    %c0_7 = arith.constant 0 : index
    %9 = vector.load %arg4[%c0_6, %c0_7] : memref<168x128xbf16, #tpu.memory_space<vmem>>, vector<168x128xbf16>
    tpu.vector_store %arg4[%c0_6, %c0_7], %8 {strides = array<i32>} : memref<168x128xbf16, #tpu.memory_space<vmem>>, vector<168x128xbf16>,
    return
  }
  func.func @transform_0(%arg0: i32) -> (i32, i32) {
    %c0_i32 = arith.constant 0 : i32
    %c0_i32_0 = arith.constant 0 : i32
    return %arg0, %c0_i32 : i32, i32
  }
  func.func @transform_1(%arg0: i32) -> (i32, i32) {
    %c0_i32 = arith.constant 0 : i32
    %c0_i32_0 = arith.constant 0 : i32
    %c0_i32_1 = arith.constant 0 : i32
    return %c0_i32, %c0_i32_0 : i32, i32
  }
  func.func @transform_2(%arg0: i32) -> (i32, i32) {
    %c0_i32 = arith.constant 0 : i32
    %c0_i32_0 = arith.constant 0 : i32
    %c0_i32_1 = arith.constant 0 : i32
    return %c0_i32, %c0_i32_0 : i32, i32
  }
  func.func @transform_3(%arg0: i32) -> (i32, i32) {
    %c0_i32 = arith.constant 0 : i32
    %c0_i32_0 = arith.constant 0 : i32
    return %arg0, %c0_i32 : i32, i32
  }
}

module attributes {stable_mosaic.version = 11 : i64} {
  func.func @_fused_tail_kernel(%arg0: i32, %arg1: memref<392x576xbf16, #tpu.memory_space<vmem>>, %arg2: memref<576x64xbf16, #tpu.memory_space<vmem>>, %arg3: memref<1x64xf32, #tpu.memory_space<vmem>>, %arg4: memref<49x64x512xbf16, #tpu.memory_space<vmem>>, %arg5: memref<1x512xf32, #tpu.memory_space<vmem>>, %arg6: memref<512x128xbf16, #tpu.memory_space<vmem>>, %arg7: memref<1x128xf32, #tpu.memory_space<vmem>>, %arg8: memref<8x128xf32, #tpu.memory_space<vmem>>, %arg9: memref<392x64xbf16, #tpu.memory_space<vmem>>) attributes {dimension_semantics = [#tpu.dimension_semantics<arbitrary>], iteration_bounds = array<i64: 1>, scalar_prefetch = 0 : i64, scratch_operands = 1 : i64, tpu.core_type = #tpu.core_type<tc>, window_params = [{pipeline_mode = #tpu.pipeline_mode<synchronous>, transform_indices = @transform_0, window_bounds = array<i64: 392, 576>}, {pipeline_mode = #tpu.pipeline_mode<synchronous>, transform_indices = @transform_1, window_bounds = array<i64: 576, 64>}, {pipeline_mode = #tpu.pipeline_mode<synchronous>, transform_indices = @transform_2, window_bounds = array<i64: 1, 64>}, {pipeline_mode = #tpu.pipeline_mode<synchronous>, transform_indices = @transform_3, window_bounds = array<i64: 49, 64, 512>}, {pipeline_mode = #tpu.pipeline_mode<synchronous>, transform_indices = @transform_4, window_bounds = array<i64: 1, 512>}, {pipeline_mode = #tpu.pipeline_mode<synchronous>, transform_indices = @transform_5, window_bounds = array<i64: 512, 128>}, {pipeline_mode = #tpu.pipeline_mode<synchronous>, transform_indices = @transform_6, window_bounds = array<i64: 1, 128>}, {pipeline_mode = #tpu.pipeline_mode<synchronous>, transform_indices = @transform_7, window_bounds = array<i64: 8, 128>}]} {
    %c0 = arith.constant 0 : index
    %c0_0 = arith.constant 0 : index
    %0 = vector.load %arg1[%c0, %c0_0] : memref<392x576xbf16, #tpu.memory_space<vmem>>, vector<392x576xbf16>
    %c0_1 = arith.constant 0 : index
    %c0_2 = arith.constant 0 : index
    %1 = vector.load %arg2[%c0_1, %c0_2] : memref<576x64xbf16, #tpu.memory_space<vmem>>, vector<576x64xbf16>
    %cst = arith.constant dense<0.000000e+00> : vector<392x64xf32>
    %2 = tpu.matmul %0, %1, %cst {dimension_numbers = #tpu.dot_dimension_numbers<[1], [0], [0], [1], [0, 0, 1, 1], [], []>} : vector<392x576xbf16>, vector<576x64xbf16>, vector<392x64xf32> -> vector<392x64xf32>
    %c0_3 = arith.constant 0 : index
    %c0_4 = arith.constant 0 : index
    %3 = vector.load %arg3[%c0_3, %c0_4] : memref<1x64xf32, #tpu.memory_space<vmem>>, vector<1x64xf32>
    %4 = vector.broadcast %3 : vector<1x64xf32> to vector<392x64xf32>
    %5 = arith.addf %2, %4 : vector<392x64xf32>
    %cst_5 = arith.constant 0.000000e+00 : f32
    %6 = vector.broadcast %cst_5 : f32 to vector<392x64xf32>
    %7 = arith.maximumf %5, %6 : vector<392x64xf32>
    %8 = arith.truncf %7 : vector<392x64xf32> to vector<392x64xbf16>
    %c0_6 = arith.constant 0 : index
    %c0_7 = arith.constant 0 : index
    %9 = vector.load %arg9[%c0_6, %c0_7] : memref<392x64xbf16, #tpu.memory_space<vmem>>, vector<392x64xbf16>
    tpu.vector_store %arg9[%c0_6, %c0_7], %8 {strides = array<i32>} : memref<392x64xbf16, #tpu.memory_space<vmem>>, vector<392x64xbf16>,
    %cst_8 = arith.constant 0.000000e+00 : f32
    %10 = vector.broadcast %cst_8 : f32 to vector<8x512xf32>
    %c0_9 = arith.constant 0 : index
    %c0_10 = arith.constant 0 : index
    %11 = vector.load %arg9[%c0_9, %c0_10] : memref<392x64xbf16, #tpu.memory_space<vmem>>, vector<8x64xbf16>
    %c0_11 = arith.constant 0 : index
    %c0_12 = arith.constant 0 : index
    %c0_13 = arith.constant 0 : index
    %12 = vector.load %arg4[%c0_11, %c0_12, %c0_13] : memref<49x64x512xbf16, #tpu.memory_space<vmem>>, vector<1x64x512xbf16>
    %13 = vector.shape_cast %12 : vector<1x64x512xbf16> to vector<64x512xbf16>
    %cst_14 = arith.constant dense<0.000000e+00> : vector<8x512xf32>
    %14 = tpu.matmul %11, %13, %cst_14 {dimension_numbers = #tpu.dot_dimension_numbers<[1], [0], [0], [1], [0, 0, 1, 1], [], []>} : vector<8x64xbf16>, vector<64x512xbf16>, vector<8x512xf32> -> vector<8x512xf32>
    %15 = arith.addf %10, %14 : vector<8x512xf32>
    %c8 = arith.constant 8 : index
    %c0_15 = arith.constant 0 : index
    %16 = vector.load %arg9[%c8, %c0_15] : memref<392x64xbf16, #tpu.memory_space<vmem>>, vector<8x64xbf16>
    %c1 = arith.constant 1 : index
    %c0_16 = arith.constant 0 : index
    %c0_17 = arith.constant 0 : index
    %17 = vector.load %arg4[%c1, %c0_16, %c0_17] : memref<49x64x512xbf16, #tpu.memory_space<vmem>>, vector<1x64x512xbf16>
    %18 = vector.shape_cast %17 : vector<1x64x512xbf16> to vector<64x512xbf16>
    %cst_18 = arith.constant dense<0.000000e+00> : vector<8x512xf32>
    %19 = tpu.matmul %16, %18, %cst_18 {dimension_numbers = #tpu.dot_dimension_numbers<[1], [0], [0], [1], [0, 0, 1, 1], [], []>} : vector<8x64xbf16>, vector<64x512xbf16>, vector<8x512xf32> -> vector<8x512xf32>
    %20 = arith.addf %15, %19 : vector<8x512xf32>
    %c16 = arith.constant 16 : index
    %c0_19 = arith.constant 0 : index
    %21 = vector.load %arg9[%c16, %c0_19] : memref<392x64xbf16, #tpu.memory_space<vmem>>, vector<8x64xbf16>
    %c2 = arith.constant 2 : index
    %c0_20 = arith.constant 0 : index
    %c0_21 = arith.constant 0 : index
    %22 = vector.load %arg4[%c2, %c0_20, %c0_21] : memref<49x64x512xbf16, #tpu.memory_space<vmem>>, vector<1x64x512xbf16>
    %23 = vector.shape_cast %22 : vector<1x64x512xbf16> to vector<64x512xbf16>
    %cst_22 = arith.constant dense<0.000000e+00> : vector<8x512xf32>
    %24 = tpu.matmul %21, %23, %cst_22 {dimension_numbers = #tpu.dot_dimension_numbers<[1], [0], [0], [1], [0, 0, 1, 1], [], []>} : vector<8x64xbf16>, vector<64x512xbf16>, vector<8x512xf32> -> vector<8x512xf32>
    %25 = arith.addf %20, %24 : vector<8x512xf32>
    %c24 = arith.constant 24 : index
    %c0_23 = arith.constant 0 : index
    %26 = vector.load %arg9[%c24, %c0_23] : memref<392x64xbf16, #tpu.memory_space<vmem>>, vector<8x64xbf16>
    %c3 = arith.constant 3 : index
    %c0_24 = arith.constant 0 : index
    %c0_25 = arith.constant 0 : index
    %27 = vector.load %arg4[%c3, %c0_24, %c0_25] : memref<49x64x512xbf16, #tpu.memory_space<vmem>>, vector<1x64x512xbf16>
    %28 = vector.shape_cast %27 : vector<1x64x512xbf16> to vector<64x512xbf16>
    %cst_26 = arith.constant dense<0.000000e+00> : vector<8x512xf32>
    %29 = tpu.matmul %26, %28, %cst_26 {dimension_numbers = #tpu.dot_dimension_numbers<[1], [0], [0], [1], [0, 0, 1, 1], [], []>} : vector<8x64xbf16>, vector<64x512xbf16>, vector<8x512xf32> -> vector<8x512xf32>
    %30 = arith.addf %25, %29 : vector<8x512xf32>
    %c32 = arith.constant 32 : index
    %c0_27 = arith.constant 0 : index
    %31 = vector.load %arg9[%c32, %c0_27] : memref<392x64xbf16, #tpu.memory_space<vmem>>, vector<8x64xbf16>
    %c4 = arith.constant 4 : index
    %c0_28 = arith.constant 0 : index
    %c0_29 = arith.constant 0 : index
    %32 = vector.load %arg4[%c4, %c0_28, %c0_29] : memref<49x64x512xbf16, #tpu.memory_space<vmem>>, vector<1x64x512xbf16>
    %33 = vector.shape_cast %32 : vector<1x64x512xbf16> to vector<64x512xbf16>
    %cst_30 = arith.constant dense<0.000000e+00> : vector<8x512xf32>
    %34 = tpu.matmul %31, %33, %cst_30 {dimension_numbers = #tpu.dot_dimension_numbers<[1], [0], [0], [1], [0, 0, 1, 1], [], []>} : vector<8x64xbf16>, vector<64x512xbf16>, vector<8x512xf32> -> vector<8x512xf32>
    %35 = arith.addf %30, %34 : vector<8x512xf32>
    %c40 = arith.constant 40 : index
    %c0_31 = arith.constant 0 : index
    %36 = vector.load %arg9[%c40, %c0_31] : memref<392x64xbf16, #tpu.memory_space<vmem>>, vector<8x64xbf16>
    %c5 = arith.constant 5 : index
    %c0_32 = arith.constant 0 : index
    %c0_33 = arith.constant 0 : index
    %37 = vector.load %arg4[%c5, %c0_32, %c0_33] : memref<49x64x512xbf16, #tpu.memory_space<vmem>>, vector<1x64x512xbf16>
    %38 = vector.shape_cast %37 : vector<1x64x512xbf16> to vector<64x512xbf16>
    %cst_34 = arith.constant dense<0.000000e+00> : vector<8x512xf32>
    %39 = tpu.matmul %36, %38, %cst_34 {dimension_numbers = #tpu.dot_dimension_numbers<[1], [0], [0], [1], [0, 0, 1, 1], [], []>} : vector<8x64xbf16>, vector<64x512xbf16>, vector<8x512xf32> -> vector<8x512xf32>
    %40 = arith.addf %35, %39 : vector<8x512xf32>
    %c48 = arith.constant 48 : index
    %c0_35 = arith.constant 0 : index
    %41 = vector.load %arg9[%c48, %c0_35] : memref<392x64xbf16, #tpu.memory_space<vmem>>, vector<8x64xbf16>
    %c6 = arith.constant 6 : index
    %c0_36 = arith.constant 0 : index
    %c0_37 = arith.constant 0 : index
    %42 = vector.load %arg4[%c6, %c0_36, %c0_37] : memref<49x64x512xbf16, #tpu.memory_space<vmem>>, vector<1x64x512xbf16>
    %43 = vector.shape_cast %42 : vector<1x64x512xbf16> to vector<64x512xbf16>
    %cst_38 = arith.constant dense<0.000000e+00> : vector<8x512xf32>
    %44 = tpu.matmul %41, %43, %cst_38 {dimension_numbers = #tpu.dot_dimension_numbers<[1], [0], [0], [1], [0, 0, 1, 1], [], []>} : vector<8x64xbf16>, vector<64x512xbf16>, vector<8x512xf32> -> vector<8x512xf32>
    %45 = arith.addf %40, %44 : vector<8x512xf32>
    %c56 = arith.constant 56 : index
    %c0_39 = arith.constant 0 : index
    %46 = vector.load %arg9[%c56, %c0_39] : memref<392x64xbf16, #tpu.memory_space<vmem>>, vector<8x64xbf16>
    %c7 = arith.constant 7 : index
    %c0_40 = arith.constant 0 : index
    %c0_41 = arith.constant 0 : index
    %47 = vector.load %arg4[%c7, %c0_40, %c0_41] : memref<49x64x512xbf16, #tpu.memory_space<vmem>>, vector<1x64x512xbf16>
    %48 = vector.shape_cast %47 : vector<1x64x512xbf16> to vector<64x512xbf16>
    %cst_42 = arith.constant dense<0.000000e+00> : vector<8x512xf32>
    %49 = tpu.matmul %46, %48, %cst_42 {dimension_numbers = #tpu.dot_dimension_numbers<[1], [0], [0], [1], [0, 0, 1, 1], [], []>} : vector<8x64xbf16>, vector<64x512xbf16>, vector<8x512xf32> -> vector<8x512xf32>
    %50 = arith.addf %45, %49 : vector<8x512xf32>
    %c64 = arith.constant 64 : index
    %c0_43 = arith.constant 0 : index
    %51 = vector.load %arg9[%c64, %c0_43] : memref<392x64xbf16, #tpu.memory_space<vmem>>, vector<8x64xbf16>
    %c8_44 = arith.constant 8 : index
    %c0_45 = arith.constant 0 : index
    %c0_46 = arith.constant 0 : index
    %52 = vector.load %arg4[%c8_44, %c0_45, %c0_46] : memref<49x64x512xbf16, #tpu.memory_space<vmem>>, vector<1x64x512xbf16>
    %53 = vector.shape_cast %52 : vector<1x64x512xbf16> to vector<64x512xbf16>
    %cst_47 = arith.constant dense<0.000000e+00> : vector<8x512xf32>
    %54 = tpu.matmul %51, %53, %cst_47 {dimension_numbers = #tpu.dot_dimension_numbers<[1], [0], [0], [1], [0, 0, 1, 1], [], []>} : vector<8x64xbf16>, vector<64x512xbf16>, vector<8x512xf32> -> vector<8x512xf32>
    %55 = arith.addf %50, %54 : vector<8x512xf32>
    %c72 = arith.constant 72 : index
    %c0_48 = arith.constant 0 : index
    %56 = vector.load %arg9[%c72, %c0_48] : memref<392x64xbf16, #tpu.memory_space<vmem>>, vector<8x64xbf16>
    %c9 = arith.constant 9 : index
    %c0_49 = arith.constant 0 : index
    %c0_50 = arith.constant 0 : index
    %57 = vector.load %arg4[%c9, %c0_49, %c0_50] : memref<49x64x512xbf16, #tpu.memory_space<vmem>>, vector<1x64x512xbf16>
    %58 = vector.shape_cast %57 : vector<1x64x512xbf16> to vector<64x512xbf16>
    %cst_51 = arith.constant dense<0.000000e+00> : vector<8x512xf32>
    %59 = tpu.matmul %56, %58, %cst_51 {dimension_numbers = #tpu.dot_dimension_numbers<[1], [0], [0], [1], [0, 0, 1, 1], [], []>} : vector<8x64xbf16>, vector<64x512xbf16>, vector<8x512xf32> -> vector<8x512xf32>
    %60 = arith.addf %55, %59 : vector<8x512xf32>
    %c80 = arith.constant 80 : index
    %c0_52 = arith.constant 0 : index
    %61 = vector.load %arg9[%c80, %c0_52] : memref<392x64xbf16, #tpu.memory_space<vmem>>, vector<8x64xbf16>
    %c10 = arith.constant 10 : index
    %c0_53 = arith.constant 0 : index
    %c0_54 = arith.constant 0 : index
    %62 = vector.load %arg4[%c10, %c0_53, %c0_54] : memref<49x64x512xbf16, #tpu.memory_space<vmem>>, vector<1x64x512xbf16>
    %63 = vector.shape_cast %62 : vector<1x64x512xbf16> to vector<64x512xbf16>
    %cst_55 = arith.constant dense<0.000000e+00> : vector<8x512xf32>
    %64 = tpu.matmul %61, %63, %cst_55 {dimension_numbers = #tpu.dot_dimension_numbers<[1], [0], [0], [1], [0, 0, 1, 1], [], []>} : vector<8x64xbf16>, vector<64x512xbf16>, vector<8x512xf32> -> vector<8x512xf32>
    %65 = arith.addf %60, %64 : vector<8x512xf32>
    %c88 = arith.constant 88 : index
    %c0_56 = arith.constant 0 : index
    %66 = vector.load %arg9[%c88, %c0_56] : memref<392x64xbf16, #tpu.memory_space<vmem>>, vector<8x64xbf16>
    %c11 = arith.constant 11 : index
    %c0_57 = arith.constant 0 : index
    %c0_58 = arith.constant 0 : index
    %67 = vector.load %arg4[%c11, %c0_57, %c0_58] : memref<49x64x512xbf16, #tpu.memory_space<vmem>>, vector<1x64x512xbf16>
    %68 = vector.shape_cast %67 : vector<1x64x512xbf16> to vector<64x512xbf16>
    %cst_59 = arith.constant dense<0.000000e+00> : vector<8x512xf32>
    %69 = tpu.matmul %66, %68, %cst_59 {dimension_numbers = #tpu.dot_dimension_numbers<[1], [0], [0], [1], [0, 0, 1, 1], [], []>} : vector<8x64xbf16>, vector<64x512xbf16>, vector<8x512xf32> -> vector<8x512xf32>
    %70 = arith.addf %65, %69 : vector<8x512xf32>
    %c96 = arith.constant 96 : index
    %c0_60 = arith.constant 0 : index
    %71 = vector.load %arg9[%c96, %c0_60] : memref<392x64xbf16, #tpu.memory_space<vmem>>, vector<8x64xbf16>
    %c12 = arith.constant 12 : index
    %c0_61 = arith.constant 0 : index
    %c0_62 = arith.constant 0 : index
    %72 = vector.load %arg4[%c12, %c0_61, %c0_62] : memref<49x64x512xbf16, #tpu.memory_space<vmem>>, vector<1x64x512xbf16>
    %73 = vector.shape_cast %72 : vector<1x64x512xbf16> to vector<64x512xbf16>
    %cst_63 = arith.constant dense<0.000000e+00> : vector<8x512xf32>
    %74 = tpu.matmul %71, %73, %cst_63 {dimension_numbers = #tpu.dot_dimension_numbers<[1], [0], [0], [1], [0, 0, 1, 1], [], []>} : vector<8x64xbf16>, vector<64x512xbf16>, vector<8x512xf32> -> vector<8x512xf32>
    %75 = arith.addf %70, %74 : vector<8x512xf32>
    %c104 = arith.constant 104 : index
    %c0_64 = arith.constant 0 : index
    %76 = vector.load %arg9[%c104, %c0_64] : memref<392x64xbf16, #tpu.memory_space<vmem>>, vector<8x64xbf16>
    %c13 = arith.constant 13 : index
    %c0_65 = arith.constant 0 : index
    %c0_66 = arith.constant 0 : index
    %77 = vector.load %arg4[%c13, %c0_65, %c0_66] : memref<49x64x512xbf16, #tpu.memory_space<vmem>>, vector<1x64x512xbf16>
    %78 = vector.shape_cast %77 : vector<1x64x512xbf16> to vector<64x512xbf16>
    %cst_67 = arith.constant dense<0.000000e+00> : vector<8x512xf32>
    %79 = tpu.matmul %76, %78, %cst_67 {dimension_numbers = #tpu.dot_dimension_numbers<[1], [0], [0], [1], [0, 0, 1, 1], [], []>} : vector<8x64xbf16>, vector<64x512xbf16>, vector<8x512xf32> -> vector<8x512xf32>
    %80 = arith.addf %75, %79 : vector<8x512xf32>
    %c112 = arith.constant 112 : index
    %c0_68 = arith.constant 0 : index
    %81 = vector.load %arg9[%c112, %c0_68] : memref<392x64xbf16, #tpu.memory_space<vmem>>, vector<8x64xbf16>
    %c14 = arith.constant 14 : index
    %c0_69 = arith.constant 0 : index
    %c0_70 = arith.constant 0 : index
    %82 = vector.load %arg4[%c14, %c0_69, %c0_70] : memref<49x64x512xbf16, #tpu.memory_space<vmem>>, vector<1x64x512xbf16>
    %83 = vector.shape_cast %82 : vector<1x64x512xbf16> to vector<64x512xbf16>
    %cst_71 = arith.constant dense<0.000000e+00> : vector<8x512xf32>
    %84 = tpu.matmul %81, %83, %cst_71 {dimension_numbers = #tpu.dot_dimension_numbers<[1], [0], [0], [1], [0, 0, 1, 1], [], []>} : vector<8x64xbf16>, vector<64x512xbf16>, vector<8x512xf32> -> vector<8x512xf32>
    %85 = arith.addf %80, %84 : vector<8x512xf32>
    %c120 = arith.constant 120 : index
    %c0_72 = arith.constant 0 : index
    %86 = vector.load %arg9[%c120, %c0_72] : memref<392x64xbf16, #tpu.memory_space<vmem>>, vector<8x64xbf16>
    %c15 = arith.constant 15 : index
    %c0_73 = arith.constant 0 : index
    %c0_74 = arith.constant 0 : index
    %87 = vector.load %arg4[%c15, %c0_73, %c0_74] : memref<49x64x512xbf16, #tpu.memory_space<vmem>>, vector<1x64x512xbf16>
    %88 = vector.shape_cast %87 : vector<1x64x512xbf16> to vector<64x512xbf16>
    %cst_75 = arith.constant dense<0.000000e+00> : vector<8x512xf32>
    %89 = tpu.matmul %86, %88, %cst_75 {dimension_numbers = #tpu.dot_dimension_numbers<[1], [0], [0], [1], [0, 0, 1, 1], [], []>} : vector<8x64xbf16>, vector<64x512xbf16>, vector<8x512xf32> -> vector<8x512xf32>
    %90 = arith.addf %85, %89 : vector<8x512xf32>
    %c128 = arith.constant 128 : index
    %c0_76 = arith.constant 0 : index
    %91 = vector.load %arg9[%c128, %c0_76] : memref<392x64xbf16, #tpu.memory_space<vmem>>, vector<8x64xbf16>
    %c16_77 = arith.constant 16 : index
    %c0_78 = arith.constant 0 : index
    %c0_79 = arith.constant 0 : index
    %92 = vector.load %arg4[%c16_77, %c0_78, %c0_79] : memref<49x64x512xbf16, #tpu.memory_space<vmem>>, vector<1x64x512xbf16>
    %93 = vector.shape_cast %92 : vector<1x64x512xbf16> to vector<64x512xbf16>
    %cst_80 = arith.constant dense<0.000000e+00> : vector<8x512xf32>
    %94 = tpu.matmul %91, %93, %cst_80 {dimension_numbers = #tpu.dot_dimension_numbers<[1], [0], [0], [1], [0, 0, 1, 1], [], []>} : vector<8x64xbf16>, vector<64x512xbf16>, vector<8x512xf32> -> vector<8x512xf32>
    %95 = arith.addf %90, %94 : vector<8x512xf32>
    %c136 = arith.constant 136 : index
    %c0_81 = arith.constant 0 : index
    %96 = vector.load %arg9[%c136, %c0_81] : memref<392x64xbf16, #tpu.memory_space<vmem>>, vector<8x64xbf16>
    %c17 = arith.constant 17 : index
    %c0_82 = arith.constant 0 : index
    %c0_83 = arith.constant 0 : index
    %97 = vector.load %arg4[%c17, %c0_82, %c0_83] : memref<49x64x512xbf16, #tpu.memory_space<vmem>>, vector<1x64x512xbf16>
    %98 = vector.shape_cast %97 : vector<1x64x512xbf16> to vector<64x512xbf16>
    %cst_84 = arith.constant dense<0.000000e+00> : vector<8x512xf32>
    %99 = tpu.matmul %96, %98, %cst_84 {dimension_numbers = #tpu.dot_dimension_numbers<[1], [0], [0], [1], [0, 0, 1, 1], [], []>} : vector<8x64xbf16>, vector<64x512xbf16>, vector<8x512xf32> -> vector<8x512xf32>
    %100 = arith.addf %95, %99 : vector<8x512xf32>
    %c144 = arith.constant 144 : index
    %c0_85 = arith.constant 0 : index
    %101 = vector.load %arg9[%c144, %c0_85] : memref<392x64xbf16, #tpu.memory_space<vmem>>, vector<8x64xbf16>
    %c18 = arith.constant 18 : index
    %c0_86 = arith.constant 0 : index
    %c0_87 = arith.constant 0 : index
    %102 = vector.load %arg4[%c18, %c0_86, %c0_87] : memref<49x64x512xbf16, #tpu.memory_space<vmem>>, vector<1x64x512xbf16>
    %103 = vector.shape_cast %102 : vector<1x64x512xbf16> to vector<64x512xbf16>
    %cst_88 = arith.constant dense<0.000000e+00> : vector<8x512xf32>
    %104 = tpu.matmul %101, %103, %cst_88 {dimension_numbers = #tpu.dot_dimension_numbers<[1], [0], [0], [1], [0, 0, 1, 1], [], []>} : vector<8x64xbf16>, vector<64x512xbf16>, vector<8x512xf32> -> vector<8x512xf32>
    %105 = arith.addf %100, %104 : vector<8x512xf32>
    %c152 = arith.constant 152 : index
    %c0_89 = arith.constant 0 : index
    %106 = vector.load %arg9[%c152, %c0_89] : memref<392x64xbf16, #tpu.memory_space<vmem>>, vector<8x64xbf16>
    %c19 = arith.constant 19 : index
    %c0_90 = arith.constant 0 : index
    %c0_91 = arith.constant 0 : index
    %107 = vector.load %arg4[%c19, %c0_90, %c0_91] : memref<49x64x512xbf16, #tpu.memory_space<vmem>>, vector<1x64x512xbf16>
    %108 = vector.shape_cast %107 : vector<1x64x512xbf16> to vector<64x512xbf16>
    %cst_92 = arith.constant dense<0.000000e+00> : vector<8x512xf32>
    %109 = tpu.matmul %106, %108, %cst_92 {dimension_numbers = #tpu.dot_dimension_numbers<[1], [0], [0], [1], [0, 0, 1, 1], [], []>} : vector<8x64xbf16>, vector<64x512xbf16>, vector<8x512xf32> -> vector<8x512xf32>
    %110 = arith.addf %105, %109 : vector<8x512xf32>
    %c160 = arith.constant 160 : index
    %c0_93 = arith.constant 0 : index
    %111 = vector.load %arg9[%c160, %c0_93] : memref<392x64xbf16, #tpu.memory_space<vmem>>, vector<8x64xbf16>
    %c20 = arith.constant 20 : index
    %c0_94 = arith.constant 0 : index
    %c0_95 = arith.constant 0 : index
    %112 = vector.load %arg4[%c20, %c0_94, %c0_95] : memref<49x64x512xbf16, #tpu.memory_space<vmem>>, vector<1x64x512xbf16>
    %113 = vector.shape_cast %112 : vector<1x64x512xbf16> to vector<64x512xbf16>
    %cst_96 = arith.constant dense<0.000000e+00> : vector<8x512xf32>
    %114 = tpu.matmul %111, %113, %cst_96 {dimension_numbers = #tpu.dot_dimension_numbers<[1], [0], [0], [1], [0, 0, 1, 1], [], []>} : vector<8x64xbf16>, vector<64x512xbf16>, vector<8x512xf32> -> vector<8x512xf32>
    %115 = arith.addf %110, %114 : vector<8x512xf32>
    %c168 = arith.constant 168 : index
    %c0_97 = arith.constant 0 : index
    %116 = vector.load %arg9[%c168, %c0_97] : memref<392x64xbf16, #tpu.memory_space<vmem>>, vector<8x64xbf16>
    %c21 = arith.constant 21 : index
    %c0_98 = arith.constant 0 : index
    %c0_99 = arith.constant 0 : index
    %117 = vector.load %arg4[%c21, %c0_98, %c0_99] : memref<49x64x512xbf16, #tpu.memory_space<vmem>>, vector<1x64x512xbf16>
    %118 = vector.shape_cast %117 : vector<1x64x512xbf16> to vector<64x512xbf16>
    %cst_100 = arith.constant dense<0.000000e+00> : vector<8x512xf32>
    %119 = tpu.matmul %116, %118, %cst_100 {dimension_numbers = #tpu.dot_dimension_numbers<[1], [0], [0], [1], [0, 0, 1, 1], [], []>} : vector<8x64xbf16>, vector<64x512xbf16>, vector<8x512xf32> -> vector<8x512xf32>
    %120 = arith.addf %115, %119 : vector<8x512xf32>
    %c176 = arith.constant 176 : index
    %c0_101 = arith.constant 0 : index
    %121 = vector.load %arg9[%c176, %c0_101] : memref<392x64xbf16, #tpu.memory_space<vmem>>, vector<8x64xbf16>
    %c22 = arith.constant 22 : index
    %c0_102 = arith.constant 0 : index
    %c0_103 = arith.constant 0 : index
    %122 = vector.load %arg4[%c22, %c0_102, %c0_103] : memref<49x64x512xbf16, #tpu.memory_space<vmem>>, vector<1x64x512xbf16>
    %123 = vector.shape_cast %122 : vector<1x64x512xbf16> to vector<64x512xbf16>
    %cst_104 = arith.constant dense<0.000000e+00> : vector<8x512xf32>
    %124 = tpu.matmul %121, %123, %cst_104 {dimension_numbers = #tpu.dot_dimension_numbers<[1], [0], [0], [1], [0, 0, 1, 1], [], []>} : vector<8x64xbf16>, vector<64x512xbf16>, vector<8x512xf32> -> vector<8x512xf32>
    %125 = arith.addf %120, %124 : vector<8x512xf32>
    %c184 = arith.constant 184 : index
    %c0_105 = arith.constant 0 : index
    %126 = vector.load %arg9[%c184, %c0_105] : memref<392x64xbf16, #tpu.memory_space<vmem>>, vector<8x64xbf16>
    %c23 = arith.constant 23 : index
    %c0_106 = arith.constant 0 : index
    %c0_107 = arith.constant 0 : index
    %127 = vector.load %arg4[%c23, %c0_106, %c0_107] : memref<49x64x512xbf16, #tpu.memory_space<vmem>>, vector<1x64x512xbf16>
    %128 = vector.shape_cast %127 : vector<1x64x512xbf16> to vector<64x512xbf16>
    %cst_108 = arith.constant dense<0.000000e+00> : vector<8x512xf32>
    %129 = tpu.matmul %126, %128, %cst_108 {dimension_numbers = #tpu.dot_dimension_numbers<[1], [0], [0], [1], [0, 0, 1, 1], [], []>} : vector<8x64xbf16>, vector<64x512xbf16>, vector<8x512xf32> -> vector<8x512xf32>
    %130 = arith.addf %125, %129 : vector<8x512xf32>
    %c192 = arith.constant 192 : index
    %c0_109 = arith.constant 0 : index
    %131 = vector.load %arg9[%c192, %c0_109] : memref<392x64xbf16, #tpu.memory_space<vmem>>, vector<8x64xbf16>
    %c24_110 = arith.constant 24 : index
    %c0_111 = arith.constant 0 : index
    %c0_112 = arith.constant 0 : index
    %132 = vector.load %arg4[%c24_110, %c0_111, %c0_112] : memref<49x64x512xbf16, #tpu.memory_space<vmem>>, vector<1x64x512xbf16>
    %133 = vector.shape_cast %132 : vector<1x64x512xbf16> to vector<64x512xbf16>
    %cst_113 = arith.constant dense<0.000000e+00> : vector<8x512xf32>
    %134 = tpu.matmul %131, %133, %cst_113 {dimension_numbers = #tpu.dot_dimension_numbers<[1], [0], [0], [1], [0, 0, 1, 1], [], []>} : vector<8x64xbf16>, vector<64x512xbf16>, vector<8x512xf32> -> vector<8x512xf32>
    %135 = arith.addf %130, %134 : vector<8x512xf32>
    %c200 = arith.constant 200 : index
    %c0_114 = arith.constant 0 : index
    %136 = vector.load %arg9[%c200, %c0_114] : memref<392x64xbf16, #tpu.memory_space<vmem>>, vector<8x64xbf16>
    %c25 = arith.constant 25 : index
    %c0_115 = arith.constant 0 : index
    %c0_116 = arith.constant 0 : index
    %137 = vector.load %arg4[%c25, %c0_115, %c0_116] : memref<49x64x512xbf16, #tpu.memory_space<vmem>>, vector<1x64x512xbf16>
    %138 = vector.shape_cast %137 : vector<1x64x512xbf16> to vector<64x512xbf16>
    %cst_117 = arith.constant dense<0.000000e+00> : vector<8x512xf32>
    %139 = tpu.matmul %136, %138, %cst_117 {dimension_numbers = #tpu.dot_dimension_numbers<[1], [0], [0], [1], [0, 0, 1, 1], [], []>} : vector<8x64xbf16>, vector<64x512xbf16>, vector<8x512xf32> -> vector<8x512xf32>
    %140 = arith.addf %135, %139 : vector<8x512xf32>
    %c208 = arith.constant 208 : index
    %c0_118 = arith.constant 0 : index
    %141 = vector.load %arg9[%c208, %c0_118] : memref<392x64xbf16, #tpu.memory_space<vmem>>, vector<8x64xbf16>
    %c26 = arith.constant 26 : index
    %c0_119 = arith.constant 0 : index
    %c0_120 = arith.constant 0 : index
    %142 = vector.load %arg4[%c26, %c0_119, %c0_120] : memref<49x64x512xbf16, #tpu.memory_space<vmem>>, vector<1x64x512xbf16>
    %143 = vector.shape_cast %142 : vector<1x64x512xbf16> to vector<64x512xbf16>
    %cst_121 = arith.constant dense<0.000000e+00> : vector<8x512xf32>
    %144 = tpu.matmul %141, %143, %cst_121 {dimension_numbers = #tpu.dot_dimension_numbers<[1], [0], [0], [1], [0, 0, 1, 1], [], []>} : vector<8x64xbf16>, vector<64x512xbf16>, vector<8x512xf32> -> vector<8x512xf32>
    %145 = arith.addf %140, %144 : vector<8x512xf32>
    %c216 = arith.constant 216 : index
    %c0_122 = arith.constant 0 : index
    %146 = vector.load %arg9[%c216, %c0_122] : memref<392x64xbf16, #tpu.memory_space<vmem>>, vector<8x64xbf16>
    %c27 = arith.constant 27 : index
    %c0_123 = arith.constant 0 : index
    %c0_124 = arith.constant 0 : index
    %147 = vector.load %arg4[%c27, %c0_123, %c0_124] : memref<49x64x512xbf16, #tpu.memory_space<vmem>>, vector<1x64x512xbf16>
    %148 = vector.shape_cast %147 : vector<1x64x512xbf16> to vector<64x512xbf16>
    %cst_125 = arith.constant dense<0.000000e+00> : vector<8x512xf32>
    %149 = tpu.matmul %146, %148, %cst_125 {dimension_numbers = #tpu.dot_dimension_numbers<[1], [0], [0], [1], [0, 0, 1, 1], [], []>} : vector<8x64xbf16>, vector<64x512xbf16>, vector<8x512xf32> -> vector<8x512xf32>
    %150 = arith.addf %145, %149 : vector<8x512xf32>
    %c224 = arith.constant 224 : index
    %c0_126 = arith.constant 0 : index
    %151 = vector.load %arg9[%c224, %c0_126] : memref<392x64xbf16, #tpu.memory_space<vmem>>, vector<8x64xbf16>
    %c28 = arith.constant 28 : index
    %c0_127 = arith.constant 0 : index
    %c0_128 = arith.constant 0 : index
    %152 = vector.load %arg4[%c28, %c0_127, %c0_128] : memref<49x64x512xbf16, #tpu.memory_space<vmem>>, vector<1x64x512xbf16>
    %153 = vector.shape_cast %152 : vector<1x64x512xbf16> to vector<64x512xbf16>
    %cst_129 = arith.constant dense<0.000000e+00> : vector<8x512xf32>
    %154 = tpu.matmul %151, %153, %cst_129 {dimension_numbers = #tpu.dot_dimension_numbers<[1], [0], [0], [1], [0, 0, 1, 1], [], []>} : vector<8x64xbf16>, vector<64x512xbf16>, vector<8x512xf32> -> vector<8x512xf32>
    %155 = arith.addf %150, %154 : vector<8x512xf32>
    %c232 = arith.constant 232 : index
    %c0_130 = arith.constant 0 : index
    %156 = vector.load %arg9[%c232, %c0_130] : memref<392x64xbf16, #tpu.memory_space<vmem>>, vector<8x64xbf16>
    %c29 = arith.constant 29 : index
    %c0_131 = arith.constant 0 : index
    %c0_132 = arith.constant 0 : index
    %157 = vector.load %arg4[%c29, %c0_131, %c0_132] : memref<49x64x512xbf16, #tpu.memory_space<vmem>>, vector<1x64x512xbf16>
    %158 = vector.shape_cast %157 : vector<1x64x512xbf16> to vector<64x512xbf16>
    %cst_133 = arith.constant dense<0.000000e+00> : vector<8x512xf32>
    %159 = tpu.matmul %156, %158, %cst_133 {dimension_numbers = #tpu.dot_dimension_numbers<[1], [0], [0], [1], [0, 0, 1, 1], [], []>} : vector<8x64xbf16>, vector<64x512xbf16>, vector<8x512xf32> -> vector<8x512xf32>
    %160 = arith.addf %155, %159 : vector<8x512xf32>
    %c240 = arith.constant 240 : index
    %c0_134 = arith.constant 0 : index
    %161 = vector.load %arg9[%c240, %c0_134] : memref<392x64xbf16, #tpu.memory_space<vmem>>, vector<8x64xbf16>
    %c30 = arith.constant 30 : index
    %c0_135 = arith.constant 0 : index
    %c0_136 = arith.constant 0 : index
    %162 = vector.load %arg4[%c30, %c0_135, %c0_136] : memref<49x64x512xbf16, #tpu.memory_space<vmem>>, vector<1x64x512xbf16>
    %163 = vector.shape_cast %162 : vector<1x64x512xbf16> to vector<64x512xbf16>
    %cst_137 = arith.constant dense<0.000000e+00> : vector<8x512xf32>
    %164 = tpu.matmul %161, %163, %cst_137 {dimension_numbers = #tpu.dot_dimension_numbers<[1], [0], [0], [1], [0, 0, 1, 1], [], []>} : vector<8x64xbf16>, vector<64x512xbf16>, vector<8x512xf32> -> vector<8x512xf32>
    %165 = arith.addf %160, %164 : vector<8x512xf32>
    %c248 = arith.constant 248 : index
    %c0_138 = arith.constant 0 : index
    %166 = vector.load %arg9[%c248, %c0_138] : memref<392x64xbf16, #tpu.memory_space<vmem>>, vector<8x64xbf16>
    %c31 = arith.constant 31 : index
    %c0_139 = arith.constant 0 : index
    %c0_140 = arith.constant 0 : index
    %167 = vector.load %arg4[%c31, %c0_139, %c0_140] : memref<49x64x512xbf16, #tpu.memory_space<vmem>>, vector<1x64x512xbf16>
    %168 = vector.shape_cast %167 : vector<1x64x512xbf16> to vector<64x512xbf16>
    %cst_141 = arith.constant dense<0.000000e+00> : vector<8x512xf32>
    %169 = tpu.matmul %166, %168, %cst_141 {dimension_numbers = #tpu.dot_dimension_numbers<[1], [0], [0], [1], [0, 0, 1, 1], [], []>} : vector<8x64xbf16>, vector<64x512xbf16>, vector<8x512xf32> -> vector<8x512xf32>
    %170 = arith.addf %165, %169 : vector<8x512xf32>
    %c256 = arith.constant 256 : index
    %c0_142 = arith.constant 0 : index
    %171 = vector.load %arg9[%c256, %c0_142] : memref<392x64xbf16, #tpu.memory_space<vmem>>, vector<8x64xbf16>
    %c32_143 = arith.constant 32 : index
    %c0_144 = arith.constant 0 : index
    %c0_145 = arith.constant 0 : index
    %172 = vector.load %arg4[%c32_143, %c0_144, %c0_145] : memref<49x64x512xbf16, #tpu.memory_space<vmem>>, vector<1x64x512xbf16>
    %173 = vector.shape_cast %172 : vector<1x64x512xbf16> to vector<64x512xbf16>
    %cst_146 = arith.constant dense<0.000000e+00> : vector<8x512xf32>
    %174 = tpu.matmul %171, %173, %cst_146 {dimension_numbers = #tpu.dot_dimension_numbers<[1], [0], [0], [1], [0, 0, 1, 1], [], []>} : vector<8x64xbf16>, vector<64x512xbf16>, vector<8x512xf32> -> vector<8x512xf32>
    %175 = arith.addf %170, %174 : vector<8x512xf32>
    %c264 = arith.constant 264 : index
    %c0_147 = arith.constant 0 : index
    %176 = vector.load %arg9[%c264, %c0_147] : memref<392x64xbf16, #tpu.memory_space<vmem>>, vector<8x64xbf16>
    %c33 = arith.constant 33 : index
    %c0_148 = arith.constant 0 : index
    %c0_149 = arith.constant 0 : index
    %177 = vector.load %arg4[%c33, %c0_148, %c0_149] : memref<49x64x512xbf16, #tpu.memory_space<vmem>>, vector<1x64x512xbf16>
    %178 = vector.shape_cast %177 : vector<1x64x512xbf16> to vector<64x512xbf16>
    %cst_150 = arith.constant dense<0.000000e+00> : vector<8x512xf32>
    %179 = tpu.matmul %176, %178, %cst_150 {dimension_numbers = #tpu.dot_dimension_numbers<[1], [0], [0], [1], [0, 0, 1, 1], [], []>} : vector<8x64xbf16>, vector<64x512xbf16>, vector<8x512xf32> -> vector<8x512xf32>
    %180 = arith.addf %175, %179 : vector<8x512xf32>
    %c272 = arith.constant 272 : index
    %c0_151 = arith.constant 0 : index
    %181 = vector.load %arg9[%c272, %c0_151] : memref<392x64xbf16, #tpu.memory_space<vmem>>, vector<8x64xbf16>
    %c34 = arith.constant 34 : index
    %c0_152 = arith.constant 0 : index
    %c0_153 = arith.constant 0 : index
    %182 = vector.load %arg4[%c34, %c0_152, %c0_153] : memref<49x64x512xbf16, #tpu.memory_space<vmem>>, vector<1x64x512xbf16>
    %183 = vector.shape_cast %182 : vector<1x64x512xbf16> to vector<64x512xbf16>
    %cst_154 = arith.constant dense<0.000000e+00> : vector<8x512xf32>
    %184 = tpu.matmul %181, %183, %cst_154 {dimension_numbers = #tpu.dot_dimension_numbers<[1], [0], [0], [1], [0, 0, 1, 1], [], []>} : vector<8x64xbf16>, vector<64x512xbf16>, vector<8x512xf32> -> vector<8x512xf32>
    %185 = arith.addf %180, %184 : vector<8x512xf32>
    %c280 = arith.constant 280 : index
    %c0_155 = arith.constant 0 : index
    %186 = vector.load %arg9[%c280, %c0_155] : memref<392x64xbf16, #tpu.memory_space<vmem>>, vector<8x64xbf16>
    %c35 = arith.constant 35 : index
    %c0_156 = arith.constant 0 : index
    %c0_157 = arith.constant 0 : index
    %187 = vector.load %arg4[%c35, %c0_156, %c0_157] : memref<49x64x512xbf16, #tpu.memory_space<vmem>>, vector<1x64x512xbf16>
    %188 = vector.shape_cast %187 : vector<1x64x512xbf16> to vector<64x512xbf16>
    %cst_158 = arith.constant dense<0.000000e+00> : vector<8x512xf32>
    %189 = tpu.matmul %186, %188, %cst_158 {dimension_numbers = #tpu.dot_dimension_numbers<[1], [0], [0], [1], [0, 0, 1, 1], [], []>} : vector<8x64xbf16>, vector<64x512xbf16>, vector<8x512xf32> -> vector<8x512xf32>
    %190 = arith.addf %185, %189 : vector<8x512xf32>
    %c288 = arith.constant 288 : index
    %c0_159 = arith.constant 0 : index
    %191 = vector.load %arg9[%c288, %c0_159] : memref<392x64xbf16, #tpu.memory_space<vmem>>, vector<8x64xbf16>
    %c36 = arith.constant 36 : index
    %c0_160 = arith.constant 0 : index
    %c0_161 = arith.constant 0 : index
    %192 = vector.load %arg4[%c36, %c0_160, %c0_161] : memref<49x64x512xbf16, #tpu.memory_space<vmem>>, vector<1x64x512xbf16>
    %193 = vector.shape_cast %192 : vector<1x64x512xbf16> to vector<64x512xbf16>
    %cst_162 = arith.constant dense<0.000000e+00> : vector<8x512xf32>
    %194 = tpu.matmul %191, %193, %cst_162 {dimension_numbers = #tpu.dot_dimension_numbers<[1], [0], [0], [1], [0, 0, 1, 1], [], []>} : vector<8x64xbf16>, vector<64x512xbf16>, vector<8x512xf32> -> vector<8x512xf32>
    %195 = arith.addf %190, %194 : vector<8x512xf32>
    %c296 = arith.constant 296 : index
    %c0_163 = arith.constant 0 : index
    %196 = vector.load %arg9[%c296, %c0_163] : memref<392x64xbf16, #tpu.memory_space<vmem>>, vector<8x64xbf16>
    %c37 = arith.constant 37 : index
    %c0_164 = arith.constant 0 : index
    %c0_165 = arith.constant 0 : index
    %197 = vector.load %arg4[%c37, %c0_164, %c0_165] : memref<49x64x512xbf16, #tpu.memory_space<vmem>>, vector<1x64x512xbf16>
    %198 = vector.shape_cast %197 : vector<1x64x512xbf16> to vector<64x512xbf16>
    %cst_166 = arith.constant dense<0.000000e+00> : vector<8x512xf32>
    %199 = tpu.matmul %196, %198, %cst_166 {dimension_numbers = #tpu.dot_dimension_numbers<[1], [0], [0], [1], [0, 0, 1, 1], [], []>} : vector<8x64xbf16>, vector<64x512xbf16>, vector<8x512xf32> -> vector<8x512xf32>
    %200 = arith.addf %195, %199 : vector<8x512xf32>
    %c304 = arith.constant 304 : index
    %c0_167 = arith.constant 0 : index
    %201 = vector.load %arg9[%c304, %c0_167] : memref<392x64xbf16, #tpu.memory_space<vmem>>, vector<8x64xbf16>
    %c38 = arith.constant 38 : index
    %c0_168 = arith.constant 0 : index
    %c0_169 = arith.constant 0 : index
    %202 = vector.load %arg4[%c38, %c0_168, %c0_169] : memref<49x64x512xbf16, #tpu.memory_space<vmem>>, vector<1x64x512xbf16>
    %203 = vector.shape_cast %202 : vector<1x64x512xbf16> to vector<64x512xbf16>
    %cst_170 = arith.constant dense<0.000000e+00> : vector<8x512xf32>
    %204 = tpu.matmul %201, %203, %cst_170 {dimension_numbers = #tpu.dot_dimension_numbers<[1], [0], [0], [1], [0, 0, 1, 1], [], []>} : vector<8x64xbf16>, vector<64x512xbf16>, vector<8x512xf32> -> vector<8x512xf32>
    %205 = arith.addf %200, %204 : vector<8x512xf32>
    %c312 = arith.constant 312 : index
    %c0_171 = arith.constant 0 : index
    %206 = vector.load %arg9[%c312, %c0_171] : memref<392x64xbf16, #tpu.memory_space<vmem>>, vector<8x64xbf16>
    %c39 = arith.constant 39 : index
    %c0_172 = arith.constant 0 : index
    %c0_173 = arith.constant 0 : index
    %207 = vector.load %arg4[%c39, %c0_172, %c0_173] : memref<49x64x512xbf16, #tpu.memory_space<vmem>>, vector<1x64x512xbf16>
    %208 = vector.shape_cast %207 : vector<1x64x512xbf16> to vector<64x512xbf16>
    %cst_174 = arith.constant dense<0.000000e+00> : vector<8x512xf32>
    %209 = tpu.matmul %206, %208, %cst_174 {dimension_numbers = #tpu.dot_dimension_numbers<[1], [0], [0], [1], [0, 0, 1, 1], [], []>} : vector<8x64xbf16>, vector<64x512xbf16>, vector<8x512xf32> -> vector<8x512xf32>
    %210 = arith.addf %205, %209 : vector<8x512xf32>
    %c320 = arith.constant 320 : index
    %c0_175 = arith.constant 0 : index
    %211 = vector.load %arg9[%c320, %c0_175] : memref<392x64xbf16, #tpu.memory_space<vmem>>, vector<8x64xbf16>
    %c40_176 = arith.constant 40 : index
    %c0_177 = arith.constant 0 : index
    %c0_178 = arith.constant 0 : index
    %212 = vector.load %arg4[%c40_176, %c0_177, %c0_178] : memref<49x64x512xbf16, #tpu.memory_space<vmem>>, vector<1x64x512xbf16>
    %213 = vector.shape_cast %212 : vector<1x64x512xbf16> to vector<64x512xbf16>
    %cst_179 = arith.constant dense<0.000000e+00> : vector<8x512xf32>
    %214 = tpu.matmul %211, %213, %cst_179 {dimension_numbers = #tpu.dot_dimension_numbers<[1], [0], [0], [1], [0, 0, 1, 1], [], []>} : vector<8x64xbf16>, vector<64x512xbf16>, vector<8x512xf32> -> vector<8x512xf32>
    %215 = arith.addf %210, %214 : vector<8x512xf32>
    %c328 = arith.constant 328 : index
    %c0_180 = arith.constant 0 : index
    %216 = vector.load %arg9[%c328, %c0_180] : memref<392x64xbf16, #tpu.memory_space<vmem>>, vector<8x64xbf16>
    %c41 = arith.constant 41 : index
    %c0_181 = arith.constant 0 : index
    %c0_182 = arith.constant 0 : index
    %217 = vector.load %arg4[%c41, %c0_181, %c0_182] : memref<49x64x512xbf16, #tpu.memory_space<vmem>>, vector<1x64x512xbf16>
    %218 = vector.shape_cast %217 : vector<1x64x512xbf16> to vector<64x512xbf16>
    %cst_183 = arith.constant dense<0.000000e+00> : vector<8x512xf32>
    %219 = tpu.matmul %216, %218, %cst_183 {dimension_numbers = #tpu.dot_dimension_numbers<[1], [0], [0], [1], [0, 0, 1, 1], [], []>} : vector<8x64xbf16>, vector<64x512xbf16>, vector<8x512xf32> -> vector<8x512xf32>
    %220 = arith.addf %215, %219 : vector<8x512xf32>
    %c336 = arith.constant 336 : index
    %c0_184 = arith.constant 0 : index
    %221 = vector.load %arg9[%c336, %c0_184] : memref<392x64xbf16, #tpu.memory_space<vmem>>, vector<8x64xbf16>
    %c42 = arith.constant 42 : index
    %c0_185 = arith.constant 0 : index
    %c0_186 = arith.constant 0 : index
    %222 = vector.load %arg4[%c42, %c0_185, %c0_186] : memref<49x64x512xbf16, #tpu.memory_space<vmem>>, vector<1x64x512xbf16>
    %223 = vector.shape_cast %222 : vector<1x64x512xbf16> to vector<64x512xbf16>
    %cst_187 = arith.constant dense<0.000000e+00> : vector<8x512xf32>
    %224 = tpu.matmul %221, %223, %cst_187 {dimension_numbers = #tpu.dot_dimension_numbers<[1], [0], [0], [1], [0, 0, 1, 1], [], []>} : vector<8x64xbf16>, vector<64x512xbf16>, vector<8x512xf32> -> vector<8x512xf32>
    %225 = arith.addf %220, %224 : vector<8x512xf32>
    %c344 = arith.constant 344 : index
    %c0_188 = arith.constant 0 : index
    %226 = vector.load %arg9[%c344, %c0_188] : memref<392x64xbf16, #tpu.memory_space<vmem>>, vector<8x64xbf16>
    %c43 = arith.constant 43 : index
    %c0_189 = arith.constant 0 : index
    %c0_190 = arith.constant 0 : index
    %227 = vector.load %arg4[%c43, %c0_189, %c0_190] : memref<49x64x512xbf16, #tpu.memory_space<vmem>>, vector<1x64x512xbf16>
    %228 = vector.shape_cast %227 : vector<1x64x512xbf16> to vector<64x512xbf16>
    %cst_191 = arith.constant dense<0.000000e+00> : vector<8x512xf32>
    %229 = tpu.matmul %226, %228, %cst_191 {dimension_numbers = #tpu.dot_dimension_numbers<[1], [0], [0], [1], [0, 0, 1, 1], [], []>} : vector<8x64xbf16>, vector<64x512xbf16>, vector<8x512xf32> -> vector<8x512xf32>
    %230 = arith.addf %225, %229 : vector<8x512xf32>
    %c352 = arith.constant 352 : index
    %c0_192 = arith.constant 0 : index
    %231 = vector.load %arg9[%c352, %c0_192] : memref<392x64xbf16, #tpu.memory_space<vmem>>, vector<8x64xbf16>
    %c44 = arith.constant 44 : index
    %c0_193 = arith.constant 0 : index
    %c0_194 = arith.constant 0 : index
    %232 = vector.load %arg4[%c44, %c0_193, %c0_194] : memref<49x64x512xbf16, #tpu.memory_space<vmem>>, vector<1x64x512xbf16>
    %233 = vector.shape_cast %232 : vector<1x64x512xbf16> to vector<64x512xbf16>
    %cst_195 = arith.constant dense<0.000000e+00> : vector<8x512xf32>
    %234 = tpu.matmul %231, %233, %cst_195 {dimension_numbers = #tpu.dot_dimension_numbers<[1], [0], [0], [1], [0, 0, 1, 1], [], []>} : vector<8x64xbf16>, vector<64x512xbf16>, vector<8x512xf32> -> vector<8x512xf32>
    %235 = arith.addf %230, %234 : vector<8x512xf32>
    %c360 = arith.constant 360 : index
    %c0_196 = arith.constant 0 : index
    %236 = vector.load %arg9[%c360, %c0_196] : memref<392x64xbf16, #tpu.memory_space<vmem>>, vector<8x64xbf16>
    %c45 = arith.constant 45 : index
    %c0_197 = arith.constant 0 : index
    %c0_198 = arith.constant 0 : index
    %237 = vector.load %arg4[%c45, %c0_197, %c0_198] : memref<49x64x512xbf16, #tpu.memory_space<vmem>>, vector<1x64x512xbf16>
    %238 = vector.shape_cast %237 : vector<1x64x512xbf16> to vector<64x512xbf16>
    %cst_199 = arith.constant dense<0.000000e+00> : vector<8x512xf32>
    %239 = tpu.matmul %236, %238, %cst_199 {dimension_numbers = #tpu.dot_dimension_numbers<[1], [0], [0], [1], [0, 0, 1, 1], [], []>} : vector<8x64xbf16>, vector<64x512xbf16>, vector<8x512xf32> -> vector<8x512xf32>
    %240 = arith.addf %235, %239 : vector<8x512xf32>
    %c368 = arith.constant 368 : index
    %c0_200 = arith.constant 0 : index
    %241 = vector.load %arg9[%c368, %c0_200] : memref<392x64xbf16, #tpu.memory_space<vmem>>, vector<8x64xbf16>
    %c46 = arith.constant 46 : index
    %c0_201 = arith.constant 0 : index
    %c0_202 = arith.constant 0 : index
    %242 = vector.load %arg4[%c46, %c0_201, %c0_202] : memref<49x64x512xbf16, #tpu.memory_space<vmem>>, vector<1x64x512xbf16>
    %243 = vector.shape_cast %242 : vector<1x64x512xbf16> to vector<64x512xbf16>
    %cst_203 = arith.constant dense<0.000000e+00> : vector<8x512xf32>
    %244 = tpu.matmul %241, %243, %cst_203 {dimension_numbers = #tpu.dot_dimension_numbers<[1], [0], [0], [1], [0, 0, 1, 1], [], []>} : vector<8x64xbf16>, vector<64x512xbf16>, vector<8x512xf32> -> vector<8x512xf32>
    %245 = arith.addf %240, %244 : vector<8x512xf32>
    %c376 = arith.constant 376 : index
    %c0_204 = arith.constant 0 : index
    %246 = vector.load %arg9[%c376, %c0_204] : memref<392x64xbf16, #tpu.memory_space<vmem>>, vector<8x64xbf16>
    %c47 = arith.constant 47 : index
    %c0_205 = arith.constant 0 : index
    %c0_206 = arith.constant 0 : index
    %247 = vector.load %arg4[%c47, %c0_205, %c0_206] : memref<49x64x512xbf16, #tpu.memory_space<vmem>>, vector<1x64x512xbf16>
    %248 = vector.shape_cast %247 : vector<1x64x512xbf16> to vector<64x512xbf16>
    %cst_207 = arith.constant dense<0.000000e+00> : vector<8x512xf32>
    %249 = tpu.matmul %246, %248, %cst_207 {dimension_numbers = #tpu.dot_dimension_numbers<[1], [0], [0], [1], [0, 0, 1, 1], [], []>} : vector<8x64xbf16>, vector<64x512xbf16>, vector<8x512xf32> -> vector<8x512xf32>
    %250 = arith.addf %245, %249 : vector<8x512xf32>
    %c384 = arith.constant 384 : index
    %c0_208 = arith.constant 0 : index
    %251 = vector.load %arg9[%c384, %c0_208] : memref<392x64xbf16, #tpu.memory_space<vmem>>, vector<8x64xbf16>
    %c48_209 = arith.constant 48 : index
    %c0_210 = arith.constant 0 : index
    %c0_211 = arith.constant 0 : index
    %252 = vector.load %arg4[%c48_209, %c0_210, %c0_211] : memref<49x64x512xbf16, #tpu.memory_space<vmem>>, vector<1x64x512xbf16>
    %253 = vector.shape_cast %252 : vector<1x64x512xbf16> to vector<64x512xbf16>
    %cst_212 = arith.constant dense<0.000000e+00> : vector<8x512xf32>
    %254 = tpu.matmul %251, %253, %cst_212 {dimension_numbers = #tpu.dot_dimension_numbers<[1], [0], [0], [1], [0, 0, 1, 1], [], []>} : vector<8x64xbf16>, vector<64x512xbf16>, vector<8x512xf32> -> vector<8x512xf32>
    %255 = arith.addf %250, %254 : vector<8x512xf32>
    %c0_213 = arith.constant 0 : index
    %c0_214 = arith.constant 0 : index
    %256 = vector.load %arg5[%c0_213, %c0_214] : memref<1x512xf32, #tpu.memory_space<vmem>>, vector<1x512xf32>
    %257 = vector.broadcast %256 : vector<1x512xf32> to vector<8x512xf32>
    %258 = arith.addf %255, %257 : vector<8x512xf32>
    %cst_215 = arith.constant 0.000000e+00 : f32
    %259 = vector.broadcast %cst_215 : f32 to vector<8x512xf32>
    %260 = arith.maximumf %258, %259 : vector<8x512xf32>
    %c0_216 = arith.constant 0 : index
    %c0_217 = arith.constant 0 : index
    %261 = vector.load %arg6[%c0_216, %c0_217] : memref<512x128xbf16, #tpu.memory_space<vmem>>, vector<512x128xbf16>
    %262 = arith.extf %261 : vector<512x128xbf16> to vector<512x128xf32>
    %cst_218 = arith.constant dense<0.000000e+00> : vector<8x128xf32>
    %263 = tpu.matmul %260, %262, %cst_218 {dimension_numbers = #tpu.dot_dimension_numbers<[1], [0], [0], [1], [0, 0, 1, 1], [], []>} : vector<8x512xf32>, vector<512x128xf32>, vector<8x128xf32> -> vector<8x128xf32>
    %c0_219 = arith.constant 0 : index
    %c0_220 = arith.constant 0 : index
    %264 = vector.load %arg7[%c0_219, %c0_220] : memref<1x128xf32, #tpu.memory_space<vmem>>, vector<1x128xf32>
    %265 = vector.broadcast %264 : vector<1x128xf32> to vector<8x128xf32>
    %266 = arith.addf %263, %265 : vector<8x128xf32>
    %c0_221 = arith.constant 0 : index
    %c0_222 = arith.constant 0 : index
    %267 = vector.load %arg8[%c0_221, %c0_222] : memref<8x128xf32, #tpu.memory_space<vmem>>, vector<8x128xf32>
    tpu.vector_store %arg8[%c0_221, %c0_222], %266 {strides = array<i32>} : memref<8x128xf32, #tpu.memory_space<vmem>>, vector<8x128xf32>,
    return
  }
  func.func @transform_0(%arg0: i32) -> (i32, i32) {
    %c0_i32 = arith.constant 0 : i32
    %c0_i32_0 = arith.constant 0 : i32
    %c0_i32_1 = arith.constant 0 : i32
    return %c0_i32, %c0_i32_0 : i32, i32
  }
  func.func @transform_1(%arg0: i32) -> (i32, i32) {
    %c0_i32 = arith.constant 0 : i32
    %c0_i32_0 = arith.constant 0 : i32
    %c0_i32_1 = arith.constant 0 : i32
    return %c0_i32, %c0_i32_0 : i32, i32
  }
  func.func @transform_2(%arg0: i32) -> (i32, i32) {
    %c0_i32 = arith.constant 0 : i32
    %c0_i32_0 = arith.constant 0 : i32
    %c0_i32_1 = arith.constant 0 : i32
    return %c0_i32, %c0_i32_0 : i32, i32
  }
  func.func @transform_3(%arg0: i32) -> (i32, i32, i32) {
    %c0_i32 = arith.constant 0 : i32
    %c0_i32_0 = arith.constant 0 : i32
    %c0_i32_1 = arith.constant 0 : i32
    %c0_i32_2 = arith.constant 0 : i32
    return %c0_i32, %c0_i32_0, %c0_i32_1 : i32, i32, i32
  }
  func.func @transform_4(%arg0: i32) -> (i32, i32) {
    %c0_i32 = arith.constant 0 : i32
    %c0_i32_0 = arith.constant 0 : i32
    %c0_i32_1 = arith.constant 0 : i32
    return %c0_i32, %c0_i32_0 : i32, i32
  }
  func.func @transform_5(%arg0: i32) -> (i32, i32) {
    %c0_i32 = arith.constant 0 : i32
    %c0_i32_0 = arith.constant 0 : i32
    %c0_i32_1 = arith.constant 0 : i32
    return %c0_i32, %c0_i32_0 : i32, i32
  }
  func.func @transform_6(%arg0: i32) -> (i32, i32) {
    %c0_i32 = arith.constant 0 : i32
    %c0_i32_0 = arith.constant 0 : i32
    %c0_i32_1 = arith.constant 0 : i32
    return %c0_i32, %c0_i32_0 : i32, i32
  }
  func.func @transform_7(%arg0: i32) -> (i32, i32) {
    %c0_i32 = arith.constant 0 : i32
    %c0_i32_0 = arith.constant 0 : i32
    %c0_i32_1 = arith.constant 0 : i32
    return %c0_i32, %c0_i32_0 : i32, i32
  }
}

</mosaic_0001>

<llo_original>
// kernel: forward.3
$region0: #{forward.3}
  #allocation0 [shape = 'u32[]', space=smem, size = 0x4, offset = 0x4, fixed_abs, tag = 'smem constant byte address 0x4 - core index']
  #allocation1 [shape = 'u32[144,128]{1,0:T(1,128)}', space=vmem, size = 0x12000, scoped, tag = 'internal scratch']
  %s0 = inlined_call_operand.vmem [shape: bf16[800,256], index: 0, kind: input, shape index: {}]
  %s1 = inlined_call_operand.vmem [shape: bf16[256,128], index: 1, kind: input, shape index: {}]
  %s2 = inlined_call_operand.vmem [shape: f32[1,128], index: 2, kind: input, shape index: {}]
  %s3 = inlined_call_operand.vmem [shape: bf16[800,128], index: 3, kind: output, shape index: {}]
  %s4 = sld [smem:[#allocation0]]
  $region45: #{forward.3} parent=0
    _
  %s6 = ssub.s32 1, %s4
  %s7 = scalar_select 0, %s6, %s4
  loop: start=0, step=1, limit=4
  $region2: #{forward.3} parent=0 // loop_pre_header
    _
  $region3: #{forward.3} parent=0 // loop_header
    %s9 = sphi 0, %s13
    %p10 = scmp.ge.s32.totalorder %s9, 4
    %s19 = sphi 0, %s21
    %s22 = sphi 0, %s19
    %s23 = sphi 0, %s22
    %s39 = sphi 0, %s23
    %s43 = sphi 0, %s43
    %s45 = sphi 0, %s43
    %s46 = sphi 0, %s45
    %s60 = sphi 0, %s46
    %s64 = sphi 0, %s64
    %s66 = sphi 0, %s64
    %s67 = sphi 0, %s66
    %s81 = sphi 0, %s67
    %s87 = sphi 0, %s89
    %s90 = sphi 0, %s87
    %s91 = sphi 0, %s90
    %s107 = sphi 0, %s91
  $region4: #{forward.3} parent=0 // loop_header_branch
    %12 = sbr.rel (%p10) target = $region8
  $region5: #{forward.3} parent=0 // loop_body
    %s14 = ssub.s32 %s9, 1
    %s15 = ssub.s32 %s9, 2
    %s16 = sadd.s32 %s9, 1
    %s17 = ssub.s32 %s9, %s16
    %p18 = scmp.eq.s32.totalorder %s17, 0
    %s20 = sadd.s32 %s19, 1
    %s21 = scalar_select %p18, %s19, %s20
    %p24 = pneg %p18
    %p25 = scmp.eq.s32.totalorder %s9, 1
    %p26 = por %p24, %p25
    %p27 = scmp.ne.s32.totalorder %s19, %s22
    %p28 = scmp.eq.s32.totalorder %s9, 0
    %p29 = por %p27, %p28
    %p30 = scmp.ne.s32.totalorder %s19, %s22
    %p31 = scmp.eq.s32.totalorder %s14, 1
    %p32 = por %p30, %p31
    %p33 = scmp.ne.s32.totalorder %s22, %s23
    %p34 = scmp.eq.s32.totalorder %s14, 0
    %p35 = por %p33, %p34
    %p36 = scmp.ne.s32.totalorder %s22, %s23
    %p37 = scmp.eq.s32.totalorder %s15, 1
    %p38 = por %p36, %p37
    %p40 = scmp.ne.s32.totalorder %s23, %s39
    %p41 = scmp.eq.s32.totalorder %s15, 0
    %p42 = por %p40, %p41
    %s44 = sadd.s32 %s43, 1
    %p47 = scmp.eq.s32.totalorder %s9, 1
    %p48 = scmp.ne.s32.totalorder %s43, %s45
    %p49 = scmp.eq.s32.totalorder %s9, 0
    %p50 = por %p48, %p49
    %p51 = scmp.ne.s32.totalorder %s43, %s45
    %p52 = scmp.eq.s32.totalorder %s14, 1
    %p53 = por %p51, %p52
    %p54 = scmp.ne.s32.totalorder %s45, %s46
    %p55 = scmp.eq.s32.totalorder %s14, 0
    %p56 = por %p54, %p55
    %p57 = scmp.ne.s32.totalorder %s45, %s46
    %p58 = scmp.eq.s32.totalorder %s15, 1
    %p59 = por %p57, %p58
    %p61 = scmp.ne.s32.totalorder %s46, %s60
    %p62 = scmp.eq.s32.totalorder %s15, 0
    %p63 = por %p61, %p62
    %s65 = sadd.s32 %s64, 1
    %p68 = scmp.eq.s32.totalorder %s9, 1
    %p69 = scmp.ne.s32.totalorder %s64, %s66
    %p70 = scmp.eq.s32.totalorder %s9, 0
    %p71 = por %p69, %p70
    %p72 = scmp.ne.s32.totalorder %s64, %s66
    %p73 = scmp.eq.s32.totalorder %s14, 1
    %p74 = por %p72, %p73
    %p75 = scmp.ne.s32.totalorder %s66, %s67
    %p76 = scmp.eq.s32.totalorder %s14, 0
    %p77 = por %p75, %p76
    %p78 = scmp.ne.s32.totalorder %s66, %s67
    %p79 = scmp.eq.s32.totalorder %s15, 1
    %p80 = por %p78, %p79
    %p82 = scmp.ne.s32.totalorder %s67, %s81
    %p83 = scmp.eq.s32.totalorder %s15, 0
    %p84 = por %p82, %p83
    %s85 = ssub.s32 %s9, %s16
    %p86 = scmp.eq.s32.totalorder %s85, 0
    %s88 = sadd.s32 %s87, 1
    %s89 = scalar_select %p86, %s87, %s88
    %p92 = pneg %p86
    %p93 = scmp.eq.s32.totalorder %s9, 1
    %p94 = por %p92, %p93
    %p95 = scmp.ne.s32.totalorder %s87, %s90
    %p96 = scmp.eq.s32.totalorder %s9, 0
    %p97 = por %p95, %p96
    %p98 = scmp.ne.s32.totalorder %s87, %s90
    %p99 = scmp.eq.s32.totalorder %s14, 1
    %p100 = por %p98, %p99
    %p101 = scmp.ne.s32.totalorder %s90, %s91
    %p102 = scmp.eq.s32.totalorder %s14, 0
    %p103 = por %p101, %p102
    %p104 = scmp.ne.s32.totalorder %s90, %s91
    %p105 = scmp.eq.s32.totalorder %s15, 1
    %p106 = por %p104, %p105
    %p108 = scmp.ne.s32.totalorder %s91, %s107
    %p109 = scmp.eq.s32.totalorder %s15, 0
    %p110 = por %p108, %p109
    %p111 = scmp.le.s32.totalorder 1, %s9
    %p112 = scmp.lt.s32.totalorder %s9, 3
    %p113 = pnand %p111, %p112
    %p114 = pneg %p113
    // Predicated region
    $region9: #{forward.3} parent=5 // pred_check
      _
    $region10: #{forward.3} parent=5 // pred_check_branch
      %116 = sbr.rel (%p113) target = $region12
    $region11: #{forward.3} parent=5 // pred_region
      %s117 = ssub.s32 %s9, 1
      // Predicated region
      $region13: #{forward.3} parent=11 // pred_check
        %p118 = pneg %p56
      $region14: #{forward.3} parent=11 // pred_check_branch
        %120 = sbr.rel (%p118) target = $region16
      $region15: #{forward.3} parent=11 // pred_region
        _
      $region16: #{forward.3} parent=11 // pred_fallthru
        _
      // Predicated region
      $region17: #{forward.3} parent=11 // pred_check
        %p121 = pneg %p77
      $region18: #{forward.3} parent=11 // pred_check_branch
        %123 = sbr.rel (%p121) target = $region20
      $region19: #{forward.3} parent=11 // pred_region
        _
      $region20: #{forward.3} parent=11 // pred_fallthru
        _
    $region12: #{forward.3} parent=5 // pred_fallthru
      _
    %p124 = scmp.lt.s32.totalorder %s9, 2
    // Predicated region
    $region21: #{forward.3} parent=5 // pred_check
      %p125 = pneg %p124
    $region22: #{forward.3} parent=5 // pred_check_branch
      %127 = sbr.rel (%p125) target = $region24
    $region23: #{forward.3} parent=5 // pred_region
      // Predicated region
      $region25: #{forward.3} parent=23 // pred_check
        %p128 = pneg %p29
      $region26: #{forward.3} parent=23 // pred_check_branch
        %130 = sbr.rel (%p128) target = $region28
      $region27: #{forward.3} parent=23 // pred_region
        %s131 = smul.u32 50, %s9
        %p132 = scmp.lt.s32.totalorder %s131, 99
        %s133 = scalar_select %p132, %s131, 99
        %s134 = smul.addr %s133, 2
        %s135 = smul.addr %s134, 4
        %s136 = scalar_lea.vmem %s0, %s135
        %s137 = smul.u32 50, %s9
      $region28: #{forward.3} parent=23 // pred_fallthru
        _
    $region24: #{forward.3} parent=5 // pred_fallthru
      _
    %p138 = scmp.le.s32.totalorder 1, %s9
    %p139 = scmp.lt.s32.totalorder %s9, 3
    %p140 = pnand %p138, %p139
    %p141 = pneg %p140
    // Predicated region
    $region29: #{forward.3} parent=5 // pred_check
      _
    $region30: #{forward.3} parent=5 // pred_check_branch
      %143 = sbr.rel (%p140) target = $region32
    $region31: #{forward.3} parent=5 // pred_region
      %s144 = ssub.s32 %s9, 1
      %s145 = smul.u32 50, %s14
      %p146 = scmp.lt.s32.totalorder %s145, 99
      %s147 = scalar_select %p146, %s145, 99
      %s148 = smul.addr %s147, 2
      %s149 = smul.addr %s148, 4
      %s150 = scalar_lea.vmem %s0, %s149
      %p151 = pneg %p35
      %p152 = pneg %p32
      %p153 = pneg %p56
      %p154 = pneg %p53
      %p155 = pneg %p77
      %p156 = pneg %p74
      %p157 = pneg %p103
      %p158 = pneg %p100
      %s159 = smul.u32 50, %s14
      %p160 = scmp.lt.s32.totalorder %s159, 99
      %s161 = scalar_select %p160, %s159, 99
      %s162 = smul.addr %s161, 4
      %s163 = scalar_lea.vmem %s3, %s162
      %s164 = smul.u32 50, %s14
      %p165 = scmp.lt.s32.totalorder %s164, 99
      %s166 = scalar_select %p165, %s164, 99
      %s167 = smul.addr %s166, 2
      %s168 = smul.addr %s167, 4
      %s169 = scalar_lea.vmem %s0, %s168
      %s170 = smul.u32 50, %s14
      %s171 = smul.u32 50, %s14
      %p172 = scmp.lt.s32.totalorder %s171, 99
      %s173 = scalar_select %p172, %s171, 99
      %s174 = smul.addr %s173, 4
      %s175 = scalar_lea.vmem %s3, %s174
      %s176 = smul.u32 50, %s14
      %v178 = vld [vmem:[%s169] sm:$0xff]
      %v179 = vld [vmem:[%s169 + $0x8] sm:$0xff]
      %v180 = vld [vmem:[%s169 + $0x10] sm:$0xff]
      %v181 = vld [vmem:[%s169 + $0x18] sm:$0xff]
      %v182 = vld [vmem:[%s169 + $0x20] sm:$0xff]
      %v183 = vld [vmem:[%s169 + $0x28] sm:$0xff]
      %v184 = vld [vmem:[%s169 + $0x30] sm:$0xff]
      %v185 = vld [vmem:[%s169 + $0x38] sm:$0xff]
      %v186 = vld [vmem:[%s169 + $0x40] sm:$0xff]
      %v187 = vld [vmem:[%s169 + $0x48] sm:$0xff]
      %v188 = vld [vmem:[%s169 + $0x50] sm:$0xff]
      %v189 = vld [vmem:[%s169 + $0x58] sm:$0xff]
      %v190 = vld [vmem:[%s169 + $0x60] sm:$0xff]
      %v191 = vld [vmem:[%s169 + $0x68] sm:$0xff]
      %v192 = vld [vmem:[%s169 + $0x70] sm:$0xff]
      %v193 = vld [vmem:[%s169 + $0x78] sm:$0xff]
      %v194 = vld [vmem:[%s169 + $0x80] sm:$0xff]
      %v195 = vld [vmem:[%s169 + $0x88] sm:$0xff]
      %v196 = vld [vmem:[%s169 + $0x90] sm:$0xff]
      %v197 = vld [vmem:[%s169 + $0x98] sm:$0xff]
      %v198 = vld [vmem:[%s169 + $0xa0] sm:$0xff]
      %v199 = vld [vmem:[%s169 + $0xa8] sm:$0xff]
      %v200 = vld [vmem:[%s169 + $0xb0] sm:$0xff]
      %v201 = vld [vmem:[%s169 + $0xb8] sm:$0xff]
      %v202 = vld [vmem:[%s169 + $0xc0] sm:$0xff]
      %v203 = vld [vmem:[%s169 + $0xc8] sm:$0xff]
      %v204 = vld [vmem:[%s169 + $0xd0] sm:$0xff]
      %v205 = vld [vmem:[%s169 + $0xd8] sm:$0xff]
      %v206 = vld [vmem:[%s169 + $0xe0] sm:$0xff]
      %v207 = vld [vmem:[%s169 + $0xe8] sm:$0xff]
      %v208 = vld [vmem:[%s169 + $0xf0] sm:$0xff]
      %v209 = vld [vmem:[%s169 + $0xf8] sm:$0xff]
      %v210 = vld [vmem:[%s169 + $0x100] sm:$0xff]
      %v211 = vld [vmem:[%s169 + $0x108] sm:$0xff]
      %v212 = vld [vmem:[%s169 + $0x110] sm:$0xff]
      %v213 = vld [vmem:[%s169 + $0x118] sm:$0xff]
      %v214 = vld [vmem:[%s169 + $0x120] sm:$0xff]
      %v215 = vld [vmem:[%s169 + $0x128] sm:$0xff]
      %v216 = vld [vmem:[%s169 + $0x130] sm:$0xff]
      %v217 = vld [vmem:[%s169 + $0x138] sm:$0xff]
      %v218 = vld [vmem:[%s169 + $0x140] sm:$0xff]
      %v219 = vld [vmem:[%s169 + $0x148] sm:$0xff]
      %v220 = vld [vmem:[%s169 + $0x150] sm:$0xff]
      %v221 = vld [vmem:[%s169 + $0x158] sm:$0xff]
      %v222 = vld [vmem:[%s169 + $0x160] sm:$0xff]
      %v223 = vld [vmem:[%s169 + $0x168] sm:$0xff]
      %v224 = vld [vmem:[%s169 + $0x170] sm:$0xff]
      %v225 = vld [vmem:[%s169 + $0x178] sm:$0xff]
      %v226 = vld [vmem:[%s169 + $0x180] sm:$0xff]
      %v227 = vld [vmem:[%s169 + $0x188] sm:$0xff]
      %v228 = vld [vmem:[%s1] sm:$0xf]
      %v229 = vld [vmem:[%s1 + $0x4] sm:$0xf]
      %v230 = vld [vmem:[%s1 + $0x8] sm:$0xf]
      %v231 = vld [vmem:[%s1 + $0xc] sm:$0xf]
      %v232 = vld [vmem:[%s1 + $0x10] sm:$0xf]
      %v233 = vld [vmem:[%s1 + $0x14] sm:$0xf]
      %v234 = vld [vmem:[%s1 + $0x18] sm:$0xf]
      %v235 = vld [vmem:[%s1 + $0x1c] sm:$0xf]
      %v236 = vld [vmem:[%s1 + $0x20] sm:$0xf]
      %v237 = vld [vmem:[%s1 + $0x24] sm:$0xf]
      %v238 = vld [vmem:[%s1 + $0x28] sm:$0xf]
      %v239 = vld [vmem:[%s1 + $0x2c] sm:$0xf]
      %v240 = vld [vmem:[%s1 + $0x30] sm:$0xf]
      %v241 = vld [vmem:[%s1 + $0x34] sm:$0xf]
      %v242 = vld [vmem:[%s1 + $0x38] sm:$0xf]
      %v243 = vld [vmem:[%s1 + $0x3c] sm:$0xf]
      %v244 = vld [vmem:[%s1 + $0x40] sm:$0xf]
      %v245 = vld [vmem:[%s1 + $0x44] sm:$0xf]
      %v246 = vld [vmem:[%s1 + $0x48] sm:$0xf]
      %v247 = vld [vmem:[%s1 + $0x4c] sm:$0xf]
      %v248 = vld [vmem:[%s1 + $0x50] sm:$0xf]
      %v249 = vld [vmem:[%s1 + $0x54] sm:$0xf]
      %v250 = vld [vmem:[%s1 + $0x58] sm:$0xf]
      %v251 = vld [vmem:[%s1 + $0x5c] sm:$0xf]
      %v252 = vld [vmem:[%s1 + $0x60] sm:$0xf]
      %v253 = vld [vmem:[%s1 + $0x64] sm:$0xf]
      %v254 = vld [vmem:[%s1 + $0x68] sm:$0xf]
      %v255 = vld [vmem:[%s1 + $0x6c] sm:$0xf]
      %v256 = vld [vmem:[%s1 + $0x70] sm:$0xf]
      %v257 = vld [vmem:[%s1 + $0x74] sm:$0xf]
      %v258 = vld [vmem:[%s1 + $0x78] sm:$0xf]
      %v259 = vld [vmem:[%s1 + $0x7c] sm:$0xf]
      %v260 = vld [vmem:[%s2] sm:$0x1]
      %v262 = vlaneseq
      %v263 = vshrl.u32 %v262, 7
      %v264 = vsub.s32 0, %v263
      %v265 = vrot.slane %v260, %v264
      %v317 = vunpack.c.l.b16 %v178
      %v318 = vunpack.c.h.b16 %v178
      %v319 = vunpack.c.l.b16 %v179
      %v320 = vunpack.c.h.b16 %v179
      %v321 = vunpack.c.l.b16 %v180
      %v322 = vunpack.c.h.b16 %v180
      %v323 = vunpack.c.l.b16 %v181
      %v324 = vunpack.c.h.b16 %v181
      %v325 = vunpack.c.l.b16 %v182
      %v326 = vunpack.c.h.b16 %v182
      %v327 = vunpack.c.l.b16 %v183
      %v328 = vunpack.c.h.b16 %v183
      %v329 = vunpack.c.l.b16 %v184
      %v330 = vunpack.c.h.b16 %v184
      %v331 = vunpack.c.l.b16 %v185
      %v332 = vunpack.c.h.b16 %v185
      %v333 = vunpack.c.l.b16 %v186
      %v334 = vunpack.c.h.b16 %v186
      %v335 = vunpack.c.l.b16 %v187
      %v336 = vunpack.c.h.b16 %v187
      %v337 = vunpack.c.l.b16 %v188
      %v338 = vunpack.c.h.b16 %v188
      %v339 = vunpack.c.l.b16 %v189
      %v340 = vunpack.c.h.b16 %v189
      %v341 = vunpack.c.l.b16 %v190
      %v342 = vunpack.c.h.b16 %v190
      %v343 = vunpack.c.l.b16 %v191
      %v344 = vunpack.c.h.b16 %v191
      %v345 = vunpack.c.l.b16 %v192
      %v346 = vunpack.c.h.b16 %v192
      %v347 = vunpack.c.l.b16 %v193
      %v348 = vunpack.c.h.b16 %v193
      %v349 = vunpack.c.l.b16 %v194
      %v350 = vunpack.c.h.b16 %v194
      %v351 = vunpack.c.l.b16 %v195
      %v352 = vunpack.c.h.b16 %v195
      %v353 = vunpack.c.l.b16 %v196
      %v354 = vunpack.c.h.b16 %v196
      %v355 = vunpack.c.l.b16 %v197
      %v356 = vunpack.c.h.b16 %v197
      %v357 = vunpack.c.l.b16 %v198
      %v358 = vunpack.c.h.b16 %v198
      %v359 = vunpack.c.l.b16 %v199
      %v360 = vunpack.c.h.b16 %v199
      %v361 = vunpack.c.l.b16 %v200
      %v362 = vunpack.c.h.b16 %v200
      %v363 = vunpack.c.l.b16 %v201
      %v364 = vunpack.c.h.b16 %v201
      %v365 = vunpack.c.l.b16 %v202
      %v366 = vunpack.c.h.b16 %v202
      %v367 = vunpack.c.l.b16 %v203
      %v368 = vunpack.c.h.b16 %v203
      %v369 = vunpack.c.l.b16 %v204
      %v370 = vunpack.c.h.b16 %v204
      %v371 = vunpack.c.l.b16 %v205
      %v372 = vunpack.c.h.b16 %v205
      %v373 = vunpack.c.l.b16 %v206
      %v374 = vunpack.c.h.b16 %v206
      %v375 = vunpack.c.l.b16 %v207
      %v376 = vunpack.c.h.b16 %v207
      %v377 = vunpack.c.l.b16 %v208
      %v378 = vunpack.c.h.b16 %v208
      %v379 = vunpack.c.l.b16 %v209
      %v380 = vunpack.c.h.b16 %v209
      %v381 = vunpack.c.l.b16 %v210
      %v382 = vunpack.c.h.b16 %v210
      %v383 = vunpack.c.l.b16 %v211
      %v384 = vunpack.c.h.b16 %v211
      %v385 = vunpack.c.l.b16 %v212
      %v386 = vunpack.c.h.b16 %v212
      %v387 = vunpack.c.l.b16 %v213
      %v388 = vunpack.c.h.b16 %v213
      %v389 = vunpack.c.l.b16 %v214
      %v390 = vunpack.c.h.b16 %v214
      %v391 = vunpack.c.l.b16 %v215
      %v392 = vunpack.c.h.b16 %v215
      %v393 = vunpack.c.l.b16 %v216
      %v394 = vunpack.c.h.b16 %v216
      %v395 = vunpack.c.l.b16 %v217
      %v396 = vunpack.c.h.b16 %v217
      %v397 = vunpack.c.l.b16 %v218
      %v398 = vunpack.c.h.b16 %v218
      %v399 = vunpack.c.l.b16 %v219
      %v400 = vunpack.c.h.b16 %v219
      %v401 = vunpack.c.l.b16 %v220
      %v402 = vunpack.c.h.b16 %v220
      %v403 = vunpack.c.l.b16 %v221
      %v404 = vunpack.c.h.b16 %v221
      %v405 = vunpack.c.l.b16 %v222
      %v406 = vunpack.c.h.b16 %v222
      %v407 = vunpack.c.l.b16 %v223
      %v408 = vunpack.c.h.b16 %v223
      %v409 = vunpack.c.l.b16 %v224
      %v410 = vunpack.c.h.b16 %v224
      %v411 = vunpack.c.l.b16 %v225
      %v412 = vunpack.c.h.b16 %v225
      %v413 = vunpack.c.l.b16 %v226
      %v414 = vunpack.c.h.b16 %v226
      %v415 = vunpack.c.l.b16 %v227
      %v416 = vunpack.c.h.b16 %v227
      %v417 = vpack.c.b16 %v319, %v317
      %v418 = vpack.c.b16 %v320, %v318
      %v419 = vpack.c.b16 %v323, %v321
      %v420 = vpack.c.b16 %v324, %v322
      %v421 = vpack.c.b16 %v327, %v325
      %v422 = vpack.c.b16 %v328, %v326
      %v423 = vpack.c.b16 %v331, %v329
      %v424 = vpack.c.b16 %v332, %v330
      %v425 = vpack.c.b16 %v335, %v333
      %v426 = vpack.c.b16 %v336, %v334
      %v427 = vpack.c.b16 %v339, %v337
      %v428 = vpack.c.b16 %v340, %v338
      %v429 = vpack.c.b16 %v343, %v341
      %v430 = vpack.c.b16 %v344, %v342
      %v431 = vpack.c.b16 %v347, %v345
      %v432 = vpack.c.b16 %v348, %v346
      %v433 = vpack.c.b16 %v351, %v349
      %v434 = vpack.c.b16 %v352, %v350
      %v435 = vpack.c.b16 %v355, %v353
      %v436 = vpack.c.b16 %v356, %v354
      %v437 = vpack.c.b16 %v359, %v357
      %v438 = vpack.c.b16 %v360, %v358
      %v439 = vpack.c.b16 %v363, %v361
      %v440 = vpack.c.b16 %v364, %v362
      %v441 = vpack.c.b16 %v367, %v365
      %v442 = vpack.c.b16 %v368, %v366
      %v443 = vpack.c.b16 %v371, %v369
      %v444 = vpack.c.b16 %v372, %v370
      %v445 = vpack.c.b16 %v375, %v373
      %v446 = vpack.c.b16 %v376, %v374
      %v447 = vpack.c.b16 %v379, %v377
      %v448 = vpack.c.b16 %v380, %v378
      %v449 = vpack.c.b16 %v383, %v381
      %v450 = vpack.c.b16 %v384, %v382
      %v451 = vpack.c.b16 %v387, %v385
      %v452 = vpack.c.b16 %v388, %v386
      %v453 = vpack.c.b16 %v391, %v389
      %v454 = vpack.c.b16 %v392, %v390
      %v455 = vpack.c.b16 %v395, %v393
      %v456 = vpack.c.b16 %v396, %v394
      %v457 = vpack.c.b16 %v399, %v397
      %v458 = vpack.c.b16 %v400, %v398
      %v459 = vpack.c.b16 %v403, %v401
      %v460 = vpack.c.b16 %v404, %v402
      %v461 = vpack.c.b16 %v407, %v405
      %v462 = vpack.c.b16 %v408, %v406
      %v463 = vpack.c.b16 %v411, %v409
      %v464 = vpack.c.b16 %v412, %v410
      %v465 = vpack.c.b16 %v415, %v413
      %v466 = vpack.c.b16 %v416, %v414
      %v549 = vunpack.c.l.b16 %v228
      %v550 = vunpack.c.l.b16 %v229
      %v551 = vunpack.c.l.b16 %v230
      %v552 = vunpack.c.l.b16 %v231
      %v553 = vunpack.c.l.b16 %v232
      %v554 = vunpack.c.l.b16 %v233
      %v555 = vunpack.c.l.b16 %v234
      %v556 = vunpack.c.l.b16 %v235
      %v557 = vunpack.c.l.b16 %v236
      %v558 = vunpack.c.l.b16 %v237
      %v559 = vunpack.c.l.b16 %v238
      %v560 = vunpack.c.l.b16 %v239
      %v561 = vunpack.c.l.b16 %v240
      %v562 = vunpack.c.l.b16 %v241
      %v563 = vunpack.c.l.b16 %v242
      %v564 = vunpack.c.l.b16 %v243
      %v565 = vunpack.c.l.b16 %v244
      %v566 = vunpack.c.l.b16 %v245
      %v567 = vunpack.c.l.b16 %v246
      %v568 = vunpack.c.l.b16 %v247
      %v569 = vunpack.c.l.b16 %v248
      %v570 = vunpack.c.l.b16 %v249
      %v571 = vunpack.c.l.b16 %v250
      %v572 = vunpack.c.l.b16 %v251
      %v573 = vunpack.c.l.b16 %v252
      %v574 = vunpack.c.l.b16 %v253
      %v575 = vunpack.c.l.b16 %v254
      %v576 = vunpack.c.l.b16 %v255
      %v577 = vunpack.c.l.b16 %v256
      %v578 = vunpack.c.l.b16 %v257
      %v579 = vunpack.c.l.b16 %v258
      %v580 = vunpack.c.l.b16 %v259
      %v581 = vpack.c.b16 %v550, %v549
      %v582 = vpack.c.b16 %v552, %v551
      %v583 = vpack.c.b16 %v554, %v553
      %v584 = vpack.c.b16 %v556, %v555
      %v585 = vpack.c.b16 %v558, %v557
      %v586 = vpack.c.b16 %v560, %v559
      %v587 = vpack.c.b16 %v562, %v561
      %v588 = vpack.c.b16 %v564, %v563
      %v589 = vpack.c.b16 %v566, %v565
      %v590 = vpack.c.b16 %v568, %v567
      %v591 = vpack.c.b16 %v570, %v569
      %v592 = vpack.c.b16 %v572, %v571
      %v593 = vpack.c.b16 %v574, %v573
      %v594 = vpack.c.b16 %v576, %v575
      %v595 = vpack.c.b16 %v578, %v577
      %v596 = vpack.c.b16 %v580, %v579
      %613 = vmatprep.subr.bf16.mxu0 0
      %614 = vmatpush1.bf16.msra.mxu0 %v581
      %615 = vmatprep.subr.bf16.mxu0 0
      %616 = vmatpush1.bf16.msra.mxu0 %v582
      %617 = vmatprep.subr.bf16.mxu0 0
      %618 = vmatpush1.bf16.msra.mxu0 %v583
      %619 = vmatprep.subr.bf16.mxu0 0
      %620 = vmatpush1.bf16.msra.mxu0 %v584
      %621 = vmatprep.subr.bf16.mxu0 0
      %622 = vmatpush1.bf16.msra.mxu0 %v585
      %623 = vmatprep.subr.bf16.mxu0 0
      %624 = vmatpush1.bf16.msra.mxu0 %v586
      %625 = vmatprep.subr.bf16.mxu0 0
      %626 = vmatpush1.bf16.msra.mxu0 %v587
      %627 = vmatprep.subr.bf16.mxu0 0
      %628 = vmatpush1.bf16.msra.mxu0 %v588
      %629 = vmatprep.subr.bf16.mxu0 0
      %630 = vmatpush1.bf16.msra.mxu0 %v589
      %631 = vmatprep.subr.bf16.mxu0 0
      %632 = vmatpush1.bf16.msra.mxu0 %v590
      %633 = vmatprep.subr.bf16.mxu0 0
      %634 = vmatpush1.bf16.msra.mxu0 %v591
      %635 = vmatprep.subr.bf16.mxu0 0
      %636 = vmatpush1.bf16.msra.mxu0 %v592
      %637 = vmatprep.subr.bf16.mxu0 0
      %638 = vmatpush1.bf16.msra.mxu0 %v593
      %639 = vmatprep.subr.bf16.mxu0 0
      %640 = vmatpush1.bf16.msra.mxu0 %v594
      %641 = vmatprep.subr.bf16.mxu0 0
      %642 = vmatpush1.bf16.msra.mxu0 %v595
      %643 = vmatprep.subr.bf16.mxu0 0
      %644 = vmatpush1.bf16.msra.mxu0 %v596
      %645 = vmatprep.mubr.bf16.mxu0 %v418
      %646 = vmatmul.mubr.bf16.gmra.mrb[0].mxu0 %v417
      %v647 = vpop.f32.mrb[0].mxu0
      %v648 = vadd.f32 %v265, %v647
      %v649 = vpop.f32.mrb[0].mxu0
      %v650 = vpop.f32.mrb[0].mxu0
      %v651 = vadd.f32 %v265, %v650
      %v652 = vpop.f32.mrb[0].mxu0
      %653 = vmatprep.mubr.bf16.mxu0 %v420
      %654 = vmatmul.mubr.bf16.gmra.mrb[0].mxu0 %v419
      %v655 = vpop.f32.mrb[0].mxu0
      %v656 = vadd.f32 %v265, %v655
      %v657 = vpop.f32.mrb[0].mxu0
      %v658 = vpop.f32.mrb[0].mxu0
      %v659 = vadd.f32 %v265, %v658
      %v660 = vpop.f32.mrb[0].mxu0
      %661 = vmatprep.mubr.bf16.mxu0 %v422
      %662 = vmatmul.mubr.bf16.gmra.mrb[0].mxu0 %v421
      %v663 = vpop.f32.mrb[0].mxu0
      %v664 = vadd.f32 %v265, %v663
      %v665 = vpop.f32.mrb[0].mxu0
      %v666 = vpop.f32.mrb[0].mxu0
      %v667 = vadd.f32 %v265, %v666
      %v668 = vpop.f32.mrb[0].mxu0
      %669 = vmatprep.mubr.bf16.mxu0 %v424
      %670 = vmatmul.mubr.bf16.gmra.mrb[0].mxu0 %v423
      %v671 = vpop.f32.mrb[0].mxu0
      %v672 = vadd.f32 %v265, %v671
      %v673 = vpop.f32.mrb[0].mxu0
      %v674 = vpop.f32.mrb[0].mxu0
      %v675 = vadd.f32 %v265, %v674
      %v676 = vpop.f32.mrb[0].mxu0
      %677 = vmatprep.mubr.bf16.mxu0 %v426
      %678 = vmatmul.mubr.bf16.gmra.mrb[0].mxu0 %v425
      %v679 = vpop.f32.mrb[0].mxu0
      %v680 = vadd.f32 %v265, %v679
      %v681 = vpop.f32.mrb[0].mxu0
      %v682 = vpop.f32.mrb[0].mxu0
      %v683 = vadd.f32 %v265, %v682
      %v684 = vpop.f32.mrb[0].mxu0
      %685 = vmatprep.mubr.bf16.mxu0 %v428
      %686 = vmatmul.mubr.bf16.gmra.mrb[0].mxu0 %v427
      %v687 = vpop.f32.mrb[0].mxu0
      %v688 = vadd.f32 %v265, %v687
      %v689 = vpop.f32.mrb[0].mxu0
      %v690 = vpop.f32.mrb[0].mxu0
      %v691 = vadd.f32 %v265, %v690
      %v692 = vpop.f32.mrb[0].mxu0
      %693 = vmatprep.mubr.bf16.mxu0 %v430
      %694 = vmatmul.mubr.bf16.gmra.mrb[0].mxu0 %v429
      %v695 = vpop.f32.mrb[0].mxu0
      %v696 = vadd.f32 %v265, %v695
      %v697 = vpop.f32.mrb[0].mxu0
      %v698 = vpop.f32.mrb[0].mxu0
      %v699 = vadd.f32 %v265, %v698
      %v700 = vpop.f32.mrb[0].mxu0
      %701 = vmatprep.mubr.bf16.mxu0 %v432
      %702 = vmatmul.mubr.bf16.gmra.mrb[0].mxu0 %v431
      %v703 = vpop.f32.mrb[0].mxu0
      %v704 = vadd.f32 %v265, %v703
      %v705 = vpop.f32.mrb[0].mxu0
      %v706 = vpop.f32.mrb[0].mxu0
      %v707 = vadd.f32 %v265, %v706
      %v708 = vpop.f32.mrb[0].mxu0
      %709 = vmatprep.mubr.bf16.mxu0 %v434
      %710 = vmatmul.mubr.bf16.gmra.mrb[0].mxu0 %v433
      %v711 = vpop.f32.mrb[0].mxu0
      %v712 = vadd.f32 %v265, %v711
      %v713 = vpop.f32.mrb[0].mxu0
      %v714 = vpop.f32.mrb[0].mxu0
      %v715 = vadd.f32 %v265, %v714
      %v716 = vpop.f32.mrb[0].mxu0
      %717 = vmatprep.mubr.bf16.mxu0 %v436
      %718 = vmatmul.mubr.bf16.gmra.mrb[0].mxu0 %v435
      %v719 = vpop.f32.mrb[0].mxu0
      %v720 = vadd.f32 %v265, %v719
      %v721 = vpop.f32.mrb[0].mxu0
      %v722 = vpop.f32.mrb[0].mxu0
      %v723 = vadd.f32 %v265, %v722
      %v724 = vpop.f32.mrb[0].mxu0
      %725 = vmatprep.mubr.bf16.mxu0 %v438
      %726 = vmatmul.mubr.bf16.gmra.mrb[0].mxu0 %v437
      %v727 = vpop.f32.mrb[0].mxu0
      %v728 = vadd.f32 %v265, %v727
      %v729 = vpop.f32.mrb[0].mxu0
      %v730 = vpop.f32.mrb[0].mxu0
      %v731 = vadd.f32 %v265, %v730
      %v732 = vpop.f32.mrb[0].mxu0
      %733 = vmatprep.mubr.bf16.mxu0 %v440
      %734 = vmatmul.mubr.bf16.gmra.mrb[0].mxu0 %v439
      %v735 = vpop.f32.mrb[0].mxu0
      %v736 = vadd.f32 %v265, %v735
      %v737 = vpop.f32.mrb[0].mxu0
      %v738 = vpop.f32.mrb[0].mxu0
      %v739 = vadd.f32 %v265, %v738
      %v740 = vpop.f32.mrb[0].mxu0
      %741 = vmatprep.mubr.bf16.mxu0 %v442
      %742 = vmatmul.mubr.bf16.gmra.mrb[0].mxu0 %v441
      %v743 = vpop.f32.mrb[0].mxu0
      %v744 = vadd.f32 %v265, %v743
      %v745 = vpop.f32.mrb[0].mxu0
      %v746 = vpop.f32.mrb[0].mxu0
      %v747 = vadd.f32 %v265, %v746
      %v748 = vpop.f32.mrb[0].mxu0
      %749 = vmatprep.mubr.bf16.mxu0 %v444
      %750 = vmatmul.mubr.bf16.gmra.mrb[0].mxu0 %v443
      %v751 = vpop.f32.mrb[0].mxu0
      %v752 = vadd.f32 %v265, %v751
      %v753 = vpop.f32.mrb[0].mxu0
      %v754 = vpop.f32.mrb[0].mxu0
      %v755 = vadd.f32 %v265, %v754
      %v756 = vpop.f32.mrb[0].mxu0
      %757 = vmatprep.mubr.bf16.mxu0 %v446
      %758 = vmatmul.mubr.bf16.gmra.mrb[0].mxu0 %v445
      %v759 = vpop.f32.mrb[0].mxu0
      %v760 = vadd.f32 %v265, %v759
      %v761 = vpop.f32.mrb[0].mxu0
      %v762 = vpop.f32.mrb[0].mxu0
      %v763 = vadd.f32 %v265, %v762
      %v764 = vpop.f32.mrb[0].mxu0
      %765 = vmatprep.mubr.bf16.mxu0 %v448
      %766 = vmatmul.mubr.bf16.gmra.mrb[0].mxu0 %v447
      %v767 = vpop.f32.mrb[0].mxu0
      %v768 = vadd.f32 %v265, %v767
      %v769 = vpop.f32.mrb[0].mxu0
      %v770 = vpop.f32.mrb[0].mxu0
      %v771 = vadd.f32 %v265, %v770
      %v772 = vpop.f32.mrb[0].mxu0
      %773 = vmatprep.mubr.bf16.mxu0 %v450
      %774 = vmatmul.mubr.bf16.gmra.mrb[0].mxu0 %v449
      %v775 = vpop.f32.mrb[0].mxu0
      %v776 = vadd.f32 %v265, %v775
      %v777 = vpop.f32.mrb[0].mxu0
      %v778 = vpop.f32.mrb[0].mxu0
      %v779 = vadd.f32 %v265, %v778
      %v780 = vpop.f32.mrb[0].mxu0
      %781 = vmatprep.mubr.bf16.mxu0 %v452
      %782 = vmatmul.mubr.bf16.gmra.mrb[0].mxu0 %v451
      %v783 = vpop.f32.mrb[0].mxu0
      %v784 = vadd.f32 %v265, %v783
      %v785 = vpop.f32.mrb[0].mxu0
      %v786 = vpop.f32.mrb[0].mxu0
      %v787 = vadd.f32 %v265, %v786
      %v788 = vpop.f32.mrb[0].mxu0
      %789 = vmatprep.mubr.bf16.mxu0 %v454
      %790 = vmatmul.mubr.bf16.gmra.mrb[0].mxu0 %v453
      %v791 = vpop.f32.mrb[0].mxu0
      %v792 = vadd.f32 %v265, %v791
      %v793 = vpop.f32.mrb[0].mxu0
      %v794 = vpop.f32.mrb[0].mxu0
      %v795 = vadd.f32 %v265, %v794
      %v796 = vpop.f32.mrb[0].mxu0
      %797 = vmatprep.mubr.bf16.mxu0 %v456
      %798 = vmatmul.mubr.bf16.gmra.mrb[0].mxu0 %v455
      %v799 = vpop.f32.mrb[0].mxu0
      %v800 = vadd.f32 %v265, %v799
      %v801 = vpop.f32.mrb[0].mxu0
      %v802 = vpop.f32.mrb[0].mxu0
      %v803 = vadd.f32 %v265, %v802
      %v804 = vpop.f32.mrb[0].mxu0
      %805 = vmatprep.mubr.bf16.mxu0 %v458
      %806 = vmatmul.mubr.bf16.gmra.mrb[0].mxu0 %v457
      %v807 = vpop.f32.mrb[0].mxu0
      %v808 = vadd.f32 %v265, %v807
      %v809 = vpop.f32.mrb[0].mxu0
      %v810 = vpop.f32.mrb[0].mxu0
      %v811 = vadd.f32 %v265, %v810
      %v812 = vpop.f32.mrb[0].mxu0
      %813 = vmatprep.mubr.bf16.mxu0 %v460
      %814 = vmatmul.mubr.bf16.gmra.mrb[0].mxu0 %v459
      %v815 = vpop.f32.mrb[0].mxu0
      %v816 = vadd.f32 %v265, %v815
      %v817 = vpop.f32.mrb[0].mxu0
      %v818 = vpop.f32.mrb[0].mxu0
      %v819 = vadd.f32 %v265, %v818
      %v820 = vpop.f32.mrb[0].mxu0
      %821 = vmatprep.mubr.bf16.mxu0 %v462
      %822 = vmatmul.mubr.bf16.gmra.mrb[0].mxu0 %v461
      %v823 = vpop.f32.mrb[0].mxu0
      %v824 = vadd.f32 %v265, %v823
      %v825 = vpop.f32.mrb[0].mxu0
      %v826 = vpop.f32.mrb[0].mxu0
      %v827 = vadd.f32 %v265, %v826
      %v828 = vpop.f32.mrb[0].mxu0
      %829 = vmatprep.mubr.bf16.mxu0 %v464
      %830 = vmatmul.mubr.bf16.gmra.mrb[0].mxu0 %v463
      %v831 = vpop.f32.mrb[0].mxu0
      %v832 = vadd.f32 %v265, %v831
      %v833 = vpop.f32.mrb[0].mxu0
      %v834 = vpop.f32.mrb[0].mxu0
      %v835 = vadd.f32 %v265, %v834
      %v836 = vpop.f32.mrb[0].mxu0
      %837 = vmatprep.mubr.bf16.mxu0 %v466
      %838 = vmatmul.mubr.bf16.gmra.mrb[0].mxu0 %v465
      %v839 = vpop.f32.mrb[0].mxu0
      %v840 = vadd.f32 %v265, %v839
      %v841 = vpop.f32.mrb[0].mxu0
      %v842 = vpop.f32.mrb[0].mxu0
      %v843 = vadd.f32 %v265, %v842
      %v844 = vpop.f32.mrb[0].mxu0
      %845 = vdwg.mxu0
      %v846 = vmax.f32 %v648, 0.0
      %v847 = vmax.f32 %v651, 0.0
      %v848 = vmax.f32 %v656, 0.0
      %v849 = vmax.f32 %v659, 0.0
      %v850 = vmax.f32 %v664, 0.0
      %v851 = vmax.f32 %v667, 0.0
      %v852 = vmax.f32 %v672, 0.0
      %v853 = vmax.f32 %v675, 0.0
      %v854 = vmax.f32 %v680, 0.0
      %v855 = vmax.f32 %v683, 0.0
      %v856 = vmax.f32 %v688, 0.0
      %v857 = vmax.f32 %v691, 0.0
      %v858 = vmax.f32 %v696, 0.0
      %v859 = vmax.f32 %v699, 0.0
      %v860 = vmax.f32 %v704, 0.0
      %v861 = vmax.f32 %v707, 0.0
      %v862 = vmax.f32 %v712, 0.0
      %v863 = vmax.f32 %v715, 0.0
      %v864 = vmax.f32 %v720, 0.0
      %v865 = vmax.f32 %v723, 0.0
      %v866 = vmax.f32 %v728, 0.0
      %v867 = vmax.f32 %v731, 0.0
      %v868 = vmax.f32 %v736, 0.0
      %v869 = vmax.f32 %v739, 0.0
      %v870 = vmax.f32 %v744, 0.0
      %v871 = vmax.f32 %v747, 0.0
      %v872 = vmax.f32 %v752, 0.0
      %v873 = vmax.f32 %v755, 0.0
      %v874 = vmax.f32 %v760, 0.0
      %v875 = vmax.f32 %v763, 0.0
      %v876 = vmax.f32 %v768, 0.0
      %v877 = vmax.f32 %v771, 0.0
      %v878 = vmax.f32 %v776, 0.0
      %v879 = vmax.f32 %v779, 0.0
      %v880 = vmax.f32 %v784, 0.0
      %v881 = vmax.f32 %v787, 0.0
      %v882 = vmax.f32 %v792, 0.0
      %v883 = vmax.f32 %v795, 0.0
      %v884 = vmax.f32 %v800, 0.0
      %v885 = vmax.f32 %v803, 0.0
      %v886 = vmax.f32 %v808, 0.0
      %v887 = vmax.f32 %v811, 0.0
      %v888 = vmax.f32 %v816, 0.0
      %v889 = vmax.f32 %v819, 0.0
      %v890 = vmax.f32 %v824, 0.0
      %v891 = vmax.f32 %v827, 0.0
      %v892 = vmax.f32 %v832, 0.0
      %v893 = vmax.f32 %v835, 0.0
      %v894 = vmax.f32 %v840, 0.0
      %v895 = vmax.f32 %v843, 0.0
      %v896 = vpack.c.bf16 %v847, %v846
      %v897 = vpack.c.bf16 %v849, %v848
      %v898 = vpack.c.bf16 %v851, %v850
      %v899 = vpack.c.bf16 %v853, %v852
      %v900 = vpack.c.bf16 %v855, %v854
      %v901 = vpack.c.bf16 %v857, %v856
      %v902 = vpack.c.bf16 %v859, %v858
      %v903 = vpack.c.bf16 %v861, %v860
      %v904 = vpack.c.bf16 %v863, %v862
      %v905 = vpack.c.bf16 %v865, %v864
      %v906 = vpack.c.bf16 %v867, %v866
      %v907 = vpack.c.bf16 %v869, %v868
      %v908 = vpack.c.bf16 %v871, %v870
      %v909 = vpack.c.bf16 %v873, %v872
      %v910 = vpack.c.bf16 %v875, %v874
      %v911 = vpack.c.bf16 %v877, %v876
      %v912 = vpack.c.bf16 %v879, %v878
      %v913 = vpack.c.bf16 %v881, %v880
      %v914 = vpack.c.bf16 %v883, %v882
      %v915 = vpack.c.bf16 %v885, %v884
      %v916 = vpack.c.bf16 %v887, %v886
      %v917 = vpack.c.bf16 %v889, %v888
      %v918 = vpack.c.bf16 %v891, %v890
      %v919 = vpack.c.bf16 %v893, %v892
      %v920 = vpack.c.bf16 %v895, %v894
      %v946 = vunpack.c.l.b16 %v896
      %v947 = vunpack.c.h.b16 %v896
      %v948 = vunpack.c.l.b16 %v897
      %v949 = vunpack.c.h.b16 %v897
      %v950 = vunpack.c.l.b16 %v898
      %v951 = vunpack.c.h.b16 %v898
      %v952 = vunpack.c.l.b16 %v899
      %v953 = vunpack.c.h.b16 %v899
      %v954 = vunpack.c.l.b16 %v900
      %v955 = vunpack.c.h.b16 %v900
      %v956 = vunpack.c.l.b16 %v901
      %v957 = vunpack.c.h.b16 %v901
      %v958 = vunpack.c.l.b16 %v902
      %v959 = vunpack.c.h.b16 %v902
      %v960 = vunpack.c.l.b16 %v903
      %v961 = vunpack.c.h.b16 %v903
      %v962 = vunpack.c.l.b16 %v904
      %v963 = vunpack.c.h.b16 %v904
      %v964 = vunpack.c.l.b16 %v905
      %v965 = vunpack.c.h.b16 %v905
      %v966 = vunpack.c.l.b16 %v906
      %v967 = vunpack.c.h.b16 %v906
      %v968 = vunpack.c.l.b16 %v907
      %v969 = vunpack.c.h.b16 %v907
      %v970 = vunpack.c.l.b16 %v908
      %v971 = vunpack.c.h.b16 %v908
      %v972 = vunpack.c.l.b16 %v909
      %v973 = vunpack.c.h.b16 %v909
      %v974 = vunpack.c.l.b16 %v910
      %v975 = vunpack.c.h.b16 %v910
      %v976 = vunpack.c.l.b16 %v911
      %v977 = vunpack.c.h.b16 %v911
      %v978 = vunpack.c.l.b16 %v912
      %v979 = vunpack.c.h.b16 %v912
      %v980 = vunpack.c.l.b16 %v913
      %v981 = vunpack.c.h.b16 %v913
      %v982 = vunpack.c.l.b16 %v914
      %v983 = vunpack.c.h.b16 %v914
      %v984 = vunpack.c.l.b16 %v915
      %v985 = vunpack.c.h.b16 %v915
      %v986 = vunpack.c.l.b16 %v916
      %v987 = vunpack.c.h.b16 %v916
      %v988 = vunpack.c.l.b16 %v917
      %v989 = vunpack.c.h.b16 %v917
      %v990 = vunpack.c.l.b16 %v918
      %v991 = vunpack.c.h.b16 %v918
      %v992 = vunpack.c.l.b16 %v919
      %v993 = vunpack.c.h.b16 %v919
      %v994 = vunpack.c.l.b16 %v920
      %v995 = vunpack.c.h.b16 %v920
      %v996 = vpack.c.b16 %v946, %v946
      %v997 = vpack.c.b16 %v947, %v947
      %v998 = vpack.c.b16 %v948, %v948
      %v999 = vpack.c.b16 %v949, %v949
      %v1000 = vpack.c.b16 %v950, %v950
      %v1001 = vpack.c.b16 %v951, %v951
      %v1002 = vpack.c.b16 %v952, %v952
      %v1003 = vpack.c.b16 %v953, %v953
      %v1004 = vpack.c.b16 %v954, %v954
      %v1005 = vpack.c.b16 %v955, %v955
      %v1006 = vpack.c.b16 %v956, %v956
      %v1007 = vpack.c.b16 %v957, %v957
      %v1008 = vpack.c.b16 %v958, %v958
      %v1009 = vpack.c.b16 %v959, %v959
      %v1010 = vpack.c.b16 %v960, %v960
      %v1011 = vpack.c.b16 %v961, %v961
      %v1012 = vpack.c.b16 %v962, %v962
      %v1013 = vpack.c.b16 %v963, %v963
      %v1014 = vpack.c.b16 %v964, %v964
      %v1015 = vpack.c.b16 %v965, %v965
      %v1016 = vpack.c.b16 %v966, %v966
      %v1017 = vpack.c.b16 %v967, %v967
      %v1018 = vpack.c.b16 %v968, %v968
      %v1019 = vpack.c.b16 %v969, %v969
      %v1020 = vpack.c.b16 %v970, %v970
      %v1021 = vpack.c.b16 %v971, %v971
      %v1022 = vpack.c.b16 %v972, %v972
      %v1023 = vpack.c.b16 %v973, %v973
      %v1024 = vpack.c.b16 %v974, %v974
      %v1025 = vpack.c.b16 %v975, %v975
      %v1026 = vpack.c.b16 %v976, %v976
      %v1027 = vpack.c.b16 %v977, %v977
      %v1028 = vpack.c.b16 %v978, %v978
      %v1029 = vpack.c.b16 %v979, %v979
      %v1030 = vpack.c.b16 %v980, %v980
      %v1031 = vpack.c.b16 %v981, %v981
      %v1032 = vpack.c.b16 %v982, %v982
      %v1033 = vpack.c.b16 %v983, %v983
      %v1034 = vpack.c.b16 %v984, %v984
      %v1035 = vpack.c.b16 %v985, %v985
      %v1036 = vpack.c.b16 %v986, %v986
      %v1037 = vpack.c.b16 %v987, %v987
      %v1038 = vpack.c.b16 %v988, %v988
      %v1039 = vpack.c.b16 %v989, %v989
      %v1040 = vpack.c.b16 %v990, %v990
      %v1041 = vpack.c.b16 %v991, %v991
      %v1042 = vpack.c.b16 %v992, %v992
      %v1043 = vpack.c.b16 %v993, %v993
      %v1044 = vpack.c.b16 %v994, %v994
      %v1045 = vpack.c.b16 %v995, %v995
      %1096 = vst [vmem:[%s175] sm:$0xf] %v996
      %1097 = vst [vmem:[%s175 + $0x4] sm:$0xf] %v997
      %1098 = vst [vmem:[%s175 + $0x8] sm:$0xf] %v998
      %1099 = vst [vmem:[%s175 + $0xc] sm:$0xf] %v999
      %1100 = vst [vmem:[%s175 + $0x10] sm:$0xf] %v1000
      %1101 = vst [vmem:[%s175 + $0x14] sm:$0xf] %v1001
      %1102 = vst [vmem:[%s175 + $0x18] sm:$0xf] %v1002
      %1103 = vst [vmem:[%s175 + $0x1c] sm:$0xf] %v1003
      %1104 = vst [vmem:[%s175 + $0x20] sm:$0xf] %v1004
      %1105 = vst [vmem:[%s175 + $0x24] sm:$0xf] %v1005
      %1106 = vst [vmem:[%s175 + $0x28] sm:$0xf] %v1006
      %1107 = vst [vmem:[%s175 + $0x2c] sm:$0xf] %v1007
      %1108 = vst [vmem:[%s175 + $0x30] sm:$0xf] %v1008
      %1109 = vst [vmem:[%s175 + $0x34] sm:$0xf] %v1009
      %1110 = vst [vmem:[%s175 + $0x38] sm:$0xf] %v1010
      %1111 = vst [vmem:[%s175 + $0x3c] sm:$0xf] %v1011
      %1112 = vst [vmem:[%s175 + $0x40] sm:$0xf] %v1012
      %1113 = vst [vmem:[%s175 + $0x44] sm:$0xf] %v1013
      %1114 = vst [vmem:[%s175 + $0x48] sm:$0xf] %v1014
      %1115 = vst [vmem:[%s175 + $0x4c] sm:$0xf] %v1015
      %1116 = vst [vmem:[%s175 + $0x50] sm:$0xf] %v1016
      %1117 = vst [vmem:[%s175 + $0x54] sm:$0xf] %v1017
      %1118 = vst [vmem:[%s175 + $0x58] sm:$0xf] %v1018
      %1119 = vst [vmem:[%s175 + $0x5c] sm:$0xf] %v1019
      %1120 = vst [vmem:[%s175 + $0x60] sm:$0xf] %v1020
      %1121 = vst [vmem:[%s175 + $0x64] sm:$0xf] %v1021
      %1122 = vst [vmem:[%s175 + $0x68] sm:$0xf] %v1022
      %1123 = vst [vmem:[%s175 + $0x6c] sm:$0xf] %v1023
      %1124 = vst [vmem:[%s175 + $0x70] sm:$0xf] %v1024
      %1125 = vst [vmem:[%s175 + $0x74] sm:$0xf] %v1025
      %1126 = vst [vmem:[%s175 + $0x78] sm:$0xf] %v1026
      %1127 = vst [vmem:[%s175 + $0x7c] sm:$0xf] %v1027
      %1128 = vst [vmem:[%s175 + $0x80] sm:$0xf] %v1028
      %1129 = vst [vmem:[%s175 + $0x84] sm:$0xf] %v1029
      %1130 = vst [vmem:[%s175 + $0x88] sm:$0xf] %v1030
      %1131 = vst [vmem:[%s175 + $0x8c] sm:$0xf] %v1031
      %1132 = vst [vmem:[%s175 + $0x90] sm:$0xf] %v1032
      %1133 = vst [vmem:[%s175 + $0x94] sm:$0xf] %v1033
      %1134 = vst [vmem:[%s175 + $0x98] sm:$0xf] %v1034
      %1135 = vst [vmem:[%s175 + $0x9c] sm:$0xf] %v1035
      %1136 = vst [vmem:[%s175 + $0xa0] sm:$0xf] %v1036
      %1137 = vst [vmem:[%s175 + $0xa4] sm:$0xf] %v1037
      %1138 = vst [vmem:[%s175 + $0xa8] sm:$0xf] %v1038
      %1139 = vst [vmem:[%s175 + $0xac] sm:$0xf] %v1039
      %1140 = vst [vmem:[%s175 + $0xb0] sm:$0xf] %v1040
      %1141 = vst [vmem:[%s175 + $0xb4] sm:$0xf] %v1041
      %1142 = vst [vmem:[%s175 + $0xb8] sm:$0xf] %v1042
      %1143 = vst [vmem:[%s175 + $0xbc] sm:$0xf] %v1043
      %1144 = vst [vmem:[%s175 + $0xc0] sm:$0xf] %v1044
      %1145 = vst [vmem:[%s175 + $0xc4] sm:$0xf] %v1045
      %s1146 = smul.u32 50, %s14
      %p1147 = scmp.lt.s32.totalorder %s1146, 99
      %s1148 = scalar_select %p1147, %s1146, 99
      %s1149 = smul.addr %s1148, 4
      %s1150 = scalar_lea.vmem %s3, %s1149
      // Predicated region
      $region33: #{forward.3} parent=31 // pred_check
        %p1151 = pneg %p100
      $region34: #{forward.3} parent=31 // pred_check_branch
        %1153 = sbr.rel (%p1151) target = $region36
      $region35: #{forward.3} parent=31 // pred_region
        %s1154 = smul.u32 50, %s14
      $region36: #{forward.3} parent=31 // pred_fallthru
        _
    $region32: #{forward.3} parent=5 // pred_fallthru
      _
    %p1155 = scmp.le.s32.totalorder 2, %s9
    // Predicated region
    $region37: #{forward.3} parent=5 // pred_check
      %p1156 = pneg %p1155
    $region38: #{forward.3} parent=5 // pred_check_branch
      %1158 = sbr.rel (%p1156) target = $region40
    $region39: #{forward.3} parent=5 // pred_region
      %s1159 = ssub.s32 %s9, 2
      // Predicated region
      $region41: #{forward.3} parent=39 // pred_check
        %p1160 = pneg %p106
      $region42: #{forward.3} parent=39 // pred_check_branch
        %1162 = sbr.rel (%p1160) target = $region44
      $region43: #{forward.3} parent=39 // pred_region
        %s1163 = smul.u32 50, %s15
        %p1164 = scmp.lt.s32.totalorder %s1163, 99
        %s1165 = scalar_select %p1164, %s1163, 99
        %s1166 = smul.addr %s1165, 4
        %s1167 = scalar_lea.vmem %s3, %s1166
      $region44: #{forward.3} parent=39 // pred_fallthru
        _
    $region40: #{forward.3} parent=5 // pred_fallthru
      _
  $region6: #{forward.3} parent=0 // loop_footer
    %s13 = sadd.s32 1, %s9
  $region7: #{forward.3} parent=0 // loop_footer_branch
    %8 = sbr.rel target = $region3
  $region8: #{forward.3} parent=0 // loop_exit
    _

// kernel: forward.4
$region0: #{forward.4}
  #allocation0 [shape = 'u32[]', space=smem, size = 0x4, offset = 0x4, fixed_abs, tag = 'smem constant byte address 0x4 - core index']
  #allocation1 [shape = 'u32[144,128]{1,0:T(1,128)}', space=vmem, size = 0x12000, scoped, tag = 'internal scratch']
  %s0 = inlined_call_operand.vmem [shape: bf16[168,512], index: 0, kind: input, shape index: {}]
  %s1 = inlined_call_operand.vmem [shape: bf16[512,128], index: 1, kind: input, shape index: {}]
  %s2 = inlined_call_operand.vmem [shape: f32[1,128], index: 2, kind: input, shape index: {}]
  %s3 = inlined_call_operand.vmem [shape: bf16[168,128], index: 3, kind: output, shape index: {}]
  %s4 = sld [smem:[#allocation0]]
  $region22: #{forward.4} parent=0
    _
  %s6 = ssub.s32 1, %s4
  %s7 = scalar_select 0, %s6, %s4
  // Predicated region
  $region2: #{forward.4} parent=0 // pred_check
    _
  $region3: #{forward.4} parent=0 // pred_check_branch
    %9 = sbr.rel (0) target = $region5
  $region4: #{forward.4} parent=0 // pred_region
    _
  $region5: #{forward.4} parent=0 // pred_fallthru
    _
  // Predicated region
  $region6: #{forward.4} parent=0 // pred_check
    _
  $region7: #{forward.4} parent=0 // pred_check_branch
    %11 = sbr.rel (0) target = $region9
  $region8: #{forward.4} parent=0 // pred_region
    _
  $region9: #{forward.4} parent=0 // pred_fallthru
    _
  // Predicated region
  $region10: #{forward.4} parent=0 // pred_check
    _
  $region11: #{forward.4} parent=0 // pred_check_branch
    %13 = sbr.rel (0) target = $region13
  $region12: #{forward.4} parent=0 // pred_region
    _
  $region13: #{forward.4} parent=0 // pred_fallthru
    _
  %v15 = vld [vmem:[%s0] sm:$0xff]
  %v16 = vld [vmem:[%s0 + $0x8] sm:$0xff]
  %v17 = vld [vmem:[%s0 + $0x10] sm:$0xff]
  %v18 = vld [vmem:[%s0 + $0x18] sm:$0xff]
  %v19 = vld [vmem:[%s0 + $0x20] sm:$0xff]
  %v20 = vld [vmem:[%s0 + $0x28] sm:$0xff]
  %v21 = vld [vmem:[%s0 + $0x30] sm:$0xff]
  %v22 = vld [vmem:[%s0 + $0x38] sm:$0xff]
  %v23 = vld [vmem:[%s0 + $0x40] sm:$0xff]
  %v24 = vld [vmem:[%s0 + $0x48] sm:$0xff]
  %v25 = vld [vmem:[%s0 + $0x50] sm:$0xff]
  %v26 = vld [vmem:[%s0 + $0x58] sm:$0xff]
  %v27 = vld [vmem:[%s0 + $0x60] sm:$0xff]
  %v28 = vld [vmem:[%s0 + $0x68] sm:$0xff]
  %v29 = vld [vmem:[%s0 + $0x70] sm:$0xff]
  %v30 = vld [vmem:[%s0 + $0x78] sm:$0xff]
  %v31 = vld [vmem:[%s0 + $0x80] sm:$0xff]
  %v32 = vld [vmem:[%s0 + $0x88] sm:$0xff]
  %v33 = vld [vmem:[%s0 + $0x90] sm:$0xff]
  %v34 = vld [vmem:[%s0 + $0x98] sm:$0xff]
  %v35 = vld [vmem:[%s0 + $0xa0] sm:$0xff]
  %v36 = vld [vmem:[%s0 + $0xa8] sm:$0xff]
  %v37 = vld [vmem:[%s0 + $0xb0] sm:$0xff]
  %v38 = vld [vmem:[%s0 + $0xb8] sm:$0xff]
  %v39 = vld [vmem:[%s0 + $0xc0] sm:$0xff]
  %v40 = vld [vmem:[%s0 + $0xc8] sm:$0xff]
  %v41 = vld [vmem:[%s0 + $0xd0] sm:$0xff]
  %v42 = vld [vmem:[%s0 + $0xd8] sm:$0xff]
  %v43 = vld [vmem:[%s0 + $0xe0] sm:$0xff]
  %v44 = vld [vmem:[%s0 + $0xe8] sm:$0xff]
  %v45 = vld [vmem:[%s0 + $0xf0] sm:$0xff]
  %v46 = vld [vmem:[%s0 + $0xf8] sm:$0xff]
  %v47 = vld [vmem:[%s0 + $0x100] sm:$0xff]
  %v48 = vld [vmem:[%s0 + $0x108] sm:$0xff]
  %v49 = vld [vmem:[%s0 + $0x110] sm:$0xff]
  %v50 = vld [vmem:[%s0 + $0x118] sm:$0xff]
  %v51 = vld [vmem:[%s0 + $0x120] sm:$0xff]
  %v52 = vld [vmem:[%s0 + $0x128] sm:$0xff]
  %v53 = vld [vmem:[%s0 + $0x130] sm:$0xff]
  %v54 = vld [vmem:[%s0 + $0x138] sm:$0xff]
  %v55 = vld [vmem:[%s0 + $0x140] sm:$0xff]
  %v56 = vld [vmem:[%s0 + $0x148] sm:$0xff]
  %v57 = vld [vmem:[%s1] sm:$0xf]
  %v58 = vld [vmem:[%s1 + $0x4] sm:$0xf]
  %v59 = vld [vmem:[%s1 + $0x8] sm:$0xf]
  %v60 = vld [vmem:[%s1 + $0xc] sm:$0xf]
  %v61 = vld [vmem:[%s1 + $0x10] sm:$0xf]
  %v62 = vld [vmem:[%s1 + $0x14] sm:$0xf]
  %v63 = vld [vmem:[%s1 + $0x18] sm:$0xf]
  %v64 = vld [vmem:[%s1 + $0x1c] sm:$0xf]
  %v65 = vld [vmem:[%s1 + $0x20] sm:$0xf]
  %v66 = vld [vmem:[%s1 + $0x24] sm:$0xf]
  %v67 = vld [vmem:[%s1 + $0x28] sm:$0xf]
  %v68 = vld [vmem:[%s1 + $0x2c] sm:$0xf]
  %v69 = vld [vmem:[%s1 + $0x30] sm:$0xf]
  %v70 = vld [vmem:[%s1 + $0x34] sm:$0xf]
  %v71 = vld [vmem:[%s1 + $0x38] sm:$0xf]
  %v72 = vld [vmem:[%s1 + $0x3c] sm:$0xf]
  %v73 = vld [vmem:[%s1 + $0x40] sm:$0xf]
  %v74 = vld [vmem:[%s1 + $0x44] sm:$0xf]
  %v75 = vld [vmem:[%s1 + $0x48] sm:$0xf]
  %v76 = vld [vmem:[%s1 + $0x4c] sm:$0xf]
  %v77 = vld [vmem:[%s1 + $0x50] sm:$0xf]
  %v78 = vld [vmem:[%s1 + $0x54] sm:$0xf]
  %v79 = vld [vmem:[%s1 + $0x58] sm:$0xf]
  %v80 = vld [vmem:[%s1 + $0x5c] sm:$0xf]
  %v81 = vld [vmem:[%s1 + $0x60] sm:$0xf]
  %v82 = vld [vmem:[%s1 + $0x64] sm:$0xf]
  %v83 = vld [vmem:[%s1 + $0x68] sm:$0xf]
  %v84 = vld [vmem:[%s1 + $0x6c] sm:$0xf]
  %v85 = vld [vmem:[%s1 + $0x70] sm:$0xf]
  %v86 = vld [vmem:[%s1 + $0x74] sm:$0xf]
  %v87 = vld [vmem:[%s1 + $0x78] sm:$0xf]
  %v88 = vld [vmem:[%s1 + $0x7c] sm:$0xf]
  %v89 = vld [vmem:[%s1 + $0x80] sm:$0xf]
  %v90 = vld [vmem:[%s1 + $0x84] sm:$0xf]
  %v91 = vld [vmem:[%s1 + $0x88] sm:$0xf]
  %v92 = vld [vmem:[%s1 + $0x8c] sm:$0xf]
  %v93 = vld [vmem:[%s1 + $0x90] sm:$0xf]
  %v94 = vld [vmem:[%s1 + $0x94] sm:$0xf]
  %v95 = vld [vmem:[%s1 + $0x98] sm:$0xf]
  %v96 = vld [vmem:[%s1 + $0x9c] sm:$0xf]
  %v97 = vld [vmem:[%s1 + $0xa0] sm:$0xf]
  %v98 = vld [vmem:[%s1 + $0xa4] sm:$0xf]
  %v99 = vld [vmem:[%s1 + $0xa8] sm:$0xf]
  %v100 = vld [vmem:[%s1 + $0xac] sm:$0xf]
  %v101 = vld [vmem:[%s1 + $0xb0] sm:$0xf]
  %v102 = vld [vmem:[%s1 + $0xb4] sm:$0xf]
  %v103 = vld [vmem:[%s1 + $0xb8] sm:$0xf]
  %v104 = vld [vmem:[%s1 + $0xbc] sm:$0xf]
  %v105 = vld [vmem:[%s1 + $0xc0] sm:$0xf]
  %v106 = vld [vmem:[%s1 + $0xc4] sm:$0xf]
  %v107 = vld [vmem:[%s1 + $0xc8] sm:$0xf]
  %v108 = vld [vmem:[%s1 + $0xcc] sm:$0xf]
  %v109 = vld [vmem:[%s1 + $0xd0] sm:$0xf]
  %v110 = vld [vmem:[%s1 + $0xd4] sm:$0xf]
  %v111 = vld [vmem:[%s1 + $0xd8] sm:$0xf]
  %v112 = vld [vmem:[%s1 + $0xdc] sm:$0xf]
  %v113 = vld [vmem:[%s1 + $0xe0] sm:$0xf]
  %v114 = vld [vmem:[%s1 + $0xe4] sm:$0xf]
  %v115 = vld [vmem:[%s1 + $0xe8] sm:$0xf]
  %v116 = vld [vmem:[%s1 + $0xec] sm:$0xf]
  %v117 = vld [vmem:[%s1 + $0xf0] sm:$0xf]
  %v118 = vld [vmem:[%s1 + $0xf4] sm:$0xf]
  %v119 = vld [vmem:[%s1 + $0xf8] sm:$0xf]
  %v120 = vld [vmem:[%s1 + $0xfc] sm:$0xf]
  %v121 = vld [vmem:[%s2] sm:$0x1]
  %v123 = vlaneseq
  %v124 = vshrl.u32 %v123, 7
  %v125 = vsub.s32 0, %v124
  %v126 = vrot.slane %v121, %v125
  %v170 = vunpack.c.l.b16 %v15
  %v171 = vunpack.c.h.b16 %v15
  %v172 = vunpack.c.l.b16 %v16
  %v173 = vunpack.c.h.b16 %v16
  %v174 = vunpack.c.l.b16 %v17
  %v175 = vunpack.c.h.b16 %v17
  %v176 = vunpack.c.l.b16 %v18
  %v177 = vunpack.c.h.b16 %v18
  %v178 = vunpack.c.l.b16 %v19
  %v179 = vunpack.c.h.b16 %v19
  %v180 = vunpack.c.l.b16 %v20
  %v181 = vunpack.c.h.b16 %v20
  %v182 = vunpack.c.l.b16 %v21
  %v183 = vunpack.c.h.b16 %v21
  %v184 = vunpack.c.l.b16 %v22
  %v185 = vunpack.c.h.b16 %v22
  %v186 = vunpack.c.l.b16 %v23
  %v187 = vunpack.c.h.b16 %v23
  %v188 = vunpack.c.l.b16 %v24
  %v189 = vunpack.c.h.b16 %v24
  %v190 = vunpack.c.l.b16 %v25
  %v191 = vunpack.c.h.b16 %v25
  %v192 = vunpack.c.l.b16 %v26
  %v193 = vunpack.c.h.b16 %v26
  %v194 = vunpack.c.l.b16 %v27
  %v195 = vunpack.c.h.b16 %v27
  %v196 = vunpack.c.l.b16 %v28
  %v197 = vunpack.c.h.b16 %v28
  %v198 = vunpack.c.l.b16 %v29
  %v199 = vunpack.c.h.b16 %v29
  %v200 = vunpack.c.l.b16 %v30
  %v201 = vunpack.c.h.b16 %v30
  %v202 = vunpack.c.l.b16 %v31
  %v203 = vunpack.c.h.b16 %v31
  %v204 = vunpack.c.l.b16 %v32
  %v205 = vunpack.c.h.b16 %v32
  %v206 = vunpack.c.l.b16 %v33
  %v207 = vunpack.c.h.b16 %v33
  %v208 = vunpack.c.l.b16 %v34
  %v209 = vunpack.c.h.b16 %v34
  %v210 = vunpack.c.l.b16 %v35
  %v211 = vunpack.c.h.b16 %v35
  %v212 = vunpack.c.l.b16 %v36
  %v213 = vunpack.c.h.b16 %v36
  %v214 = vunpack.c.l.b16 %v37
  %v215 = vunpack.c.h.b16 %v37
  %v216 = vunpack.c.l.b16 %v38
  %v217 = vunpack.c.h.b16 %v38
  %v218 = vunpack.c.l.b16 %v39
  %v219 = vunpack.c.h.b16 %v39
  %v220 = vunpack.c.l.b16 %v40
  %v221 = vunpack.c.h.b16 %v40
  %v222 = vunpack.c.l.b16 %v41
  %v223 = vunpack.c.h.b16 %v41
  %v224 = vunpack.c.l.b16 %v42
  %v225 = vunpack.c.h.b16 %v42
  %v226 = vunpack.c.l.b16 %v43
  %v227 = vunpack.c.h.b16 %v43
  %v228 = vunpack.c.l.b16 %v44
  %v229 = vunpack.c.h.b16 %v44
  %v230 = vunpack.c.l.b16 %v45
  %v231 = vunpack.c.h.b16 %v45
  %v232 = vunpack.c.l.b16 %v46
  %v233 = vunpack.c.h.b16 %v46
  %v234 = vunpack.c.l.b16 %v47
  %v235 = vunpack.c.h.b16 %v47
  %v236 = vunpack.c.l.b16 %v48
  %v237 = vunpack.c.h.b16 %v48
  %v238 = vunpack.c.l.b16 %v49
  %v239 = vunpack.c.h.b16 %v49
  %v240 = vunpack.c.l.b16 %v50
  %v241 = vunpack.c.h.b16 %v50
  %v242 = vunpack.c.l.b16 %v51
  %v243 = vunpack.c.h.b16 %v51
  %v244 = vunpack.c.l.b16 %v52
  %v245 = vunpack.c.h.b16 %v52
  %v246 = vunpack.c.l.b16 %v53
  %v247 = vunpack.c.h.b16 %v53
  %v248 = vunpack.c.l.b16 %v54
  %v249 = vunpack.c.h.b16 %v54
  %v250 = vunpack.c.l.b16 %v55
  %v251 = vunpack.c.h.b16 %v55
  %v252 = vunpack.c.l.b16 %v56
  %v253 = vunpack.c.h.b16 %v56
  %v254 = vpack.c.b16 %v174, %v170
  %v255 = vpack.c.b16 %v175, %v171
  %v256 = vpack.c.b16 %v176, %v172
  %v257 = vpack.c.b16 %v177, %v173
  %v258 = vpack.c.b16 %v182, %v178
  %v259 = vpack.c.b16 %v183, %v179
  %v260 = vpack.c.b16 %v184, %v180
  %v261 = vpack.c.b16 %v185, %v181
  %v262 = vpack.c.b16 %v190, %v186
  %v263 = vpack.c.b16 %v191, %v187
  %v264 = vpack.c.b16 %v192, %v188
  %v265 = vpack.c.b16 %v193, %v189
  %v266 = vpack.c.b16 %v198, %v194
  %v267 = vpack.c.b16 %v199, %v195
  %v268 = vpack.c.b16 %v200, %v196
  %v269 = vpack.c.b16 %v201, %v197
  %v270 = vpack.c.b16 %v206, %v202
  %v271 = vpack.c.b16 %v207, %v203
  %v272 = vpack.c.b16 %v208, %v204
  %v273 = vpack.c.b16 %v209, %v205
  %v274 = vpack.c.b16 %v214, %v210
  %v275 = vpack.c.b16 %v215, %v211
  %v276 = vpack.c.b16 %v216, %v212
  %v277 = vpack.c.b16 %v217, %v213
  %v278 = vpack.c.b16 %v222, %v218
  %v279 = vpack.c.b16 %v223, %v219
  %v280 = vpack.c.b16 %v224, %v220
  %v281 = vpack.c.b16 %v225, %v221
  %v282 = vpack.c.b16 %v230, %v226
  %v283 = vpack.c.b16 %v231, %v227
  %v284 = vpack.c.b16 %v232, %v228
  %v285 = vpack.c.b16 %v233, %v229
  %v286 = vpack.c.b16 %v238, %v234
  %v287 = vpack.c.b16 %v239, %v235
  %v288 = vpack.c.b16 %v240, %v236
  %v289 = vpack.c.b16 %v241, %v237
  %v290 = vpack.c.b16 %v246, %v242
  %v291 = vpack.c.b16 %v247, %v243
  %v292 = vpack.c.b16 %v248, %v244
  %v293 = vpack.c.b16 %v249, %v245
  %v294 = vpack.c.b16 %v250, %v250
  %v295 = vpack.c.b16 %v251, %v251
  %v296 = vpack.c.b16 %v252, %v252
  %v297 = vpack.c.b16 %v253, %v253
  %v406 = vunpack.c.l.b16 %v57
  %v407 = vunpack.c.l.b16 %v58
  %v408 = vunpack.c.l.b16 %v59
  %v409 = vunpack.c.l.b16 %v60
  %v410 = vunpack.c.l.b16 %v61
  %v411 = vunpack.c.l.b16 %v62
  %v412 = vunpack.c.l.b16 %v63
  %v413 = vunpack.c.l.b16 %v64
  %v414 = vunpack.c.l.b16 %v65
  %v415 = vunpack.c.l.b16 %v66
  %v416 = vunpack.c.l.b16 %v67
  %v417 = vunpack.c.l.b16 %v68
  %v418 = vunpack.c.l.b16 %v69
  %v419 = vunpack.c.l.b16 %v70
  %v420 = vunpack.c.l.b16 %v71
  %v421 = vunpack.c.l.b16 %v72
  %v422 = vunpack.c.l.b16 %v73
  %v423 = vunpack.c.l.b16 %v74
  %v424 = vunpack.c.l.b16 %v75
  %v425 = vunpack.c.l.b16 %v76
  %v426 = vunpack.c.l.b16 %v77
  %v427 = vunpack.c.l.b16 %v78
  %v428 = vunpack.c.l.b16 %v79
  %v429 = vunpack.c.l.b16 %v80
  %v430 = vunpack.c.l.b16 %v81
  %v431 = vunpack.c.l.b16 %v82
  %v432 = vunpack.c.l.b16 %v83
  %v433 = vunpack.c.l.b16 %v84
  %v434 = vunpack.c.l.b16 %v85
  %v435 = vunpack.c.l.b16 %v86
  %v436 = vunpack.c.l.b16 %v87
  %v437 = vunpack.c.l.b16 %v88
  %v438 = vunpack.c.l.b16 %v89
  %v439 = vunpack.c.l.b16 %v90
  %v440 = vunpack.c.l.b16 %v91
  %v441 = vunpack.c.l.b16 %v92
  %v442 = vunpack.c.l.b16 %v93
  %v443 = vunpack.c.l.b16 %v94
  %v444 = vunpack.c.l.b16 %v95
  %v445 = vunpack.c.l.b16 %v96
  %v446 = vunpack.c.l.b16 %v97
  %v447 = vunpack.c.l.b16 %v98
  %v448 = vunpack.c.l.b16 %v99
  %v449 = vunpack.c.l.b16 %v100
  %v450 = vunpack.c.l.b16 %v101
  %v451 = vunpack.c.l.b16 %v102
  %v452 = vunpack.c.l.b16 %v103
  %v453 = vunpack.c.l.b16 %v104
  %v454 = vunpack.c.l.b16 %v105
  %v455 = vunpack.c.l.b16 %v106
  %v456 = vunpack.c.l.b16 %v107
  %v457 = vunpack.c.l.b16 %v108
  %v458 = vunpack.c.l.b16 %v109
  %v459 = vunpack.c.l.b16 %v110
  %v460 = vunpack.c.l.b16 %v111
  %v461 = vunpack.c.l.b16 %v112
  %v462 = vunpack.c.l.b16 %v113
  %v463 = vunpack.c.l.b16 %v114
  %v464 = vunpack.c.l.b16 %v115
  %v465 = vunpack.c.l.b16 %v116
  %v466 = vunpack.c.l.b16 %v117
  %v467 = vunpack.c.l.b16 %v118
  %v468 = vunpack.c.l.b16 %v119
  %v469 = vunpack.c.l.b16 %v120
  %v470 = vpack.c.b16 %v407, %v406
  %v471 = vpack.c.b16 %v409, %v408
  %v472 = vpack.c.b16 %v411, %v410
  %v473 = vpack.c.b16 %v413, %v412
  %v474 = vpack.c.b16 %v415, %v414
  %v475 = vpack.c.b16 %v417, %v416
  %v476 = vpack.c.b16 %v419, %v418
  %v477 = vpack.c.b16 %v421, %v420
  %v478 = vpack.c.b16 %v423, %v422
  %v479 = vpack.c.b16 %v425, %v424
  %v480 = vpack.c.b16 %v427, %v426
  %v481 = vpack.c.b16 %v429, %v428
  %v482 = vpack.c.b16 %v431, %v430
  %v483 = vpack.c.b16 %v433, %v432
  %v484 = vpack.c.b16 %v435, %v434
  %v485 = vpack.c.b16 %v437, %v436
  %v486 = vpack.c.b16 %v439, %v438
  %v487 = vpack.c.b16 %v441, %v440
  %v488 = vpack.c.b16 %v443, %v442
  %v489 = vpack.c.b16 %v445, %v444
  %v490 = vpack.c.b16 %v447, %v446
  %v491 = vpack.c.b16 %v449, %v448
  %v492 = vpack.c.b16 %v451, %v450
  %v493 = vpack.c.b16 %v453, %v452
  %v494 = vpack.c.b16 %v455, %v454
  %v495 = vpack.c.b16 %v457, %v456
  %v496 = vpack.c.b16 %v459, %v458
  %v497 = vpack.c.b16 %v461, %v460
  %v498 = vpack.c.b16 %v463, %v462
  %v499 = vpack.c.b16 %v465, %v464
  %v500 = vpack.c.b16 %v467, %v466
  %v501 = vpack.c.b16 %v469, %v468
  %534 = vmatprep.subr.bf16.mxu0 0
  %535 = vmatpush1.bf16.msra.mxu0 %v470
  %536 = vmatprep.subr.bf16.mxu0 0
  %537 = vmatpush1.bf16.msra.mxu0 %v471
  %538 = vmatprep.subr.bf16.mxu0 0
  %539 = vmatpush1.bf16.msra.mxu0 %v472
  %540 = vmatprep.subr.bf16.mxu0 0
  %541 = vmatpush1.bf16.msra.mxu0 %v473
  %542 = vmatprep.subr.bf16.mxu0 0
  %543 = vmatpush1.bf16.msra.mxu0 %v474
  %544 = vmatprep.subr.bf16.mxu0 0
  %545 = vmatpush1.bf16.msra.mxu0 %v475
  %546 = vmatprep.subr.bf16.mxu0 0
  %547 = vmatpush1.bf16.msra.mxu0 %v476
  %548 = vmatprep.subr.bf16.mxu0 0
  %549 = vmatpush1.bf16.msra.mxu0 %v477
  %550 = vmatprep.subr.bf16.mxu0 0
  %551 = vmatpush1.bf16.msra.mxu0 %v478
  %552 = vmatprep.subr.bf16.mxu0 0
  %553 = vmatpush1.bf16.msra.mxu0 %v479
  %554 = vmatprep.subr.bf16.mxu0 0
  %555 = vmatpush1.bf16.msra.mxu0 %v480
  %556 = vmatprep.subr.bf16.mxu0 0
  %557 = vmatpush1.bf16.msra.mxu0 %v481
  %558 = vmatprep.subr.bf16.mxu0 0
  %559 = vmatpush1.bf16.msra.mxu0 %v482
  %560 = vmatprep.subr.bf16.mxu0 0
  %561 = vmatpush1.bf16.msra.mxu0 %v483
  %562 = vmatprep.subr.bf16.mxu0 0
  %563 = vmatpush1.bf16.msra.mxu0 %v484
  %564 = vmatprep.subr.bf16.mxu0 0
  %565 = vmatpush1.bf16.msra.mxu0 %v485
  %566 = vmatprep.mubr.bf16.mxu0 %v255
  %567 = vmatmul.mubr.bf16.gmra.mrb[0].mxu0 %v254
  %v568 = vpop.f32.mrb[0].mxu0
  %v569 = vadd.f32 %v126, %v568
  %v570 = vpop.f32.mrb[0].mxu0
  %v571 = vpop.f32.mrb[0].mxu0
  %v572 = vadd.f32 %v126, %v571
  %v573 = vpop.f32.mrb[0].mxu0
  %574 = vmatprep.mubr.bf16.mxu0 %v259
  %575 = vmatmul.mubr.bf16.gmra.mrb[0].mxu0 %v258
  %v576 = vpop.f32.mrb[0].mxu0
  %v577 = vadd.f32 %v126, %v576
  %v578 = vpop.f32.mrb[0].mxu0
  %v579 = vpop.f32.mrb[0].mxu0
  %v580 = vadd.f32 %v126, %v579
  %v581 = vpop.f32.mrb[0].mxu0
  %582 = vmatprep.mubr.bf16.mxu0 %v263
  %583 = vmatmul.mubr.bf16.gmra.mrb[0].mxu0 %v262
  %v584 = vpop.f32.mrb[0].mxu0
  %v585 = vadd.f32 %v126, %v584
  %v586 = vpop.f32.mrb[0].mxu0
  %v587 = vpop.f32.mrb[0].mxu0
  %v588 = vadd.f32 %v126, %v587
  %v589 = vpop.f32.mrb[0].mxu0
  %590 = vmatprep.mubr.bf16.mxu0 %v267
  %591 = vmatmul.mubr.bf16.gmra.mrb[0].mxu0 %v266
  %v592 = vpop.f32.mrb[0].mxu0
  %v593 = vadd.f32 %v126, %v592
  %v594 = vpop.f32.mrb[0].mxu0
  %v595 = vpop.f32.mrb[0].mxu0
  %v596 = vadd.f32 %v126, %v595
  %v597 = vpop.f32.mrb[0].mxu0
  %598 = vmatprep.mubr.bf16.mxu0 %v271
  %599 = vmatmul.mubr.bf16.gmra.mrb[0].mxu0 %v270
  %v600 = vpop.f32.mrb[0].mxu0
  %v601 = vadd.f32 %v126, %v600
  %v602 = vpop.f32.mrb[0].mxu0
  %v603 = vpop.f32.mrb[0].mxu0
  %v604 = vadd.f32 %v126, %v603
  %v605 = vpop.f32.mrb[0].mxu0
  %606 = vmatprep.mubr.bf16.mxu0 %v275
  %607 = vmatmul.mubr.bf16.gmra.mrb[0].mxu0 %v274
  %v608 = vpop.f32.mrb[0].mxu0
  %v609 = vadd.f32 %v126, %v608
  %v610 = vpop.f32.mrb[0].mxu0
  %v611 = vpop.f32.mrb[0].mxu0
  %v612 = vadd.f32 %v126, %v611
  %v613 = vpop.f32.mrb[0].mxu0
  %614 = vmatprep.mubr.bf16.mxu0 %v279
  %615 = vmatmul.mubr.bf16.gmra.mrb[0].mxu0 %v278
  %v616 = vpop.f32.mrb[0].mxu0
  %v617 = vadd.f32 %v126, %v616
  %v618 = vpop.f32.mrb[0].mxu0
  %v619 = vpop.f32.mrb[0].mxu0
  %v620 = vadd.f32 %v126, %v619
  %v621 = vpop.f32.mrb[0].mxu0
  %622 = vmatprep.mubr.bf16.mxu0 %v283
  %623 = vmatmul.mubr.bf16.gmra.mrb[0].mxu0 %v282
  %v624 = vpop.f32.mrb[0].mxu0
  %v625 = vadd.f32 %v126, %v624
  %v626 = vpop.f32.mrb[0].mxu0
  %v627 = vpop.f32.mrb[0].mxu0
  %v628 = vadd.f32 %v126, %v627
  %v629 = vpop.f32.mrb[0].mxu0
  %630 = vmatprep.mubr.bf16.mxu0 %v287
  %631 = vmatmul.mubr.bf16.gmra.mrb[0].mxu0 %v286
  %v632 = vpop.f32.mrb[0].mxu0
  %v633 = vadd.f32 %v126, %v632
  %v634 = vpop.f32.mrb[0].mxu0
  %v635 = vpop.f32.mrb[0].mxu0
  %v636 = vadd.f32 %v126, %v635
  %v637 = vpop.f32.mrb[0].mxu0
  %638 = vmatprep.mubr.bf16.mxu0 %v291
  %639 = vmatmul.mubr.bf16.gmra.mrb[0].mxu0 %v290
  %v640 = vpop.f32.mrb[0].mxu0
  %v641 = vadd.f32 %v126, %v640
  %v642 = vpop.f32.mrb[0].mxu0
  %v643 = vpop.f32.mrb[0].mxu0
  %v644 = vadd.f32 %v126, %v643
  %v645 = vpop.f32.mrb[0].mxu0
  %646 = vmatprep.mubr.bf16.mxu0 %v295
  %647 = vmatmul.mubr.bf16.gmra.mrb[0].mxu0 %v294
  %v648 = vpop.f32.mrb[0].mxu0
  %v649 = vadd.f32 %v126, %v648
  %v650 = vpop.f32.mrb[0].mxu0
  %v651 = vpop.f32.mrb[0].mxu0
  %v652 = vpop.f32.mrb[0].mxu0
  %653 = vdwg.mxu0
  %654 = vmatprep.subr.bf16.mxu0 0
  %655 = vmatpush1.bf16.msra.mxu0 %v486
  %656 = vmatprep.subr.bf16.mxu0 0
  %657 = vmatpush1.bf16.msra.mxu0 %v487
  %658 = vmatprep.subr.bf16.mxu0 0
  %659 = vmatpush1.bf16.msra.mxu0 %v488
  %660 = vmatprep.subr.bf16.mxu0 0
  %661 = vmatpush1.bf16.msra.mxu0 %v489
  %662 = vmatprep.subr.bf16.mxu0 0
  %663 = vmatpush1.bf16.msra.mxu0 %v490
  %664 = vmatprep.subr.bf16.mxu0 0
  %665 = vmatpush1.bf16.msra.mxu0 %v491
  %666 = vmatprep.subr.bf16.mxu0 0
  %667 = vmatpush1.bf16.msra.mxu0 %v492
  %668 = vmatprep.subr.bf16.mxu0 0
  %669 = vmatpush1.bf16.msra.mxu0 %v493
  %670 = vmatprep.subr.bf16.mxu0 0
  %671 = vmatpush1.bf16.msra.mxu0 %v494
  %672 = vmatprep.subr.bf16.mxu0 0
  %673 = vmatpush1.bf16.msra.mxu0 %v495
  %674 = vmatprep.subr.bf16.mxu0 0
  %675 = vmatpush1.bf16.msra.mxu0 %v496
  %676 = vmatprep.subr.bf16.mxu0 0
  %677 = vmatpush1.bf16.msra.mxu0 %v497
  %678 = vmatprep.subr.bf16.mxu0 0
  %679 = vmatpush1.bf16.msra.mxu0 %v498
  %680 = vmatprep.subr.bf16.mxu0 0
  %681 = vmatpush1.bf16.msra.mxu0 %v499
  %682 = vmatprep.subr.bf16.mxu0 0
  %683 = vmatpush1.bf16.msra.mxu0 %v500
  %684 = vmatprep.subr.bf16.mxu0 0
  %685 = vmatpush1.bf16.msra.mxu0 %v501
  %686 = vmatprep.mubr.bf16.mxu0 %v257
  %687 = vmatmul.mubr.bf16.gmra.mrb[0].mxu0 %v256
  %v688 = vpop.f32.mrb[0].mxu0
  %v689 = vadd.f32 %v569, %v688
  %v690 = vpop.f32.mrb[0].mxu0
  %v691 = vpop.f32.mrb[0].mxu0
  %v692 = vadd.f32 %v572, %v691
  %v693 = vpop.f32.mrb[0].mxu0
  %694 = vmatprep.mubr.bf16.mxu0 %v261
  %695 = vmatmul.mubr.bf16.gmra.mrb[0].mxu0 %v260
  %v696 = vpop.f32.mrb[0].mxu0
  %v697 = vadd.f32 %v577, %v696
  %v698 = vpop.f32.mrb[0].mxu0
  %v699 = vpop.f32.mrb[0].mxu0
  %v700 = vadd.f32 %v580, %v699
  %v701 = vpop.f32.mrb[0].mxu0
  %702 = vmatprep.mubr.bf16.mxu0 %v265
  %703 = vmatmul.mubr.bf16.gmra.mrb[0].mxu0 %v264
  %v704 = vpop.f32.mrb[0].mxu0
  %v705 = vadd.f32 %v585, %v704
  %v706 = vpop.f32.mrb[0].mxu0
  %v707 = vpop.f32.mrb[0].mxu0
  %v708 = vadd.f32 %v588, %v707
  %v709 = vpop.f32.mrb[0].mxu0
  %710 = vmatprep.mubr.bf16.mxu0 %v269
  %711 = vmatmul.mubr.bf16.gmra.mrb[0].mxu0 %v268
  %v712 = vpop.f32.mrb[0].mxu0
  %v713 = vadd.f32 %v593, %v712
  %v714 = vpop.f32.mrb[0].mxu0
  %v715 = vpop.f32.mrb[0].mxu0
  %v716 = vadd.f32 %v596, %v715
  %v717 = vpop.f32.mrb[0].mxu0
  %718 = vmatprep.mubr.bf16.mxu0 %v273
  %719 = vmatmul.mubr.bf16.gmra.mrb[0].mxu0 %v272
  %v720 = vpop.f32.mrb[0].mxu0
  %v721 = vadd.f32 %v601, %v720
  %v722 = vpop.f32.mrb[0].mxu0
  %v723 = vpop.f32.mrb[0].mxu0
  %v724 = vadd.f32 %v604, %v723
  %v725 = vpop.f32.mrb[0].mxu0
  %726 = vmatprep.mubr.bf16.mxu0 %v277
  %727 = vmatmul.mubr.bf16.gmra.mrb[0].mxu0 %v276
  %v728 = vpop.f32.mrb[0].mxu0
  %v729 = vadd.f32 %v609, %v728
  %v730 = vpop.f32.mrb[0].mxu0
  %v731 = vpop.f32.mrb[0].mxu0
  %v732 = vadd.f32 %v612, %v731
  %v733 = vpop.f32.mrb[0].mxu0
  %734 = vmatprep.mubr.bf16.mxu0 %v281
  %735 = vmatmul.mubr.bf16.gmra.mrb[0].mxu0 %v280
  %v736 = vpop.f32.mrb[0].mxu0
  %v737 = vadd.f32 %v617, %v736
  %v738 = vpop.f32.mrb[0].mxu0
  %v739 = vpop.f32.mrb[0].mxu0
  %v740 = vadd.f32 %v620, %v739
  %v741 = vpop.f32.mrb[0].mxu0
  %742 = vmatprep.mubr.bf16.mxu0 %v285
  %743 = vmatmul.mubr.bf16.gmra.mrb[0].mxu0 %v284
  %v744 = vpop.f32.mrb[0].mxu0
  %v745 = vadd.f32 %v625, %v744
  %v746 = vpop.f32.mrb[0].mxu0
  %v747 = vpop.f32.mrb[0].mxu0
  %v748 = vadd.f32 %v628, %v747
  %v749 = vpop.f32.mrb[0].mxu0
  %750 = vmatprep.mubr.bf16.mxu0 %v289
  %751 = vmatmul.mubr.bf16.gmra.mrb[0].mxu0 %v288
  %v752 = vpop.f32.mrb[0].mxu0
  %v753 = vadd.f32 %v633, %v752
  %v754 = vpop.f32.mrb[0].mxu0
  %v755 = vpop.f32.mrb[0].mxu0
  %v756 = vadd.f32 %v636, %v755
  %v757 = vpop.f32.mrb[0].mxu0
  %758 = vmatprep.mubr.bf16.mxu0 %v293
  %759 = vmatmul.mubr.bf16.gmra.mrb[0].mxu0 %v292
  %v760 = vpop.f32.mrb[0].mxu0
  %v761 = vadd.f32 %v641, %v760
  %v762 = vpop.f32.mrb[0].mxu0
  %v763 = vpop.f32.mrb[0].mxu0
  %v764 = vadd.f32 %v644, %v763
  %v765 = vpop.f32.mrb[0].mxu0
  %766 = vmatprep.mubr.bf16.mxu0 %v297
  %767 = vmatmul.mubr.bf16.gmra.mrb[0].mxu0 %v296
  %v768 = vpop.f32.mrb[0].mxu0
  %v769 = vadd.f32 %v649, %v768
  %v770 = vpop.f32.mrb[0].mxu0
  %v771 = vpop.f32.mrb[0].mxu0
  %v772 = vpop.f32.mrb[0].mxu0
  %773 = vdwg.mxu0
  %v774 = vmax.f32 %v689, 0.0
  %v775 = vmax.f32 %v692, 0.0
  %v776 = vmax.f32 %v697, 0.0
  %v777 = vmax.f32 %v700, 0.0
  %v778 = vmax.f32 %v705, 0.0
  %v779 = vmax.f32 %v708, 0.0
  %v780 = vmax.f32 %v713, 0.0
  %v781 = vmax.f32 %v716, 0.0
  %v782 = vmax.f32 %v721, 0.0
  %v783 = vmax.f32 %v724, 0.0
  %v784 = vmax.f32 %v729, 0.0
  %v785 = vmax.f32 %v732, 0.0
  %v786 = vmax.f32 %v737, 0.0
  %v787 = vmax.f32 %v740, 0.0
  %v788 = vmax.f32 %v745, 0.0
  %v789 = vmax.f32 %v748, 0.0
  %v790 = vmax.f32 %v753, 0.0
  %v791 = vmax.f32 %v756, 0.0
  %v792 = vmax.f32 %v761, 0.0
  %v793 = vmax.f32 %v764, 0.0
  %v794 = vmax.f32 %v769, 0.0
  %v795 = vpack.c.bf16 %v775, %v774
  %v796 = vpack.c.bf16 %v777, %v776
  %v797 = vpack.c.bf16 %v779, %v778
  %v798 = vpack.c.bf16 %v781, %v780
  %v799 = vpack.c.bf16 %v783, %v782
  %v800 = vpack.c.bf16 %v785, %v784
  %v801 = vpack.c.bf16 %v787, %v786
  %v802 = vpack.c.bf16 %v789, %v788
  %v803 = vpack.c.bf16 %v791, %v790
  %v804 = vpack.c.bf16 %v793, %v792
  %v805 = vpack.c.bf16 %v794, %v794
  %v817 = vunpack.c.l.b16 %v795
  %v818 = vunpack.c.h.b16 %v795
  %v819 = vunpack.c.l.b16 %v796
  %v820 = vunpack.c.h.b16 %v796
  %v821 = vunpack.c.l.b16 %v797
  %v822 = vunpack.c.h.b16 %v797
  %v823 = vunpack.c.l.b16 %v798
  %v824 = vunpack.c.h.b16 %v798
  %v825 = vunpack.c.l.b16 %v799
  %v826 = vunpack.c.h.b16 %v799
  %v827 = vunpack.c.l.b16 %v800
  %v828 = vunpack.c.h.b16 %v800
  %v829 = vunpack.c.l.b16 %v801
  %v830 = vunpack.c.h.b16 %v801
  %v831 = vunpack.c.l.b16 %v802
  %v832 = vunpack.c.h.b16 %v802
  %v833 = vunpack.c.l.b16 %v803
  %v834 = vunpack.c.h.b16 %v803
  %v835 = vunpack.c.l.b16 %v804
  %v836 = vunpack.c.h.b16 %v804
  %v837 = vunpack.c.l.b16 %v805
  %v838 = vpack.c.b16 %v817, %v817
  %v839 = vpack.c.b16 %v818, %v818
  %v840 = vpack.c.b16 %v819, %v819
  %v841 = vpack.c.b16 %v820, %v820
  %v842 = vpack.c.b16 %v821, %v821
  %v843 = vpack.c.b16 %v822, %v822
  %v844 = vpack.c.b16 %v823, %v823
  %v845 = vpack.c.b16 %v824, %v824
  %v846 = vpack.c.b16 %v825, %v825
  %v847 = vpack.c.b16 %v826, %v826
  %v848 = vpack.c.b16 %v827, %v827
  %v849 = vpack.c.b16 %v828, %v828
  %v850 = vpack.c.b16 %v829, %v829
  %v851 = vpack.c.b16 %v830, %v830
  %v852 = vpack.c.b16 %v831, %v831
  %v853 = vpack.c.b16 %v832, %v832
  %v854 = vpack.c.b16 %v833, %v833
  %v855 = vpack.c.b16 %v834, %v834
  %v856 = vpack.c.b16 %v835, %v835
  %v857 = vpack.c.b16 %v836, %v836
  %v858 = vpack.c.b16 %v837, %v837
  %880 = vst [vmem:[%s3] sm:$0xf] %v838
  %881 = vst [vmem:[%s3 + $0x4] sm:$0xf] %v839
  %882 = vst [vmem:[%s3 + $0x8] sm:$0xf] %v840
  %883 = vst [vmem:[%s3 + $0xc] sm:$0xf] %v841
  %884 = vst [vmem:[%s3 + $0x10] sm:$0xf] %v842
  %885 = vst [vmem:[%s3 + $0x14] sm:$0xf] %v843
  %886 = vst [vmem:[%s3 + $0x18] sm:$0xf] %v844
  %887 = vst [vmem:[%s3 + $0x1c] sm:$0xf] %v845
  %888 = vst [vmem:[%s3 + $0x20] sm:$0xf] %v846
  %889 = vst [vmem:[%s3 + $0x24] sm:$0xf] %v847
  %890 = vst [vmem:[%s3 + $0x28] sm:$0xf] %v848
  %891 = vst [vmem:[%s3 + $0x2c] sm:$0xf] %v849
  %892 = vst [vmem:[%s3 + $0x30] sm:$0xf] %v850
  %893 = vst [vmem:[%s3 + $0x34] sm:$0xf] %v851
  %894 = vst [vmem:[%s3 + $0x38] sm:$0xf] %v852
  %895 = vst [vmem:[%s3 + $0x3c] sm:$0xf] %v853
  %896 = vst [vmem:[%s3 + $0x40] sm:$0xf] %v854
  %897 = vst [vmem:[%s3 + $0x44] sm:$0xf] %v855
  %898 = vst [vmem:[%s3 + $0x48] sm:$0xf] %v856
  %899 = vst [vmem:[%s3 + $0x4c] sm:$0xf] %v857
  %900 = vst [vmem:[%s3 + $0x50] sm:$0xf] %v858
  // Predicated region
  $region14: #{forward.4} parent=0 // pred_check
    _
  $region15: #{forward.4} parent=0 // pred_check_branch
    %902 = sbr.rel (0) target = $region17
  $region16: #{forward.4} parent=0 // pred_region
    _
  $region17: #{forward.4} parent=0 // pred_fallthru
    _
  // Predicated region
  $region18: #{forward.4} parent=0 // pred_check
    _
  $region19: #{forward.4} parent=0 // pred_check_branch
    %904 = sbr.rel (0) target = $region21
  $region20: #{forward.4} parent=0 // pred_region
    _
  $region21: #{forward.4} parent=0 // pred_fallthru
    _

// kernel: forward.5
$region0: #{forward.5}
  #allocation0 [shape = 'u32[]', space=smem, size = 0x4, offset = 0x4, fixed_abs, tag = 'smem constant byte address 0x4 - core index']
  #allocation1 [shape = 'u32[144,128]{1,0:T(1,128)}', space=vmem, size = 0x12000, scoped, tag = 'internal scratch']
  #allocation2 [shape = 'bf16[392,64]{1,0:T(8,128)(2,1)}', space=vmem, size = 0x18800, scoped, tag = 'scratch operand']
  %s0 = inlined_call_operand.vmem [shape: bf16[392,576], index: 0, kind: input, shape index: {}]
  %s1 = inlined_call_operand.vmem [shape: bf16[576,64], index: 1, kind: input, shape index: {}]
  %s2 = inlined_call_operand.vmem [shape: f32[1,64], index: 2, kind: input, shape index: {}]
  %s3 = inlined_call_operand.vmem [shape: bf16[49,64,512], index: 3, kind: input, shape index: {}]
  %s4 = inlined_call_operand.vmem [shape: f32[1,512], index: 4, kind: input, shape index: {}]
  %s5 = inlined_call_operand.vmem [shape: bf16[512,128], index: 5, kind: input, shape index: {}]
  %s6 = inlined_call_operand.vmem [shape: f32[1,128], index: 6, kind: input, shape index: {}]
  %s7 = inlined_call_operand.vmem [shape: f32[8,128], index: 7, kind: output, shape index: {}]
  %s8 = sld [smem:[#allocation0]]
  $region38: #{forward.5} parent=0
    _
  %s10 = ssub.s32 1, %s8
  %s11 = scalar_select 0, %s10, %s8
  // Predicated region
  $region2: #{forward.5} parent=0 // pred_check
    _
  $region3: #{forward.5} parent=0 // pred_check_branch
    %13 = sbr.rel (0) target = $region5
  $region4: #{forward.5} parent=0 // pred_region
    _
  $region5: #{forward.5} parent=0 // pred_fallthru
    _
  // Predicated region
  $region6: #{forward.5} parent=0 // pred_check
    _
  $region7: #{forward.5} parent=0 // pred_check_branch
    %15 = sbr.rel (0) target = $region9
  $region8: #{forward.5} parent=0 // pred_region
    _
  $region9: #{forward.5} parent=0 // pred_fallthru
    _
  // Predicated region
  $region10: #{forward.5} parent=0 // pred_check
    _
  $region11: #{forward.5} parent=0 // pred_check_branch
    %17 = sbr.rel (0) target = $region13
  $region12: #{forward.5} parent=0 // pred_region
    _
  $region13: #{forward.5} parent=0 // pred_fallthru
    _
  // Predicated region
  $region14: #{forward.5} parent=0 // pred_check
    _
  $region15: #{forward.5} parent=0 // pred_check_branch
    %19 = sbr.rel (0) target = $region17
  $region16: #{forward.5} parent=0 // pred_region
    _
  $region17: #{forward.5} parent=0 // pred_fallthru
    _
  // Predicated region
  $region18: #{forward.5} parent=0 // pred_check
    _
  $region19: #{forward.5} parent=0 // pred_check_branch
    %21 = sbr.rel (0) target = $region21
  $region20: #{forward.5} parent=0 // pred_region
    _
  $region21: #{forward.5} parent=0 // pred_fallthru
    _
  // Predicated region
  $region22: #{forward.5} parent=0 // pred_check
    _
  $region23: #{forward.5} parent=0 // pred_check_branch
    %23 = sbr.rel (0) target = $region25
  $region24: #{forward.5} parent=0 // pred_region
    _
  $region25: #{forward.5} parent=0 // pred_fallthru
    _
  // Predicated region
  $region26: #{forward.5} parent=0 // pred_check
    _
  $region27: #{forward.5} parent=0 // pred_check_branch
    %25 = sbr.rel (0) target = $region29
  $region28: #{forward.5} parent=0 // pred_region
    _
  $region29: #{forward.5} parent=0 // pred_fallthru
    _
  %v27 = vld [vmem:[%s0] sm:$0xff]
  %v28 = vld [vmem:[%s0 + $0x8] sm:$0xff]
  %v29 = vld [vmem:[%s0 + $0x10] sm:$0xf]
  %v30 = vld [vmem:[%s0 + $0x14] sm:$0xff]
  %v31 = vld [vmem:[%s0 + $0x1c] sm:$0xff]
  %v32 = vld [vmem:[%s0 + $0x24] sm:$0xf]
  %v33 = vld [vmem:[%s0 + $0x28] sm:$0xff]
  %v34 = vld [vmem:[%s0 + $0x30] sm:$0xff]
  %v35 = vld [vmem:[%s0 + $0x38] sm:$0xf]
  %v36 = vld [vmem:[%s0 + $0x3c] sm:$0xff]
  %v37 = vld [vmem:[%s0 + $0x44] sm:$0xff]
  %v38 = vld [vmem:[%s0 + $0x4c] sm:$0xf]
  %v39 = vld [vmem:[%s0 + $0x50] sm:$0xff]
  %v40 = vld [vmem:[%s0 + $0x58] sm:$0xff]
  %v41 = vld [vmem:[%s0 + $0x60] sm:$0xf]
  %v42 = vld [vmem:[%s0 + $0x64] sm:$0xff]
  %v43 = vld [vmem:[%s0 + $0x6c] sm:$0xff]
  %v44 = vld [vmem:[%s0 + $0x74] sm:$0xf]
  %v45 = vld [vmem:[%s0 + $0x78] sm:$0xff]
  %v46 = vld [vmem:[%s0 + $0x80] sm:$0xff]
  %v47 = vld [vmem:[%s0 + $0x88] sm:$0xf]
  %v48 = vld [vmem:[%s0 + $0x8c] sm:$0xff]
  %v49 = vld [vmem:[%s0 + $0x94] sm:$0xff]
  %v50 = vld [vmem:[%s0 + $0x9c] sm:$0xf]
  %v51 = vld [vmem:[%s0 + $0xa0] sm:$0xff]
  %v52 = vld [vmem:[%s0 + $0xa8] sm:$0xff]
  %v53 = vld [vmem:[%s0 + $0xb0] sm:$0xf]
  %v54 = vld [vmem:[%s0 + $0xb4] sm:$0xff]
  %v55 = vld [vmem:[%s0 + $0xbc] sm:$0xff]
  %v56 = vld [vmem:[%s0 + $0xc4] sm:$0xf]
  %v57 = vld [vmem:[%s0 + $0xc8] sm:$0xff]
  %v58 = vld [vmem:[%s0 + $0xd0] sm:$0xff]
  %v59 = vld [vmem:[%s0 + $0xd8] sm:$0xf]
  %v60 = vld [vmem:[%s0 + $0xdc] sm:$0xff]
  %v61 = vld [vmem:[%s0 + $0xe4] sm:$0xff]
  %v62 = vld [vmem:[%s0 + $0xec] sm:$0xf]
  %v63 = vld [vmem:[%s0 + $0xf0] sm:$0xff]
  %v64 = vld [vmem:[%s0 + $0xf8] sm:$0xff]
  %v65 = vld [vmem:[%s0 + $0x100] sm:$0xf]
  %v66 = vld [vmem:[%s0 + $0x104] sm:$0xff]
  %v67 = vld [vmem:[%s0 + $0x10c] sm:$0xff]
  %v68 = vld [vmem:[%s0 + $0x114] sm:$0xf]
  %v69 = vld [vmem:[%s0 + $0x118] sm:$0xff]
  %v70 = vld [vmem:[%s0 + $0x120] sm:$0xff]
  %v71 = vld [vmem:[%s0 + $0x128] sm:$0xf]
  %v72 = vld [vmem:[%s0 + $0x12c] sm:$0xff]
  %v73 = vld [vmem:[%s0 + $0x134] sm:$0xff]
  %v74 = vld [vmem:[%s0 + $0x13c] sm:$0xf]
  %v75 = vld [vmem:[%s0 + $0x140] sm:$0xff]
  %v76 = vld [vmem:[%s0 + $0x148] sm:$0xff]
  %v77 = vld [vmem:[%s0 + $0x150] sm:$0xf]
  %v78 = vld [vmem:[%s0 + $0x154] sm:$0xff]
  %v79 = vld [vmem:[%s0 + $0x15c] sm:$0xff]
  %v80 = vld [vmem:[%s0 + $0x164] sm:$0xf]
  %v81 = vld [vmem:[%s0 + $0x168] sm:$0xff]
  %v82 = vld [vmem:[%s0 + $0x170] sm:$0xff]
  %v83 = vld [vmem:[%s0 + $0x178] sm:$0xf]
  %v84 = vld [vmem:[%s0 + $0x17c] sm:$0xff]
  %v85 = vld [vmem:[%s0 + $0x184] sm:$0xff]
  %v86 = vld [vmem:[%s0 + $0x18c] sm:$0xf]
  %v87 = vld [vmem:[%s0 + $0x190] sm:$0xff]
  %v88 = vld [vmem:[%s0 + $0x198] sm:$0xff]
  %v89 = vld [vmem:[%s0 + $0x1a0] sm:$0xf]
  %v90 = vld [vmem:[%s0 + $0x1a4] sm:$0xff]
  %v91 = vld [vmem:[%s0 + $0x1ac] sm:$0xff]
  %v92 = vld [vmem:[%s0 + $0x1b4] sm:$0xf]
  %v93 = vld [vmem:[%s0 + $0x1b8] sm:$0xff]
  %v94 = vld [vmem:[%s0 + $0x1c0] sm:$0xff]
  %v95 = vld [vmem:[%s0 + $0x1c8] sm:$0xf]
  %v96 = vld [vmem:[%s0 + $0x1cc] sm:$0xff]
  %v97 = vld [vmem:[%s0 + $0x1d4] sm:$0xff]
  %v98 = vld [vmem:[%s0 + $0x1dc] sm:$0xf]
  %v99 = vld [vmem:[%s0 + $0x1e0] sm:$0xff]
  %v100 = vld [vmem:[%s0 + $0x1e8] sm:$0xff]
  %v101 = vld [vmem:[%s0 + $0x1f0] sm:$0xf]
  %v102 = vld [vmem:[%s0 + $0x1f4] sm:$0xff]
  %v103 = vld [vmem:[%s0 + $0x1fc] sm:$0xff]
  %v104 = vld [vmem:[%s0 + $0x204] sm:$0xf]
  %v105 = vld [vmem:[%s0 + $0x208] sm:$0xff]
  %v106 = vld [vmem:[%s0 + $0x210] sm:$0xff]
  %v107 = vld [vmem:[%s0 + $0x218] sm:$0xf]
  %v108 = vld [vmem:[%s0 + $0x21c] sm:$0xff]
  %v109 = vld [vmem:[%s0 + $0x224] sm:$0xff]
  %v110 = vld [vmem:[%s0 + $0x22c] sm:$0xf]
  %v111 = vld [vmem:[%s0 + $0x230] sm:$0xff]
  %v112 = vld [vmem:[%s0 + $0x238] sm:$0xff]
  %v113 = vld [vmem:[%s0 + $0x240] sm:$0xf]
  %v114 = vld [vmem:[%s0 + $0x244] sm:$0xff]
  %v115 = vld [vmem:[%s0 + $0x24c] sm:$0xff]
  %v116 = vld [vmem:[%s0 + $0x254] sm:$0xf]
  %v117 = vld [vmem:[%s0 + $0x258] sm:$0xff]
  %v118 = vld [vmem:[%s0 + $0x260] sm:$0xff]
  %v119 = vld [vmem:[%s0 + $0x268] sm:$0xf]
  %v120 = vld [vmem:[%s0 + $0x26c] sm:$0xff]
  %v121 = vld [vmem:[%s0 + $0x274] sm:$0xff]
  %v122 = vld [vmem:[%s0 + $0x27c] sm:$0xf]
  %v123 = vld [vmem:[%s0 + $0x280] sm:$0xff]
  %v124 = vld [vmem:[%s0 + $0x288] sm:$0xff]
  %v125 = vld [vmem:[%s0 + $0x290] sm:$0xf]
  %v126 = vld [vmem:[%s0 + $0x294] sm:$0xff]
  %v127 = vld [vmem:[%s0 + $0x29c] sm:$0xff]
  %v128 = vld [vmem:[%s0 + $0x2a4] sm:$0xf]
  %v129 = vld [vmem:[%s0 + $0x2a8] sm:$0xff]
  %v130 = vld [vmem:[%s0 + $0x2b0] sm:$0xff]
  %v131 = vld [vmem:[%s0 + $0x2b8] sm:$0xf]
  %v132 = vld [vmem:[%s0 + $0x2bc] sm:$0xff]
  %v133 = vld [vmem:[%s0 + $0x2c4] sm:$0xff]
  %v134 = vld [vmem:[%s0 + $0x2cc] sm:$0xf]
  %v135 = vld [vmem:[%s0 + $0x2d0] sm:$0xff]
  %v136 = vld [vmem:[%s0 + $0x2d8] sm:$0xff]
  %v137 = vld [vmem:[%s0 + $0x2e0] sm:$0xf]
  %v138 = vld [vmem:[%s0 + $0x2e4] sm:$0xff]
  %v139 = vld [vmem:[%s0 + $0x2ec] sm:$0xff]
  %v140 = vld [vmem:[%s0 + $0x2f4] sm:$0xf]
  %v141 = vld [vmem:[%s0 + $0x2f8] sm:$0xff]
  %v142 = vld [vmem:[%s0 + $0x300] sm:$0xff]
  %v143 = vld [vmem:[%s0 + $0x308] sm:$0xf]
  %v144 = vld [vmem:[%s0 + $0x30c] sm:$0xff]
  %v145 = vld [vmem:[%s0 + $0x314] sm:$0xff]
  %v146 = vld [vmem:[%s0 + $0x31c] sm:$0xf]
  %v147 = vld [vmem:[%s0 + $0x320] sm:$0xff]
  %v148 = vld [vmem:[%s0 + $0x328] sm:$0xff]
  %v149 = vld [vmem:[%s0 + $0x330] sm:$0xf]
  %v150 = vld [vmem:[%s0 + $0x334] sm:$0xff]
  %v151 = vld [vmem:[%s0 + $0x33c] sm:$0xff]
  %v152 = vld [vmem:[%s0 + $0x344] sm:$0xf]
  %v153 = vld [vmem:[%s0 + $0x348] sm:$0xff]
  %v154 = vld [vmem:[%s0 + $0x350] sm:$0xff]
  %v155 = vld [vmem:[%s0 + $0x358] sm:$0xf]
  %v156 = vld [vmem:[%s0 + $0x35c] sm:$0xff]
  %v157 = vld [vmem:[%s0 + $0x364] sm:$0xff]
  %v158 = vld [vmem:[%s0 + $0x36c] sm:$0xf]
  %v159 = vld [vmem:[%s0 + $0x370] sm:$0xff]
  %v160 = vld [vmem:[%s0 + $0x378] sm:$0xff]
  %v161 = vld [vmem:[%s0 + $0x380] sm:$0xf]
  %v162 = vld [vmem:[%s0 + $0x384] sm:$0xff]
  %v163 = vld [vmem:[%s0 + $0x38c] sm:$0xff]
  %v164 = vld [vmem:[%s0 + $0x394] sm:$0xf]
  %v165 = vld [vmem:[%s0 + $0x398] sm:$0xff]
  %v166 = vld [vmem:[%s0 + $0x3a0] sm:$0xff]
  %v167 = vld [vmem:[%s0 + $0x3a8] sm:$0xf]
  %v168 = vld [vmem:[%s0 + $0x3ac] sm:$0xff]
  %v169 = vld [vmem:[%s0 + $0x3b4] sm:$0xff]
  %v170 = vld [vmem:[%s0 + $0x3bc] sm:$0xf]
  %v171 = vld [vmem:[%s0 + $0x3c0] sm:$0xff]
  %v172 = vld [vmem:[%s0 + $0x3c8] sm:$0xff]
  %v173 = vld [vmem:[%s0 + $0x3d0] sm:$0xf]
  %v174 = vld [vmem:[%s1] sm:$0xf]
  %v175 = vld [vmem:[%s1 + $0x4] sm:$0xf]
  %v176 = vld [vmem:[%s1 + $0x8] sm:$0xf]
  %v177 = vld [vmem:[%s1 + $0xc] sm:$0xf]
  %v178 = vld [vmem:[%s1 + $0x10] sm:$0xf]
  %v179 = vld [vmem:[%s1 + $0x14] sm:$0xf]
  %v180 = vld [vmem:[%s1 + $0x18] sm:$0xf]
  %v181 = vld [vmem:[%s1 + $0x1c] sm:$0xf]
  %v182 = vld [vmem:[%s1 + $0x20] sm:$0xf]
  %v183 = vld [vmem:[%s1 + $0x24] sm:$0xf]
  %v184 = vld [vmem:[%s1 + $0x28] sm:$0xf]
  %v185 = vld [vmem:[%s1 + $0x2c] sm:$0xf]
  %v186 = vld [vmem:[%s1 + $0x30] sm:$0xf]
  %v187 = vld [vmem:[%s1 + $0x34] sm:$0xf]
  %v188 = vld [vmem:[%s1 + $0x38] sm:$0xf]
  %v189 = vld [vmem:[%s1 + $0x3c] sm:$0xf]
  %v190 = vld [vmem:[%s1 + $0x40] sm:$0xf]
  %v191 = vld [vmem:[%s1 + $0x44] sm:$0xf]
  %v192 = vld [vmem:[%s1 + $0x48] sm:$0xf]
  %v193 = vld [vmem:[%s1 + $0x4c] sm:$0xf]
  %v194 = vld [vmem:[%s1 + $0x50] sm:$0xf]
  %v195 = vld [vmem:[%s1 + $0x54] sm:$0xf]
  %v196 = vld [vmem:[%s1 + $0x58] sm:$0xf]
  %v197 = vld [vmem:[%s1 + $0x5c] sm:$0xf]
  %v198 = vld [vmem:[%s1 + $0x60] sm:$0xf]
  %v199 = vld [vmem:[%s1 + $0x64] sm:$0xf]
  %v200 = vld [vmem:[%s1 + $0x68] sm:$0xf]
  %v201 = vld [vmem:[%s1 + $0x6c] sm:$0xf]
  %v202 = vld [vmem:[%s1 + $0x70] sm:$0xf]
  %v203 = vld [vmem:[%s1 + $0x74] sm:$0xf]
  %v204 = vld [vmem:[%s1 + $0x78] sm:$0xf]
  %v205 = vld [vmem:[%s1 + $0x7c] sm:$0xf]
  %v206 = vld [vmem:[%s1 + $0x80] sm:$0xf]
  %v207 = vld [vmem:[%s1 + $0x84] sm:$0xf]
  %v208 = vld [vmem:[%s1 + $0x88] sm:$0xf]
  %v209 = vld [vmem:[%s1 + $0x8c] sm:$0xf]
  %v210 = vld [vmem:[%s1 + $0x90] sm:$0xf]
  %v211 = vld [vmem:[%s1 + $0x94] sm:$0xf]
  %v212 = vld [vmem:[%s1 + $0x98] sm:$0xf]
  %v213 = vld [vmem:[%s1 + $0x9c] sm:$0xf]
  %v214 = vld [vmem:[%s1 + $0xa0] sm:$0xf]
  %v215 = vld [vmem:[%s1 + $0xa4] sm:$0xf]
  %v216 = vld [vmem:[%s1 + $0xa8] sm:$0xf]
  %v217 = vld [vmem:[%s1 + $0xac] sm:$0xf]
  %v218 = vld [vmem:[%s1 + $0xb0] sm:$0xf]
  %v219 = vld [vmem:[%s1 + $0xb4] sm:$0xf]
  %v220 = vld [vmem:[%s1 + $0xb8] sm:$0xf]
  %v221 = vld [vmem:[%s1 + $0xbc] sm:$0xf]
  %v222 = vld [vmem:[%s1 + $0xc0] sm:$0xf]
  %v223 = vld [vmem:[%s1 + $0xc4] sm:$0xf]
  %v224 = vld [vmem:[%s1 + $0xc8] sm:$0xf]
  %v225 = vld [vmem:[%s1 + $0xcc] sm:$0xf]
  %v226 = vld [vmem:[%s1 + $0xd0] sm:$0xf]
  %v227 = vld [vmem:[%s1 + $0xd4] sm:$0xf]
  %v228 = vld [vmem:[%s1 + $0xd8] sm:$0xf]
  %v229 = vld [vmem:[%s1 + $0xdc] sm:$0xf]
  %v230 = vld [vmem:[%s1 + $0xe0] sm:$0xf]
  %v231 = vld [vmem:[%s1 + $0xe4] sm:$0xf]
  %v232 = vld [vmem:[%s1 + $0xe8] sm:$0xf]
  %v233 = vld [vmem:[%s1 + $0xec] sm:$0xf]
  %v234 = vld [vmem:[%s1 + $0xf0] sm:$0xf]
  %v235 = vld [vmem:[%s1 + $0xf4] sm:$0xf]
  %v236 = vld [vmem:[%s1 + $0xf8] sm:$0xf]
  %v237 = vld [vmem:[%s1 + $0xfc] sm:$0xf]
  %v238 = vld [vmem:[%s1 + $0x100] sm:$0xf]
  %v239 = vld [vmem:[%s1 + $0x104] sm:$0xf]
  %v240 = vld [vmem:[%s1 + $0x108] sm:$0xf]
  %v241 = vld [vmem:[%s1 + $0x10c] sm:$0xf]
  %v242 = vld [vmem:[%s1 + $0x110] sm:$0xf]
  %v243 = vld [vmem:[%s1 + $0x114] sm:$0xf]
  %v244 = vld [vmem:[%s1 + $0x118] sm:$0xf]
  %v245 = vld [vmem:[%s1 + $0x11c] sm:$0xf]
  %v246 = vld [vmem:[%s2] sm:$0x1]
  %v248 = vlaneseq
  %v249 = vshrl.u32 %v248, 7
  %v250 = vsub.s32 0, %v249
  %v251 = vrot.slane %v246, %v250
  %v400 = vunpack.c.l.b16 %v27
  %v401 = vunpack.c.h.b16 %v27
  %v402 = vunpack.c.l.b16 %v28
  %v403 = vunpack.c.h.b16 %v28
  %v404 = vunpack.c.l.b16 %v29
  %v405 = vunpack.c.l.b16 %v30
  %v406 = vunpack.c.h.b16 %v30
  %v407 = vunpack.c.l.b16 %v31
  %v408 = vunpack.c.h.b16 %v31
  %v409 = vunpack.c.l.b16 %v32
  %v410 = vunpack.c.l.b16 %v33
  %v411 = vunpack.c.h.b16 %v33
  %v412 = vunpack.c.l.b16 %v34
  %v413 = vunpack.c.h.b16 %v34
  %v414 = vunpack.c.l.b16 %v35
  %v415 = vunpack.c.l.b16 %v36
  %v416 = vunpack.c.h.b16 %v36
  %v417 = vunpack.c.l.b16 %v37
  %v418 = vunpack.c.h.b16 %v37
  %v419 = vunpack.c.l.b16 %v38
  %v420 = vunpack.c.l.b16 %v39
  %v421 = vunpack.c.h.b16 %v39
  %v422 = vunpack.c.l.b16 %v40
  %v423 = vunpack.c.h.b16 %v40
  %v424 = vunpack.c.l.b16 %v41
  %v425 = vunpack.c.l.b16 %v42
  %v426 = vunpack.c.h.b16 %v42
  %v427 = vunpack.c.l.b16 %v43
  %v428 = vunpack.c.h.b16 %v43
  %v429 = vunpack.c.l.b16 %v44
  %v430 = vunpack.c.l.b16 %v45
  %v431 = vunpack.c.h.b16 %v45
  %v432 = vunpack.c.l.b16 %v46
  %v433 = vunpack.c.h.b16 %v46
  %v434 = vunpack.c.l.b16 %v47
  %v435 = vunpack.c.l.b16 %v48
  %v436 = vunpack.c.h.b16 %v48
  %v437 = vunpack.c.l.b16 %v49
  %v438 = vunpack.c.h.b16 %v49
  %v439 = vunpack.c.l.b16 %v50
  %v440 = vunpack.c.l.b16 %v51
  %v441 = vunpack.c.h.b16 %v51
  %v442 = vunpack.c.l.b16 %v52
  %v443 = vunpack.c.h.b16 %v52
  %v444 = vunpack.c.l.b16 %v53
  %v445 = vunpack.c.l.b16 %v54
  %v446 = vunpack.c.h.b16 %v54
  %v447 = vunpack.c.l.b16 %v55
  %v448 = vunpack.c.h.b16 %v55
  %v449 = vunpack.c.l.b16 %v56
  %v450 = vunpack.c.l.b16 %v57
  %v451 = vunpack.c.h.b16 %v57
  %v452 = vunpack.c.l.b16 %v58
  %v453 = vunpack.c.h.b16 %v58
  %v454 = vunpack.c.l.b16 %v59
  %v455 = vunpack.c.l.b16 %v60
  %v456 = vunpack.c.h.b16 %v60
  %v457 = vunpack.c.l.b16 %v61
  %v458 = vunpack.c.h.b16 %v61
  %v459 = vunpack.c.l.b16 %v62
  %v460 = vunpack.c.l.b16 %v63
  %v461 = vunpack.c.h.b16 %v63
  %v462 = vunpack.c.l.b16 %v64
  %v463 = vunpack.c.h.b16 %v64
  %v464 = vunpack.c.l.b16 %v65
  %v465 = vunpack.c.l.b16 %v66
  %v466 = vunpack.c.h.b16 %v66
  %v467 = vunpack.c.l.b16 %v67
  %v468 = vunpack.c.h.b16 %v67
  %v469 = vunpack.c.l.b16 %v68
  %v470 = vunpack.c.l.b16 %v69
  %v471 = vunpack.c.h.b16 %v69
  %v472 = vunpack.c.l.b16 %v70
  %v473 = vunpack.c.h.b16 %v70
  %v474 = vunpack.c.l.b16 %v71
  %v475 = vunpack.c.l.b16 %v72
  %v476 = vunpack.c.h.b16 %v72
  %v477 = vunpack.c.l.b16 %v73
  %v478 = vunpack.c.h.b16 %v73
  %v479 = vunpack.c.l.b16 %v74
  %v480 = vunpack.c.l.b16 %v75
  %v481 = vunpack.c.h.b16 %v75
  %v482 = vunpack.c.l.b16 %v76
  %v483 = vunpack.c.h.b16 %v76
  %v484 = vunpack.c.l.b16 %v77
  %v485 = vunpack.c.l.b16 %v78
  %v486 = vunpack.c.h.b16 %v78
  %v487 = vunpack.c.l.b16 %v79
  %v488 = vunpack.c.h.b16 %v79
  %v489 = vunpack.c.l.b16 %v80
  %v490 = vunpack.c.l.b16 %v81
  %v491 = vunpack.c.h.b16 %v81
  %v492 = vunpack.c.l.b16 %v82
  %v493 = vunpack.c.h.b16 %v82
  %v494 = vunpack.c.l.b16 %v83
  %v495 = vunpack.c.l.b16 %v84
  %v496 = vunpack.c.h.b16 %v84
  %v497 = vunpack.c.l.b16 %v85
  %v498 = vunpack.c.h.b16 %v85
  %v499 = vunpack.c.l.b16 %v86
  %v500 = vunpack.c.l.b16 %v87
  %v501 = vunpack.c.h.b16 %v87
  %v502 = vunpack.c.l.b16 %v88
  %v503 = vunpack.c.h.b16 %v88
  %v504 = vunpack.c.l.b16 %v89
  %v505 = vunpack.c.l.b16 %v90
  %v506 = vunpack.c.h.b16 %v90
  %v507 = vunpack.c.l.b16 %v91
  %v508 = vunpack.c.h.b16 %v91
  %v509 = vunpack.c.l.b16 %v92
  %v510 = vunpack.c.l.b16 %v93
  %v511 = vunpack.c.h.b16 %v93
  %v512 = vunpack.c.l.b16 %v94
  %v513 = vunpack.c.h.b16 %v94
  %v514 = vunpack.c.l.b16 %v95
  %v515 = vunpack.c.l.b16 %v96
  %v516 = vunpack.c.h.b16 %v96
  %v517 = vunpack.c.l.b16 %v97
  %v518 = vunpack.c.h.b16 %v97
  %v519 = vunpack.c.l.b16 %v98
  %v520 = vunpack.c.l.b16 %v99
  %v521 = vunpack.c.h.b16 %v99
  %v522 = vunpack.c.l.b16 %v100
  %v523 = vunpack.c.h.b16 %v100
  %v524 = vunpack.c.l.b16 %v101
  %v525 = vunpack.c.l.b16 %v102
  %v526 = vunpack.c.h.b16 %v102
  %v527 = vunpack.c.l.b16 %v103
  %v528 = vunpack.c.h.b16 %v103
  %v529 = vunpack.c.l.b16 %v104
  %v530 = vunpack.c.l.b16 %v105
  %v531 = vunpack.c.h.b16 %v105
  %v532 = vunpack.c.l.b16 %v106
  %v533 = vunpack.c.h.b16 %v106
  %v534 = vunpack.c.l.b16 %v107
  %v535 = vunpack.c.l.b16 %v108
  %v536 = vunpack.c.h.b16 %v108
  %v537 = vunpack.c.l.b16 %v109
  %v538 = vunpack.c.h.b16 %v109
  %v539 = vunpack.c.l.b16 %v110
  %v540 = vunpack.c.l.b16 %v111
  %v541 = vunpack.c.h.b16 %v111
  %v542 = vunpack.c.l.b16 %v112
  %v543 = vunpack.c.h.b16 %v112
  %v544 = vunpack.c.l.b16 %v113
  %v545 = vunpack.c.l.b16 %v114
  %v546 = vunpack.c.h.b16 %v114
  %v547 = vunpack.c.l.b16 %v115
  %v548 = vunpack.c.h.b16 %v115
  %v549 = vunpack.c.l.b16 %v116
  %v550 = vunpack.c.l.b16 %v117
  %v551 = vunpack.c.h.b16 %v117
  %v552 = vunpack.c.l.b16 %v118
  %v553 = vunpack.c.h.b16 %v118
  %v554 = vunpack.c.l.b16 %v119
  %v555 = vunpack.c.l.b16 %v120
  %v556 = vunpack.c.h.b16 %v120
  %v557 = vunpack.c.l.b16 %v121
  %v558 = vunpack.c.h.b16 %v121
  %v559 = vunpack.c.l.b16 %v122
  %v560 = vunpack.c.l.b16 %v123
  %v561 = vunpack.c.h.b16 %v123
  %v562 = vunpack.c.l.b16 %v124
  %v563 = vunpack.c.h.b16 %v124
  %v564 = vunpack.c.l.b16 %v125
  %v565 = vunpack.c.l.b16 %v126
  %v566 = vunpack.c.h.b16 %v126
  %v567 = vunpack.c.l.b16 %v127
  %v568 = vunpack.c.h.b16 %v127
  %v569 = vunpack.c.l.b16 %v128
  %v570 = vunpack.c.l.b16 %v129
  %v571 = vunpack.c.h.b16 %v129
  %v572 = vunpack.c.l.b16 %v130
  %v573 = vunpack.c.h.b16 %v130
  %v574 = vunpack.c.l.b16 %v131
  %v575 = vunpack.c.l.b16 %v132
  %v576 = vunpack.c.h.b16 %v132
  %v577 = vunpack.c.l.b16 %v133
  %v578 = vunpack.c.h.b16 %v133
  %v579 = vunpack.c.l.b16 %v134
  %v580 = vunpack.c.l.b16 %v135
  %v581 = vunpack.c.h.b16 %v135
  %v582 = vunpack.c.l.b16 %v136
  %v583 = vunpack.c.h.b16 %v136
  %v584 = vunpack.c.l.b16 %v137
  %v585 = vunpack.c.l.b16 %v138
  %v586 = vunpack.c.h.b16 %v138
  %v587 = vunpack.c.l.b16 %v139
  %v588 = vunpack.c.h.b16 %v139
  %v589 = vunpack.c.l.b16 %v140
  %v590 = vunpack.c.l.b16 %v141
  %v591 = vunpack.c.h.b16 %v141
  %v592 = vunpack.c.l.b16 %v142
  %v593 = vunpack.c.h.b16 %v142
  %v594 = vunpack.c.l.b16 %v143
  %v595 = vunpack.c.l.b16 %v144
  %v596 = vunpack.c.h.b16 %v144
  %v597 = vunpack.c.l.b16 %v145
  %v598 = vunpack.c.h.b16 %v145
  %v599 = vunpack.c.l.b16 %v146
  %v600 = vunpack.c.l.b16 %v147
  %v601 = vunpack.c.h.b16 %v147
  %v602 = vunpack.c.l.b16 %v148
  %v603 = vunpack.c.h.b16 %v148
  %v604 = vunpack.c.l.b16 %v149
  %v605 = vunpack.c.l.b16 %v150
  %v606 = vunpack.c.h.b16 %v150
  %v607 = vunpack.c.l.b16 %v151
  %v608 = vunpack.c.h.b16 %v151
  %v609 = vunpack.c.l.b16 %v152
  %v610 = vunpack.c.l.b16 %v153
  %v611 = vunpack.c.h.b16 %v153
  %v612 = vunpack.c.l.b16 %v154
  %v613 = vunpack.c.h.b16 %v154
  %v614 = vunpack.c.l.b16 %v155
  %v615 = vunpack.c.l.b16 %v156
  %v616 = vunpack.c.h.b16 %v156
  %v617 = vunpack.c.l.b16 %v157
  %v618 = vunpack.c.h.b16 %v157
  %v619 = vunpack.c.l.b16 %v158
  %v620 = vunpack.c.l.b16 %v159
  %v621 = vunpack.c.h.b16 %v159
  %v622 = vunpack.c.l.b16 %v160
  %v623 = vunpack.c.h.b16 %v160
  %v624 = vunpack.c.l.b16 %v161
  %v625 = vunpack.c.l.b16 %v162
  %v626 = vunpack.c.h.b16 %v162
  %v627 = vunpack.c.l.b16 %v163
  %v628 = vunpack.c.h.b16 %v163
  %v629 = vunpack.c.l.b16 %v164
  %v630 = vunpack.c.l.b16 %v165
  %v631 = vunpack.c.h.b16 %v165
  %v632 = vunpack.c.l.b16 %v166
  %v633 = vunpack.c.h.b16 %v166
  %v634 = vunpack.c.l.b16 %v167
  %v635 = vunpack.c.l.b16 %v168
  %v636 = vunpack.c.h.b16 %v168
  %v637 = vunpack.c.l.b16 %v169
  %v638 = vunpack.c.h.b16 %v169
  %v639 = vunpack.c.l.b16 %v170
  %v640 = vunpack.c.l.b16 %v171
  %v641 = vunpack.c.h.b16 %v171
  %v642 = vunpack.c.l.b16 %v172
  %v643 = vunpack.c.h.b16 %v172
  %v644 = vunpack.c.l.b16 %v173
  %v645 = vpack.c.b16 %v405, %v400
  %v646 = vpack.c.b16 %v406, %v401
  %v647 = vpack.c.b16 %v407, %v402
  %v648 = vpack.c.b16 %v408, %v403
  %v649 = vpack.c.b16 %v409, %v404
  %v650 = vpack.c.b16 %v415, %v410
  %v651 = vpack.c.b16 %v416, %v411
  %v652 = vpack.c.b16 %v417, %v412
  %v653 = vpack.c.b16 %v418, %v413
  %v654 = vpack.c.b16 %v419, %v414
  %v655 = vpack.c.b16 %v425, %v420
  %v656 = vpack.c.b16 %v426, %v421
  %v657 = vpack.c.b16 %v427, %v422
  %v658 = vpack.c.b16 %v428, %v423
  %v659 = vpack.c.b16 %v429, %v424
  %v660 = vpack.c.b16 %v435, %v430
  %v661 = vpack.c.b16 %v436, %v431
  %v662 = vpack.c.b16 %v437, %v432
  %v663 = vpack.c.b16 %v438, %v433
  %v664 = vpack.c.b16 %v439, %v434
  %v665 = vpack.c.b16 %v445, %v440
  %v666 = vpack.c.b16 %v446, %v441
  %v667 = vpack.c.b16 %v447, %v442
  %v668 = vpack.c.b16 %v448, %v443
  %v669 = vpack.c.b16 %v449, %v444
  %v670 = vpack.c.b16 %v455, %v450
  %v671 = vpack.c.b16 %v456, %v451
  %v672 = vpack.c.b16 %v457, %v452
  %v673 = vpack.c.b16 %v458, %v453
  %v674 = vpack.c.b16 %v459, %v454
  %v675 = vpack.c.b16 %v465, %v460
  %v676 = vpack.c.b16 %v466, %v461
  %v677 = vpack.c.b16 %v467, %v462
  %v678 = vpack.c.b16 %v468, %v463
  %v679 = vpack.c.b16 %v469, %v464
  %v680 = vpack.c.b16 %v475, %v470
  %v681 = vpack.c.b16 %v476, %v471
  %v682 = vpack.c.b16 %v477, %v472
  %v683 = vpack.c.b16 %v478, %v473
  %v684 = vpack.c.b16 %v479, %v474
  %v685 = vpack.c.b16 %v485, %v480
  %v686 = vpack.c.b16 %v486, %v481
  %v687 = vpack.c.b16 %v487, %v482
  %v688 = vpack.c.b16 %v488, %v483
  %v689 = vpack.c.b16 %v489, %v484
  %v690 = vpack.c.b16 %v495, %v490
  %v691 = vpack.c.b16 %v496, %v491
  %v692 = vpack.c.b16 %v497, %v492
  %v693 = vpack.c.b16 %v498, %v493
  %v694 = vpack.c.b16 %v499, %v494
  %v695 = vpack.c.b16 %v505, %v500
  %v696 = vpack.c.b16 %v506, %v501
  %v697 = vpack.c.b16 %v507, %v502
  %v698 = vpack.c.b16 %v508, %v503
  %v699 = vpack.c.b16 %v509, %v504
  %v700 = vpack.c.b16 %v515, %v510
  %v701 = vpack.c.b16 %v516, %v511
  %v702 = vpack.c.b16 %v517, %v512
  %v703 = vpack.c.b16 %v518, %v513
  %v704 = vpack.c.b16 %v519, %v514
  %v705 = vpack.c.b16 %v525, %v520
  %v706 = vpack.c.b16 %v526, %v521
  %v707 = vpack.c.b16 %v527, %v522
  %v708 = vpack.c.b16 %v528, %v523
  %v709 = vpack.c.b16 %v529, %v524
  %v710 = vpack.c.b16 %v535, %v530
  %v711 = vpack.c.b16 %v536, %v531
  %v712 = vpack.c.b16 %v537, %v532
  %v713 = vpack.c.b16 %v538, %v533
  %v714 = vpack.c.b16 %v539, %v534
  %v715 = vpack.c.b16 %v545, %v540
  %v716 = vpack.c.b16 %v546, %v541
  %v717 = vpack.c.b16 %v547, %v542
  %v718 = vpack.c.b16 %v548, %v543
  %v719 = vpack.c.b16 %v549, %v544
  %v720 = vpack.c.b16 %v555, %v550
  %v721 = vpack.c.b16 %v556, %v551
  %v722 = vpack.c.b16 %v557, %v552
  %v723 = vpack.c.b16 %v558, %v553
  %v724 = vpack.c.b16 %v559, %v554
  %v725 = vpack.c.b16 %v565, %v560
  %v726 = vpack.c.b16 %v566, %v561
  %v727 = vpack.c.b16 %v567, %v562
  %v728 = vpack.c.b16 %v568, %v563
  %v729 = vpack.c.b16 %v569, %v564
  %v730 = vpack.c.b16 %v575, %v570
  %v731 = vpack.c.b16 %v576, %v571
  %v732 = vpack.c.b16 %v577, %v572
  %v733 = vpack.c.b16 %v578, %v573
  %v734 = vpack.c.b16 %v579, %v574
  %v735 = vpack.c.b16 %v585, %v580
  %v736 = vpack.c.b16 %v586, %v581
  %v737 = vpack.c.b16 %v587, %v582
  %v738 = vpack.c.b16 %v588, %v583
  %v739 = vpack.c.b16 %v589, %v584
  %v740 = vpack.c.b16 %v595, %v590
  %v741 = vpack.c.b16 %v596, %v591
  %v742 = vpack.c.b16 %v597, %v592
  %v743 = vpack.c.b16 %v598, %v593
  %v744 = vpack.c.b16 %v599, %v594
  %v745 = vpack.c.b16 %v605, %v600
  %v746 = vpack.c.b16 %v606, %v601
  %v747 = vpack.c.b16 %v607, %v602
  %v748 = vpack.c.b16 %v608, %v603
  %v749 = vpack.c.b16 %v609, %v604
  %v750 = vpack.c.b16 %v615, %v610
  %v751 = vpack.c.b16 %v616, %v611
  %v752 = vpack.c.b16 %v617, %v612
  %v753 = vpack.c.b16 %v618, %v613
  %v754 = vpack.c.b16 %v619, %v614
  %v755 = vpack.c.b16 %v625, %v620
  %v756 = vpack.c.b16 %v626, %v621
  %v757 = vpack.c.b16 %v627, %v622
  %v758 = vpack.c.b16 %v628, %v623
  %v759 = vpack.c.b16 %v629, %v624
  %v760 = vpack.c.b16 %v635, %v630
  %v761 = vpack.c.b16 %v636, %v631
  %v762 = vpack.c.b16 %v637, %v632
  %v763 = vpack.c.b16 %v638, %v633
  %v764 = vpack.c.b16 %v639, %v634
  %v765 = vpack.c.b16 %v640, %v640
  %v766 = vpack.c.b16 %v641, %v641
  %v767 = vpack.c.b16 %v642, %v642
  %v768 = vpack.c.b16 %v643, %v643
  %v769 = vpack.c.b16 %v644, %v644
  %v942 = vunpack.c.l.b16 %v174
  %v943 = vunpack.c.l.b16 %v175
  %v944 = vunpack.c.l.b16 %v176
  %v945 = vunpack.c.l.b16 %v177
  %v946 = vunpack.c.l.b16 %v178
  %v947 = vunpack.c.l.b16 %v179
  %v948 = vunpack.c.l.b16 %v180
  %v949 = vunpack.c.l.b16 %v181
  %v950 = vunpack.c.l.b16 %v182
  %v951 = vunpack.c.l.b16 %v183
  %v952 = vunpack.c.l.b16 %v184
  %v953 = vunpack.c.l.b16 %v185
  %v954 = vunpack.c.l.b16 %v186
  %v955 = vunpack.c.l.b16 %v187
  %v956 = vunpack.c.l.b16 %v188
  %v957 = vunpack.c.l.b16 %v189
  %v958 = vunpack.c.l.b16 %v190
  %v959 = vunpack.c.l.b16 %v191
  %v960 = vunpack.c.l.b16 %v192
  %v961 = vunpack.c.l.b16 %v193
  %v962 = vunpack.c.l.b16 %v194
  %v963 = vunpack.c.l.b16 %v195
  %v964 = vunpack.c.l.b16 %v196
  %v965 = vunpack.c.l.b16 %v197
  %v966 = vunpack.c.l.b16 %v198
  %v967 = vunpack.c.l.b16 %v199
  %v968 = vunpack.c.l.b16 %v200
  %v969 = vunpack.c.l.b16 %v201
  %v970 = vunpack.c.l.b16 %v202
  %v971 = vunpack.c.l.b16 %v203
  %v972 = vunpack.c.l.b16 %v204
  %v973 = vunpack.c.l.b16 %v205
  %v974 = vunpack.c.l.b16 %v206
  %v975 = vunpack.c.l.b16 %v207
  %v976 = vunpack.c.l.b16 %v208
  %v977 = vunpack.c.l.b16 %v209
  %v978 = vunpack.c.l.b16 %v210
  %v979 = vunpack.c.l.b16 %v211
  %v980 = vunpack.c.l.b16 %v212
  %v981 = vunpack.c.l.b16 %v213
  %v982 = vunpack.c.l.b16 %v214
  %v983 = vunpack.c.l.b16 %v215
  %v984 = vunpack.c.l.b16 %v216
  %v985 = vunpack.c.l.b16 %v217
  %v986 = vunpack.c.l.b16 %v218
  %v987 = vunpack.c.l.b16 %v219
  %v988 = vunpack.c.l.b16 %v220
  %v989 = vunpack.c.l.b16 %v221
  %v990 = vunpack.c.l.b16 %v222
  %v991 = vunpack.c.l.b16 %v223
  %v992 = vunpack.c.l.b16 %v224
  %v993 = vunpack.c.l.b16 %v225
  %v994 = vunpack.c.l.b16 %v226
  %v995 = vunpack.c.l.b16 %v227
  %v996 = vunpack.c.l.b16 %v228
  %v997 = vunpack.c.l.b16 %v229
  %v998 = vunpack.c.l.b16 %v230
  %v999 = vunpack.c.l.b16 %v231
  %v1000 = vunpack.c.l.b16 %v232
  %v1001 = vunpack.c.l.b16 %v233
  %v1002 = vunpack.c.l.b16 %v234
  %v1003 = vunpack.c.l.b16 %v235
  %v1004 = vunpack.c.l.b16 %v236
  %v1005 = vunpack.c.l.b16 %v237
  %v1006 = vunpack.c.l.b16 %v238
  %v1007 = vunpack.c.l.b16 %v239
  %v1008 = vunpack.c.l.b16 %v240
  %v1009 = vunpack.c.l.b16 %v241
  %v1010 = vunpack.c.l.b16 %v242
  %v1011 = vunpack.c.l.b16 %v243
  %v1012 = vunpack.c.l.b16 %v244
  %v1013 = vunpack.c.l.b16 %v245
  %v1014 = vpack.c.b16 %v943, %v942
  %v1015 = vpack.c.b16 %v945, %v944
  %v1016 = vpack.c.b16 %v947, %v946
  %v1017 = vpack.c.b16 %v949, %v948
  %v1018 = vpack.c.b16 %v951, %v950
  %v1019 = vpack.c.b16 %v953, %v952
  %v1020 = vpack.c.b16 %v955, %v954
  %v1021 = vpack.c.b16 %v957, %v956
  %v1022 = vpack.c.b16 %v959, %v958
  %v1023 = vpack.c.b16 %v961, %v960
  %v1024 = vpack.c.b16 %v963, %v962
  %v1025 = vpack.c.b16 %v965, %v964
  %v1026 = vpack.c.b16 %v967, %v966
  %v1027 = vpack.c.b16 %v969, %v968
  %v1028 = vpack.c.b16 %v971, %v970
  %v1029 = vpack.c.b16 %v973, %v972
  %v1030 = vpack.c.b16 %v975, %v974
  %v1031 = vpack.c.b16 %v977, %v976
  %v1032 = vpack.c.b16 %v979, %v978
  %v1033 = vpack.c.b16 %v981, %v980
  %v1034 = vpack.c.b16 %v983, %v982
  %v1035 = vpack.c.b16 %v985, %v984
  %v1036 = vpack.c.b16 %v987, %v986
  %v1037 = vpack.c.b16 %v989, %v988
  %v1038 = vpack.c.b16 %v991, %v990
  %v1039 = vpack.c.b16 %v993, %v992
  %v1040 = vpack.c.b16 %v995, %v994
  %v1041 = vpack.c.b16 %v997, %v996
  %v1042 = vpack.c.b16 %v999, %v998
  %v1043 = vpack.c.b16 %v1001, %v1000
  %v1044 = vpack.c.b16 %v1003, %v1002
  %v1045 = vpack.c.b16 %v1005, %v1004
  %v1046 = vpack.c.b16 %v1007, %v1006
  %v1047 = vpack.c.b16 %v1009, %v1008
  %v1048 = vpack.c.b16 %v1011, %v1010
  %v1049 = vpack.c.b16 %v1013, %v1012
  %vm1086 = vcmask 523264
  %v1088 = vsel %vm1086, %v649, 0
  %v1091 = vsel %vm1086, %v654, 0
  %v1094 = vsel %vm1086, %v659, 0
  %v1097 = vsel %vm1086, %v664, 0
  %v1100 = vsel %vm1086, %v669, 0
  %v1103 = vsel %vm1086, %v674, 0
  %v1106 = vsel %vm1086, %v679, 0
  %v1109 = vsel %vm1086, %v684, 0
  %v1112 = vsel %vm1086, %v689, 0
  %v1115 = vsel %vm1086, %v694, 0
  %v1118 = vsel %vm1086, %v699, 0
  %v1121 = vsel %vm1086, %v704, 0
  %v1124 = vsel %vm1086, %v709, 0
  %v1127 = vsel %vm1086, %v714, 0
  %v1130 = vsel %vm1086, %v719, 0
  %v1133 = vsel %vm1086, %v724, 0
  %v1136 = vsel %vm1086, %v729, 0
  %v1139 = vsel %vm1086, %v734, 0
  %v1142 = vsel %vm1086, %v739, 0
  %v1145 = vsel %vm1086, %v744, 0
  %v1148 = vsel %vm1086, %v749, 0
  %v1151 = vsel %vm1086, %v754, 0
  %v1154 = vsel %vm1086, %v759, 0
  %v1157 = vsel %vm1086, %v764, 0
  %v1160 = vsel %vm1086, %v769, 0
  %1162 = vmatprep.subr.bf16.mxu0 0
  %1163 = vmatpush1.bf16.msra.mxu0 %v1014
  %1164 = vmatprep.subr.bf16.mxu0 0
  %1165 = vmatpush1.bf16.msra.mxu0 %v1015
  %1166 = vmatprep.subr.bf16.mxu0 0
  %1167 = vmatpush1.bf16.msra.mxu0 %v1016
  %1168 = vmatprep.subr.bf16.mxu0 0
  %1169 = vmatpush1.bf16.msra.mxu0 %v1017
  %1170 = vmatprep.subr.bf16.mxu0 0
  %1171 = vmatpush1.bf16.msra.mxu0 %v1018
  %1172 = vmatprep.subr.bf16.mxu0 0
  %1173 = vmatpush1.bf16.msra.mxu0 %v1019
  %1174 = vmatprep.subr.bf16.mxu0 0
  %1175 = vmatpush1.bf16.msra.mxu0 %v1020
  %1176 = vmatprep.subr.bf16.mxu0 0
  %1177 = vmatpush1.bf16.msra.mxu0 %v1021
  %1178 = vmatprep.subr.bf16.mxu0 0
  %1179 = vmatpush1.bf16.msra.mxu0 %v1022
  %1180 = vmatprep.subr.bf16.mxu0 0
  %1181 = vmatpush1.bf16.msra.mxu0 %v1023
  %1182 = vmatprep.subr.bf16.mxu0 0
  %1183 = vmatpush1.bf16.msra.mxu0 %v1024
  %1184 = vmatprep.subr.bf16.mxu0 0
  %1185 = vmatpush1.bf16.msra.mxu0 %v1025
  %1186 = vmatprep.subr.bf16.mxu0 0
  %1187 = vmatpush1.bf16.msra.mxu0 %v1026
  %1188 = vmatprep.subr.bf16.mxu0 0
  %1189 = vmatpush1.bf16.msra.mxu0 %v1027
  %1190 = vmatprep.subr.bf16.mxu0 0
  %1191 = vmatpush1.bf16.msra.mxu0 %v1028
  %1192 = vmatprep.subr.bf16.mxu0 0
  %1193 = vmatpush1.bf16.msra.mxu0 %v1029
  %1194 = vmatprep.mubr.bf16.mxu0 %v646
  %1195 = vmatmul.mubr.bf16.gmra.mrb[0].mxu0 %v645
  %v1196 = vpop.f32.mrb[0].mxu0
  %v1197 = vadd.f32 %v251, %v1196
  %v1198 = vpop.f32.mrb[0].mxu0
  %v1199 = vpop.f32.mrb[0].mxu0
  %v1200 = vadd.f32 %v251, %v1199
  %v1201 = vpop.f32.mrb[0].mxu0
  %1202 = vmatprep.mubr.bf16.mxu0 %v651
  %1203 = vmatmul.mubr.bf16.gmra.mrb[0].mxu0 %v650
  %v1204 = vpop.f32.mrb[0].mxu0
  %v1205 = vadd.f32 %v251, %v1204
  %v1206 = vpop.f32.mrb[0].mxu0
  %v1207 = vpop.f32.mrb[0].mxu0
  %v1208 = vadd.f32 %v251, %v1207
  %v1209 = vpop.f32.mrb[0].mxu0
  %1210 = vmatprep.mubr.bf16.mxu0 %v656
  %1211 = vmatmul.mubr.bf16.gmra.mrb[0].mxu0 %v655
  %v1212 = vpop.f32.mrb[0].mxu0
  %v1213 = vadd.f32 %v251, %v1212
  %v1214 = vpop.f32.mrb[0].mxu0
  %v1215 = vpop.f32.mrb[0].mxu0
  %v1216 = vadd.f32 %v251, %v1215
  %v1217 = vpop.f32.mrb[0].mxu0
  %1218 = vmatprep.mubr.bf16.mxu0 %v661
  %1219 = vmatmul.mubr.bf16.gmra.mrb[0].mxu0 %v660
  %v1220 = vpop.f32.mrb[0].mxu0
  %v1221 = vadd.f32 %v251, %v1220
  %v1222 = vpop.f32.mrb[0].mxu0
  %v1223 = vpop.f32.mrb[0].mxu0
  %v1224 = vadd.f32 %v251, %v1223
  %v1225 = vpop.f32.mrb[0].mxu0
  %1226 = vmatprep.mubr.bf16.mxu0 %v666
  %1227 = vmatmul.mubr.bf16.gmra.mrb[0].mxu0 %v665
  %v1228 = vpop.f32.mrb[0].mxu0
  %v1229 = vadd.f32 %v251, %v1228
  %v1230 = vpop.f32.mrb[0].mxu0
  %v1231 = vpop.f32.mrb[0].mxu0
  %v1232 = vadd.f32 %v251, %v1231
  %v1233 = vpop.f32.mrb[0].mxu0
  %1234 = vmatprep.mubr.bf16.mxu0 %v671
  %1235 = vmatmul.mubr.bf16.gmra.mrb[0].mxu0 %v670
  %v1236 = vpop.f32.mrb[0].mxu0
  %v1237 = vadd.f32 %v251, %v1236
  %v1238 = vpop.f32.mrb[0].mxu0
  %v1239 = vpop.f32.mrb[0].mxu0
  %v1240 = vadd.f32 %v251, %v1239
  %v1241 = vpop.f32.mrb[0].mxu0
  %1242 = vmatprep.mubr.bf16.mxu0 %v676
  %1243 = vmatmul.mubr.bf16.gmra.mrb[0].mxu0 %v675
  %v1244 = vpop.f32.mrb[0].mxu0
  %v1245 = vadd.f32 %v251, %v1244
  %v1246 = vpop.f32.mrb[0].mxu0
  %v1247 = vpop.f32.mrb[0].mxu0
  %v1248 = vadd.f32 %v251, %v1247
  %v1249 = vpop.f32.mrb[0].mxu0
  %1250 = vmatprep.mubr.bf16.mxu0 %v681
  %1251 = vmatmul.mubr.bf16.gmra.mrb[0].mxu0 %v680
  %v1252 = vpop.f32.mrb[0].mxu0
  %v1253 = vadd.f32 %v251, %v1252
  %v1254 = vpop.f32.mrb[0].mxu0
  %v1255 = vpop.f32.mrb[0].mxu0
  %v1256 = vadd.f32 %v251, %v1255
  %v1257 = vpop.f32.mrb[0].mxu0
  %1258 = vmatprep.mubr.bf16.mxu0 %v686
  %1259 = vmatmul.mubr.bf16.gmra.mrb[0].mxu0 %v685
  %v1260 = vpop.f32.mrb[0].mxu0
  %v1261 = vadd.f32 %v251, %v1260
  %v1262 = vpop.f32.mrb[0].mxu0
  %v1263 = vpop.f32.mrb[0].mxu0
  %v1264 = vadd.f32 %v251, %v1263
  %v1265 = vpop.f32.mrb[0].mxu0
  %1266 = vmatprep.mubr.bf16.mxu0 %v691
  %1267 = vmatmul.mubr.bf16.gmra.mrb[0].mxu0 %v690
  %v1268 = vpop.f32.mrb[0].mxu0
  %v1269 = vadd.f32 %v251, %v1268
  %v1270 = vpop.f32.mrb[0].mxu0
  %v1271 = vpop.f32.mrb[0].mxu0
  %v1272 = vadd.f32 %v251, %v1271
  %v1273 = vpop.f32.mrb[0].mxu0
  %1274 = vmatprep.mubr.bf16.mxu0 %v696
  %1275 = vmatmul.mubr.bf16.gmra.mrb[0].mxu0 %v695
  %v1276 = vpop.f32.mrb[0].mxu0
  %v1277 = vadd.f32 %v251, %v1276
  %v1278 = vpop.f32.mrb[0].mxu0
  %v1279 = vpop.f32.mrb[0].mxu0
  %v1280 = vadd.f32 %v251, %v1279
  %v1281 = vpop.f32.mrb[0].mxu0
  %1282 = vmatprep.mubr.bf16.mxu0 %v701
  %1283 = vmatmul.mubr.bf16.gmra.mrb[0].mxu0 %v700
  %v1284 = vpop.f32.mrb[0].mxu0
  %v1285 = vadd.f32 %v251, %v1284
  %v1286 = vpop.f32.mrb[0].mxu0
  %v1287 = vpop.f32.mrb[0].mxu0
  %v1288 = vadd.f32 %v251, %v1287
  %v1289 = vpop.f32.mrb[0].mxu0
  %1290 = vmatprep.mubr.bf16.mxu0 %v706
  %1291 = vmatmul.mubr.bf16.gmra.mrb[0].mxu0 %v705
  %v1292 = vpop.f32.mrb[0].mxu0
  %v1293 = vadd.f32 %v251, %v1292
  %v1294 = vpop.f32.mrb[0].mxu0
  %v1295 = vpop.f32.mrb[0].mxu0
  %v1296 = vadd.f32 %v251, %v1295
  %v1297 = vpop.f32.mrb[0].mxu0
  %1298 = vmatprep.mubr.bf16.mxu0 %v711
  %1299 = vmatmul.mubr.bf16.gmra.mrb[0].mxu0 %v710
  %v1300 = vpop.f32.mrb[0].mxu0
  %v1301 = vadd.f32 %v251, %v1300
  %v1302 = vpop.f32.mrb[0].mxu0
  %v1303 = vpop.f32.mrb[0].mxu0
  %v1304 = vadd.f32 %v251, %v1303
  %v1305 = vpop.f32.mrb[0].mxu0
  %1306 = vmatprep.mubr.bf16.mxu0 %v716
  %1307 = vmatmul.mubr.bf16.gmra.mrb[0].mxu0 %v715
  %v1308 = vpop.f32.mrb[0].mxu0
  %v1309 = vadd.f32 %v251, %v1308
  %v1310 = vpop.f32.mrb[0].mxu0
  %v1311 = vpop.f32.mrb[0].mxu0
  %v1312 = vadd.f32 %v251, %v1311
  %v1313 = vpop.f32.mrb[0].mxu0
  %1314 = vmatprep.mubr.bf16.mxu0 %v721
  %1315 = vmatmul.mubr.bf16.gmra.mrb[0].mxu0 %v720
  %v1316 = vpop.f32.mrb[0].mxu0
  %v1317 = vadd.f32 %v251, %v1316
  %v1318 = vpop.f32.mrb[0].mxu0
  %v1319 = vpop.f32.mrb[0].mxu0
  %v1320 = vadd.f32 %v251, %v1319
  %v1321 = vpop.f32.mrb[0].mxu0
  %1322 = vmatprep.mubr.bf16.mxu0 %v726
  %1323 = vmatmul.mubr.bf16.gmra.mrb[0].mxu0 %v725
  %v1324 = vpop.f32.mrb[0].mxu0
  %v1325 = vadd.f32 %v251, %v1324
  %v1326 = vpop.f32.mrb[0].mxu0
  %v1327 = vpop.f32.mrb[0].mxu0
  %v1328 = vadd.f32 %v251, %v1327
  %v1329 = vpop.f32.mrb[0].mxu0
  %1330 = vmatprep.mubr.bf16.mxu0 %v731
  %1331 = vmatmul.mubr.bf16.gmra.mrb[0].mxu0 %v730
  %v1332 = vpop.f32.mrb[0].mxu0
  %v1333 = vadd.f32 %v251, %v1332
  %v1334 = vpop.f32.mrb[0].mxu0
  %v1335 = vpop.f32.mrb[0].mxu0
  %v1336 = vadd.f32 %v251, %v1335
  %v1337 = vpop.f32.mrb[0].mxu0
  %1338 = vmatprep.mubr.bf16.mxu0 %v736
  %1339 = vmatmul.mubr.bf16.gmra.mrb[0].mxu0 %v735
  %v1340 = vpop.f32.mrb[0].mxu0
  %v1341 = vadd.f32 %v251, %v1340
  %v1342 = vpop.f32.mrb[0].mxu0
  %v1343 = vpop.f32.mrb[0].mxu0
  %v1344 = vadd.f32 %v251, %v1343
  %v1345 = vpop.f32.mrb[0].mxu0
  %1346 = vmatprep.mubr.bf16.mxu0 %v741
  %1347 = vmatmul.mubr.bf16.gmra.mrb[0].mxu0 %v740
  %v1348 = vpop.f32.mrb[0].mxu0
  %v1349 = vadd.f32 %v251, %v1348
  %v1350 = vpop.f32.mrb[0].mxu0
  %v1351 = vpop.f32.mrb[0].mxu0
  %v1352 = vadd.f32 %v251, %v1351
  %v1353 = vpop.f32.mrb[0].mxu0
  %1354 = vmatprep.mubr.bf16.mxu0 %v746
  %1355 = vmatmul.mubr.bf16.gmra.mrb[0].mxu0 %v745
  %v1356 = vpop.f32.mrb[0].mxu0
  %v1357 = vadd.f32 %v251, %v1356
  %v1358 = vpop.f32.mrb[0].mxu0
  %v1359 = vpop.f32.mrb[0].mxu0
  %v1360 = vadd.f32 %v251, %v1359
  %v1361 = vpop.f32.mrb[0].mxu0
  %1362 = vmatprep.mubr.bf16.mxu0 %v751
  %1363 = vmatmul.mubr.bf16.gmra.mrb[0].mxu0 %v750
  %v1364 = vpop.f32.mrb[0].mxu0
  %v1365 = vadd.f32 %v251, %v1364
  %v1366 = vpop.f32.mrb[0].mxu0
  %v1367 = vpop.f32.mrb[0].mxu0
  %v1368 = vadd.f32 %v251, %v1367
  %v1369 = vpop.f32.mrb[0].mxu0
  %1370 = vmatprep.mubr.bf16.mxu0 %v756
  %1371 = vmatmul.mubr.bf16.gmra.mrb[0].mxu0 %v755
  %v1372 = vpop.f32.mrb[0].mxu0
  %v1373 = vadd.f32 %v251, %v1372
  %v1374 = vpop.f32.mrb[0].mxu0
  %v1375 = vpop.f32.mrb[0].mxu0
  %v1376 = vadd.f32 %v251, %v1375
  %v1377 = vpop.f32.mrb[0].mxu0
  %1378 = vmatprep.mubr.bf16.mxu0 %v761
  %1379 = vmatmul.mubr.bf16.gmra.mrb[0].mxu0 %v760
  %v1380 = vpop.f32.mrb[0].mxu0
  %v1381 = vadd.f32 %v251, %v1380
  %v1382 = vpop.f32.mrb[0].mxu0
  %v1383 = vpop.f32.mrb[0].mxu0
  %v1384 = vadd.f32 %v251, %v1383
  %v1385 = vpop.f32.mrb[0].mxu0
  %1386 = vmatprep.mubr.bf16.mxu0 %v766
  %1387 = vmatmul.mubr.bf16.gmra.mrb[0].mxu0 %v765
  %v1388 = vpop.f32.mrb[0].mxu0
  %v1389 = vadd.f32 %v251, %v1388
  %v1390 = vpop.f32.mrb[0].mxu0
  %v1391 = vpop.f32.mrb[0].mxu0
  %v1392 = vpop.f32.mrb[0].mxu0
  %1393 = vdwg.mxu0
  %1394 = vmatprep.subr.bf16.mxu0 0
  %1395 = vmatpush1.bf16.msra.mxu0 %v1030
  %1396 = vmatprep.subr.bf16.mxu0 0
  %1397 = vmatpush1.bf16.msra.mxu0 %v1031
  %1398 = vmatprep.subr.bf16.mxu0 0
  %1399 = vmatpush1.bf16.msra.mxu0 %v1032
  %1400 = vmatprep.subr.bf16.mxu0 0
  %1401 = vmatpush1.bf16.msra.mxu0 %v1033
  %1402 = vmatprep.subr.bf16.mxu0 0
  %1403 = vmatpush1.bf16.msra.mxu0 %v1034
  %1404 = vmatprep.subr.bf16.mxu0 0
  %1405 = vmatpush1.bf16.msra.mxu0 %v1035
  %1406 = vmatprep.subr.bf16.mxu0 0
  %1407 = vmatpush1.bf16.msra.mxu0 %v1036
  %1408 = vmatprep.subr.bf16.mxu0 0
  %1409 = vmatpush1.bf16.msra.mxu0 %v1037
  %1410 = vmatprep.subr.bf16.mxu0 0
  %1411 = vmatpush1.bf16.msra.mxu0 %v1038
  %1412 = vmatprep.subr.bf16.mxu0 0
  %1413 = vmatpush1.bf16.msra.mxu0 %v1039
  %1414 = vmatprep.subr.bf16.mxu0 0
  %1415 = vmatpush1.bf16.msra.mxu0 %v1040
  %1416 = vmatprep.subr.bf16.mxu0 0
  %1417 = vmatpush1.bf16.msra.mxu0 %v1041
  %1418 = vmatprep.subr.bf16.mxu0 0
  %1419 = vmatpush1.bf16.msra.mxu0 %v1042
  %1420 = vmatprep.subr.bf16.mxu0 0
  %1421 = vmatpush1.bf16.msra.mxu0 %v1043
  %1422 = vmatprep.subr.bf16.mxu0 0
  %1423 = vmatpush1.bf16.msra.mxu0 %v1044
  %1424 = vmatprep.subr.bf16.mxu0 0
  %1425 = vmatpush1.bf16.msra.mxu0 %v1045
  %1426 = vmatprep.mubr.bf16.mxu0 %v648
  %1427 = vmatmul.mubr.bf16.gmra.mrb[0].mxu0 %v647
  %v1428 = vpop.f32.mrb[0].mxu0
  %v1429 = vadd.f32 %v1197, %v1428
  %v1430 = vpop.f32.mrb[0].mxu0
  %v1431 = vpop.f32.mrb[0].mxu0
  %v1432 = vadd.f32 %v1200, %v1431
  %v1433 = vpop.f32.mrb[0].mxu0
  %1434 = vmatprep.mubr.bf16.mxu0 %v653
  %1435 = vmatmul.mubr.bf16.gmra.mrb[0].mxu0 %v652
  %v1436 = vpop.f32.mrb[0].mxu0
  %v1437 = vadd.f32 %v1205, %v1436
  %v1438 = vpop.f32.mrb[0].mxu0
  %v1439 = vpop.f32.mrb[0].mxu0
  %v1440 = vadd.f32 %v1208, %v1439
  %v1441 = vpop.f32.mrb[0].mxu0
  %1442 = vmatprep.mubr.bf16.mxu0 %v658
  %1443 = vmatmul.mubr.bf16.gmra.mrb[0].mxu0 %v657
  %v1444 = vpop.f32.mrb[0].mxu0
  %v1445 = vadd.f32 %v1213, %v1444
  %v1446 = vpop.f32.mrb[0].mxu0
  %v1447 = vpop.f32.mrb[0].mxu0
  %v1448 = vadd.f32 %v1216, %v1447
  %v1449 = vpop.f32.mrb[0].mxu0
  %1450 = vmatprep.mubr.bf16.mxu0 %v663
  %1451 = vmatmul.mubr.bf16.gmra.mrb[0].mxu0 %v662
  %v1452 = vpop.f32.mrb[0].mxu0
  %v1453 = vadd.f32 %v1221, %v1452
  %v1454 = vpop.f32.mrb[0].mxu0
  %v1455 = vpop.f32.mrb[0].mxu0
  %v1456 = vadd.f32 %v1224, %v1455
  %v1457 = vpop.f32.mrb[0].mxu0
  %1458 = vmatprep.mubr.bf16.mxu0 %v668
  %1459 = vmatmul.mubr.bf16.gmra.mrb[0].mxu0 %v667
  %v1460 = vpop.f32.mrb[0].mxu0
  %v1461 = vadd.f32 %v1229, %v1460
  %v1462 = vpop.f32.mrb[0].mxu0
  %v1463 = vpop.f32.mrb[0].mxu0
  %v1464 = vadd.f32 %v1232, %v1463
  %v1465 = vpop.f32.mrb[0].mxu0
  %1466 = vmatprep.mubr.bf16.mxu0 %v673
  %1467 = vmatmul.mubr.bf16.gmra.mrb[0].mxu0 %v672
  %v1468 = vpop.f32.mrb[0].mxu0
  %v1469 = vadd.f32 %v1237, %v1468
  %v1470 = vpop.f32.mrb[0].mxu0
  %v1471 = vpop.f32.mrb[0].mxu0
  %v1472 = vadd.f32 %v1240, %v1471
  %v1473 = vpop.f32.mrb[0].mxu0
  %1474 = vmatprep.mubr.bf16.mxu0 %v678
  %1475 = vmatmul.mubr.bf16.gmra.mrb[0].mxu0 %v677
  %v1476 = vpop.f32.mrb[0].mxu0
  %v1477 = vadd.f32 %v1245, %v1476
  %v1478 = vpop.f32.mrb[0].mxu0
  %v1479 = vpop.f32.mrb[0].mxu0
  %v1480 = vadd.f32 %v1248, %v1479
  %v1481 = vpop.f32.mrb[0].mxu0
  %1482 = vmatprep.mubr.bf16.mxu0 %v683
  %1483 = vmatmul.mubr.bf16.gmra.mrb[0].mxu0 %v682
  %v1484 = vpop.f32.mrb[0].mxu0
  %v1485 = vadd.f32 %v1253, %v1484
  %v1486 = vpop.f32.mrb[0].mxu0
  %v1487 = vpop.f32.mrb[0].mxu0
  %v1488 = vadd.f32 %v1256, %v1487
  %v1489 = vpop.f32.mrb[0].mxu0
  %1490 = vmatprep.mubr.bf16.mxu0 %v688
  %1491 = vmatmul.mubr.bf16.gmra.mrb[0].mxu0 %v687
  %v1492 = vpop.f32.mrb[0].mxu0
  %v1493 = vadd.f32 %v1261, %v1492
  %v1494 = vpop.f32.mrb[0].mxu0
  %v1495 = vpop.f32.mrb[0].mxu0
  %v1496 = vadd.f32 %v1264, %v1495
  %v1497 = vpop.f32.mrb[0].mxu0
  %1498 = vmatprep.mubr.bf16.mxu0 %v693
  %1499 = vmatmul.mubr.bf16.gmra.mrb[0].mxu0 %v692
  %v1500 = vpop.f32.mrb[0].mxu0
  %v1501 = vadd.f32 %v1269, %v1500
  %v1502 = vpop.f32.mrb[0].mxu0
  %v1503 = vpop.f32.mrb[0].mxu0
  %v1504 = vadd.f32 %v1272, %v1503
  %v1505 = vpop.f32.mrb[0].mxu0
  %1506 = vmatprep.mubr.bf16.mxu0 %v698
  %1507 = vmatmul.mubr.bf16.gmra.mrb[0].mxu0 %v697
  %v1508 = vpop.f32.mrb[0].mxu0
  %v1509 = vadd.f32 %v1277, %v1508
  %v1510 = vpop.f32.mrb[0].mxu0
  %v1511 = vpop.f32.mrb[0].mxu0
  %v1512 = vadd.f32 %v1280, %v1511
  %v1513 = vpop.f32.mrb[0].mxu0
  %1514 = vmatprep.mubr.bf16.mxu0 %v703
  %1515 = vmatmul.mubr.bf16.gmra.mrb[0].mxu0 %v702
  %v1516 = vpop.f32.mrb[0].mxu0
  %v1517 = vadd.f32 %v1285, %v1516
  %v1518 = vpop.f32.mrb[0].mxu0
  %v1519 = vpop.f32.mrb[0].mxu0
  %v1520 = vadd.f32 %v1288, %v1519
  %v1521 = vpop.f32.mrb[0].mxu0
  %1522 = vmatprep.mubr.bf16.mxu0 %v708
  %1523 = vmatmul.mubr.bf16.gmra.mrb[0].mxu0 %v707
  %v1524 = vpop.f32.mrb[0].mxu0
  %v1525 = vadd.f32 %v1293, %v1524
  %v1526 = vpop.f32.mrb[0].mxu0
  %v1527 = vpop.f32.mrb[0].mxu0
  %v1528 = vadd.f32 %v1296, %v1527
  %v1529 = vpop.f32.mrb[0].mxu0
  %1530 = vmatprep.mubr.bf16.mxu0 %v713
  %1531 = vmatmul.mubr.bf16.gmra.mrb[0].mxu0 %v712
  %v1532 = vpop.f32.mrb[0].mxu0
  %v1533 = vadd.f32 %v1301, %v1532
  %v1534 = vpop.f32.mrb[0].mxu0
  %v1535 = vpop.f32.mrb[0].mxu0
  %v1536 = vadd.f32 %v1304, %v1535
  %v1537 = vpop.f32.mrb[0].mxu0
  %1538 = vmatprep.mubr.bf16.mxu0 %v718
  %1539 = vmatmul.mubr.bf16.gmra.mrb[0].mxu0 %v717
  %v1540 = vpop.f32.mrb[0].mxu0
  %v1541 = vadd.f32 %v1309, %v1540
  %v1542 = vpop.f32.mrb[0].mxu0
  %v1543 = vpop.f32.mrb[0].mxu0
  %v1544 = vadd.f32 %v1312, %v1543
  %v1545 = vpop.f32.mrb[0].mxu0
  %1546 = vmatprep.mubr.bf16.mxu0 %v723
  %1547 = vmatmul.mubr.bf16.gmra.mrb[0].mxu0 %v722
  %v1548 = vpop.f32.mrb[0].mxu0
  %v1549 = vadd.f32 %v1317, %v1548
  %v1550 = vpop.f32.mrb[0].mxu0
  %v1551 = vpop.f32.mrb[0].mxu0
  %v1552 = vadd.f32 %v1320, %v1551
  %v1553 = vpop.f32.mrb[0].mxu0
  %1554 = vmatprep.mubr.bf16.mxu0 %v728
  %1555 = vmatmul.mubr.bf16.gmra.mrb[0].mxu0 %v727
  %v1556 = vpop.f32.mrb[0].mxu0
  %v1557 = vadd.f32 %v1325, %v1556
  %v1558 = vpop.f32.mrb[0].mxu0
  %v1559 = vpop.f32.mrb[0].mxu0
  %v1560 = vadd.f32 %v1328, %v1559
  %v1561 = vpop.f32.mrb[0].mxu0
  %1562 = vmatprep.mubr.bf16.mxu0 %v733
  %1563 = vmatmul.mubr.bf16.gmra.mrb[0].mxu0 %v732
  %v1564 = vpop.f32.mrb[0].mxu0
  %v1565 = vadd.f32 %v1333, %v1564
  %v1566 = vpop.f32.mrb[0].mxu0
  %v1567 = vpop.f32.mrb[0].mxu0
  %v1568 = vadd.f32 %v1336, %v1567
  %v1569 = vpop.f32.mrb[0].mxu0
  %1570 = vmatprep.mubr.bf16.mxu0 %v738
  %1571 = vmatmul.mubr.bf16.gmra.mrb[0].mxu0 %v737
  %v1572 = vpop.f32.mrb[0].mxu0
  %v1573 = vadd.f32 %v1341, %v1572
  %v1574 = vpop.f32.mrb[0].mxu0
  %v1575 = vpop.f32.mrb[0].mxu0
  %v1576 = vadd.f32 %v1344, %v1575
  %v1577 = vpop.f32.mrb[0].mxu0
  %1578 = vmatprep.mubr.bf16.mxu0 %v743
  %1579 = vmatmul.mubr.bf16.gmra.mrb[0].mxu0 %v742
  %v1580 = vpop.f32.mrb[0].mxu0
  %v1581 = vadd.f32 %v1349, %v1580
  %v1582 = vpop.f32.mrb[0].mxu0
  %v1583 = vpop.f32.mrb[0].mxu0
  %v1584 = vadd.f32 %v1352, %v1583
  %v1585 = vpop.f32.mrb[0].mxu0
  %1586 = vmatprep.mubr.bf16.mxu0 %v748
  %1587 = vmatmul.mubr.bf16.gmra.mrb[0].mxu0 %v747
  %v1588 = vpop.f32.mrb[0].mxu0
  %v1589 = vadd.f32 %v1357, %v1588
  %v1590 = vpop.f32.mrb[0].mxu0
  %v1591 = vpop.f32.mrb[0].mxu0
  %v1592 = vadd.f32 %v1360, %v1591
  %v1593 = vpop.f32.mrb[0].mxu0
  %1594 = vmatprep.mubr.bf16.mxu0 %v753
  %1595 = vmatmul.mubr.bf16.gmra.mrb[0].mxu0 %v752
  %v1596 = vpop.f32.mrb[0].mxu0
  %v1597 = vadd.f32 %v1365, %v1596
  %v1598 = vpop.f32.mrb[0].mxu0
  %v1599 = vpop.f32.mrb[0].mxu0
  %v1600 = vadd.f32 %v1368, %v1599
  %v1601 = vpop.f32.mrb[0].mxu0
  %1602 = vmatprep.mubr.bf16.mxu0 %v758
  %1603 = vmatmul.mubr.bf16.gmra.mrb[0].mxu0 %v757
  %v1604 = vpop.f32.mrb[0].mxu0
  %v1605 = vadd.f32 %v1373, %v1604
  %v1606 = vpop.f32.mrb[0].mxu0
  %v1607 = vpop.f32.mrb[0].mxu0
  %v1608 = vadd.f32 %v1376, %v1607
  %v1609 = vpop.f32.mrb[0].mxu0
  %1610 = vmatprep.mubr.bf16.mxu0 %v763
  %1611 = vmatmul.mubr.bf16.gmra.mrb[0].mxu0 %v762
  %v1612 = vpop.f32.mrb[0].mxu0
  %v1613 = vadd.f32 %v1381, %v1612
  %v1614 = vpop.f32.mrb[0].mxu0
  %v1615 = vpop.f32.mrb[0].mxu0
  %v1616 = vadd.f32 %v1384, %v1615
  %v1617 = vpop.f32.mrb[0].mxu0
  %1618 = vmatprep.mubr.bf16.mxu0 %v768
  %1619 = vmatmul.mubr.bf16.gmra.mrb[0].mxu0 %v767
  %v1620 = vpop.f32.mrb[0].mxu0
  %v1621 = vadd.f32 %v1389, %v1620
  %v1622 = vpop.f32.mrb[0].mxu0
  %v1623 = vpop.f32.mrb[0].mxu0
  %v1624 = vpop.f32.mrb[0].mxu0
  %1625 = vdwg.mxu0
  %1626 = vmatprep.subr.bf16.mxu0 0
  %1627 = vmatpush1.bf16.msra.mxu0 %v1046
  %1628 = vmatprep.subr.bf16.mxu0 0
  %1629 = vmatpush1.bf16.msra.mxu0 %v1047
  %1630 = vmatprep.subr.bf16.mxu0 0
  %1631 = vmatpush1.bf16.msra.mxu0 %v1048
  %1632 = vmatprep.subr.bf16.mxu0 0
  %1633 = vmatpush1.bf16.msra.mxu0 %v1049
  %1634 = vmatprep.subr.bf16.mxu0 0
  %1635 = vmatpush1.bf16.msra.mxu0 0
  %1636 = vmatprep.subr.bf16.mxu0 0
  %1637 = vmatpush1.bf16.msra.mxu0 0
  %1638 = vmatprep.subr.bf16.mxu0 0
  %1639 = vmatpush1.bf16.msra.mxu0 0
  %1640 = vmatprep.subr.bf16.mxu0 0
  %1641 = vmatpush1.bf16.msra.mxu0 0
  %1642 = vmatprep.subr.bf16.mxu0 0
  %1643 = vmatpush1.bf16.msra.mxu0 0
  %1644 = vmatprep.subr.bf16.mxu0 0
  %1645 = vmatpush1.bf16.msra.mxu0 0
  %1646 = vmatprep.subr.bf16.mxu0 0
  %1647 = vmatpush1.bf16.msra.mxu0 0
  %1648 = vmatprep.subr.bf16.mxu0 0
  %1649 = vmatpush1.bf16.msra.mxu0 0
  %1650 = vmatprep.subr.bf16.mxu0 0
  %1651 = vmatpush1.bf16.msra.mxu0 0
  %1652 = vmatprep.subr.bf16.mxu0 0
  %1653 = vmatpush1.bf16.msra.mxu0 0
  %1654 = vmatprep.subr.bf16.mxu0 0
  %1655 = vmatpush1.bf16.msra.mxu0 0
  %1656 = vmatprep.subr.bf16.mxu0 0
  %1657 = vmatpush1.bf16.msra.mxu0 0
  %1658 = vmatprep.mubr.bf16.mxu0 0
  %1659 = vmatmul.mubr.bf16.gmra.mrb[0].mxu0 %v1088
  %v1660 = vpop.f32.mrb[0].mxu0
  %v1661 = vadd.f32 %v1429, %v1660
  %v1662 = vpop.f32.mrb[0].mxu0
  %v1663 = vpop.f32.mrb[0].mxu0
  %v1664 = vadd.f32 %v1432, %v1663
  %v1665 = vpop.f32.mrb[0].mxu0
  %1666 = vmatprep.mubr.bf16.mxu0 0
  %1667 = vmatmul.mubr.bf16.gmra.mrb[0].mxu0 %v1091
  %v1668 = vpop.f32.mrb[0].mxu0
  %v1669 = vadd.f32 %v1437, %v1668
  %v1670 = vpop.f32.mrb[0].mxu0
  %v1671 = vpop.f32.mrb[0].mxu0
  %v1672 = vadd.f32 %v1440, %v1671
  %v1673 = vpop.f32.mrb[0].mxu0
  %1674 = vmatprep.mubr.bf16.mxu0 0
  %1675 = vmatmul.mubr.bf16.gmra.mrb[0].mxu0 %v1094
  %v1676 = vpop.f32.mrb[0].mxu0
  %v1677 = vadd.f32 %v1445, %v1676
  %v1678 = vpop.f32.mrb[0].mxu0
  %v1679 = vpop.f32.mrb[0].mxu0
  %v1680 = vadd.f32 %v1448, %v1679
  %v1681 = vpop.f32.mrb[0].mxu0
  %1682 = vmatprep.mubr.bf16.mxu0 0
  %1683 = vmatmul.mubr.bf16.gmra.mrb[0].mxu0 %v1097
  %v1684 = vpop.f32.mrb[0].mxu0
  %v1685 = vadd.f32 %v1453, %v1684
  %v1686 = vpop.f32.mrb[0].mxu0
  %v1687 = vpop.f32.mrb[0].mxu0
  %v1688 = vadd.f32 %v1456, %v1687
  %v1689 = vpop.f32.mrb[0].mxu0
  %1690 = vmatprep.mubr.bf16.mxu0 0
  %1691 = vmatmul.mubr.bf16.gmra.mrb[0].mxu0 %v1100
  %v1692 = vpop.f32.mrb[0].mxu0
  %v1693 = vadd.f32 %v1461, %v1692
  %v1694 = vpop.f32.mrb[0].mxu0
  %v1695 = vpop.f32.mrb[0].mxu0
  %v1696 = vadd.f32 %v1464, %v1695
  %v1697 = vpop.f32.mrb[0].mxu0
  %1698 = vmatprep.mubr.bf16.mxu0 0
  %1699 = vmatmul.mubr.bf16.gmra.mrb[0].mxu0 %v1103
  %v1700 = vpop.f32.mrb[0].mxu0
  %v1701 = vadd.f32 %v1469, %v1700
  %v1702 = vpop.f32.mrb[0].mxu0
  %v1703 = vpop.f32.mrb[0].mxu0
  %v1704 = vadd.f32 %v1472, %v1703
  %v1705 = vpop.f32.mrb[0].mxu0
  %1706 = vmatprep.mubr.bf16.mxu0 0
  %1707 = vmatmul.mubr.bf16.gmra.mrb[0].mxu0 %v1106
  %v1708 = vpop.f32.mrb[0].mxu0
  %v1709 = vadd.f32 %v1477, %v1708
  %v1710 = vpop.f32.mrb[0].mxu0
  %v1711 = vpop.f32.mrb[0].mxu0
  %v1712 = vadd.f32 %v1480, %v1711
  %v1713 = vpop.f32.mrb[0].mxu0
  %1714 = vmatprep.mubr.bf16.mxu0 0
  %1715 = vmatmul.mubr.bf16.gmra.mrb[0].mxu0 %v1109
  %v1716 = vpop.f32.mrb[0].mxu0
  %v1717 = vadd.f32 %v1485, %v1716
  %v1718 = vpop.f32.mrb[0].mxu0
  %v1719 = vpop.f32.mrb[0].mxu0
  %v1720 = vadd.f32 %v1488, %v1719
  %v1721 = vpop.f32.mrb[0].mxu0
  %1722 = vmatprep.mubr.bf16.mxu0 0
  %1723 = vmatmul.mubr.bf16.gmra.mrb[0].mxu0 %v1112
  %v1724 = vpop.f32.mrb[0].mxu0
  %v1725 = vadd.f32 %v1493, %v1724
  %v1726 = vpop.f32.mrb[0].mxu0
  %v1727 = vpop.f32.mrb[0].mxu0
  %v1728 = vadd.f32 %v1496, %v1727
  %v1729 = vpop.f32.mrb[0].mxu0
  %1730 = vmatprep.mubr.bf16.mxu0 0
  %1731 = vmatmul.mubr.bf16.gmra.mrb[0].mxu0 %v1115
  %v1732 = vpop.f32.mrb[0].mxu0
  %v1733 = vadd.f32 %v1501, %v1732
  %v1734 = vpop.f32.mrb[0].mxu0
  %v1735 = vpop.f32.mrb[0].mxu0
  %v1736 = vadd.f32 %v1504, %v1735
  %v1737 = vpop.f32.mrb[0].mxu0
  %1738 = vmatprep.mubr.bf16.mxu0 0
  %1739 = vmatmul.mubr.bf16.gmra.mrb[0].mxu0 %v1118
  %v1740 = vpop.f32.mrb[0].mxu0
  %v1741 = vadd.f32 %v1509, %v1740
  %v1742 = vpop.f32.mrb[0].mxu0
  %v1743 = vpop.f32.mrb[0].mxu0
  %v1744 = vadd.f32 %v1512, %v1743
  %v1745 = vpop.f32.mrb[0].mxu0
  %1746 = vmatprep.mubr.bf16.mxu0 0
  %1747 = vmatmul.mubr.bf16.gmra.mrb[0].mxu0 %v1121
  %v1748 = vpop.f32.mrb[0].mxu0
  %v1749 = vadd.f32 %v1517, %v1748
  %v1750 = vpop.f32.mrb[0].mxu0
  %v1751 = vpop.f32.mrb[0].mxu0
  %v1752 = vadd.f32 %v1520, %v1751
  %v1753 = vpop.f32.mrb[0].mxu0
  %1754 = vmatprep.mubr.bf16.mxu0 0
  %1755 = vmatmul.mubr.bf16.gmra.mrb[0].mxu0 %v1124
  %v1756 = vpop.f32.mrb[0].mxu0
  %v1757 = vadd.f32 %v1525, %v1756
  %v1758 = vpop.f32.mrb[0].mxu0
  %v1759 = vpop.f32.mrb[0].mxu0
  %v1760 = vadd.f32 %v1528, %v1759
  %v1761 = vpop.f32.mrb[0].mxu0
  %1762 = vmatprep.mubr.bf16.mxu0 0
  %1763 = vmatmul.mubr.bf16.gmra.mrb[0].mxu0 %v1127
  %v1764 = vpop.f32.mrb[0].mxu0
  %v1765 = vadd.f32 %v1533, %v1764
  %v1766 = vpop.f32.mrb[0].mxu0
  %v1767 = vpop.f32.mrb[0].mxu0
  %v1768 = vadd.f32 %v1536, %v1767
  %v1769 = vpop.f32.mrb[0].mxu0
  %1770 = vmatprep.mubr.bf16.mxu0 0
  %1771 = vmatmul.mubr.bf16.gmra.mrb[0].mxu0 %v1130
  %v1772 = vpop.f32.mrb[0].mxu0
  %v1773 = vadd.f32 %v1541, %v1772
  %v1774 = vpop.f32.mrb[0].mxu0
  %v1775 = vpop.f32.mrb[0].mxu0
  %v1776 = vadd.f32 %v1544, %v1775
  %v1777 = vpop.f32.mrb[0].mxu0
  %1778 = vmatprep.mubr.bf16.mxu0 0
  %1779 = vmatmul.mubr.bf16.gmra.mrb[0].mxu0 %v1133
  %v1780 = vpop.f32.mrb[0].mxu0
  %v1781 = vadd.f32 %v1549, %v1780
  %v1782 = vpop.f32.mrb[0].mxu0
  %v1783 = vpop.f32.mrb[0].mxu0
  %v1784 = vadd.f32 %v1552, %v1783
  %v1785 = vpop.f32.mrb[0].mxu0
  %1786 = vmatprep.mubr.bf16.mxu0 0
  %1787 = vmatmul.mubr.bf16.gmra.mrb[0].mxu0 %v1136
  %v1788 = vpop.f32.mrb[0].mxu0
  %v1789 = vadd.f32 %v1557, %v1788
  %v1790 = vpop.f32.mrb[0].mxu0
  %v1791 = vpop.f32.mrb[0].mxu0
  %v1792 = vadd.f32 %v1560, %v1791
  %v1793 = vpop.f32.mrb[0].mxu0
  %1794 = vmatprep.mubr.bf16.mxu0 0
  %1795 = vmatmul.mubr.bf16.gmra.mrb[0].mxu0 %v1139
  %v1796 = vpop.f32.mrb[0].mxu0
  %v1797 = vadd.f32 %v1565, %v1796
  %v1798 = vpop.f32.mrb[0].mxu0
  %v1799 = vpop.f32.mrb[0].mxu0
  %v1800 = vadd.f32 %v1568, %v1799
  %v1801 = vpop.f32.mrb[0].mxu0
  %1802 = vmatprep.mubr.bf16.mxu0 0
  %1803 = vmatmul.mubr.bf16.gmra.mrb[0].mxu0 %v1142
  %v1804 = vpop.f32.mrb[0].mxu0
  %v1805 = vadd.f32 %v1573, %v1804
  %v1806 = vpop.f32.mrb[0].mxu0
  %v1807 = vpop.f32.mrb[0].mxu0
  %v1808 = vadd.f32 %v1576, %v1807
  %v1809 = vpop.f32.mrb[0].mxu0
  %1810 = vmatprep.mubr.bf16.mxu0 0
  %1811 = vmatmul.mubr.bf16.gmra.mrb[0].mxu0 %v1145
  %v1812 = vpop.f32.mrb[0].mxu0
  %v1813 = vadd.f32 %v1581, %v1812
  %v1814 = vpop.f32.mrb[0].mxu0
  %v1815 = vpop.f32.mrb[0].mxu0
  %v1816 = vadd.f32 %v1584, %v1815
  %v1817 = vpop.f32.mrb[0].mxu0
  %1818 = vmatprep.mubr.bf16.mxu0 0
  %1819 = vmatmul.mubr.bf16.gmra.mrb[0].mxu0 %v1148
  %v1820 = vpop.f32.mrb[0].mxu0
  %v1821 = vadd.f32 %v1589, %v1820
  %v1822 = vpop.f32.mrb[0].mxu0
  %v1823 = vpop.f32.mrb[0].mxu0
  %v1824 = vadd.f32 %v1592, %v1823
  %v1825 = vpop.f32.mrb[0].mxu0
  %1826 = vmatprep.mubr.bf16.mxu0 0
  %1827 = vmatmul.mubr.bf16.gmra.mrb[0].mxu0 %v1151
  %v1828 = vpop.f32.mrb[0].mxu0
  %v1829 = vadd.f32 %v1597, %v1828
  %v1830 = vpop.f32.mrb[0].mxu0
  %v1831 = vpop.f32.mrb[0].mxu0
  %v1832 = vadd.f32 %v1600, %v1831
  %v1833 = vpop.f32.mrb[0].mxu0
  %1834 = vmatprep.mubr.bf16.mxu0 0
  %1835 = vmatmul.mubr.bf16.gmra.mrb[0].mxu0 %v1154
  %v1836 = vpop.f32.mrb[0].mxu0
  %v1837 = vadd.f32 %v1605, %v1836
  %v1838 = vpop.f32.mrb[0].mxu0
  %v1839 = vpop.f32.mrb[0].mxu0
  %v1840 = vadd.f32 %v1608, %v1839
  %v1841 = vpop.f32.mrb[0].mxu0
  %1842 = vmatprep.mubr.bf16.mxu0 0
  %1843 = vmatmul.mubr.bf16.gmra.mrb[0].mxu0 %v1157
  %v1844 = vpop.f32.mrb[0].mxu0
  %v1845 = vadd.f32 %v1613, %v1844
  %v1846 = vpop.f32.mrb[0].mxu0
  %v1847 = vpop.f32.mrb[0].mxu0
  %v1848 = vadd.f32 %v1616, %v1847
  %v1849 = vpop.f32.mrb[0].mxu0
  %1850 = vmatprep.mubr.bf16.mxu0 0
  %1851 = vmatmul.mubr.bf16.gmra.mrb[0].mxu0 %v1160
  %v1852 = vpop.f32.mrb[0].mxu0
  %v1853 = vadd.f32 %v1621, %v1852
  %v1854 = vpop.f32.mrb[0].mxu0
  %v1855 = vpop.f32.mrb[0].mxu0
  %v1856 = vpop.f32.mrb[0].mxu0
  %1857 = vdwg.mxu0
  %v1858 = vmax.f32 %v1661, 0.0
  %v1859 = vmax.f32 %v1664, 0.0
  %v1860 = vmax.f32 %v1669, 0.0
  %v1861 = vmax.f32 %v1672, 0.0
  %v1862 = vmax.f32 %v1677, 0.0
  %v1863 = vmax.f32 %v1680, 0.0
  %v1864 = vmax.f32 %v1685, 0.0
  %v1865 = vmax.f32 %v1688, 0.0
  %v1866 = vmax.f32 %v1693, 0.0
  %v1867 = vmax.f32 %v1696, 0.0
  %v1868 = vmax.f32 %v1701, 0.0
  %v1869 = vmax.f32 %v1704, 0.0
  %v1870 = vmax.f32 %v1709, 0.0
  %v1871 = vmax.f32 %v1712, 0.0
  %v1872 = vmax.f32 %v1717, 0.0
  %v1873 = vmax.f32 %v1720, 0.0
  %v1874 = vmax.f32 %v1725, 0.0
  %v1875 = vmax.f32 %v1728, 0.0
  %v1876 = vmax.f32 %v1733, 0.0
  %v1877 = vmax.f32 %v1736, 0.0
  %v1878 = vmax.f32 %v1741, 0.0
  %v1879 = vmax.f32 %v1744, 0.0
  %v1880 = vmax.f32 %v1749, 0.0
  %v1881 = vmax.f32 %v1752, 0.0
  %v1882 = vmax.f32 %v1757, 0.0
  %v1883 = vmax.f32 %v1760, 0.0
  %v1884 = vmax.f32 %v1765, 0.0
  %v1885 = vmax.f32 %v1768, 0.0
  %v1886 = vmax.f32 %v1773, 0.0
  %v1887 = vmax.f32 %v1776, 0.0
  %v1888 = vmax.f32 %v1781, 0.0
  %v1889 = vmax.f32 %v1784, 0.0
  %v1890 = vmax.f32 %v1789, 0.0
  %v1891 = vmax.f32 %v1792, 0.0
  %v1892 = vmax.f32 %v1797, 0.0
  %v1893 = vmax.f32 %v1800, 0.0
  %v1894 = vmax.f32 %v1805, 0.0
  %v1895 = vmax.f32 %v1808, 0.0
  %v1896 = vmax.f32 %v1813, 0.0
  %v1897 = vmax.f32 %v1816, 0.0
  %v1898 = vmax.f32 %v1821, 0.0
  %v1899 = vmax.f32 %v1824, 0.0
  %v1900 = vmax.f32 %v1829, 0.0
  %v1901 = vmax.f32 %v1832, 0.0
  %v1902 = vmax.f32 %v1837, 0.0
  %v1903 = vmax.f32 %v1840, 0.0
  %v1904 = vmax.f32 %v1845, 0.0
  %v1905 = vmax.f32 %v1848, 0.0
  %v1906 = vmax.f32 %v1853, 0.0
  %v1907 = vpack.c.bf16 %v1859, %v1858
  %v1908 = vpack.c.bf16 %v1861, %v1860
  %v1909 = vpack.c.bf16 %v1863, %v1862
  %v1910 = vpack.c.bf16 %v1865, %v1864
  %v1911 = vpack.c.bf16 %v1867, %v1866
  %v1912 = vpack.c.bf16 %v1869, %v1868
  %v1913 = vpack.c.bf16 %v1871, %v1870
  %v1914 = vpack.c.bf16 %v1873, %v1872
  %v1915 = vpack.c.bf16 %v1875, %v1874
  %v1916 = vpack.c.bf16 %v1877, %v1876
  %v1917 = vpack.c.bf16 %v1879, %v1878
  %v1918 = vpack.c.bf16 %v1881, %v1880
  %v1919 = vpack.c.bf16 %v1883, %v1882
  %v1920 = vpack.c.bf16 %v1885, %v1884
  %v1921 = vpack.c.bf16 %v1887, %v1886
  %v1922 = vpack.c.bf16 %v1889, %v1888
  %v1923 = vpack.c.bf16 %v1891, %v1890
  %v1924 = vpack.c.bf16 %v1893, %v1892
  %v1925 = vpack.c.bf16 %v1895, %v1894
  %v1926 = vpack.c.bf16 %v1897, %v1896
  %v1927 = vpack.c.bf16 %v1899, %v1898
  %v1928 = vpack.c.bf16 %v1901, %v1900
  %v1929 = vpack.c.bf16 %v1903, %v1902
  %v1930 = vpack.c.bf16 %v1905, %v1904
  %v1931 = vpack.c.bf16 %v1906, %v1906
  %v1957 = vunpack.c.l.b16 %v1907
  %v1958 = vunpack.c.h.b16 %v1907
  %v1959 = vunpack.c.l.b16 %v1908
  %v1960 = vunpack.c.h.b16 %v1908
  %v1961 = vunpack.c.l.b16 %v1909
  %v1962 = vunpack.c.h.b16 %v1909
  %v1963 = vunpack.c.l.b16 %v1910
  %v1964 = vunpack.c.h.b16 %v1910
  %v1965 = vunpack.c.l.b16 %v1911
  %v1966 = vunpack.c.h.b16 %v1911
  %v1967 = vunpack.c.l.b16 %v1912
  %v1968 = vunpack.c.h.b16 %v1912
  %v1969 = vunpack.c.l.b16 %v1913
  %v1970 = vunpack.c.h.b16 %v1913
  %v1971 = vunpack.c.l.b16 %v1914
  %v1972 = vunpack.c.h.b16 %v1914
  %v1973 = vunpack.c.l.b16 %v1915
  %v1974 = vunpack.c.h.b16 %v1915
  %v1975 = vunpack.c.l.b16 %v1916
  %v1976 = vunpack.c.h.b16 %v1916
  %v1977 = vunpack.c.l.b16 %v1917
  %v1978 = vunpack.c.h.b16 %v1917
  %v1979 = vunpack.c.l.b16 %v1918
  %v1980 = vunpack.c.h.b16 %v1918
  %v1981 = vunpack.c.l.b16 %v1919
  %v1982 = vunpack.c.h.b16 %v1919
  %v1983 = vunpack.c.l.b16 %v1920
  %v1984 = vunpack.c.h.b16 %v1920
  %v1985 = vunpack.c.l.b16 %v1921
  %v1986 = vunpack.c.h.b16 %v1921
  %v1987 = vunpack.c.l.b16 %v1922
  %v1988 = vunpack.c.h.b16 %v1922
  %v1989 = vunpack.c.l.b16 %v1923
  %v1990 = vunpack.c.h.b16 %v1923
  %v1991 = vunpack.c.l.b16 %v1924
  %v1992 = vunpack.c.h.b16 %v1924
  %v1993 = vunpack.c.l.b16 %v1925
  %v1994 = vunpack.c.h.b16 %v1925
  %v1995 = vunpack.c.l.b16 %v1926
  %v1996 = vunpack.c.h.b16 %v1926
  %v1997 = vunpack.c.l.b16 %v1927
  %v1998 = vunpack.c.h.b16 %v1927
  %v1999 = vunpack.c.l.b16 %v1928
  %v2000 = vunpack.c.h.b16 %v1928
  %v2001 = vunpack.c.l.b16 %v1929
  %v2002 = vunpack.c.h.b16 %v1929
  %v2003 = vunpack.c.l.b16 %v1930
  %v2004 = vunpack.c.h.b16 %v1930
  %v2005 = vunpack.c.l.b16 %v1931
  %v2006 = vpack.c.b16 %v1957, %v1957
  %v2007 = vpack.c.b16 %v1958, %v1958
  %v2008 = vpack.c.b16 %v1959, %v1959
  %v2009 = vpack.c.b16 %v1960, %v1960
  %v2010 = vpack.c.b16 %v1961, %v1961
  %v2011 = vpack.c.b16 %v1962, %v1962
  %v2012 = vpack.c.b16 %v1963, %v1963
  %v2013 = vpack.c.b16 %v1964, %v1964
  %v2014 = vpack.c.b16 %v1965, %v1965
  %v2015 = vpack.c.b16 %v1966, %v1966
  %v2016 = vpack.c.b16 %v1967, %v1967
  %v2017 = vpack.c.b16 %v1968, %v1968
  %v2018 = vpack.c.b16 %v1969, %v1969
  %v2019 = vpack.c.b16 %v1970, %v1970
  %v2020 = vpack.c.b16 %v1971, %v1971
  %v2021 = vpack.c.b16 %v1972, %v1972
  %v2022 = vpack.c.b16 %v1973, %v1973
  %v2023 = vpack.c.b16 %v1974, %v1974
  %v2024 = vpack.c.b16 %v1975, %v1975
  %v2025 = vpack.c.b16 %v1976, %v1976
  %v2026 = vpack.c.b16 %v1977, %v1977
  %v2027 = vpack.c.b16 %v1978, %v1978
  %v2028 = vpack.c.b16 %v1979, %v1979
  %v2029 = vpack.c.b16 %v1980, %v1980
  %v2030 = vpack.c.b16 %v1981, %v1981
  %v2031 = vpack.c.b16 %v1982, %v1982
  %v2032 = vpack.c.b16 %v1983, %v1983
  %v2033 = vpack.c.b16 %v1984, %v1984
  %v2034 = vpack.c.b16 %v1985, %v1985
  %v2035 = vpack.c.b16 %v1986, %v1986
  %v2036 = vpack.c.b16 %v1987, %v1987
  %v2037 = vpack.c.b16 %v1988, %v1988
  %v2038 = vpack.c.b16 %v1989, %v1989
  %v2039 = vpack.c.b16 %v1990, %v1990
  %v2040 = vpack.c.b16 %v1991, %v1991
  %v2041 = vpack.c.b16 %v1992, %v1992
  %v2042 = vpack.c.b16 %v1993, %v1993
  %v2043 = vpack.c.b16 %v1994, %v1994
  %v2044 = vpack.c.b16 %v1995, %v1995
  %v2045 = vpack.c.b16 %v1996, %v1996
  %v2046 = vpack.c.b16 %v1997, %v1997
  %v2047 = vpack.c.b16 %v1998, %v1998
  %v2048 = vpack.c.b16 %v1999, %v1999
  %v2049 = vpack.c.b16 %v2000, %v2000
  %v2050 = vpack.c.b16 %v2001, %v2001
  %v2051 = vpack.c.b16 %v2002, %v2002
  %v2052 = vpack.c.b16 %v2003, %v2003
  %v2053 = vpack.c.b16 %v2004, %v2004
  %v2054 = vpack.c.b16 %v2005, %v2005
  %vm2104 = vcmask 519168
  %2105 = vst.msk [vmem:[#allocation2] sm:$0xf] %vm2104, %v2006
  %2106 = vst.msk [vmem:[#allocation2 + $0x4] sm:$0xf] %vm2104, %v2007
  %2107 = vst.msk [vmem:[#allocation2 + $0x8] sm:$0xf] %vm2104, %v2008
  %2108 = vst.msk [vmem:[#allocation2 + $0xc] sm:$0xf] %vm2104, %v2009
  %2109 = vst.msk [vmem:[#allocation2 + $0x10] sm:$0xf] %vm2104, %v2010
  %2110 = vst.msk [vmem:[#allocation2 + $0x14] sm:$0xf] %vm2104, %v2011
  %2111 = vst.msk [vmem:[#allocation2 + $0x18] sm:$0xf] %vm2104, %v2012
  %2112 = vst.msk [vmem:[#allocation2 + $0x1c] sm:$0xf] %vm2104, %v2013
  %2113 = vst.msk [vmem:[#allocation2 + $0x20] sm:$0xf] %vm2104, %v2014
  %2114 = vst.msk [vmem:[#allocation2 + $0x24] sm:$0xf] %vm2104, %v2015
  %2115 = vst.msk [vmem:[#allocation2 + $0x28] sm:$0xf] %vm2104, %v2016
  %2116 = vst.msk [vmem:[#allocation2 + $0x2c] sm:$0xf] %vm2104, %v2017
  %2117 = vst.msk [vmem:[#allocation2 + $0x30] sm:$0xf] %vm2104, %v2018
  %2118 = vst.msk [vmem:[#allocation2 + $0x34] sm:$0xf] %vm2104, %v2019
  %2119 = vst.msk [vmem:[#allocation2 + $0x38] sm:$0xf] %vm2104, %v2020
  %2120 = vst.msk [vmem:[#allocation2 + $0x3c] sm:$0xf] %vm2104, %v2021
  %2121 = vst.msk [vmem:[#allocation2 + $0x40] sm:$0xf] %vm2104, %v2022
  %2122 = vst.msk [vmem:[#allocation2 + $0x44] sm:$0xf] %vm2104, %v2023
  %2123 = vst.msk [vmem:[#allocation2 + $0x48] sm:$0xf] %vm2104, %v2024
  %2124 = vst.msk [vmem:[#allocation2 + $0x4c] sm:$0xf] %vm2104, %v2025
  %2125 = vst.msk [vmem:[#allocation2 + $0x50] sm:$0xf] %vm2104, %v2026
  %2126 = vst.msk [vmem:[#allocation2 + $0x54] sm:$0xf] %vm2104, %v2027
  %2127 = vst.msk [vmem:[#allocation2 + $0x58] sm:$0xf] %vm2104, %v2028
  %2128 = vst.msk [vmem:[#allocation2 + $0x5c] sm:$0xf] %vm2104, %v2029
  %2129 = vst.msk [vmem:[#allocation2 + $0x60] sm:$0xf] %vm2104, %v2030
  %2130 = vst.msk [vmem:[#allocation2 + $0x64] sm:$0xf] %vm2104, %v2031
  %2131 = vst.msk [vmem:[#allocation2 + $0x68] sm:$0xf] %vm2104, %v2032
  %2132 = vst.msk [vmem:[#allocation2 + $0x6c] sm:$0xf] %vm2104, %v2033
  %2133 = vst.msk [vmem:[#allocation2 + $0x70] sm:$0xf] %vm2104, %v2034
  %2134 = vst.msk [vmem:[#allocation2 + $0x74] sm:$0xf] %vm2104, %v2035
  %2135 = vst.msk [vmem:[#allocation2 + $0x78] sm:$0xf] %vm2104, %v2036
  %2136 = vst.msk [vmem:[#allocation2 + $0x7c] sm:$0xf] %vm2104, %v2037
  %2137 = vst.msk [vmem:[#allocation2 + $0x80] sm:$0xf] %vm2104, %v2038
  %2138 = vst.msk [vmem:[#allocation2 + $0x84] sm:$0xf] %vm2104, %v2039
  %2139 = vst.msk [vmem:[#allocation2 + $0x88] sm:$0xf] %vm2104, %v2040
  %2140 = vst.msk [vmem:[#allocation2 + $0x8c] sm:$0xf] %vm2104, %v2041
  %2141 = vst.msk [vmem:[#allocation2 + $0x90] sm:$0xf] %vm2104, %v2042
  %2142 = vst.msk [vmem:[#allocation2 + $0x94] sm:$0xf] %vm2104, %v2043
  %2143 = vst.msk [vmem:[#allocation2 + $0x98] sm:$0xf] %vm2104, %v2044
  %2144 = vst.msk [vmem:[#allocation2 + $0x9c] sm:$0xf] %vm2104, %v2045
  %2145 = vst.msk [vmem:[#allocation2 + $0xa0] sm:$0xf] %vm2104, %v2046
  %2146 = vst.msk [vmem:[#allocation2 + $0xa4] sm:$0xf] %vm2104, %v2047
  %2147 = vst.msk [vmem:[#allocation2 + $0xa8] sm:$0xf] %vm2104, %v2048
  %2148 = vst.msk [vmem:[#allocation2 + $0xac] sm:$0xf] %vm2104, %v2049
  %2149 = vst.msk [vmem:[#allocation2 + $0xb0] sm:$0xf] %vm2104, %v2050
  %2150 = vst.msk [vmem:[#allocation2 + $0xb4] sm:$0xf] %vm2104, %v2051
  %2151 = vst.msk [vmem:[#allocation2 + $0xb8] sm:$0xf] %vm2104, %v2052
  %2152 = vst.msk [vmem:[#allocation2 + $0xbc] sm:$0xf] %vm2104, %v2053
  %2153 = vst.msk [vmem:[#allocation2 + $0xc0] sm:$0xf] %vm2104, %v2054
  %v2154 = vld [vmem:[#allocation2] sm:$0xf]
  %v2155 = vld [vmem:[%s3] sm:$0xff]
  %v2156 = vld [vmem:[%s3 + $0x8] sm:$0xff]
  %v2157 = vld [vmem:[%s3 + $0x10] sm:$0xff]
  %v2158 = vld [vmem:[%s3 + $0x18] sm:$0xff]
  %v2159 = vld [vmem:[%s3 + $0x20] sm:$0xff]
  %v2160 = vld [vmem:[%s3 + $0x28] sm:$0xff]
  %v2161 = vld [vmem:[%s3 + $0x30] sm:$0xff]
  %v2162 = vld [vmem:[%s3 + $0x38] sm:$0xff]
  %v2163 = vld [vmem:[%s3 + $0x40] sm:$0xff]
  %v2164 = vld [vmem:[%s3 + $0x48] sm:$0xff]
  %v2165 = vld [vmem:[%s3 + $0x50] sm:$0xff]
  %v2166 = vld [vmem:[%s3 + $0x58] sm:$0xff]
  %v2167 = vld [vmem:[%s3 + $0x60] sm:$0xff]
  %v2168 = vld [vmem:[%s3 + $0x68] sm:$0xff]
  %v2169 = vld [vmem:[%s3 + $0x70] sm:$0xff]
  %v2170 = vld [vmem:[%s3 + $0x78] sm:$0xff]
  %v2171 = vld [vmem:[#allocation2 + $0x4] sm:$0xf]
  %s2172 = scalar_lea.vmem %s3, 128
  %v2173 = vld [vmem:[%s2172] sm:$0xff]
  %v2174 = vld [vmem:[%s2172 + $0x8] sm:$0xff]
  %v2175 = vld [vmem:[%s2172 + $0x10] sm:$0xff]
  %v2176 = vld [vmem:[%s2172 + $0x18] sm:$0xff]
  %v2177 = vld [vmem:[%s2172 + $0x20] sm:$0xff]
  %v2178 = vld [vmem:[%s2172 + $0x28] sm:$0xff]
  %v2179 = vld [vmem:[%s2172 + $0x30] sm:$0xff]
  %v2180 = vld [vmem:[%s2172 + $0x38] sm:$0xff]
  %v2181 = vld [vmem:[%s2172 + $0x40] sm:$0xff]
  %v2182 = vld [vmem:[%s2172 + $0x48] sm:$0xff]
  %v2183 = vld [vmem:[%s2172 + $0x50] sm:$0xff]
  %v2184 = vld [vmem:[%s2172 + $0x58] sm:$0xff]
  %v2185 = vld [vmem:[%s2172 + $0x60] sm:$0xff]
  %v2186 = vld [vmem:[%s2172 + $0x68] sm:$0xff]
  %v2187 = vld [vmem:[%s2172 + $0x70] sm:$0xff]
  %v2188 = vld [vmem:[%s2172 + $0x78] sm:$0xff]
  %v2205 = vunpack.c.l.b16 %v2173
  %v2206 = vunpack.c.h.b16 %v2173
  %v2207 = vunpack.c.l.b16 %v2174
  %v2208 = vunpack.c.h.b16 %v2174
  %v2209 = vunpack.c.l.b16 %v2175
  %v2210 = vunpack.c.h.b16 %v2175
  %v2211 = vunpack.c.l.b16 %v2176
  %v2212 = vunpack.c.h.b16 %v2176
  %v2213 = vunpack.c.l.b16 %v2177
  %v2214 = vunpack.c.h.b16 %v2177
  %v2215 = vunpack.c.l.b16 %v2178
  %v2216 = vunpack.c.h.b16 %v2178
  %v2217 = vunpack.c.l.b16 %v2179
  %v2218 = vunpack.c.h.b16 %v2179
  %v2219 = vunpack.c.l.b16 %v2180
  %v2220 = vunpack.c.h.b16 %v2180
  %v2221 = vunpack.c.l.b16 %v2181
  %v2222 = vunpack.c.h.b16 %v2181
  %v2223 = vunpack.c.l.b16 %v2182
  %v2224 = vunpack.c.h.b16 %v2182
  %v2225 = vunpack.c.l.b16 %v2183
  %v2226 = vunpack.c.h.b16 %v2183
  %v2227 = vunpack.c.l.b16 %v2184
  %v2228 = vunpack.c.h.b16 %v2184
  %v2229 = vunpack.c.l.b16 %v2185
  %v2230 = vunpack.c.h.b16 %v2185
  %v2231 = vunpack.c.l.b16 %v2186
  %v2232 = vunpack.c.h.b16 %v2186
  %v2233 = vunpack.c.l.b16 %v2187
  %v2234 = vunpack.c.h.b16 %v2187
  %v2235 = vunpack.c.l.b16 %v2188
  %v2236 = vunpack.c.h.b16 %v2188
  %v2237 = vpack.c.b16 %v2209, %v2205
  %v2238 = vpack.c.b16 %v2210, %v2206
  %v2239 = vpack.c.b16 %v2211, %v2207
  %v2240 = vpack.c.b16 %v2212, %v2208
  %v2241 = vpack.c.b16 %v2217, %v2213
  %v2242 = vpack.c.b16 %v2218, %v2214
  %v2243 = vpack.c.b16 %v2219, %v2215
  %v2244 = vpack.c.b16 %v2220, %v2216
  %v2245 = vpack.c.b16 %v2225, %v2221
  %v2246 = vpack.c.b16 %v2226, %v2222
  %v2247 = vpack.c.b16 %v2227, %v2223
  %v2248 = vpack.c.b16 %v2228, %v2224
  %v2249 = vpack.c.b16 %v2233, %v2229
  %v2250 = vpack.c.b16 %v2234, %v2230
  %v2251 = vpack.c.b16 %v2235, %v2231
  %v2252 = vpack.c.b16 %v2236, %v2232
  %v2270 = vsel %vm1086, %v2171, 0
  %2272 = vmatprep.subr.bf16.mxu0 %v2238
  %2273 = vmatpush1.bf16.msra.mxu0 %v2237
  %2274 = vmatprep.subr.bf16.mxu0 %v2242
  %2275 = vmatpush1.bf16.msra.mxu0 %v2241
  %2276 = vmatprep.subr.bf16.mxu0 %v2246
  %2277 = vmatpush1.bf16.msra.mxu0 %v2245
  %2278 = vmatprep.subr.bf16.mxu0 %v2250
  %2279 = vmatpush1.bf16.msra.mxu0 %v2249
  %2280 = vmatprep.subr.bf16.mxu0 0
  %2281 = vmatpush1.bf16.msra.mxu0 0
  %2282 = vmatprep.subr.bf16.mxu0 0
  %2283 = vmatpush1.bf16.msra.mxu0 0
  %2284 = vmatprep.subr.bf16.mxu0 0
  %2285 = vmatpush1.bf16.msra.mxu0 0
  %2286 = vmatprep.subr.bf16.mxu0 0
  %2287 = vmatpush1.bf16.msra.mxu0 0
  %2288 = vmatprep.subr.bf16.mxu0 0
  %2289 = vmatpush1.bf16.msra.mxu0 0
  %2290 = vmatprep.subr.bf16.mxu0 0
  %2291 = vmatpush1.bf16.msra.mxu0 0
  %2292 = vmatprep.subr.bf16.mxu0 0
  %2293 = vmatpush1.bf16.msra.mxu0 0
  %2294 = vmatprep.subr.bf16.mxu0 0
  %2295 = vmatpush1.bf16.msra.mxu0 0
  %2296 = vmatprep.subr.bf16.mxu0 0
  %2297 = vmatpush1.bf16.msra.mxu0 0
  %2298 = vmatprep.subr.bf16.mxu0 0
  %2299 = vmatpush1.bf16.msra.mxu0 0
  %2300 = vmatprep.subr.bf16.mxu0 0
  %2301 = vmatpush1.bf16.msra.mxu0 0
  %2302 = vmatprep.subr.bf16.mxu0 0
  %2303 = vmatpush1.bf16.msra.mxu0 0
  %2304 = vmatprep.mubr.bf16.mxu0 0
  %2305 = vmatmul.mubr.bf16.gmra.mrb[0].mxu0 %v2270
  %v2306 = vpop.f32.mrb[0].mxu0
  %v2307 = vadd.f32 0.0, %v2306
  %v2308 = vpop.f32.mrb[0].mxu0
  %v2309 = vadd.f32 0.0, %v2308
  %v2310 = vpop.f32.mrb[0].mxu0
  %v2311 = vpop.f32.mrb[0].mxu0
  %2312 = vdwg.mxu0
  %2313 = vmatprep.subr.bf16.mxu0 %v2240
  %2314 = vmatpush1.bf16.msra.mxu0 %v2239
  %2315 = vmatprep.subr.bf16.mxu0 %v2244
  %2316 = vmatpush1.bf16.msra.mxu0 %v2243
  %2317 = vmatprep.subr.bf16.mxu0 %v2248
  %2318 = vmatpush1.bf16.msra.mxu0 %v2247
  %2319 = vmatprep.subr.bf16.mxu0 %v2252
  %2320 = vmatpush1.bf16.msra.mxu0 %v2251
  %2321 = vmatprep.subr.bf16.mxu0 0
  %2322 = vmatpush1.bf16.msra.mxu0 0
  %2323 = vmatprep.subr.bf16.mxu0 0
  %2324 = vmatpush1.bf16.msra.mxu0 0
  %2325 = vmatprep.subr.bf16.mxu0 0
  %2326 = vmatpush1.bf16.msra.mxu0 0
  %2327 = vmatprep.subr.bf16.mxu0 0
  %2328 = vmatpush1.bf16.msra.mxu0 0
  %2329 = vmatprep.subr.bf16.mxu0 0
  %2330 = vmatpush1.bf16.msra.mxu0 0
  %2331 = vmatprep.subr.bf16.mxu0 0
  %2332 = vmatpush1.bf16.msra.mxu0 0
  %2333 = vmatprep.subr.bf16.mxu0 0
  %2334 = vmatpush1.bf16.msra.mxu0 0
  %2335 = vmatprep.subr.bf16.mxu0 0
  %2336 = vmatpush1.bf16.msra.mxu0 0
  %2337 = vmatprep.subr.bf16.mxu0 0
  %2338 = vmatpush1.bf16.msra.mxu0 0
  %2339 = vmatprep.subr.bf16.mxu0 0
  %2340 = vmatpush1.bf16.msra.mxu0 0
  %2341 = vmatprep.subr.bf16.mxu0 0
  %2342 = vmatpush1.bf16.msra.mxu0 0
  %2343 = vmatprep.subr.bf16.mxu0 0
  %2344 = vmatpush1.bf16.msra.mxu0 0
  %2345 = vmatprep.mubr.bf16.mxu0 0
  %2346 = vmatmul.mubr.bf16.gmra.mrb[0].mxu0 %v2270
  %v2347 = vpop.f32.mrb[0].mxu0
  %v2348 = vadd.f32 0.0, %v2347
  %v2349 = vpop.f32.mrb[0].mxu0
  %v2350 = vadd.f32 0.0, %v2349
  %v2351 = vpop.f32.mrb[0].mxu0
  %v2352 = vpop.f32.mrb[0].mxu0
  %2353 = vdwg.mxu0
  %v2370 = vunpack.c.l.b16 %v2155
  %v2371 = vunpack.c.h.b16 %v2155
  %v2372 = vunpack.c.l.b16 %v2156
  %v2373 = vunpack.c.h.b16 %v2156
  %v2374 = vunpack.c.l.b16 %v2157
  %v2375 = vunpack.c.h.b16 %v2157
  %v2376 = vunpack.c.l.b16 %v2158
  %v2377 = vunpack.c.h.b16 %v2158
  %v2378 = vunpack.c.l.b16 %v2159
  %v2379 = vunpack.c.h.b16 %v2159
  %v2380 = vunpack.c.l.b16 %v2160
  %v2381 = vunpack.c.h.b16 %v2160
  %v2382 = vunpack.c.l.b16 %v2161
  %v2383 = vunpack.c.h.b16 %v2161
  %v2384 = vunpack.c.l.b16 %v2162
  %v2385 = vunpack.c.h.b16 %v2162
  %v2386 = vunpack.c.l.b16 %v2163
  %v2387 = vunpack.c.h.b16 %v2163
  %v2388 = vunpack.c.l.b16 %v2164
  %v2389 = vunpack.c.h.b16 %v2164
  %v2390 = vunpack.c.l.b16 %v2165
  %v2391 = vunpack.c.h.b16 %v2165
  %v2392 = vunpack.c.l.b16 %v2166
  %v2393 = vunpack.c.h.b16 %v2166
  %v2394 = vunpack.c.l.b16 %v2167
  %v2395 = vunpack.c.h.b16 %v2167
  %v2396 = vunpack.c.l.b16 %v2168
  %v2397 = vunpack.c.h.b16 %v2168
  %v2398 = vunpack.c.l.b16 %v2169
  %v2399 = vunpack.c.h.b16 %v2169
  %v2400 = vunpack.c.l.b16 %v2170
  %v2401 = vunpack.c.h.b16 %v2170
  %v2402 = vpack.c.b16 %v2374, %v2370
  %v2403 = vpack.c.b16 %v2375, %v2371
  %v2404 = vpack.c.b16 %v2376, %v2372
  %v2405 = vpack.c.b16 %v2377, %v2373
  %v2406 = vpack.c.b16 %v2382, %v2378
  %v2407 = vpack.c.b16 %v2383, %v2379
  %v2408 = vpack.c.b16 %v2384, %v2380
  %v2409 = vpack.c.b16 %v2385, %v2381
  %v2410 = vpack.c.b16 %v2390, %v2386
  %v2411 = vpack.c.b16 %v2391, %v2387
  %v2412 = vpack.c.b16 %v2392, %v2388
  %v2413 = vpack.c.b16 %v2393, %v2389
  %v2414 = vpack.c.b16 %v2398, %v2394
  %v2415 = vpack.c.b16 %v2399, %v2395
  %v2416 = vpack.c.b16 %v2400, %v2396
  %v2417 = vpack.c.b16 %v2401, %v2397
  %v2435 = vsel %vm1086, %v2154, 0
  %2437 = vmatprep.subr.bf16.mxu0 %v2403
  %2438 = vmatpush1.bf16.msra.mxu0 %v2402
  %2439 = vmatprep.subr.bf16.mxu0 %v2407
  %2440 = vmatpush1.bf16.msra.mxu0 %v2406
  %2441 = vmatprep.subr.bf16.mxu0 %v2411
  %2442 = vmatpush1.bf16.msra.mxu0 %v2410
  %2443 = vmatprep.subr.bf16.mxu0 %v2415
  %2444 = vmatpush1.bf16.msra.mxu0 %v2414
  %2445 = vmatprep.subr.bf16.mxu0 0
  %2446 = vmatpush1.bf16.msra.mxu0 0
  %2447 = vmatprep.subr.bf16.mxu0 0
  %2448 = vmatpush1.bf16.msra.mxu0 0
  %2449 = vmatprep.subr.bf16.mxu0 0
  %2450 = vmatpush1.bf16.msra.mxu0 0
  %2451 = vmatprep.subr.bf16.mxu0 0
  %2452 = vmatpush1.bf16.msra.mxu0 0
  %2453 = vmatprep.subr.bf16.mxu0 0
  %2454 = vmatpush1.bf16.msra.mxu0 0
  %2455 = vmatprep.subr.bf16.mxu0 0
  %2456 = vmatpush1.bf16.msra.mxu0 0
  %2457 = vmatprep.subr.bf16.mxu0 0
  %2458 = vmatpush1.bf16.msra.mxu0 0
  %2459 = vmatprep.subr.bf16.mxu0 0
  %2460 = vmatpush1.bf16.msra.mxu0 0
  %2461 = vmatprep.subr.bf16.mxu0 0
  %2462 = vmatpush1.bf16.msra.mxu0 0
  %2463 = vmatprep.subr.bf16.mxu0 0
  %2464 = vmatpush1.bf16.msra.mxu0 0
  %2465 = vmatprep.subr.bf16.mxu0 0
  %2466 = vmatpush1.bf16.msra.mxu0 0
  %2467 = vmatprep.subr.bf16.mxu0 0
  %2468 = vmatpush1.bf16.msra.mxu0 0
  %2469 = vmatprep.mubr.bf16.mxu0 0
  %2470 = vmatmul.mubr.bf16.gmra.mrb[0].mxu0 %v2435
  %v2471 = vpop.f32.mrb[0].mxu0
  %v2472 = vadd.f32 %v2307, %v2471
  %v2473 = vpop.f32.mrb[0].mxu0
  %v2474 = vadd.f32 %v2309, %v2473
  %v2475 = vpop.f32.mrb[0].mxu0
  %v2476 = vpop.f32.mrb[0].mxu0
  %2477 = vdwg.mxu0
  %2478 = vmatprep.subr.bf16.mxu0 %v2405
  %2479 = vmatpush1.bf16.msra.mxu0 %v2404
  %2480 = vmatprep.subr.bf16.mxu0 %v2409
  %2481 = vmatpush1.bf16.msra.mxu0 %v2408
  %2482 = vmatprep.subr.bf16.mxu0 %v2413
  %2483 = vmatpush1.bf16.msra.mxu0 %v2412
  %2484 = vmatprep.subr.bf16.mxu0 %v2417
  %2485 = vmatpush1.bf16.msra.mxu0 %v2416
  %2486 = vmatprep.subr.bf16.mxu0 0
  %2487 = vmatpush1.bf16.msra.mxu0 0
  %2488 = vmatprep.subr.bf16.mxu0 0
  %2489 = vmatpush1.bf16.msra.mxu0 0
  %2490 = vmatprep.subr.bf16.mxu0 0
  %2491 = vmatpush1.bf16.msra.mxu0 0
  %2492 = vmatprep.subr.bf16.mxu0 0
  %2493 = vmatpush1.bf16.msra.mxu0 0
  %2494 = vmatprep.subr.bf16.mxu0 0
  %2495 = vmatpush1.bf16.msra.mxu0 0
  %2496 = vmatprep.subr.bf16.mxu0 0
  %2497 = vmatpush1.bf16.msra.mxu0 0
  %2498 = vmatprep.subr.bf16.mxu0 0
  %2499 = vmatpush1.bf16.msra.mxu0 0
  %2500 = vmatprep.subr.bf16.mxu0 0
  %2501 = vmatpush1.bf16.msra.mxu0 0
  %2502 = vmatprep.subr.bf16.mxu0 0
  %2503 = vmatpush1.bf16.msra.mxu0 0
  %2504 = vmatprep.subr.bf16.mxu0 0
  %2505 = vmatpush1.bf16.msra.mxu0 0
  %2506 = vmatprep.subr.bf16.mxu0 0
  %2507 = vmatpush1.bf16.msra.mxu0 0
  %2508 = vmatprep.subr.bf16.mxu0 0
  %2509 = vmatpush1.bf16.msra.mxu0 0
  %2510 = vmatprep.mubr.bf16.mxu0 0
  %2511 = vmatmul.mubr.bf16.gmra.mrb[0].mxu0 %v2435
  %v2512 = vpop.f32.mrb[0].mxu0
  %v2513 = vadd.f32 %v2348, %v2512
  %v2514 = vpop.f32.mrb[0].mxu0
  %v2515 = vadd.f32 %v2350, %v2514
  %v2516 = vpop.f32.mrb[0].mxu0
  %v2517 = vpop.f32.mrb[0].mxu0
  %2518 = vdwg.mxu0
  %v2519 = vld [vmem:[#allocation2 + $0x8] sm:$0xf]
  %s2520 = scalar_lea.vmem %s3, 256
  %v2521 = vld [vmem:[%s2520] sm:$0xff]
  %v2522 = vld [vmem:[%s2520 + $0x8] sm:$0xff]
  %v2523 = vld [vmem:[%s2520 + $0x10] sm:$0xff]
  %v2524 = vld [vmem:[%s2520 + $0x18] sm:$0xff]
  %v2525 = vld [vmem:[%s2520 + $0x20] sm:$0xff]
  %v2526 = vld [vmem:[%s2520 + $0x28] sm:$0xff]
  %v2527 = vld [vmem:[%s2520 + $0x30] sm:$0xff]
  %v2528 = vld [vmem:[%s2520 + $0x38] sm:$0xff]
  %v2529 = vld [vmem:[%s2520 + $0x40] sm:$0xff]
  %v2530 = vld [vmem:[%s2520 + $0x48] sm:$0xff]
  %v2531 = vld [vmem:[%s2520 + $0x50] sm:$0xff]
  %v2532 = vld [vmem:[%s2520 + $0x58] sm:$0xff]
  %v2533 = vld [vmem:[%s2520 + $0x60] sm:$0xff]
  %v2534 = vld [vmem:[%s2520 + $0x68] sm:$0xff]
  %v2535 = vld [vmem:[%s2520 + $0x70] sm:$0xff]
  %v2536 = vld [vmem:[%s2520 + $0x78] sm:$0xff]
  %v2553 = vunpack.c.l.b16 %v2521
  %v2554 = vunpack.c.h.b16 %v2521
  %v2555 = vunpack.c.l.b16 %v2522
  %v2556 = vunpack.c.h.b16 %v2522
  %v2557 = vunpack.c.l.b16 %v2523
  %v2558 = vunpack.c.h.b16 %v2523
  %v2559 = vunpack.c.l.b16 %v2524
  %v2560 = vunpack.c.h.b16 %v2524
  %v2561 = vunpack.c.l.b16 %v2525
  %v2562 = vunpack.c.h.b16 %v2525
  %v2563 = vunpack.c.l.b16 %v2526
  %v2564 = vunpack.c.h.b16 %v2526
  %v2565 = vunpack.c.l.b16 %v2527
  %v2566 = vunpack.c.h.b16 %v2527
  %v2567 = vunpack.c.l.b16 %v2528
  %v2568 = vunpack.c.h.b16 %v2528
  %v2569 = vunpack.c.l.b16 %v2529
  %v2570 = vunpack.c.h.b16 %v2529
  %v2571 = vunpack.c.l.b16 %v2530
  %v2572 = vunpack.c.h.b16 %v2530
  %v2573 = vunpack.c.l.b16 %v2531
  %v2574 = vunpack.c.h.b16 %v2531
  %v2575 = vunpack.c.l.b16 %v2532
  %v2576 = vunpack.c.h.b16 %v2532
  %v2577 = vunpack.c.l.b16 %v2533
  %v2578 = vunpack.c.h.b16 %v2533
  %v2579 = vunpack.c.l.b16 %v2534
  %v2580 = vunpack.c.h.b16 %v2534
  %v2581 = vunpack.c.l.b16 %v2535
  %v2582 = vunpack.c.h.b16 %v2535
  %v2583 = vunpack.c.l.b16 %v2536
  %v2584 = vunpack.c.h.b16 %v2536
  %v2585 = vpack.c.b16 %v2557, %v2553
  %v2586 = vpack.c.b16 %v2558, %v2554
  %v2587 = vpack.c.b16 %v2559, %v2555
  %v2588 = vpack.c.b16 %v2560, %v2556
  %v2589 = vpack.c.b16 %v2565, %v2561
  %v2590 = vpack.c.b16 %v2566, %v2562
  %v2591 = vpack.c.b16 %v2567, %v2563
  %v2592 = vpack.c.b16 %v2568, %v2564
  %v2593 = vpack.c.b16 %v2573, %v2569
  %v2594 = vpack.c.b16 %v2574, %v2570
  %v2595 = vpack.c.b16 %v2575, %v2571
  %v2596 = vpack.c.b16 %v2576, %v2572
  %v2597 = vpack.c.b16 %v2581, %v2577
  %v2598 = vpack.c.b16 %v2582, %v2578
  %v2599 = vpack.c.b16 %v2583, %v2579
  %v2600 = vpack.c.b16 %v2584, %v2580
  %v2618 = vsel %vm1086, %v2519, 0
  %2620 = vmatprep.subr.bf16.mxu0 %v2586
  %2621 = vmatpush1.bf16.msra.mxu0 %v2585
  %2622 = vmatprep.subr.bf16.mxu0 %v2590
  %2623 = vmatpush1.bf16.msra.mxu0 %v2589
  %2624 = vmatprep.subr.bf16.mxu0 %v2594
  %2625 = vmatpush1.bf16.msra.mxu0 %v2593
  %2626 = vmatprep.subr.bf16.mxu0 %v2598
  %2627 = vmatpush1.bf16.msra.mxu0 %v2597
  %2628 = vmatprep.subr.bf16.mxu0 0
  %2629 = vmatpush1.bf16.msra.mxu0 0
  %2630 = vmatprep.subr.bf16.mxu0 0
  %2631 = vmatpush1.bf16.msra.mxu0 0
  %2632 = vmatprep.subr.bf16.mxu0 0
  %2633 = vmatpush1.bf16.msra.mxu0 0
  %2634 = vmatprep.subr.bf16.mxu0 0
  %2635 = vmatpush1.bf16.msra.mxu0 0
  %2636 = vmatprep.subr.bf16.mxu0 0
  %2637 = vmatpush1.bf16.msra.mxu0 0
  %2638 = vmatprep.subr.bf16.mxu0 0
  %2639 = vmatpush1.bf16.msra.mxu0 0
  %2640 = vmatprep.subr.bf16.mxu0 0
  %2641 = vmatpush1.bf16.msra.mxu0 0
  %2642 = vmatprep.subr.bf16.mxu0 0
  %2643 = vmatpush1.bf16.msra.mxu0 0
  %2644 = vmatprep.subr.bf16.mxu0 0
  %2645 = vmatpush1.bf16.msra.mxu0 0
  %2646 = vmatprep.subr.bf16.mxu0 0
  %2647 = vmatpush1.bf16.msra.mxu0 0
  %2648 = vmatprep.subr.bf16.mxu0 0
  %2649 = vmatpush1.bf16.msra.mxu0 0
  %2650 = vmatprep.subr.bf16.mxu0 0
  %2651 = vmatpush1.bf16.msra.mxu0 0
  %2652 = vmatprep.mubr.bf16.mxu0 0
  %2653 = vmatmul.mubr.bf16.gmra.mrb[0].mxu0 %v2618
  %v2654 = vpop.f32.mrb[0].mxu0
  %v2655 = vadd.f32 0.0, %v2654
  %v2656 = vpop.f32.mrb[0].mxu0
  %v2657 = vadd.f32 0.0, %v2656
  %v2658 = vpop.f32.mrb[0].mxu0
  %v2659 = vpop.f32.mrb[0].mxu0
  %2660 = vdwg.mxu0
  %2661 = vmatprep.subr.bf16.mxu0 %v2588
  %2662 = vmatpush1.bf16.msra.mxu0 %v2587
  %2663 = vmatprep.subr.bf16.mxu0 %v2592
  %2664 = vmatpush1.bf16.msra.mxu0 %v2591
  %2665 = vmatprep.subr.bf16.mxu0 %v2596
  %2666 = vmatpush1.bf16.msra.mxu0 %v2595
  %2667 = vmatprep.subr.bf16.mxu0 %v2600
  %2668 = vmatpush1.bf16.msra.mxu0 %v2599
  %2669 = vmatprep.subr.bf16.mxu0 0
  %2670 = vmatpush1.bf16.msra.mxu0 0
  %2671 = vmatprep.subr.bf16.mxu0 0
  %2672 = vmatpush1.bf16.msra.mxu0 0
  %2673 = vmatprep.subr.bf16.mxu0 0
  %2674 = vmatpush1.bf16.msra.mxu0 0
  %2675 = vmatprep.subr.bf16.mxu0 0
  %2676 = vmatpush1.bf16.msra.mxu0 0
  %2677 = vmatprep.subr.bf16.mxu0 0
  %2678 = vmatpush1.bf16.msra.mxu0 0
  %2679 = vmatprep.subr.bf16.mxu0 0
  %2680 = vmatpush1.bf16.msra.mxu0 0
  %2681 = vmatprep.subr.bf16.mxu0 0
  %2682 = vmatpush1.bf16.msra.mxu0 0
  %2683 = vmatprep.subr.bf16.mxu0 0
  %2684 = vmatpush1.bf16.msra.mxu0 0
  %2685 = vmatprep.subr.bf16.mxu0 0
  %2686 = vmatpush1.bf16.msra.mxu0 0
  %2687 = vmatprep.subr.bf16.mxu0 0
  %2688 = vmatpush1.bf16.msra.mxu0 0
  %2689 = vmatprep.subr.bf16.mxu0 0
  %2690 = vmatpush1.bf16.msra.mxu0 0
  %2691 = vmatprep.subr.bf16.mxu0 0
  %2692 = vmatpush1.bf16.msra.mxu0 0
  %2693 = vmatprep.mubr.bf16.mxu0 0
  %2694 = vmatmul.mubr.bf16.gmra.mrb[0].mxu0 %v2618
  %v2695 = vpop.f32.mrb[0].mxu0
  %v2696 = vadd.f32 0.0, %v2695
  %v2697 = vpop.f32.mrb[0].mxu0
  %v2698 = vadd.f32 0.0, %v2697
  %v2699 = vpop.f32.mrb[0].mxu0
  %v2700 = vpop.f32.mrb[0].mxu0
  %2701 = vdwg.mxu0
  %v2702 = vadd.f32 %v2472, %v2655
  %v2703 = vadd.f32 %v2474, %v2657
  %v2704 = vadd.f32 %v2513, %v2696
  %v2705 = vadd.f32 %v2515, %v2698
  %v2706 = vld [vmem:[#allocation2 + $0xc] sm:$0xf]
  %s2707 = scalar_lea.vmem %s3, 384
  %v2708 = vld [vmem:[%s2707] sm:$0xff]
  %v2709 = vld [vmem:[%s2707 + $0x8] sm:$0xff]
  %v2710 = vld [vmem:[%s2707 + $0x10] sm:$0xff]
  %v2711 = vld [vmem:[%s2707 + $0x18] sm:$0xff]
  %v2712 = vld [vmem:[%s2707 + $0x20] sm:$0xff]
  %v2713 = vld [vmem:[%s2707 + $0x28] sm:$0xff]
  %v2714 = vld [vmem:[%s2707 + $0x30] sm:$0xff]
  %v2715 = vld [vmem:[%s2707 + $0x38] sm:$0xff]
  %v2716 = vld [vmem:[%s2707 + $0x40] sm:$0xff]
  %v2717 = vld [vmem:[%s2707 + $0x48] sm:$0xff]
  %v2718 = vld [vmem:[%s2707 + $0x50] sm:$0xff]
  %v2719 = vld [vmem:[%s2707 + $0x58] sm:$0xff]
  %v2720 = vld [vmem:[%s2707 + $0x60] sm:$0xff]
  %v2721 = vld [vmem:[%s2707 + $0x68] sm:$0xff]
  %v2722 = vld [vmem:[%s2707 + $0x70] sm:$0xff]
  %v2723 = vld [vmem:[%s2707 + $0x78] sm:$0xff]
  %v2740 = vunpack.c.l.b16 %v2708
  %v2741 = vunpack.c.h.b16 %v2708
  %v2742 = vunpack.c.l.b16 %v2709
  %v2743 = vunpack.c.h.b16 %v2709
  %v2744 = vunpack.c.l.b16 %v2710
  %v2745 = vunpack.c.h.b16 %v2710
  %v2746 = vunpack.c.l.b16 %v2711
  %v2747 = vunpack.c.h.b16 %v2711
  %v2748 = vunpack.c.l.b16 %v2712
  %v2749 = vunpack.c.h.b16 %v2712
  %v2750 = vunpack.c.l.b16 %v2713
  %v2751 = vunpack.c.h.b16 %v2713
  %v2752 = vunpack.c.l.b16 %v2714
  %v2753 = vunpack.c.h.b16 %v2714
  %v2754 = vunpack.c.l.b16 %v2715
  %v2755 = vunpack.c.h.b16 %v2715
  %v2756 = vunpack.c.l.b16 %v2716
  %v2757 = vunpack.c.h.b16 %v2716
  %v2758 = vunpack.c.l.b16 %v2717
  %v2759 = vunpack.c.h.b16 %v2717
  %v2760 = vunpack.c.l.b16 %v2718
  %v2761 = vunpack.c.h.b16 %v2718
  %v2762 = vunpack.c.l.b16 %v2719
  %v2763 = vunpack.c.h.b16 %v2719
  %v2764 = vunpack.c.l.b16 %v2720
  %v2765 = vunpack.c.h.b16 %v2720
  %v2766 = vunpack.c.l.b16 %v2721
  %v2767 = vunpack.c.h.b16 %v2721
  %v2768 = vunpack.c.l.b16 %v2722
  %v2769 = vunpack.c.h.b16 %v2722
  %v2770 = vunpack.c.l.b16 %v2723
  %v2771 = vunpack.c.h.b16 %v2723
  %v2772 = vpack.c.b16 %v2744, %v2740
  %v2773 = vpack.c.b16 %v2745, %v2741
  %v2774 = vpack.c.b16 %v2746, %v2742
  %v2775 = vpack.c.b16 %v2747, %v2743
  %v2776 = vpack.c.b16 %v2752, %v2748
  %v2777 = vpack.c.b16 %v2753, %v2749
  %v2778 = vpack.c.b16 %v2754, %v2750
  %v2779 = vpack.c.b16 %v2755, %v2751
  %v2780 = vpack.c.b16 %v2760, %v2756
  %v2781 = vpack.c.b16 %v2761, %v2757
  %v2782 = vpack.c.b16 %v2762, %v2758
  %v2783 = vpack.c.b16 %v2763, %v2759
  %v2784 = vpack.c.b16 %v2768, %v2764
  %v2785 = vpack.c.b16 %v2769, %v2765
  %v2786 = vpack.c.b16 %v2770, %v2766
  %v2787 = vpack.c.b16 %v2771, %v2767
  %v2805 = vsel %vm1086, %v2706, 0
  %2807 = vmatprep.subr.bf16.mxu0 %v2773
  %2808 = vmatpush1.bf16.msra.mxu0 %v2772
  %2809 = vmatprep.subr.bf16.mxu0 %v2777
  %2810 = vmatpush1.bf16.msra.mxu0 %v2776
  %2811 = vmatprep.subr.bf16.mxu0 %v2781
  %2812 = vmatpush1.bf16.msra.mxu0 %v2780
  %2813 = vmatprep.subr.bf16.mxu0 %v2785
  %2814 = vmatpush1.bf16.msra.mxu0 %v2784
  %2815 = vmatprep.subr.bf16.mxu0 0
  %2816 = vmatpush1.bf16.msra.mxu0 0
  %2817 = vmatprep.subr.bf16.mxu0 0
  %2818 = vmatpush1.bf16.msra.mxu0 0
  %2819 = vmatprep.subr.bf16.mxu0 0
  %2820 = vmatpush1.bf16.msra.mxu0 0
  %2821 = vmatprep.subr.bf16.mxu0 0
  %2822 = vmatpush1.bf16.msra.mxu0 0
  %2823 = vmatprep.subr.bf16.mxu0 0
  %2824 = vmatpush1.bf16.msra.mxu0 0
  %2825 = vmatprep.subr.bf16.mxu0 0
  %2826 = vmatpush1.bf16.msra.mxu0 0
  %2827 = vmatprep.subr.bf16.mxu0 0
  %2828 = vmatpush1.bf16.msra.mxu0 0
  %2829 = vmatprep.subr.bf16.mxu0 0
  %2830 = vmatpush1.bf16.msra.mxu0 0
  %2831 = vmatprep.subr.bf16.mxu0 0
  %2832 = vmatpush1.bf16.msra.mxu0 0
  %2833 = vmatprep.subr.bf16.mxu0 0
  %2834 = vmatpush1.bf16.msra.mxu0 0
  %2835 = vmatprep.subr.bf16.mxu0 0
  %2836 = vmatpush1.bf16.msra.mxu0 0
  %2837 = vmatprep.subr.bf16.mxu0 0
  %2838 = vmatpush1.bf16.msra.mxu0 0
  %2839 = vmatprep.mubr.bf16.mxu0 0
  %2840 = vmatmul.mubr.bf16.gmra.mrb[0].mxu0 %v2805
  %v2841 = vpop.f32.mrb[0].mxu0
  %v2842 = vadd.f32 0.0, %v2841
  %v2843 = vpop.f32.mrb[0].mxu0
  %v2844 = vadd.f32 0.0, %v2843
  %v2845 = vpop.f32.mrb[0].mxu0
  %v2846 = vpop.f32.mrb[0].mxu0
  %2847 = vdwg.mxu0
  %2848 = vmatprep.subr.bf16.mxu0 %v2775
  %2849 = vmatpush1.bf16.msra.mxu0 %v2774
  %2850 = vmatprep.subr.bf16.mxu0 %v2779
  %2851 = vmatpush1.bf16.msra.mxu0 %v2778
  %2852 = vmatprep.subr.bf16.mxu0 %v2783
  %2853 = vmatpush1.bf16.msra.mxu0 %v2782
  %2854 = vmatprep.subr.bf16.mxu0 %v2787
  %2855 = vmatpush1.bf16.msra.mxu0 %v2786
  %2856 = vmatprep.subr.bf16.mxu0 0
  %2857 = vmatpush1.bf16.msra.mxu0 0
  %2858 = vmatprep.subr.bf16.mxu0 0
  %2859 = vmatpush1.bf16.msra.mxu0 0
  %2860 = vmatprep.subr.bf16.mxu0 0
  %2861 = vmatpush1.bf16.msra.mxu0 0
  %2862 = vmatprep.subr.bf16.mxu0 0
  %2863 = vmatpush1.bf16.msra.mxu0 0
  %2864 = vmatprep.subr.bf16.mxu0 0
  %2865 = vmatpush1.bf16.msra.mxu0 0
  %2866 = vmatprep.subr.bf16.mxu0 0
  %2867 = vmatpush1.bf16.msra.mxu0 0
  %2868 = vmatprep.subr.bf16.mxu0 0
  %2869 = vmatpush1.bf16.msra.mxu0 0
  %2870 = vmatprep.subr.bf16.mxu0 0
  %2871 = vmatpush1.bf16.msra.mxu0 0
  %2872 = vmatprep.subr.bf16.mxu0 0
  %2873 = vmatpush1.bf16.msra.mxu0 0
  %2874 = vmatprep.subr.bf16.mxu0 0
  %2875 = vmatpush1.bf16.msra.mxu0 0
  %2876 = vmatprep.subr.bf16.mxu0 0
  %2877 = vmatpush1.bf16.msra.mxu0 0
  %2878 = vmatprep.subr.bf16.mxu0 0
  %2879 = vmatpush1.bf16.msra.mxu0 0
  %2880 = vmatprep.mubr.bf16.mxu0 0
  %2881 = vmatmul.mubr.bf16.gmra.mrb[0].mxu0 %v2805
  %v2882 = vpop.f32.mrb[0].mxu0
  %v2883 = vadd.f32 0.0, %v2882
  %v2884 = vpop.f32.mrb[0].mxu0
  %v2885 = vadd.f32 0.0, %v2884
  %v2886 = vpop.f32.mrb[0].mxu0
  %v2887 = vpop.f32.mrb[0].mxu0
  %2888 = vdwg.mxu0
  %v2889 = vadd.f32 %v2702, %v2842
  %v2890 = vadd.f32 %v2703, %v2844
  %v2891 = vadd.f32 %v2704, %v2883
  %v2892 = vadd.f32 %v2705, %v2885
  %v2893 = vld [vmem:[#allocation2 + $0x10] sm:$0xf]
  %s2894 = scalar_lea.vmem %s3, 512
  %v2895 = vld [vmem:[%s2894] sm:$0xff]
  %v2896 = vld [vmem:[%s2894 + $0x8] sm:$0xff]
  %v2897 = vld [vmem:[%s2894 + $0x10] sm:$0xff]
  %v2898 = vld [vmem:[%s2894 + $0x18] sm:$0xff]
  %v2899 = vld [vmem:[%s2894 + $0x20] sm:$0xff]
  %v2900 = vld [vmem:[%s2894 + $0x28] sm:$0xff]
  %v2901 = vld [vmem:[%s2894 + $0x30] sm:$0xff]
  %v2902 = vld [vmem:[%s2894 + $0x38] sm:$0xff]
  %v2903 = vld [vmem:[%s2894 + $0x40] sm:$0xff]
  %v2904 = vld [vmem:[%s2894 + $0x48] sm:$0xff]
  %v2905 = vld [vmem:[%s2894 + $0x50] sm:$0xff]
  %v2906 = vld [vmem:[%s2894 + $0x58] sm:$0xff]
  %v2907 = vld [vmem:[%s2894 + $0x60] sm:$0xff]
  %v2908 = vld [vmem:[%s2894 + $0x68] sm:$0xff]
  %v2909 = vld [vmem:[%s2894 + $0x70] sm:$0xff]
  %v2910 = vld [vmem:[%s2894 + $0x78] sm:$0xff]
  %v2927 = vunpack.c.l.b16 %v2895
  %v2928 = vunpack.c.h.b16 %v2895
  %v2929 = vunpack.c.l.b16 %v2896
  %v2930 = vunpack.c.h.b16 %v2896
  %v2931 = vunpack.c.l.b16 %v2897
  %v2932 = vunpack.c.h.b16 %v2897
  %v2933 = vunpack.c.l.b16 %v2898
  %v2934 = vunpack.c.h.b16 %v2898
  %v2935 = vunpack.c.l.b16 %v2899
  %v2936 = vunpack.c.h.b16 %v2899
  %v2937 = vunpack.c.l.b16 %v2900
  %v2938 = vunpack.c.h.b16 %v2900
  %v2939 = vunpack.c.l.b16 %v2901
  %v2940 = vunpack.c.h.b16 %v2901
  %v2941 = vunpack.c.l.b16 %v2902
  %v2942 = vunpack.c.h.b16 %v2902
  %v2943 = vunpack.c.l.b16 %v2903
  %v2944 = vunpack.c.h.b16 %v2903
  %v2945 = vunpack.c.l.b16 %v2904
  %v2946 = vunpack.c.h.b16 %v2904
  %v2947 = vunpack.c.l.b16 %v2905
  %v2948 = vunpack.c.h.b16 %v2905
  %v2949 = vunpack.c.l.b16 %v2906
  %v2950 = vunpack.c.h.b16 %v2906
  %v2951 = vunpack.c.l.b16 %v2907
  %v2952 = vunpack.c.h.b16 %v2907
  %v2953 = vunpack.c.l.b16 %v2908
  %v2954 = vunpack.c.h.b16 %v2908
  %v2955 = vunpack.c.l.b16 %v2909
  %v2956 = vunpack.c.h.b16 %v2909
  %v2957 = vunpack.c.l.b16 %v2910
  %v2958 = vunpack.c.h.b16 %v2910
  %v2959 = vpack.c.b16 %v2931, %v2927
  %v2960 = vpack.c.b16 %v2932, %v2928
  %v2961 = vpack.c.b16 %v2933, %v2929
  %v2962 = vpack.c.b16 %v2934, %v2930
  %v2963 = vpack.c.b16 %v2939, %v2935
  %v2964 = vpack.c.b16 %v2940, %v2936
  %v2965 = vpack.c.b16 %v2941, %v2937
  %v2966 = vpack.c.b16 %v2942, %v2938
  %v2967 = vpack.c.b16 %v2947, %v2943
  %v2968 = vpack.c.b16 %v2948, %v2944
  %v2969 = vpack.c.b16 %v2949, %v2945
  %v2970 = vpack.c.b16 %v2950, %v2946
  %v2971 = vpack.c.b16 %v2955, %v2951
  %v2972 = vpack.c.b16 %v2956, %v2952
  %v2973 = vpack.c.b16 %v2957, %v2953
  %v2974 = vpack.c.b16 %v2958, %v2954
  %v2992 = vsel %vm1086, %v2893, 0
  %2994 = vmatprep.subr.bf16.mxu0 %v2960
  %2995 = vmatpush1.bf16.msra.mxu0 %v2959
  %2996 = vmatprep.subr.bf16.mxu0 %v2964
  %2997 = vmatpush1.bf16.msra.mxu0 %v2963
  %2998 = vmatprep.subr.bf16.mxu0 %v2968
  %2999 = vmatpush1.bf16.msra.mxu0 %v2967
  %3000 = vmatprep.subr.bf16.mxu0 %v2972
  %3001 = vmatpush1.bf16.msra.mxu0 %v2971
  %3002 = vmatprep.subr.bf16.mxu0 0
  %3003 = vmatpush1.bf16.msra.mxu0 0
  %3004 = vmatprep.subr.bf16.mxu0 0
  %3005 = vmatpush1.bf16.msra.mxu0 0
  %3006 = vmatprep.subr.bf16.mxu0 0
  %3007 = vmatpush1.bf16.msra.mxu0 0
  %3008 = vmatprep.subr.bf16.mxu0 0
  %3009 = vmatpush1.bf16.msra.mxu0 0
  %3010 = vmatprep.subr.bf16.mxu0 0
  %3011 = vmatpush1.bf16.msra.mxu0 0
  %3012 = vmatprep.subr.bf16.mxu0 0
  %3013 = vmatpush1.bf16.msra.mxu0 0
  %3014 = vmatprep.subr.bf16.mxu0 0
  %3015 = vmatpush1.bf16.msra.mxu0 0
  %3016 = vmatprep.subr.bf16.mxu0 0
  %3017 = vmatpush1.bf16.msra.mxu0 0
  %3018 = vmatprep.subr.bf16.mxu0 0
  %3019 = vmatpush1.bf16.msra.mxu0 0
  %3020 = vmatprep.subr.bf16.mxu0 0
  %3021 = vmatpush1.bf16.msra.mxu0 0
  %3022 = vmatprep.subr.bf16.mxu0 0
  %3023 = vmatpush1.bf16.msra.mxu0 0
  %3024 = vmatprep.subr.bf16.mxu0 0
  %3025 = vmatpush1.bf16.msra.mxu0 0
  %3026 = vmatprep.mubr.bf16.mxu0 0
  %3027 = vmatmul.mubr.bf16.gmra.mrb[0].mxu0 %v2992
  %v3028 = vpop.f32.mrb[0].mxu0
  %v3029 = vadd.f32 0.0, %v3028
  %v3030 = vpop.f32.mrb[0].mxu0
  %v3031 = vadd.f32 0.0, %v3030
  %v3032 = vpop.f32.mrb[0].mxu0
  %v3033 = vpop.f32.mrb[0].mxu0
  %3034 = vdwg.mxu0
  %3035 = vmatprep.subr.bf16.mxu0 %v2962
  %3036 = vmatpush1.bf16.msra.mxu0 %v2961
  %3037 = vmatprep.subr.bf16.mxu0 %v2966
  %3038 = vmatpush1.bf16.msra.mxu0 %v2965
  %3039 = vmatprep.subr.bf16.mxu0 %v2970
  %3040 = vmatpush1.bf16.msra.mxu0 %v2969
  %3041 = vmatprep.subr.bf16.mxu0 %v2974
  %3042 = vmatpush1.bf16.msra.mxu0 %v2973
  %3043 = vmatprep.subr.bf16.mxu0 0
  %3044 = vmatpush1.bf16.msra.mxu0 0
  %3045 = vmatprep.subr.bf16.mxu0 0
  %3046 = vmatpush1.bf16.msra.mxu0 0
  %3047 = vmatprep.subr.bf16.mxu0 0
  %3048 = vmatpush1.bf16.msra.mxu0 0
  %3049 = vmatprep.subr.bf16.mxu0 0
  %3050 = vmatpush1.bf16.msra.mxu0 0
  %3051 = vmatprep.subr.bf16.mxu0 0
  %3052 = vmatpush1.bf16.msra.mxu0 0
  %3053 = vmatprep.subr.bf16.mxu0 0
  %3054 = vmatpush1.bf16.msra.mxu0 0
  %3055 = vmatprep.subr.bf16.mxu0 0
  %3056 = vmatpush1.bf16.msra.mxu0 0
  %3057 = vmatprep.subr.bf16.mxu0 0
  %3058 = vmatpush1.bf16.msra.mxu0 0
  %3059 = vmatprep.subr.bf16.mxu0 0
  %3060 = vmatpush1.bf16.msra.mxu0 0
  %3061 = vmatprep.subr.bf16.mxu0 0
  %3062 = vmatpush1.bf16.msra.mxu0 0
  %3063 = vmatprep.subr.bf16.mxu0 0
  %3064 = vmatpush1.bf16.msra.mxu0 0
  %3065 = vmatprep.subr.bf16.mxu0 0
  %3066 = vmatpush1.bf16.msra.mxu0 0
  %3067 = vmatprep.mubr.bf16.mxu0 0
  %3068 = vmatmul.mubr.bf16.gmra.mrb[0].mxu0 %v2992
  %v3069 = vpop.f32.mrb[0].mxu0
  %v3070 = vadd.f32 0.0, %v3069
  %v3071 = vpop.f32.mrb[0].mxu0
  %v3072 = vadd.f32 0.0, %v3071
  %v3073 = vpop.f32.mrb[0].mxu0
  %v3074 = vpop.f32.mrb[0].mxu0
  %3075 = vdwg.mxu0
  %v3076 = vadd.f32 %v2889, %v3029
  %v3077 = vadd.f32 %v2890, %v3031
  %v3078 = vadd.f32 %v2891, %v3070
  %v3079 = vadd.f32 %v2892, %v3072
  %v3080 = vld [vmem:[#allocation2 + $0x14] sm:$0xf]
  %s3081 = scalar_lea.vmem %s3, 640
  %v3082 = vld [vmem:[%s3081] sm:$0xff]
  %v3083 = vld [vmem:[%s3081 + $0x8] sm:$0xff]
  %v3084 = vld [vmem:[%s3081 + $0x10] sm:$0xff]
  %v3085 = vld [vmem:[%s3081 + $0x18] sm:$0xff]
  %v3086 = vld [vmem:[%s3081 + $0x20] sm:$0xff]
  %v3087 = vld [vmem:[%s3081 + $0x28] sm:$0xff]
  %v3088 = vld [vmem:[%s3081 + $0x30] sm:$0xff]
  %v3089 = vld [vmem:[%s3081 + $0x38] sm:$0xff]
  %v3090 = vld [vmem:[%s3081 + $0x40] sm:$0xff]
  %v3091 = vld [vmem:[%s3081 + $0x48] sm:$0xff]
  %v3092 = vld [vmem:[%s3081 + $0x50] sm:$0xff]
  %v3093 = vld [vmem:[%s3081 + $0x58] sm:$0xff]
  %v3094 = vld [vmem:[%s3081 + $0x60] sm:$0xff]
  %v3095 = vld [vmem:[%s3081 + $0x68] sm:$0xff]
  %v3096 = vld [vmem:[%s3081 + $0x70] sm:$0xff]
  %v3097 = vld [vmem:[%s3081 + $0x78] sm:$0xff]
  %v3114 = vunpack.c.l.b16 %v3082
  %v3115 = vunpack.c.h.b16 %v3082
  %v3116 = vunpack.c.l.b16 %v3083
  %v3117 = vunpack.c.h.b16 %v3083
  %v3118 = vunpack.c.l.b16 %v3084
  %v3119 = vunpack.c.h.b16 %v3084
  %v3120 = vunpack.c.l.b16 %v3085
  %v3121 = vunpack.c.h.b16 %v3085
  %v3122 = vunpack.c.l.b16 %v3086
  %v3123 = vunpack.c.h.b16 %v3086
  %v3124 = vunpack.c.l.b16 %v3087
  %v3125 = vunpack.c.h.b16 %v3087
  %v3126 = vunpack.c.l.b16 %v3088
  %v3127 = vunpack.c.h.b16 %v3088
  %v3128 = vunpack.c.l.b16 %v3089
  %v3129 = vunpack.c.h.b16 %v3089
  %v3130 = vunpack.c.l.b16 %v3090
  %v3131 = vunpack.c.h.b16 %v3090
  %v3132 = vunpack.c.l.b16 %v3091
  %v3133 = vunpack.c.h.b16 %v3091
  %v3134 = vunpack.c.l.b16 %v3092
  %v3135 = vunpack.c.h.b16 %v3092
  %v3136 = vunpack.c.l.b16 %v3093
  %v3137 = vunpack.c.h.b16 %v3093
  %v3138 = vunpack.c.l.b16 %v3094
  %v3139 = vunpack.c.h.b16 %v3094
  %v3140 = vunpack.c.l.b16 %v3095
  %v3141 = vunpack.c.h.b16 %v3095
  %v3142 = vunpack.c.l.b16 %v3096
  %v3143 = vunpack.c.h.b16 %v3096
  %v3144 = vunpack.c.l.b16 %v3097
  %v3145 = vunpack.c.h.b16 %v3097
  %v3146 = vpack.c.b16 %v3118, %v3114
  %v3147 = vpack.c.b16 %v3119, %v3115
  %v3148 = vpack.c.b16 %v3120, %v3116
  %v3149 = vpack.c.b16 %v3121, %v3117
  %v3150 = vpack.c.b16 %v3126, %v3122
  %v3151 = vpack.c.b16 %v3127, %v3123
  %v3152 = vpack.c.b16 %v3128, %v3124
  %v3153 = vpack.c.b16 %v3129, %v3125
  %v3154 = vpack.c.b16 %v3134, %v3130
  %v3155 = vpack.c.b16 %v3135, %v3131
  %v3156 = vpack.c.b16 %v3136, %v3132
  %v3157 = vpack.c.b16 %v3137, %v3133
  %v3158 = vpack.c.b16 %v3142, %v3138
  %v3159 = vpack.c.b16 %v3143, %v3139
  %v3160 = vpack.c.b16 %v3144, %v3140
  %v3161 = vpack.c.b16 %v3145, %v3141
  %v3179 = vsel %vm1086, %v3080, 0
  %3181 = vmatprep.subr.bf16.mxu0 %v3147
  %3182 = vmatpush1.bf16.msra.mxu0 %v3146
  %3183 = vmatprep.subr.bf16.mxu0 %v3151
  %3184 = vmatpush1.bf16.msra.mxu0 %v3150
  %3185 = vmatprep.subr.bf16.mxu0 %v3155
  %3186 = vmatpush1.bf16.msra.mxu0 %v3154
  %3187 = vmatprep.subr.bf16.mxu0 %v3159
  %3188 = vmatpush1.bf16.msra.mxu0 %v3158
  %3189 = vmatprep.subr.bf16.mxu0 0
  %3190 = vmatpush1.bf16.msra.mxu0 0
  %3191 = vmatprep.subr.bf16.mxu0 0
  %3192 = vmatpush1.bf16.msra.mxu0 0
  %3193 = vmatprep.subr.bf16.mxu0 0
  %3194 = vmatpush1.bf16.msra.mxu0 0
  %3195 = vmatprep.subr.bf16.mxu0 0
  %3196 = vmatpush1.bf16.msra.mxu0 0
  %3197 = vmatprep.subr.bf16.mxu0 0
  %3198 = vmatpush1.bf16.msra.mxu0 0
  %3199 = vmatprep.subr.bf16.mxu0 0
  %3200 = vmatpush1.bf16.msra.mxu0 0
  %3201 = vmatprep.subr.bf16.mxu0 0
  %3202 = vmatpush1.bf16.msra.mxu0 0
  %3203 = vmatprep.subr.bf16.mxu0 0
  %3204 = vmatpush1.bf16.msra.mxu0 0
  %3205 = vmatprep.subr.bf16.mxu0 0
  %3206 = vmatpush1.bf16.msra.mxu0 0
  %3207 = vmatprep.subr.bf16.mxu0 0
  %3208 = vmatpush1.bf16.msra.mxu0 0
  %3209 = vmatprep.subr.bf16.mxu0 0
  %3210 = vmatpush1.bf16.msra.mxu0 0
  %3211 = vmatprep.subr.bf16.mxu0 0
  %3212 = vmatpush1.bf16.msra.mxu0 0
  %3213 = vmatprep.mubr.bf16.mxu0 0
  %3214 = vmatmul.mubr.bf16.gmra.mrb[0].mxu0 %v3179
  %v3215 = vpop.f32.mrb[0].mxu0
  %v3216 = vadd.f32 0.0, %v3215
  %v3217 = vpop.f32.mrb[0].mxu0
  %v3218 = vadd.f32 0.0, %v3217
  %v3219 = vpop.f32.mrb[0].mxu0
  %v3220 = vpop.f32.mrb[0].mxu0
  %3221 = vdwg.mxu0
  %3222 = vmatprep.subr.bf16.mxu0 %v3149
  %3223 = vmatpush1.bf16.msra.mxu0 %v3148
  %3224 = vmatprep.subr.bf16.mxu0 %v3153
  %3225 = vmatpush1.bf16.msra.mxu0 %v3152
  %3226 = vmatprep.subr.bf16.mxu0 %v3157
  %3227 = vmatpush1.bf16.msra.mxu0 %v3156
  %3228 = vmatprep.subr.bf16.mxu0 %v3161
  %3229 = vmatpush1.bf16.msra.mxu0 %v3160
  %3230 = vmatprep.subr.bf16.mxu0 0
  %3231 = vmatpush1.bf16.msra.mxu0 0
  %3232 = vmatprep.subr.bf16.mxu0 0
  %3233 = vmatpush1.bf16.msra.mxu0 0
  %3234 = vmatprep.subr.bf16.mxu0 0
  %3235 = vmatpush1.bf16.msra.mxu0 0
  %3236 = vmatprep.subr.bf16.mxu0 0
  %3237 = vmatpush1.bf16.msra.mxu0 0
  %3238 = vmatprep.subr.bf16.mxu0 0
  %3239 = vmatpush1.bf16.msra.mxu0 0
  %3240 = vmatprep.subr.bf16.mxu0 0
  %3241 = vmatpush1.bf16.msra.mxu0 0
  %3242 = vmatprep.subr.bf16.mxu0 0
  %3243 = vmatpush1.bf16.msra.mxu0 0
  %3244 = vmatprep.subr.bf16.mxu0 0
  %3245 = vmatpush1.bf16.msra.mxu0 0
  %3246 = vmatprep.subr.bf16.mxu0 0
  %3247 = vmatpush1.bf16.msra.mxu0 0
  %3248 = vmatprep.subr.bf16.mxu0 0
  %3249 = vmatpush1.bf16.msra.mxu0 0
  %3250 = vmatprep.subr.bf16.mxu0 0
  %3251 = vmatpush1.bf16.msra.mxu0 0
  %3252 = vmatprep.subr.bf16.mxu0 0
  %3253 = vmatpush1.bf16.msra.mxu0 0
  %3254 = vmatprep.mubr.bf16.mxu0 0
  %3255 = vmatmul.mubr.bf16.gmra.mrb[0].mxu0 %v3179
  %v3256 = vpop.f32.mrb[0].mxu0
  %v3257 = vadd.f32 0.0, %v3256
  %v3258 = vpop.f32.mrb[0].mxu0
  %v3259 = vadd.f32 0.0, %v3258
  %v3260 = vpop.f32.mrb[0].mxu0
  %v3261 = vpop.f32.mrb[0].mxu0
  %3262 = vdwg.mxu0
  %v3263 = vadd.f32 %v3076, %v3216
  %v3264 = vadd.f32 %v3077, %v3218
  %v3265 = vadd.f32 %v3078, %v3257
  %v3266 = vadd.f32 %v3079, %v3259
  %v3267 = vld [vmem:[#allocation2 + $0x18] sm:$0xf]
  %s3268 = scalar_lea.vmem %s3, 768
  %v3269 = vld [vmem:[%s3268] sm:$0xff]
  %v3270 = vld [vmem:[%s3268 + $0x8] sm:$0xff]
  %v3271 = vld [vmem:[%s3268 + $0x10] sm:$0xff]
  %v3272 = vld [vmem:[%s3268 + $0x18] sm:$0xff]
  %v3273 = vld [vmem:[%s3268 + $0x20] sm:$0xff]
  %v3274 = vld [vmem:[%s3268 + $0x28] sm:$0xff]
  %v3275 = vld [vmem:[%s3268 + $0x30] sm:$0xff]
  %v3276 = vld [vmem:[%s3268 + $0x38] sm:$0xff]
  %v3277 = vld [vmem:[%s3268 + $0x40] sm:$0xff]
  %v3278 = vld [vmem:[%s3268 + $0x48] sm:$0xff]
  %v3279 = vld [vmem:[%s3268 + $0x50] sm:$0xff]
  %v3280 = vld [vmem:[%s3268 + $0x58] sm:$0xff]
  %v3281 = vld [vmem:[%s3268 + $0x60] sm:$0xff]
  %v3282 = vld [vmem:[%s3268 + $0x68] sm:$0xff]
  %v3283 = vld [vmem:[%s3268 + $0x70] sm:$0xff]
  %v3284 = vld [vmem:[%s3268 + $0x78] sm:$0xff]
  %v3301 = vunpack.c.l.b16 %v3269
  %v3302 = vunpack.c.h.b16 %v3269
  %v3303 = vunpack.c.l.b16 %v3270
  %v3304 = vunpack.c.h.b16 %v3270
  %v3305 = vunpack.c.l.b16 %v3271
  %v3306 = vunpack.c.h.b16 %v3271
  %v3307 = vunpack.c.l.b16 %v3272
  %v3308 = vunpack.c.h.b16 %v3272
  %v3309 = vunpack.c.l.b16 %v3273
  %v3310 = vunpack.c.h.b16 %v3273
  %v3311 = vunpack.c.l.b16 %v3274
  %v3312 = vunpack.c.h.b16 %v3274
  %v3313 = vunpack.c.l.b16 %v3275
  %v3314 = vunpack.c.h.b16 %v3275
  %v3315 = vunpack.c.l.b16 %v3276
  %v3316 = vunpack.c.h.b16 %v3276
  %v3317 = vunpack.c.l.b16 %v3277
  %v3318 = vunpack.c.h.b16 %v3277
  %v3319 = vunpack.c.l.b16 %v3278
  %v3320 = vunpack.c.h.b16 %v3278
  %v3321 = vunpack.c.l.b16 %v3279
  %v3322 = vunpack.c.h.b16 %v3279
  %v3323 = vunpack.c.l.b16 %v3280
  %v3324 = vunpack.c.h.b16 %v3280
  %v3325 = vunpack.c.l.b16 %v3281
  %v3326 = vunpack.c.h.b16 %v3281
  %v3327 = vunpack.c.l.b16 %v3282
  %v3328 = vunpack.c.h.b16 %v3282
  %v3329 = vunpack.c.l.b16 %v3283
  %v3330 = vunpack.c.h.b16 %v3283
  %v3331 = vunpack.c.l.b16 %v3284
  %v3332 = vunpack.c.h.b16 %v3284
  %v3333 = vpack.c.b16 %v3305, %v3301
  %v3334 = vpack.c.b16 %v3306, %v3302
  %v3335 = vpack.c.b16 %v3307, %v3303
  %v3336 = vpack.c.b16 %v3308, %v3304
  %v3337 = vpack.c.b16 %v3313, %v3309
  %v3338 = vpack.c.b16 %v3314, %v3310
  %v3339 = vpack.c.b16 %v3315, %v3311
  %v3340 = vpack.c.b16 %v3316, %v3312
  %v3341 = vpack.c.b16 %v3321, %v3317
  %v3342 = vpack.c.b16 %v3322, %v3318
  %v3343 = vpack.c.b16 %v3323, %v3319
  %v3344 = vpack.c.b16 %v3324, %v3320
  %v3345 = vpack.c.b16 %v3329, %v3325
  %v3346 = vpack.c.b16 %v3330, %v3326
  %v3347 = vpack.c.b16 %v3331, %v3327
  %v3348 = vpack.c.b16 %v3332, %v3328
  %v3366 = vsel %vm1086, %v3267, 0
  %3368 = vmatprep.subr.bf16.mxu0 %v3334
  %3369 = vmatpush1.bf16.msra.mxu0 %v3333
  %3370 = vmatprep.subr.bf16.mxu0 %v3338
  %3371 = vmatpush1.bf16.msra.mxu0 %v3337
  %3372 = vmatprep.subr.bf16.mxu0 %v3342
  %3373 = vmatpush1.bf16.msra.mxu0 %v3341
  %3374 = vmatprep.subr.bf16.mxu0 %v3346
  %3375 = vmatpush1.bf16.msra.mxu0 %v3345
  %3376 = vmatprep.subr.bf16.mxu0 0
  %3377 = vmatpush1.bf16.msra.mxu0 0
  %3378 = vmatprep.subr.bf16.mxu0 0
  %3379 = vmatpush1.bf16.msra.mxu0 0
  %3380 = vmatprep.subr.bf16.mxu0 0
  %3381 = vmatpush1.bf16.msra.mxu0 0
  %3382 = vmatprep.subr.bf16.mxu0 0
  %3383 = vmatpush1.bf16.msra.mxu0 0
  %3384 = vmatprep.subr.bf16.mxu0 0
  %3385 = vmatpush1.bf16.msra.mxu0 0
  %3386 = vmatprep.subr.bf16.mxu0 0
  %3387 = vmatpush1.bf16.msra.mxu0 0
  %3388 = vmatprep.subr.bf16.mxu0 0
  %3389 = vmatpush1.bf16.msra.mxu0 0
  %3390 = vmatprep.subr.bf16.mxu0 0
  %3391 = vmatpush1.bf16.msra.mxu0 0
  %3392 = vmatprep.subr.bf16.mxu0 0
  %3393 = vmatpush1.bf16.msra.mxu0 0
  %3394 = vmatprep.subr.bf16.mxu0 0
  %3395 = vmatpush1.bf16.msra.mxu0 0
  %3396 = vmatprep.subr.bf16.mxu0 0
  %3397 = vmatpush1.bf16.msra.mxu0 0
  %3398 = vmatprep.subr.bf16.mxu0 0
  %3399 = vmatpush1.bf16.msra.mxu0 0
  %3400 = vmatprep.mubr.bf16.mxu0 0
  %3401 = vmatmul.mubr.bf16.gmra.mrb[0].mxu0 %v3366
  %v3402 = vpop.f32.mrb[0].mxu0
  %v3403 = vadd.f32 0.0, %v3402
  %v3404 = vpop.f32.mrb[0].mxu0
  %v3405 = vadd.f32 0.0, %v3404
  %v3406 = vpop.f32.mrb[0].mxu0
  %v3407 = vpop.f32.mrb[0].mxu0
  %3408 = vdwg.mxu0
  %3409 = vmatprep.subr.bf16.mxu0 %v3336
  %3410 = vmatpush1.bf16.msra.mxu0 %v3335
  %3411 = vmatprep.subr.bf16.mxu0 %v3340
  %3412 = vmatpush1.bf16.msra.mxu0 %v3339
  %3413 = vmatprep.subr.bf16.mxu0 %v3344
  %3414 = vmatpush1.bf16.msra.mxu0 %v3343
  %3415 = vmatprep.subr.bf16.mxu0 %v3348
  %3416 = vmatpush1.bf16.msra.mxu0 %v3347
  %3417 = vmatprep.subr.bf16.mxu0 0
  %3418 = vmatpush1.bf16.msra.mxu0 0
  %3419 = vmatprep.subr.bf16.mxu0 0
  %3420 = vmatpush1.bf16.msra.mxu0 0
  %3421 = vmatprep.subr.bf16.mxu0 0
  %3422 = vmatpush1.bf16.msra.mxu0 0
  %3423 = vmatprep.subr.bf16.mxu0 0
  %3424 = vmatpush1.bf16.msra.mxu0 0
  %3425 = vmatprep.subr.bf16.mxu0 0
  %3426 = vmatpush1.bf16.msra.mxu0 0
  %3427 = vmatprep.subr.bf16.mxu0 0
  %3428 = vmatpush1.bf16.msra.mxu0 0
  %3429 = vmatprep.subr.bf16.mxu0 0
  %3430 = vmatpush1.bf16.msra.mxu0 0
  %3431 = vmatprep.subr.bf16.mxu0 0
  %3432 = vmatpush1.bf16.msra.mxu0 0
  %3433 = vmatprep.subr.bf16.mxu0 0
  %3434 = vmatpush1.bf16.msra.mxu0 0
  %3435 = vmatprep.subr.bf16.mxu0 0
  %3436 = vmatpush1.bf16.msra.mxu0 0
  %3437 = vmatprep.subr.bf16.mxu0 0
  %3438 = vmatpush1.bf16.msra.mxu0 0
  %3439 = vmatprep.subr.bf16.mxu0 0
  %3440 = vmatpush1.bf16.msra.mxu0 0
  %3441 = vmatprep.mubr.bf16.mxu0 0
  %3442 = vmatmul.mubr.bf16.gmra.mrb[0].mxu0 %v3366
  %v3443 = vpop.f32.mrb[0].mxu0
  %v3444 = vadd.f32 0.0, %v3443
  %v3445 = vpop.f32.mrb[0].mxu0
  %v3446 = vadd.f32 0.0, %v3445
  %v3447 = vpop.f32.mrb[0].mxu0
  %v3448 = vpop.f32.mrb[0].mxu0
  %3449 = vdwg.mxu0
  %v3450 = vadd.f32 %v3263, %v3403
  %v3451 = vadd.f32 %v3264, %v3405
  %v3452 = vadd.f32 %v3265, %v3444
  %v3453 = vadd.f32 %v3266, %v3446
  %v3454 = vld [vmem:[#allocation2 + $0x1c] sm:$0xf]
  %s3455 = scalar_lea.vmem %s3, 896
  %v3456 = vld [vmem:[%s3455] sm:$0xff]
  %v3457 = vld [vmem:[%s3455 + $0x8] sm:$0xff]
  %v3458 = vld [vmem:[%s3455 + $0x10] sm:$0xff]
  %v3459 = vld [vmem:[%s3455 + $0x18] sm:$0xff]
  %v3460 = vld [vmem:[%s3455 + $0x20] sm:$0xff]
  %v3461 = vld [vmem:[%s3455 + $0x28] sm:$0xff]
  %v3462 = vld [vmem:[%s3455 + $0x30] sm:$0xff]
  %v3463 = vld [vmem:[%s3455 + $0x38] sm:$0xff]
  %v3464 = vld [vmem:[%s3455 + $0x40] sm:$0xff]
  %v3465 = vld [vmem:[%s3455 + $0x48] sm:$0xff]
  %v3466 = vld [vmem:[%s3455 + $0x50] sm:$0xff]
  %v3467 = vld [vmem:[%s3455 + $0x58] sm:$0xff]
  %v3468 = vld [vmem:[%s3455 + $0x60] sm:$0xff]
  %v3469 = vld [vmem:[%s3455 + $0x68] sm:$0xff]
  %v3470 = vld [vmem:[%s3455 + $0x70] sm:$0xff]
  %v3471 = vld [vmem:[%s3455 + $0x78] sm:$0xff]
  %v3488 = vunpack.c.l.b16 %v3456
  %v3489 = vunpack.c.h.b16 %v3456
  %v3490 = vunpack.c.l.b16 %v3457
  %v3491 = vunpack.c.h.b16 %v3457
  %v3492 = vunpack.c.l.b16 %v3458
  %v3493 = vunpack.c.h.b16 %v3458
  %v3494 = vunpack.c.l.b16 %v3459
  %v3495 = vunpack.c.h.b16 %v3459
  %v3496 = vunpack.c.l.b16 %v3460
  %v3497 = vunpack.c.h.b16 %v3460
  %v3498 = vunpack.c.l.b16 %v3461
  %v3499 = vunpack.c.h.b16 %v3461
  %v3500 = vunpack.c.l.b16 %v3462
  %v3501 = vunpack.c.h.b16 %v3462
  %v3502 = vunpack.c.l.b16 %v3463
  %v3503 = vunpack.c.h.b16 %v3463
  %v3504 = vunpack.c.l.b16 %v3464
  %v3505 = vunpack.c.h.b16 %v3464
  %v3506 = vunpack.c.l.b16 %v3465
  %v3507 = vunpack.c.h.b16 %v3465
  %v3508 = vunpack.c.l.b16 %v3466
  %v3509 = vunpack.c.h.b16 %v3466
  %v3510 = vunpack.c.l.b16 %v3467
  %v3511 = vunpack.c.h.b16 %v3467
  %v3512 = vunpack.c.l.b16 %v3468
  %v3513 = vunpack.c.h.b16 %v3468
  %v3514 = vunpack.c.l.b16 %v3469
  %v3515 = vunpack.c.h.b16 %v3469
  %v3516 = vunpack.c.l.b16 %v3470
  %v3517 = vunpack.c.h.b16 %v3470
  %v3518 = vunpack.c.l.b16 %v3471
  %v3519 = vunpack.c.h.b16 %v3471
  %v3520 = vpack.c.b16 %v3492, %v3488
  %v3521 = vpack.c.b16 %v3493, %v3489
  %v3522 = vpack.c.b16 %v3494, %v3490
  %v3523 = vpack.c.b16 %v3495, %v3491
  %v3524 = vpack.c.b16 %v3500, %v3496
  %v3525 = vpack.c.b16 %v3501, %v3497
  %v3526 = vpack.c.b16 %v3502, %v3498
  %v3527 = vpack.c.b16 %v3503, %v3499
  %v3528 = vpack.c.b16 %v3508, %v3504
  %v3529 = vpack.c.b16 %v3509, %v3505
  %v3530 = vpack.c.b16 %v3510, %v3506
  %v3531 = vpack.c.b16 %v3511, %v3507
  %v3532 = vpack.c.b16 %v3516, %v3512
  %v3533 = vpack.c.b16 %v3517, %v3513
  %v3534 = vpack.c.b16 %v3518, %v3514
  %v3535 = vpack.c.b16 %v3519, %v3515
  %v3553 = vsel %vm1086, %v3454, 0
  %3555 = vmatprep.subr.bf16.mxu0 %v3521
  %3556 = vmatpush1.bf16.msra.mxu0 %v3520
  %3557 = vmatprep.subr.bf16.mxu0 %v3525
  %3558 = vmatpush1.bf16.msra.mxu0 %v3524
  %3559 = vmatprep.subr.bf16.mxu0 %v3529
  %3560 = vmatpush1.bf16.msra.mxu0 %v3528
  %3561 = vmatprep.subr.bf16.mxu0 %v3533
  %3562 = vmatpush1.bf16.msra.mxu0 %v3532
  %3563 = vmatprep.subr.bf16.mxu0 0
  %3564 = vmatpush1.bf16.msra.mxu0 0
  %3565 = vmatprep.subr.bf16.mxu0 0
  %3566 = vmatpush1.bf16.msra.mxu0 0
  %3567 = vmatprep.subr.bf16.mxu0 0
  %3568 = vmatpush1.bf16.msra.mxu0 0
  %3569 = vmatprep.subr.bf16.mxu0 0
  %3570 = vmatpush1.bf16.msra.mxu0 0
  %3571 = vmatprep.subr.bf16.mxu0 0
  %3572 = vmatpush1.bf16.msra.mxu0 0
  %3573 = vmatprep.subr.bf16.mxu0 0
  %3574 = vmatpush1.bf16.msra.mxu0 0
  %3575 = vmatprep.subr.bf16.mxu0 0
  %3576 = vmatpush1.bf16.msra.mxu0 0
  %3577 = vmatprep.subr.bf16.mxu0 0
  %3578 = vmatpush1.bf16.msra.mxu0 0
  %3579 = vmatprep.subr.bf16.mxu0 0
  %3580 = vmatpush1.bf16.msra.mxu0 0
  %3581 = vmatprep.subr.bf16.mxu0 0
  %3582 = vmatpush1.bf16.msra.mxu0 0
  %3583 = vmatprep.subr.bf16.mxu0 0
  %3584 = vmatpush1.bf16.msra.mxu0 0
  %3585 = vmatprep.subr.bf16.mxu0 0
  %3586 = vmatpush1.bf16.msra.mxu0 0
  %3587 = vmatprep.mubr.bf16.mxu0 0
  %3588 = vmatmul.mubr.bf16.gmra.mrb[0].mxu0 %v3553
  %v3589 = vpop.f32.mrb[0].mxu0
  %v3590 = vadd.f32 0.0, %v3589
  %v3591 = vpop.f32.mrb[0].mxu0
  %v3592 = vadd.f32 0.0, %v3591
  %v3593 = vpop.f32.mrb[0].mxu0
  %v3594 = vpop.f32.mrb[0].mxu0
  %3595 = vdwg.mxu0
  %3596 = vmatprep.subr.bf16.mxu0 %v3523
  %3597 = vmatpush1.bf16.msra.mxu0 %v3522
  %3598 = vmatprep.subr.bf16.mxu0 %v3527
  %3599 = vmatpush1.bf16.msra.mxu0 %v3526
  %3600 = vmatprep.subr.bf16.mxu0 %v3531
  %3601 = vmatpush1.bf16.msra.mxu0 %v3530
  %3602 = vmatprep.subr.bf16.mxu0 %v3535
  %3603 = vmatpush1.bf16.msra.mxu0 %v3534
  %3604 = vmatprep.subr.bf16.mxu0 0
  %3605 = vmatpush1.bf16.msra.mxu0 0
  %3606 = vmatprep.subr.bf16.mxu0 0
  %3607 = vmatpush1.bf16.msra.mxu0 0
  %3608 = vmatprep.subr.bf16.mxu0 0
  %3609 = vmatpush1.bf16.msra.mxu0 0
  %3610 = vmatprep.subr.bf16.mxu0 0
  %3611 = vmatpush1.bf16.msra.mxu0 0
  %3612 = vmatprep.subr.bf16.mxu0 0
  %3613 = vmatpush1.bf16.msra.mxu0 0
  %3614 = vmatprep.subr.bf16.mxu0 0
  %3615 = vmatpush1.bf16.msra.mxu0 0
  %3616 = vmatprep.subr.bf16.mxu0 0
  %3617 = vmatpush1.bf16.msra.mxu0 0
  %3618 = vmatprep.subr.bf16.mxu0 0
  %3619 = vmatpush1.bf16.msra.mxu0 0
  %3620 = vmatprep.subr.bf16.mxu0 0
  %3621 = vmatpush1.bf16.msra.mxu0 0
  %3622 = vmatprep.subr.bf16.mxu0 0
  %3623 = vmatpush1.bf16.msra.mxu0 0
  %3624 = vmatprep.subr.bf16.mxu0 0
  %3625 = vmatpush1.bf16.msra.mxu0 0
  %3626 = vmatprep.subr.bf16.mxu0 0
  %3627 = vmatpush1.bf16.msra.mxu0 0
  %3628 = vmatprep.mubr.bf16.mxu0 0
  %3629 = vmatmul.mubr.bf16.gmra.mrb[0].mxu0 %v3553
  %v3630 = vpop.f32.mrb[0].mxu0
  %v3631 = vadd.f32 0.0, %v3630
  %v3632 = vpop.f32.mrb[0].mxu0
  %v3633 = vadd.f32 0.0, %v3632
  %v3634 = vpop.f32.mrb[0].mxu0
  %v3635 = vpop.f32.mrb[0].mxu0
  %3636 = vdwg.mxu0
  %v3637 = vadd.f32 %v3450, %v3590
  %v3638 = vadd.f32 %v3451, %v3592
  %v3639 = vadd.f32 %v3452, %v3631
  %v3640 = vadd.f32 %v3453, %v3633
  %v3641 = vld [vmem:[#allocation2 + $0x20] sm:$0xf]
  %s3642 = scalar_lea.vmem %s3, 1024
  %v3643 = vld [vmem:[%s3642] sm:$0xff]
  %v3644 = vld [vmem:[%s3642 + $0x8] sm:$0xff]
  %v3645 = vld [vmem:[%s3642 + $0x10] sm:$0xff]
  %v3646 = vld [vmem:[%s3642 + $0x18] sm:$0xff]
  %v3647 = vld [vmem:[%s3642 + $0x20] sm:$0xff]
  %v3648 = vld [vmem:[%s3642 + $0x28] sm:$0xff]
  %v3649 = vld [vmem:[%s3642 + $0x30] sm:$0xff]
  %v3650 = vld [vmem:[%s3642 + $0x38] sm:$0xff]
  %v3651 = vld [vmem:[%s3642 + $0x40] sm:$0xff]
  %v3652 = vld [vmem:[%s3642 + $0x48] sm:$0xff]
  %v3653 = vld [vmem:[%s3642 + $0x50] sm:$0xff]
  %v3654 = vld [vmem:[%s3642 + $0x58] sm:$0xff]
  %v3655 = vld [vmem:[%s3642 + $0x60] sm:$0xff]
  %v3656 = vld [vmem:[%s3642 + $0x68] sm:$0xff]
  %v3657 = vld [vmem:[%s3642 + $0x70] sm:$0xff]
  %v3658 = vld [vmem:[%s3642 + $0x78] sm:$0xff]
  %v3675 = vunpack.c.l.b16 %v3643
  %v3676 = vunpack.c.h.b16 %v3643
  %v3677 = vunpack.c.l.b16 %v3644
  %v3678 = vunpack.c.h.b16 %v3644
  %v3679 = vunpack.c.l.b16 %v3645
  %v3680 = vunpack.c.h.b16 %v3645
  %v3681 = vunpack.c.l.b16 %v3646
  %v3682 = vunpack.c.h.b16 %v3646
  %v3683 = vunpack.c.l.b16 %v3647
  %v3684 = vunpack.c.h.b16 %v3647
  %v3685 = vunpack.c.l.b16 %v3648
  %v3686 = vunpack.c.h.b16 %v3648
  %v3687 = vunpack.c.l.b16 %v3649
  %v3688 = vunpack.c.h.b16 %v3649
  %v3689 = vunpack.c.l.b16 %v3650
  %v3690 = vunpack.c.h.b16 %v3650
  %v3691 = vunpack.c.l.b16 %v3651
  %v3692 = vunpack.c.h.b16 %v3651
  %v3693 = vunpack.c.l.b16 %v3652
  %v3694 = vunpack.c.h.b16 %v3652
  %v3695 = vunpack.c.l.b16 %v3653
  %v3696 = vunpack.c.h.b16 %v3653
  %v3697 = vunpack.c.l.b16 %v3654
  %v3698 = vunpack.c.h.b16 %v3654
  %v3699 = vunpack.c.l.b16 %v3655
  %v3700 = vunpack.c.h.b16 %v3655
  %v3701 = vunpack.c.l.b16 %v3656
  %v3702 = vunpack.c.h.b16 %v3656
  %v3703 = vunpack.c.l.b16 %v3657
  %v3704 = vunpack.c.h.b16 %v3657
  %v3705 = vunpack.c.l.b16 %v3658
  %v3706 = vunpack.c.h.b16 %v3658
  %v3707 = vpack.c.b16 %v3679, %v3675
  %v3708 = vpack.c.b16 %v3680, %v3676
  %v3709 = vpack.c.b16 %v3681, %v3677
  %v3710 = vpack.c.b16 %v3682, %v3678
  %v3711 = vpack.c.b16 %v3687, %v3683
  %v3712 = vpack.c.b16 %v3688, %v3684
  %v3713 = vpack.c.b16 %v3689, %v3685
  %v3714 = vpack.c.b16 %v3690, %v3686
  %v3715 = vpack.c.b16 %v3695, %v3691
  %v3716 = vpack.c.b16 %v3696, %v3692
  %v3717 = vpack.c.b16 %v3697, %v3693
  %v3718 = vpack.c.b16 %v3698, %v3694
  %v3719 = vpack.c.b16 %v3703, %v3699
  %v3720 = vpack.c.b16 %v3704, %v3700
  %v3721 = vpack.c.b16 %v3705, %v3701
  %v3722 = vpack.c.b16 %v3706, %v3702
  %v3740 = vsel %vm1086, %v3641, 0
  %3742 = vmatprep.subr.bf16.mxu0 %v3708
  %3743 = vmatpush1.bf16.msra.mxu0 %v3707
  %3744 = vmatprep.subr.bf16.mxu0 %v3712
  %3745 = vmatpush1.bf16.msra.mxu0 %v3711
  %3746 = vmatprep.subr.bf16.mxu0 %v3716
  %3747 = vmatpush1.bf16.msra.mxu0 %v3715
  %3748 = vmatprep.subr.bf16.mxu0 %v3720
  %3749 = vmatpush1.bf16.msra.mxu0 %v3719
  %3750 = vmatprep.subr.bf16.mxu0 0
  %3751 = vmatpush1.bf16.msra.mxu0 0
  %3752 = vmatprep.subr.bf16.mxu0 0
  %3753 = vmatpush1.bf16.msra.mxu0 0
  %3754 = vmatprep.subr.bf16.mxu0 0
  %3755 = vmatpush1.bf16.msra.mxu0 0
  %3756 = vmatprep.subr.bf16.mxu0 0
  %3757 = vmatpush1.bf16.msra.mxu0 0
  %3758 = vmatprep.subr.bf16.mxu0 0
  %3759 = vmatpush1.bf16.msra.mxu0 0
  %3760 = vmatprep.subr.bf16.mxu0 0
  %3761 = vmatpush1.bf16.msra.mxu0 0
  %3762 = vmatprep.subr.bf16.mxu0 0
  %3763 = vmatpush1.bf16.msra.mxu0 0
  %3764 = vmatprep.subr.bf16.mxu0 0
  %3765 = vmatpush1.bf16.msra.mxu0 0
  %3766 = vmatprep.subr.bf16.mxu0 0
  %3767 = vmatpush1.bf16.msra.mxu0 0
  %3768 = vmatprep.subr.bf16.mxu0 0
  %3769 = vmatpush1.bf16.msra.mxu0 0
  %3770 = vmatprep.subr.bf16.mxu0 0
  %3771 = vmatpush1.bf16.msra.mxu0 0
  %3772 = vmatprep.subr.bf16.mxu0 0
  %3773 = vmatpush1.bf16.msra.mxu0 0
  %3774 = vmatprep.mubr.bf16.mxu0 0
  %3775 = vmatmul.mubr.bf16.gmra.mrb[0].mxu0 %v3740
  %v3776 = vpop.f32.mrb[0].mxu0
  %v3777 = vadd.f32 0.0, %v3776
  %v3778 = vpop.f32.mrb[0].mxu0
  %v3779 = vadd.f32 0.0, %v3778
  %v3780 = vpop.f32.mrb[0].mxu0
  %v3781 = vpop.f32.mrb[0].mxu0
  %3782 = vdwg.mxu0
  %3783 = vmatprep.subr.bf16.mxu0 %v3710
  %3784 = vmatpush1.bf16.msra.mxu0 %v3709
  %3785 = vmatprep.subr.bf16.mxu0 %v3714
  %3786 = vmatpush1.bf16.msra.mxu0 %v3713
  %3787 = vmatprep.subr.bf16.mxu0 %v3718
  %3788 = vmatpush1.bf16.msra.mxu0 %v3717
  %3789 = vmatprep.subr.bf16.mxu0 %v3722
  %3790 = vmatpush1.bf16.msra.mxu0 %v3721
  %3791 = vmatprep.subr.bf16.mxu0 0
  %3792 = vmatpush1.bf16.msra.mxu0 0
  %3793 = vmatprep.subr.bf16.mxu0 0
  %3794 = vmatpush1.bf16.msra.mxu0 0
  %3795 = vmatprep.subr.bf16.mxu0 0
  %3796 = vmatpush1.bf16.msra.mxu0 0
  %3797 = vmatprep.subr.bf16.mxu0 0
  %3798 = vmatpush1.bf16.msra.mxu0 0
  %3799 = vmatprep.subr.bf16.mxu0 0
  %3800 = vmatpush1.bf16.msra.mxu0 0
  %3801 = vmatprep.subr.bf16.mxu0 0
  %3802 = vmatpush1.bf16.msra.mxu0 0
  %3803 = vmatprep.subr.bf16.mxu0 0
  %3804 = vmatpush1.bf16.msra.mxu0 0
  %3805 = vmatprep.subr.bf16.mxu0 0
  %3806 = vmatpush1.bf16.msra.mxu0 0
  %3807 = vmatprep.subr.bf16.mxu0 0
  %3808 = vmatpush1.bf16.msra.mxu0 0
  %3809 = vmatprep.subr.bf16.mxu0 0
  %3810 = vmatpush1.bf16.msra.mxu0 0
  %3811 = vmatprep.subr.bf16.mxu0 0
  %3812 = vmatpush1.bf16.msra.mxu0 0
  %3813 = vmatprep.subr.bf16.mxu0 0
  %3814 = vmatpush1.bf16.msra.mxu0 0
  %3815 = vmatprep.mubr.bf16.mxu0 0
  %3816 = vmatmul.mubr.bf16.gmra.mrb[0].mxu0 %v3740
  %v3817 = vpop.f32.mrb[0].mxu0
  %v3818 = vadd.f32 0.0, %v3817
  %v3819 = vpop.f32.mrb[0].mxu0
  %v3820 = vadd.f32 0.0, %v3819
  %v3821 = vpop.f32.mrb[0].mxu0
  %v3822 = vpop.f32.mrb[0].mxu0
  %3823 = vdwg.mxu0
  %v3824 = vadd.f32 %v3637, %v3777
  %v3825 = vadd.f32 %v3638, %v3779
  %v3826 = vadd.f32 %v3639, %v3818
  %v3827 = vadd.f32 %v3640, %v3820
  %v3828 = vld [vmem:[#allocation2 + $0x24] sm:$0xf]
  %s3829 = scalar_lea.vmem %s3, 1152
  %v3830 = vld [vmem:[%s3829] sm:$0xff]
  %v3831 = vld [vmem:[%s3829 + $0x8] sm:$0xff]
  %v3832 = vld [vmem:[%s3829 + $0x10] sm:$0xff]
  %v3833 = vld [vmem:[%s3829 + $0x18] sm:$0xff]
  %v3834 = vld [vmem:[%s3829 + $0x20] sm:$0xff]
  %v3835 = vld [vmem:[%s3829 + $0x28] sm:$0xff]
  %v3836 = vld [vmem:[%s3829 + $0x30] sm:$0xff]
  %v3837 = vld [vmem:[%s3829 + $0x38] sm:$0xff]
  %v3838 = vld [vmem:[%s3829 + $0x40] sm:$0xff]
  %v3839 = vld [vmem:[%s3829 + $0x48] sm:$0xff]
  %v3840 = vld [vmem:[%s3829 + $0x50] sm:$0xff]
  %v3841 = vld [vmem:[%s3829 + $0x58] sm:$0xff]
  %v3842 = vld [vmem:[%s3829 + $0x60] sm:$0xff]
  %v3843 = vld [vmem:[%s3829 + $0x68] sm:$0xff]
  %v3844 = vld [vmem:[%s3829 + $0x70] sm:$0xff]
  %v3845 = vld [vmem:[%s3829 + $0x78] sm:$0xff]
  %v3862 = vunpack.c.l.b16 %v3830
  %v3863 = vunpack.c.h.b16 %v3830
  %v3864 = vunpack.c.l.b16 %v3831
  %v3865 = vunpack.c.h.b16 %v3831
  %v3866 = vunpack.c.l.b16 %v3832
  %v3867 = vunpack.c.h.b16 %v3832
  %v3868 = vunpack.c.l.b16 %v3833
  %v3869 = vunpack.c.h.b16 %v3833
  %v3870 = vunpack.c.l.b16 %v3834
  %v3871 = vunpack.c.h.b16 %v3834
  %v3872 = vunpack.c.l.b16 %v3835
  %v3873 = vunpack.c.h.b16 %v3835
  %v3874 = vunpack.c.l.b16 %v3836
  %v3875 = vunpack.c.h.b16 %v3836
  %v3876 = vunpack.c.l.b16 %v3837
  %v3877 = vunpack.c.h.b16 %v3837
  %v3878 = vunpack.c.l.b16 %v3838
  %v3879 = vunpack.c.h.b16 %v3838
  %v3880 = vunpack.c.l.b16 %v3839
  %v3881 = vunpack.c.h.b16 %v3839
  %v3882 = vunpack.c.l.b16 %v3840
  %v3883 = vunpack.c.h.b16 %v3840
  %v3884 = vunpack.c.l.b16 %v3841
  %v3885 = vunpack.c.h.b16 %v3841
  %v3886 = vunpack.c.l.b16 %v3842
  %v3887 = vunpack.c.h.b16 %v3842
  %v3888 = vunpack.c.l.b16 %v3843
  %v3889 = vunpack.c.h.b16 %v3843
  %v3890 = vunpack.c.l.b16 %v3844
  %v3891 = vunpack.c.h.b16 %v3844
  %v3892 = vunpack.c.l.b16 %v3845
  %v3893 = vunpack.c.h.b16 %v3845
  %v3894 = vpack.c.b16 %v3866, %v3862
  %v3895 = vpack.c.b16 %v3867, %v3863
  %v3896 = vpack.c.b16 %v3868, %v3864
  %v3897 = vpack.c.b16 %v3869, %v3865
  %v3898 = vpack.c.b16 %v3874, %v3870
  %v3899 = vpack.c.b16 %v3875, %v3871
  %v3900 = vpack.c.b16 %v3876, %v3872
  %v3901 = vpack.c.b16 %v3877, %v3873
  %v3902 = vpack.c.b16 %v3882, %v3878
  %v3903 = vpack.c.b16 %v3883, %v3879
  %v3904 = vpack.c.b16 %v3884, %v3880
  %v3905 = vpack.c.b16 %v3885, %v3881
  %v3906 = vpack.c.b16 %v3890, %v3886
  %v3907 = vpack.c.b16 %v3891, %v3887
  %v3908 = vpack.c.b16 %v3892, %v3888
  %v3909 = vpack.c.b16 %v3893, %v3889
  %v3927 = vsel %vm1086, %v3828, 0
  %3929 = vmatprep.subr.bf16.mxu0 %v3895
  %3930 = vmatpush1.bf16.msra.mxu0 %v3894
  %3931 = vmatprep.subr.bf16.mxu0 %v3899
  %3932 = vmatpush1.bf16.msra.mxu0 %v3898
  %3933 = vmatprep.subr.bf16.mxu0 %v3903
  %3934 = vmatpush1.bf16.msra.mxu0 %v3902
  %3935 = vmatprep.subr.bf16.mxu0 %v3907
  %3936 = vmatpush1.bf16.msra.mxu0 %v3906
  %3937 = vmatprep.subr.bf16.mxu0 0
  %3938 = vmatpush1.bf16.msra.mxu0 0
  %3939 = vmatprep.subr.bf16.mxu0 0
  %3940 = vmatpush1.bf16.msra.mxu0 0
  %3941 = vmatprep.subr.bf16.mxu0 0
  %3942 = vmatpush1.bf16.msra.mxu0 0
  %3943 = vmatprep.subr.bf16.mxu0 0
  %3944 = vmatpush1.bf16.msra.mxu0 0
  %3945 = vmatprep.subr.bf16.mxu0 0
  %3946 = vmatpush1.bf16.msra.mxu0 0
  %3947 = vmatprep.subr.bf16.mxu0 0
  %3948 = vmatpush1.bf16.msra.mxu0 0
  %3949 = vmatprep.subr.bf16.mxu0 0
  %3950 = vmatpush1.bf16.msra.mxu0 0
  %3951 = vmatprep.subr.bf16.mxu0 0
  %3952 = vmatpush1.bf16.msra.mxu0 0
  %3953 = vmatprep.subr.bf16.mxu0 0
  %3954 = vmatpush1.bf16.msra.mxu0 0
  %3955 = vmatprep.subr.bf16.mxu0 0
  %3956 = vmatpush1.bf16.msra.mxu0 0
  %3957 = vmatprep.subr.bf16.mxu0 0
  %3958 = vmatpush1.bf16.msra.mxu0 0
  %3959 = vmatprep.subr.bf16.mxu0 0
  %3960 = vmatpush1.bf16.msra.mxu0 0
  %3961 = vmatprep.mubr.bf16.mxu0 0
  %3962 = vmatmul.mubr.bf16.gmra.mrb[0].mxu0 %v3927
  %v3963 = vpop.f32.mrb[0].mxu0
  %v3964 = vadd.f32 0.0, %v3963
  %v3965 = vpop.f32.mrb[0].mxu0
  %v3966 = vadd.f32 0.0, %v3965
  %v3967 = vpop.f32.mrb[0].mxu0
  %v3968 = vpop.f32.mrb[0].mxu0
  %3969 = vdwg.mxu0
  %3970 = vmatprep.subr.bf16.mxu0 %v3897
  %3971 = vmatpush1.bf16.msra.mxu0 %v3896
  %3972 = vmatprep.subr.bf16.mxu0 %v3901
  %3973 = vmatpush1.bf16.msra.mxu0 %v3900
  %3974 = vmatprep.subr.bf16.mxu0 %v3905
  %3975 = vmatpush1.bf16.msra.mxu0 %v3904
  %3976 = vmatprep.subr.bf16.mxu0 %v3909
  %3977 = vmatpush1.bf16.msra.mxu0 %v3908
  %3978 = vmatprep.subr.bf16.mxu0 0
  %3979 = vmatpush1.bf16.msra.mxu0 0
  %3980 = vmatprep.subr.bf16.mxu0 0
  %3981 = vmatpush1.bf16.msra.mxu0 0
  %3982 = vmatprep.subr.bf16.mxu0 0
  %3983 = vmatpush1.bf16.msra.mxu0 0
  %3984 = vmatprep.subr.bf16.mxu0 0
  %3985 = vmatpush1.bf16.msra.mxu0 0
  %3986 = vmatprep.subr.bf16.mxu0 0
  %3987 = vmatpush1.bf16.msra.mxu0 0
  %3988 = vmatprep.subr.bf16.mxu0 0
  %3989 = vmatpush1.bf16.msra.mxu0 0
  %3990 = vmatprep.subr.bf16.mxu0 0
  %3991 = vmatpush1.bf16.msra.mxu0 0
  %3992 = vmatprep.subr.bf16.mxu0 0
  %3993 = vmatpush1.bf16.msra.mxu0 0
  %3994 = vmatprep.subr.bf16.mxu0 0
  %3995 = vmatpush1.bf16.msra.mxu0 0
  %3996 = vmatprep.subr.bf16.mxu0 0
  %3997 = vmatpush1.bf16.msra.mxu0 0
  %3998 = vmatprep.subr.bf16.mxu0 0
  %3999 = vmatpush1.bf16.msra.mxu0 0
  %4000 = vmatprep.subr.bf16.mxu0 0
  %4001 = vmatpush1.bf16.msra.mxu0 0
  %4002 = vmatprep.mubr.bf16.mxu0 0
  %4003 = vmatmul.mubr.bf16.gmra.mrb[0].mxu0 %v3927
  %v4004 = vpop.f32.mrb[0].mxu0
  %v4005 = vadd.f32 0.0, %v4004
  %v4006 = vpop.f32.mrb[0].mxu0
  %v4007 = vadd.f32 0.0, %v4006
  %v4008 = vpop.f32.mrb[0].mxu0
  %v4009 = vpop.f32.mrb[0].mxu0
  %4010 = vdwg.mxu0
  %v4011 = vadd.f32 %v3824, %v3964
  %v4012 = vadd.f32 %v3825, %v3966
  %v4013 = vadd.f32 %v3826, %v4005
  %v4014 = vadd.f32 %v3827, %v4007
  %v4015 = vld [vmem:[#allocation2 + $0x28] sm:$0xf]
  %s4016 = scalar_lea.vmem %s3, 1280
  %v4017 = vld [vmem:[%s4016] sm:$0xff]
  %v4018 = vld [vmem:[%s4016 + $0x8] sm:$0xff]
  %v4019 = vld [vmem:[%s4016 + $0x10] sm:$0xff]
  %v4020 = vld [vmem:[%s4016 + $0x18] sm:$0xff]
  %v4021 = vld [vmem:[%s4016 + $0x20] sm:$0xff]
  %v4022 = vld [vmem:[%s4016 + $0x28] sm:$0xff]
  %v4023 = vld [vmem:[%s4016 + $0x30] sm:$0xff]
  %v4024 = vld [vmem:[%s4016 + $0x38] sm:$0xff]
  %v4025 = vld [vmem:[%s4016 + $0x40] sm:$0xff]
  %v4026 = vld [vmem:[%s4016 + $0x48] sm:$0xff]
  %v4027 = vld [vmem:[%s4016 + $0x50] sm:$0xff]
  %v4028 = vld [vmem:[%s4016 + $0x58] sm:$0xff]
  %v4029 = vld [vmem:[%s4016 + $0x60] sm:$0xff]
  %v4030 = vld [vmem:[%s4016 + $0x68] sm:$0xff]
  %v4031 = vld [vmem:[%s4016 + $0x70] sm:$0xff]
  %v4032 = vld [vmem:[%s4016 + $0x78] sm:$0xff]
  %v4049 = vunpack.c.l.b16 %v4017
  %v4050 = vunpack.c.h.b16 %v4017
  %v4051 = vunpack.c.l.b16 %v4018
  %v4052 = vunpack.c.h.b16 %v4018
  %v4053 = vunpack.c.l.b16 %v4019
  %v4054 = vunpack.c.h.b16 %v4019
  %v4055 = vunpack.c.l.b16 %v4020
  %v4056 = vunpack.c.h.b16 %v4020
  %v4057 = vunpack.c.l.b16 %v4021
  %v4058 = vunpack.c.h.b16 %v4021
  %v4059 = vunpack.c.l.b16 %v4022
  %v4060 = vunpack.c.h.b16 %v4022
  %v4061 = vunpack.c.l.b16 %v4023
  %v4062 = vunpack.c.h.b16 %v4023
  %v4063 = vunpack.c.l.b16 %v4024
  %v4064 = vunpack.c.h.b16 %v4024
  %v4065 = vunpack.c.l.b16 %v4025
  %v4066 = vunpack.c.h.b16 %v4025
  %v4067 = vunpack.c.l.b16 %v4026
  %v4068 = vunpack.c.h.b16 %v4026
  %v4069 = vunpack.c.l.b16 %v4027
  %v4070 = vunpack.c.h.b16 %v4027
  %v4071 = vunpack.c.l.b16 %v4028
  %v4072 = vunpack.c.h.b16 %v4028
  %v4073 = vunpack.c.l.b16 %v4029
  %v4074 = vunpack.c.h.b16 %v4029
  %v4075 = vunpack.c.l.b16 %v4030
  %v4076 = vunpack.c.h.b16 %v4030
  %v4077 = vunpack.c.l.b16 %v4031
  %v4078 = vunpack.c.h.b16 %v4031
  %v4079 = vunpack.c.l.b16 %v4032
  %v4080 = vunpack.c.h.b16 %v4032
  %v4081 = vpack.c.b16 %v4053, %v4049
  %v4082 = vpack.c.b16 %v4054, %v4050
  %v4083 = vpack.c.b16 %v4055, %v4051
  %v4084 = vpack.c.b16 %v4056, %v4052
  %v4085 = vpack.c.b16 %v4061, %v4057
  %v4086 = vpack.c.b16 %v4062, %v4058
  %v4087 = vpack.c.b16 %v4063, %v4059
  %v4088 = vpack.c.b16 %v4064, %v4060
  %v4089 = vpack.c.b16 %v4069, %v4065
  %v4090 = vpack.c.b16 %v4070, %v4066
  %v4091 = vpack.c.b16 %v4071, %v4067
  %v4092 = vpack.c.b16 %v4072, %v4068
  %v4093 = vpack.c.b16 %v4077, %v4073
  %v4094 = vpack.c.b16 %v4078, %v4074
  %v4095 = vpack.c.b16 %v4079, %v4075
  %v4096 = vpack.c.b16 %v4080, %v4076
  %v4114 = vsel %vm1086, %v4015, 0
  %4116 = vmatprep.subr.bf16.mxu0 %v4082
  %4117 = vmatpush1.bf16.msra.mxu0 %v4081
  %4118 = vmatprep.subr.bf16.mxu0 %v4086
  %4119 = vmatpush1.bf16.msra.mxu0 %v4085
  %4120 = vmatprep.subr.bf16.mxu0 %v4090
  %4121 = vmatpush1.bf16.msra.mxu0 %v4089
  %4122 = vmatprep.subr.bf16.mxu0 %v4094
  %4123 = vmatpush1.bf16.msra.mxu0 %v4093
  %4124 = vmatprep.subr.bf16.mxu0 0
  %4125 = vmatpush1.bf16.msra.mxu0 0
  %4126 = vmatprep.subr.bf16.mxu0 0
  %4127 = vmatpush1.bf16.msra.mxu0 0
  %4128 = vmatprep.subr.bf16.mxu0 0
  %4129 = vmatpush1.bf16.msra.mxu0 0
  %4130 = vmatprep.subr.bf16.mxu0 0
  %4131 = vmatpush1.bf16.msra.mxu0 0
  %4132 = vmatprep.subr.bf16.mxu0 0
  %4133 = vmatpush1.bf16.msra.mxu0 0
  %4134 = vmatprep.subr.bf16.mxu0 0
  %4135 = vmatpush1.bf16.msra.mxu0 0
  %4136 = vmatprep.subr.bf16.mxu0 0
  %4137 = vmatpush1.bf16.msra.mxu0 0
  %4138 = vmatprep.subr.bf16.mxu0 0
  %4139 = vmatpush1.bf16.msra.mxu0 0
  %4140 = vmatprep.subr.bf16.mxu0 0
  %4141 = vmatpush1.bf16.msra.mxu0 0
  %4142 = vmatprep.subr.bf16.mxu0 0
  %4143 = vmatpush1.bf16.msra.mxu0 0
  %4144 = vmatprep.subr.bf16.mxu0 0
  %4145 = vmatpush1.bf16.msra.mxu0 0
  %4146 = vmatprep.subr.bf16.mxu0 0
  %4147 = vmatpush1.bf16.msra.mxu0 0
  %4148 = vmatprep.mubr.bf16.mxu0 0
  %4149 = vmatmul.mubr.bf16.gmra.mrb[0].mxu0 %v4114
  %v4150 = vpop.f32.mrb[0].mxu0
  %v4151 = vadd.f32 0.0, %v4150
  %v4152 = vpop.f32.mrb[0].mxu0
  %v4153 = vadd.f32 0.0, %v4152
  %v4154 = vpop.f32.mrb[0].mxu0
  %v4155 = vpop.f32.mrb[0].mxu0
  %4156 = vdwg.mxu0
  %4157 = vmatprep.subr.bf16.mxu0 %v4084
  %4158 = vmatpush1.bf16.msra.mxu0 %v4083
  %4159 = vmatprep.subr.bf16.mxu0 %v4088
  %4160 = vmatpush1.bf16.msra.mxu0 %v4087
  %4161 = vmatprep.subr.bf16.mxu0 %v4092
  %4162 = vmatpush1.bf16.msra.mxu0 %v4091
  %4163 = vmatprep.subr.bf16.mxu0 %v4096
  %4164 = vmatpush1.bf16.msra.mxu0 %v4095
  %4165 = vmatprep.subr.bf16.mxu0 0
  %4166 = vmatpush1.bf16.msra.mxu0 0
  %4167 = vmatprep.subr.bf16.mxu0 0
  %4168 = vmatpush1.bf16.msra.mxu0 0
  %4169 = vmatprep.subr.bf16.mxu0 0
  %4170 = vmatpush1.bf16.msra.mxu0 0
  %4171 = vmatprep.subr.bf16.mxu0 0
  %4172 = vmatpush1.bf16.msra.mxu0 0
  %4173 = vmatprep.subr.bf16.mxu0 0
  %4174 = vmatpush1.bf16.msra.mxu0 0
  %4175 = vmatprep.subr.bf16.mxu0 0
  %4176 = vmatpush1.bf16.msra.mxu0 0
  %4177 = vmatprep.subr.bf16.mxu0 0
  %4178 = vmatpush1.bf16.msra.mxu0 0
  %4179 = vmatprep.subr.bf16.mxu0 0
  %4180 = vmatpush1.bf16.msra.mxu0 0
  %4181 = vmatprep.subr.bf16.mxu0 0
  %4182 = vmatpush1.bf16.msra.mxu0 0
  %4183 = vmatprep.subr.bf16.mxu0 0
  %4184 = vmatpush1.bf16.msra.mxu0 0
  %4185 = vmatprep.subr.bf16.mxu0 0
  %4186 = vmatpush1.bf16.msra.mxu0 0
  %4187 = vmatprep.subr.bf16.mxu0 0
  %4188 = vmatpush1.bf16.msra.mxu0 0
  %4189 = vmatprep.mubr.bf16.mxu0 0
  %4190 = vmatmul.mubr.bf16.gmra.mrb[0].mxu0 %v4114
  %v4191 = vpop.f32.mrb[0].mxu0
  %v4192 = vadd.f32 0.0, %v4191
  %v4193 = vpop.f32.mrb[0].mxu0
  %v4194 = vadd.f32 0.0, %v4193
  %v4195 = vpop.f32.mrb[0].mxu0
  %v4196 = vpop.f32.mrb[0].mxu0
  %4197 = vdwg.mxu0
  %v4198 = vadd.f32 %v4011, %v4151
  %v4199 = vadd.f32 %v4012, %v4153
  %v4200 = vadd.f32 %v4013, %v4192
  %v4201 = vadd.f32 %v4014, %v4194
  %v4202 = vld [vmem:[#allocation2 + $0x2c] sm:$0xf]
  %s4203 = scalar_lea.vmem %s3, 1408
  %v4204 = vld [vmem:[%s4203] sm:$0xff]
  %v4205 = vld [vmem:[%s4203 + $0x8] sm:$0xff]
  %v4206 = vld [vmem:[%s4203 + $0x10] sm:$0xff]
  %v4207 = vld [vmem:[%s4203 + $0x18] sm:$0xff]
  %v4208 = vld [vmem:[%s4203 + $0x20] sm:$0xff]
  %v4209 = vld [vmem:[%s4203 + $0x28] sm:$0xff]
  %v4210 = vld [vmem:[%s4203 + $0x30] sm:$0xff]
  %v4211 = vld [vmem:[%s4203 + $0x38] sm:$0xff]
  %v4212 = vld [vmem:[%s4203 + $0x40] sm:$0xff]
  %v4213 = vld [vmem:[%s4203 + $0x48] sm:$0xff]
  %v4214 = vld [vmem:[%s4203 + $0x50] sm:$0xff]
  %v4215 = vld [vmem:[%s4203 + $0x58] sm:$0xff]
  %v4216 = vld [vmem:[%s4203 + $0x60] sm:$0xff]
  %v4217 = vld [vmem:[%s4203 + $0x68] sm:$0xff]
  %v4218 = vld [vmem:[%s4203 + $0x70] sm:$0xff]
  %v4219 = vld [vmem:[%s4203 + $0x78] sm:$0xff]
  %v4236 = vunpack.c.l.b16 %v4204
  %v4237 = vunpack.c.h.b16 %v4204
  %v4238 = vunpack.c.l.b16 %v4205
  %v4239 = vunpack.c.h.b16 %v4205
  %v4240 = vunpack.c.l.b16 %v4206
  %v4241 = vunpack.c.h.b16 %v4206
  %v4242 = vunpack.c.l.b16 %v4207
  %v4243 = vunpack.c.h.b16 %v4207
  %v4244 = vunpack.c.l.b16 %v4208
  %v4245 = vunpack.c.h.b16 %v4208
  %v4246 = vunpack.c.l.b16 %v4209
  %v4247 = vunpack.c.h.b16 %v4209
  %v4248 = vunpack.c.l.b16 %v4210
  %v4249 = vunpack.c.h.b16 %v4210
  %v4250 = vunpack.c.l.b16 %v4211
  %v4251 = vunpack.c.h.b16 %v4211
  %v4252 = vunpack.c.l.b16 %v4212
  %v4253 = vunpack.c.h.b16 %v4212
  %v4254 = vunpack.c.l.b16 %v4213
  %v4255 = vunpack.c.h.b16 %v4213
  %v4256 = vunpack.c.l.b16 %v4214
  %v4257 = vunpack.c.h.b16 %v4214
  %v4258 = vunpack.c.l.b16 %v4215
  %v4259 = vunpack.c.h.b16 %v4215
  %v4260 = vunpack.c.l.b16 %v4216
  %v4261 = vunpack.c.h.b16 %v4216
  %v4262 = vunpack.c.l.b16 %v4217
  %v4263 = vunpack.c.h.b16 %v4217
  %v4264 = vunpack.c.l.b16 %v4218
  %v4265 = vunpack.c.h.b16 %v4218
  %v4266 = vunpack.c.l.b16 %v4219
  %v4267 = vunpack.c.h.b16 %v4219
  %v4268 = vpack.c.b16 %v4240, %v4236
  %v4269 = vpack.c.b16 %v4241, %v4237
  %v4270 = vpack.c.b16 %v4242, %v4238
  %v4271 = vpack.c.b16 %v4243, %v4239
  %v4272 = vpack.c.b16 %v4248, %v4244
  %v4273 = vpack.c.b16 %v4249, %v4245
  %v4274 = vpack.c.b16 %v4250, %v4246
  %v4275 = vpack.c.b16 %v4251, %v4247
  %v4276 = vpack.c.b16 %v4256, %v4252
  %v4277 = vpack.c.b16 %v4257, %v4253
  %v4278 = vpack.c.b16 %v4258, %v4254
  %v4279 = vpack.c.b16 %v4259, %v4255
  %v4280 = vpack.c.b16 %v4264, %v4260
  %v4281 = vpack.c.b16 %v4265, %v4261
  %v4282 = vpack.c.b16 %v4266, %v4262
  %v4283 = vpack.c.b16 %v4267, %v4263
  %v4301 = vsel %vm1086, %v4202, 0
  %4303 = vmatprep.subr.bf16.mxu0 %v4269
  %4304 = vmatpush1.bf16.msra.mxu0 %v4268
  %4305 = vmatprep.subr.bf16.mxu0 %v4273
  %4306 = vmatpush1.bf16.msra.mxu0 %v4272
  %4307 = vmatprep.subr.bf16.mxu0 %v4277
  %4308 = vmatpush1.bf16.msra.mxu0 %v4276
  %4309 = vmatprep.subr.bf16.mxu0 %v4281
  %4310 = vmatpush1.bf16.msra.mxu0 %v4280
  %4311 = vmatprep.subr.bf16.mxu0 0
  %4312 = vmatpush1.bf16.msra.mxu0 0
  %4313 = vmatprep.subr.bf16.mxu0 0
  %4314 = vmatpush1.bf16.msra.mxu0 0
  %4315 = vmatprep.subr.bf16.mxu0 0
  %4316 = vmatpush1.bf16.msra.mxu0 0
  %4317 = vmatprep.subr.bf16.mxu0 0
  %4318 = vmatpush1.bf16.msra.mxu0 0
  %4319 = vmatprep.subr.bf16.mxu0 0
  %4320 = vmatpush1.bf16.msra.mxu0 0
  %4321 = vmatprep.subr.bf16.mxu0 0
  %4322 = vmatpush1.bf16.msra.mxu0 0
  %4323 = vmatprep.subr.bf16.mxu0 0
  %4324 = vmatpush1.bf16.msra.mxu0 0
  %4325 = vmatprep.subr.bf16.mxu0 0
  %4326 = vmatpush1.bf16.msra.mxu0 0
  %4327 = vmatprep.subr.bf16.mxu0 0
  %4328 = vmatpush1.bf16.msra.mxu0 0
  %4329 = vmatprep.subr.bf16.mxu0 0
  %4330 = vmatpush1.bf16.msra.mxu0 0
  %4331 = vmatprep.subr.bf16.mxu0 0
  %4332 = vmatpush1.bf16.msra.mxu0 0
  %4333 = vmatprep.subr.bf16.mxu0 0
  %4334 = vmatpush1.bf16.msra.mxu0 0
  %4335 = vmatprep.mubr.bf16.mxu0 0
  %4336 = vmatmul.mubr.bf16.gmra.mrb[0].mxu0 %v4301
  %v4337 = vpop.f32.mrb[0].mxu0
  %v4338 = vadd.f32 0.0, %v4337
  %v4339 = vpop.f32.mrb[0].mxu0
  %v4340 = vadd.f32 0.0, %v4339
  %v4341 = vpop.f32.mrb[0].mxu0
  %v4342 = vpop.f32.mrb[0].mxu0
  %4343 = vdwg.mxu0
  %4344 = vmatprep.subr.bf16.mxu0 %v4271
  %4345 = vmatpush1.bf16.msra.mxu0 %v4270
  %4346 = vmatprep.subr.bf16.mxu0 %v4275
  %4347 = vmatpush1.bf16.msra.mxu0 %v4274
  %4348 = vmatprep.subr.bf16.mxu0 %v4279
  %4349 = vmatpush1.bf16.msra.mxu0 %v4278
  %4350 = vmatprep.subr.bf16.mxu0 %v4283
  %4351 = vmatpush1.bf16.msra.mxu0 %v4282
  %4352 = vmatprep.subr.bf16.mxu0 0
  %4353 = vmatpush1.bf16.msra.mxu0 0
  %4354 = vmatprep.subr.bf16.mxu0 0
  %4355 = vmatpush1.bf16.msra.mxu0 0
  %4356 = vmatprep.subr.bf16.mxu0 0
  %4357 = vmatpush1.bf16.msra.mxu0 0
  %4358 = vmatprep.subr.bf16.mxu0 0
  %4359 = vmatpush1.bf16.msra.mxu0 0
  %4360 = vmatprep.subr.bf16.mxu0 0
  %4361 = vmatpush1.bf16.msra.mxu0 0
  %4362 = vmatprep.subr.bf16.mxu0 0
  %4363 = vmatpush1.bf16.msra.mxu0 0
  %4364 = vmatprep.subr.bf16.mxu0 0
  %4365 = vmatpush1.bf16.msra.mxu0 0
  %4366 = vmatprep.subr.bf16.mxu0 0
  %4367 = vmatpush1.bf16.msra.mxu0 0
  %4368 = vmatprep.subr.bf16.mxu0 0
  %4369 = vmatpush1.bf16.msra.mxu0 0
  %4370 = vmatprep.subr.bf16.mxu0 0
  %4371 = vmatpush1.bf16.msra.mxu0 0
  %4372 = vmatprep.subr.bf16.mxu0 0
  %4373 = vmatpush1.bf16.msra.mxu0 0
  %4374 = vmatprep.subr.bf16.mxu0 0
  %4375 = vmatpush1.bf16.msra.mxu0 0
  %4376 = vmatprep.mubr.bf16.mxu0 0
  %4377 = vmatmul.mubr.bf16.gmra.mrb[0].mxu0 %v4301
  %v4378 = vpop.f32.mrb[0].mxu0
  %v4379 = vadd.f32 0.0, %v4378
  %v4380 = vpop.f32.mrb[0].mxu0
  %v4381 = vadd.f32 0.0, %v4380
  %v4382 = vpop.f32.mrb[0].mxu0
  %v4383 = vpop.f32.mrb[0].mxu0
  %4384 = vdwg.mxu0
  %v4385 = vadd.f32 %v4198, %v4338
  %v4386 = vadd.f32 %v4199, %v4340
  %v4387 = vadd.f32 %v4200, %v4379
  %v4388 = vadd.f32 %v4201, %v4381
  %v4389 = vld [vmem:[#allocation2 + $0x30] sm:$0xf]
  %s4390 = scalar_lea.vmem %s3, 1536
  %v4391 = vld [vmem:[%s4390] sm:$0xff]
  %v4392 = vld [vmem:[%s4390 + $0x8] sm:$0xff]
  %v4393 = vld [vmem:[%s4390 + $0x10] sm:$0xff]
  %v4394 = vld [vmem:[%s4390 + $0x18] sm:$0xff]
  %v4395 = vld [vmem:[%s4390 + $0x20] sm:$0xff]
  %v4396 = vld [vmem:[%s4390 + $0x28] sm:$0xff]
  %v4397 = vld [vmem:[%s4390 + $0x30] sm:$0xff]
  %v4398 = vld [vmem:[%s4390 + $0x38] sm:$0xff]
  %v4399 = vld [vmem:[%s4390 + $0x40] sm:$0xff]
  %v4400 = vld [vmem:[%s4390 + $0x48] sm:$0xff]
  %v4401 = vld [vmem:[%s4390 + $0x50] sm:$0xff]
  %v4402 = vld [vmem:[%s4390 + $0x58] sm:$0xff]
  %v4403 = vld [vmem:[%s4390 + $0x60] sm:$0xff]
  %v4404 = vld [vmem:[%s4390 + $0x68] sm:$0xff]
  %v4405 = vld [vmem:[%s4390 + $0x70] sm:$0xff]
  %v4406 = vld [vmem:[%s4390 + $0x78] sm:$0xff]
  %v4423 = vunpack.c.l.b16 %v4391
  %v4424 = vunpack.c.h.b16 %v4391
  %v4425 = vunpack.c.l.b16 %v4392
  %v4426 = vunpack.c.h.b16 %v4392
  %v4427 = vunpack.c.l.b16 %v4393
  %v4428 = vunpack.c.h.b16 %v4393
  %v4429 = vunpack.c.l.b16 %v4394
  %v4430 = vunpack.c.h.b16 %v4394
  %v4431 = vunpack.c.l.b16 %v4395
  %v4432 = vunpack.c.h.b16 %v4395
  %v4433 = vunpack.c.l.b16 %v4396
  %v4434 = vunpack.c.h.b16 %v4396
  %v4435 = vunpack.c.l.b16 %v4397
  %v4436 = vunpack.c.h.b16 %v4397
  %v4437 = vunpack.c.l.b16 %v4398
  %v4438 = vunpack.c.h.b16 %v4398
  %v4439 = vunpack.c.l.b16 %v4399
  %v4440 = vunpack.c.h.b16 %v4399
  %v4441 = vunpack.c.l.b16 %v4400
  %v4442 = vunpack.c.h.b16 %v4400
  %v4443 = vunpack.c.l.b16 %v4401
  %v4444 = vunpack.c.h.b16 %v4401
  %v4445 = vunpack.c.l.b16 %v4402
  %v4446 = vunpack.c.h.b16 %v4402
  %v4447 = vunpack.c.l.b16 %v4403
  %v4448 = vunpack.c.h.b16 %v4403
  %v4449 = vunpack.c.l.b16 %v4404
  %v4450 = vunpack.c.h.b16 %v4404
  %v4451 = vunpack.c.l.b16 %v4405
  %v4452 = vunpack.c.h.b16 %v4405
  %v4453 = vunpack.c.l.b16 %v4406
  %v4454 = vunpack.c.h.b16 %v4406
  %v4455 = vpack.c.b16 %v4427, %v4423
  %v4456 = vpack.c.b16 %v4428, %v4424
  %v4457 = vpack.c.b16 %v4429, %v4425
  %v4458 = vpack.c.b16 %v4430, %v4426
  %v4459 = vpack.c.b16 %v4435, %v4431
  %v4460 = vpack.c.b16 %v4436, %v4432
  %v4461 = vpack.c.b16 %v4437, %v4433
  %v4462 = vpack.c.b16 %v4438, %v4434
  %v4463 = vpack.c.b16 %v4443, %v4439
  %v4464 = vpack.c.b16 %v4444, %v4440
  %v4465 = vpack.c.b16 %v4445, %v4441
  %v4466 = vpack.c.b16 %v4446, %v4442
  %v4467 = vpack.c.b16 %v4451, %v4447
  %v4468 = vpack.c.b16 %v4452, %v4448
  %v4469 = vpack.c.b16 %v4453, %v4449
  %v4470 = vpack.c.b16 %v4454, %v4450
  %v4488 = vsel %vm1086, %v4389, 0
  %4490 = vmatprep.subr.bf16.mxu0 %v4456
  %4491 = vmatpush1.bf16.msra.mxu0 %v4455
  %4492 = vmatprep.subr.bf16.mxu0 %v4460
  %4493 = vmatpush1.bf16.msra.mxu0 %v4459
  %4494 = vmatprep.subr.bf16.mxu0 %v4464
  %4495 = vmatpush1.bf16.msra.mxu0 %v4463
  %4496 = vmatprep.subr.bf16.mxu0 %v4468
  %4497 = vmatpush1.bf16.msra.mxu0 %v4467
  %4498 = vmatprep.subr.bf16.mxu0 0
  %4499 = vmatpush1.bf16.msra.mxu0 0
  %4500 = vmatprep.subr.bf16.mxu0 0
  %4501 = vmatpush1.bf16.msra.mxu0 0
  %4502 = vmatprep.subr.bf16.mxu0 0
  %4503 = vmatpush1.bf16.msra.mxu0 0
  %4504 = vmatprep.subr.bf16.mxu0 0
  %4505 = vmatpush1.bf16.msra.mxu0 0
  %4506 = vmatprep.subr.bf16.mxu0 0
  %4507 = vmatpush1.bf16.msra.mxu0 0
  %4508 = vmatprep.subr.bf16.mxu0 0
  %4509 = vmatpush1.bf16.msra.mxu0 0
  %4510 = vmatprep.subr.bf16.mxu0 0
  %4511 = vmatpush1.bf16.msra.mxu0 0
  %4512 = vmatprep.subr.bf16.mxu0 0
  %4513 = vmatpush1.bf16.msra.mxu0 0
  %4514 = vmatprep.subr.bf16.mxu0 0
  %4515 = vmatpush1.bf16.msra.mxu0 0
  %4516 = vmatprep.subr.bf16.mxu0 0
  %4517 = vmatpush1.bf16.msra.mxu0 0
  %4518 = vmatprep.subr.bf16.mxu0 0
  %4519 = vmatpush1.bf16.msra.mxu0 0
  %4520 = vmatprep.subr.bf16.mxu0 0
  %4521 = vmatpush1.bf16.msra.mxu0 0
  %4522 = vmatprep.mubr.bf16.mxu0 0
  %4523 = vmatmul.mubr.bf16.gmra.mrb[0].mxu0 %v4488
  %v4524 = vpop.f32.mrb[0].mxu0
  %v4525 = vadd.f32 0.0, %v4524
  %v4526 = vpop.f32.mrb[0].mxu0
  %v4527 = vadd.f32 0.0, %v4526
  %v4528 = vpop.f32.mrb[0].mxu0
  %v4529 = vpop.f32.mrb[0].mxu0
  %4530 = vdwg.mxu0
  %4531 = vmatprep.subr.bf16.mxu0 %v4458
  %4532 = vmatpush1.bf16.msra.mxu0 %v4457
  %4533 = vmatprep.subr.bf16.mxu0 %v4462
  %4534 = vmatpush1.bf16.msra.mxu0 %v4461
  %4535 = vmatprep.subr.bf16.mxu0 %v4466
  %4536 = vmatpush1.bf16.msra.mxu0 %v4465
  %4537 = vmatprep.subr.bf16.mxu0 %v4470
  %4538 = vmatpush1.bf16.msra.mxu0 %v4469
  %4539 = vmatprep.subr.bf16.mxu0 0
  %4540 = vmatpush1.bf16.msra.mxu0 0
  %4541 = vmatprep.subr.bf16.mxu0 0
  %4542 = vmatpush1.bf16.msra.mxu0 0
  %4543 = vmatprep.subr.bf16.mxu0 0
  %4544 = vmatpush1.bf16.msra.mxu0 0
  %4545 = vmatprep.subr.bf16.mxu0 0
  %4546 = vmatpush1.bf16.msra.mxu0 0
  %4547 = vmatprep.subr.bf16.mxu0 0
  %4548 = vmatpush1.bf16.msra.mxu0 0
  %4549 = vmatprep.subr.bf16.mxu0 0
  %4550 = vmatpush1.bf16.msra.mxu0 0
  %4551 = vmatprep.subr.bf16.mxu0 0
  %4552 = vmatpush1.bf16.msra.mxu0 0
  %4553 = vmatprep.subr.bf16.mxu0 0
  %4554 = vmatpush1.bf16.msra.mxu0 0
  %4555 = vmatprep.subr.bf16.mxu0 0
  %4556 = vmatpush1.bf16.msra.mxu0 0
  %4557 = vmatprep.subr.bf16.mxu0 0
  %4558 = vmatpush1.bf16.msra.mxu0 0
  %4559 = vmatprep.subr.bf16.mxu0 0
  %4560 = vmatpush1.bf16.msra.mxu0 0
  %4561 = vmatprep.subr.bf16.mxu0 0
  %4562 = vmatpush1.bf16.msra.mxu0 0
  %4563 = vmatprep.mubr.bf16.mxu0 0
  %4564 = vmatmul.mubr.bf16.gmra.mrb[0].mxu0 %v4488
  %v4565 = vpop.f32.mrb[0].mxu0
  %v4566 = vadd.f32 0.0, %v4565
  %v4567 = vpop.f32.mrb[0].mxu0
  %v4568 = vadd.f32 0.0, %v4567
  %v4569 = vpop.f32.mrb[0].mxu0
  %v4570 = vpop.f32.mrb[0].mxu0
  %4571 = vdwg.mxu0
  %v4572 = vadd.f32 %v4385, %v4525
  %v4573 = vadd.f32 %v4386, %v4527
  %v4574 = vadd.f32 %v4387, %v4566
  %v4575 = vadd.f32 %v4388, %v4568
  %v4576 = vld [vmem:[#allocation2 + $0x34] sm:$0xf]
  %s4577 = scalar_lea.vmem %s3, 1664
  %v4578 = vld [vmem:[%s4577] sm:$0xff]
  %v4579 = vld [vmem:[%s4577 + $0x8] sm:$0xff]
  %v4580 = vld [vmem:[%s4577 + $0x10] sm:$0xff]
  %v4581 = vld [vmem:[%s4577 + $0x18] sm:$0xff]
  %v4582 = vld [vmem:[%s4577 + $0x20] sm:$0xff]
  %v4583 = vld [vmem:[%s4577 + $0x28] sm:$0xff]
  %v4584 = vld [vmem:[%s4577 + $0x30] sm:$0xff]
  %v4585 = vld [vmem:[%s4577 + $0x38] sm:$0xff]
  %v4586 = vld [vmem:[%s4577 + $0x40] sm:$0xff]
  %v4587 = vld [vmem:[%s4577 + $0x48] sm:$0xff]
  %v4588 = vld [vmem:[%s4577 + $0x50] sm:$0xff]
  %v4589 = vld [vmem:[%s4577 + $0x58] sm:$0xff]
  %v4590 = vld [vmem:[%s4577 + $0x60] sm:$0xff]
  %v4591 = vld [vmem:[%s4577 + $0x68] sm:$0xff]
  %v4592 = vld [vmem:[%s4577 + $0x70] sm:$0xff]
  %v4593 = vld [vmem:[%s4577 + $0x78] sm:$0xff]
  %v4610 = vunpack.c.l.b16 %v4578
  %v4611 = vunpack.c.h.b16 %v4578
  %v4612 = vunpack.c.l.b16 %v4579
  %v4613 = vunpack.c.h.b16 %v4579
  %v4614 = vunpack.c.l.b16 %v4580
  %v4615 = vunpack.c.h.b16 %v4580
  %v4616 = vunpack.c.l.b16 %v4581
  %v4617 = vunpack.c.h.b16 %v4581
  %v4618 = vunpack.c.l.b16 %v4582
  %v4619 = vunpack.c.h.b16 %v4582
  %v4620 = vunpack.c.l.b16 %v4583
  %v4621 = vunpack.c.h.b16 %v4583
  %v4622 = vunpack.c.l.b16 %v4584
  %v4623 = vunpack.c.h.b16 %v4584
  %v4624 = vunpack.c.l.b16 %v4585
  %v4625 = vunpack.c.h.b16 %v4585
  %v4626 = vunpack.c.l.b16 %v4586
  %v4627 = vunpack.c.h.b16 %v4586
  %v4628 = vunpack.c.l.b16 %v4587
  %v4629 = vunpack.c.h.b16 %v4587
  %v4630 = vunpack.c.l.b16 %v4588
  %v4631 = vunpack.c.h.b16 %v4588
  %v4632 = vunpack.c.l.b16 %v4589
  %v4633 = vunpack.c.h.b16 %v4589
  %v4634 = vunpack.c.l.b16 %v4590
  %v4635 = vunpack.c.h.b16 %v4590
  %v4636 = vunpack.c.l.b16 %v4591
  %v4637 = vunpack.c.h.b16 %v4591
  %v4638 = vunpack.c.l.b16 %v4592
  %v4639 = vunpack.c.h.b16 %v4592
  %v4640 = vunpack.c.l.b16 %v4593
  %v4641 = vunpack.c.h.b16 %v4593
  %v4642 = vpack.c.b16 %v4614, %v4610
  %v4643 = vpack.c.b16 %v4615, %v4611
  %v4644 = vpack.c.b16 %v4616, %v4612
  %v4645 = vpack.c.b16 %v4617, %v4613
  %v4646 = vpack.c.b16 %v4622, %v4618
  %v4647 = vpack.c.b16 %v4623, %v4619
  %v4648 = vpack.c.b16 %v4624, %v4620
  %v4649 = vpack.c.b16 %v4625, %v4621
  %v4650 = vpack.c.b16 %v4630, %v4626
  %v4651 = vpack.c.b16 %v4631, %v4627
  %v4652 = vpack.c.b16 %v4632, %v4628
  %v4653 = vpack.c.b16 %v4633, %v4629
  %v4654 = vpack.c.b16 %v4638, %v4634
  %v4655 = vpack.c.b16 %v4639, %v4635
  %v4656 = vpack.c.b16 %v4640, %v4636
  %v4657 = vpack.c.b16 %v4641, %v4637
  %v4675 = vsel %vm1086, %v4576, 0
  %4677 = vmatprep.subr.bf16.mxu0 %v4643
  %4678 = vmatpush1.bf16.msra.mxu0 %v4642
  %4679 = vmatprep.subr.bf16.mxu0 %v4647
  %4680 = vmatpush1.bf16.msra.mxu0 %v4646
  %4681 = vmatprep.subr.bf16.mxu0 %v4651
  %4682 = vmatpush1.bf16.msra.mxu0 %v4650
  %4683 = vmatprep.subr.bf16.mxu0 %v4655
  %4684 = vmatpush1.bf16.msra.mxu0 %v4654
  %4685 = vmatprep.subr.bf16.mxu0 0
  %4686 = vmatpush1.bf16.msra.mxu0 0
  %4687 = vmatprep.subr.bf16.mxu0 0
  %4688 = vmatpush1.bf16.msra.mxu0 0
  %4689 = vmatprep.subr.bf16.mxu0 0
  %4690 = vmatpush1.bf16.msra.mxu0 0
  %4691 = vmatprep.subr.bf16.mxu0 0
  %4692 = vmatpush1.bf16.msra.mxu0 0
  %4693 = vmatprep.subr.bf16.mxu0 0
  %4694 = vmatpush1.bf16.msra.mxu0 0
  %4695 = vmatprep.subr.bf16.mxu0 0
  %4696 = vmatpush1.bf16.msra.mxu0 0
  %4697 = vmatprep.subr.bf16.mxu0 0
  %4698 = vmatpush1.bf16.msra.mxu0 0
  %4699 = vmatprep.subr.bf16.mxu0 0
  %4700 = vmatpush1.bf16.msra.mxu0 0
  %4701 = vmatprep.subr.bf16.mxu0 0
  %4702 = vmatpush1.bf16.msra.mxu0 0
  %4703 = vmatprep.subr.bf16.mxu0 0
  %4704 = vmatpush1.bf16.msra.mxu0 0
  %4705 = vmatprep.subr.bf16.mxu0 0
  %4706 = vmatpush1.bf16.msra.mxu0 0
  %4707 = vmatprep.subr.bf16.mxu0 0
  %4708 = vmatpush1.bf16.msra.mxu0 0
  %4709 = vmatprep.mubr.bf16.mxu0 0
  %4710 = vmatmul.mubr.bf16.gmra.mrb[0].mxu0 %v4675
  %v4711 = vpop.f32.mrb[0].mxu0
  %v4712 = vadd.f32 0.0, %v4711
  %v4713 = vpop.f32.mrb[0].mxu0
  %v4714 = vadd.f32 0.0, %v4713
  %v4715 = vpop.f32.mrb[0].mxu0
  %v4716 = vpop.f32.mrb[0].mxu0
  %4717 = vdwg.mxu0
  %4718 = vmatprep.subr.bf16.mxu0 %v4645
  %4719 = vmatpush1.bf16.msra.mxu0 %v4644
  %4720 = vmatprep.subr.bf16.mxu0 %v4649
  %4721 = vmatpush1.bf16.msra.mxu0 %v4648
  %4722 = vmatprep.subr.bf16.mxu0 %v4653
  %4723 = vmatpush1.bf16.msra.mxu0 %v4652
  %4724 = vmatprep.subr.bf16.mxu0 %v4657
  %4725 = vmatpush1.bf16.msra.mxu0 %v4656
  %4726 = vmatprep.subr.bf16.mxu0 0
  %4727 = vmatpush1.bf16.msra.mxu0 0
  %4728 = vmatprep.subr.bf16.mxu0 0
  %4729 = vmatpush1.bf16.msra.mxu0 0
  %4730 = vmatprep.subr.bf16.mxu0 0
  %4731 = vmatpush1.bf16.msra.mxu0 0
  %4732 = vmatprep.subr.bf16.mxu0 0
  %4733 = vmatpush1.bf16.msra.mxu0 0
  %4734 = vmatprep.subr.bf16.mxu0 0
  %4735 = vmatpush1.bf16.msra.mxu0 0
  %4736 = vmatprep.subr.bf16.mxu0 0
  %4737 = vmatpush1.bf16.msra.mxu0 0
  %4738 = vmatprep.subr.bf16.mxu0 0
  %4739 = vmatpush1.bf16.msra.mxu0 0
  %4740 = vmatprep.subr.bf16.mxu0 0
  %4741 = vmatpush1.bf16.msra.mxu0 0
  %4742 = vmatprep.subr.bf16.mxu0 0
  %4743 = vmatpush1.bf16.msra.mxu0 0
  %4744 = vmatprep.subr.bf16.mxu0 0
  %4745 = vmatpush1.bf16.msra.mxu0 0
  %4746 = vmatprep.subr.bf16.mxu0 0
  %4747 = vmatpush1.bf16.msra.mxu0 0
  %4748 = vmatprep.subr.bf16.mxu0 0
  %4749 = vmatpush1.bf16.msra.mxu0 0
  %4750 = vmatprep.mubr.bf16.mxu0 0
  %4751 = vmatmul.mubr.bf16.gmra.mrb[0].mxu0 %v4675
  %v4752 = vpop.f32.mrb[0].mxu0
  %v4753 = vadd.f32 0.0, %v4752
  %v4754 = vpop.f32.mrb[0].mxu0
  %v4755 = vadd.f32 0.0, %v4754
  %v4756 = vpop.f32.mrb[0].mxu0
  %v4757 = vpop.f32.mrb[0].mxu0
  %4758 = vdwg.mxu0
  %v4759 = vadd.f32 %v4572, %v4712
  %v4760 = vadd.f32 %v4573, %v4714
  %v4761 = vadd.f32 %v4574, %v4753
  %v4762 = vadd.f32 %v4575, %v4755
  %v4763 = vld [vmem:[#allocation2 + $0x38] sm:$0xf]
  %s4764 = scalar_lea.vmem %s3, 1792
  %v4765 = vld [vmem:[%s4764] sm:$0xff]
  %v4766 = vld [vmem:[%s4764 + $0x8] sm:$0xff]
  %v4767 = vld [vmem:[%s4764 + $0x10] sm:$0xff]
  %v4768 = vld [vmem:[%s4764 + $0x18] sm:$0xff]
  %v4769 = vld [vmem:[%s4764 + $0x20] sm:$0xff]
  %v4770 = vld [vmem:[%s4764 + $0x28] sm:$0xff]
  %v4771 = vld [vmem:[%s4764 + $0x30] sm:$0xff]
  %v4772 = vld [vmem:[%s4764 + $0x38] sm:$0xff]
  %v4773 = vld [vmem:[%s4764 + $0x40] sm:$0xff]
  %v4774 = vld [vmem:[%s4764 + $0x48] sm:$0xff]
  %v4775 = vld [vmem:[%s4764 + $0x50] sm:$0xff]
  %v4776 = vld [vmem:[%s4764 + $0x58] sm:$0xff]
  %v4777 = vld [vmem:[%s4764 + $0x60] sm:$0xff]
  %v4778 = vld [vmem:[%s4764 + $0x68] sm:$0xff]
  %v4779 = vld [vmem:[%s4764 + $0x70] sm:$0xff]
  %v4780 = vld [vmem:[%s4764 + $0x78] sm:$0xff]
  %v4797 = vunpack.c.l.b16 %v4765
  %v4798 = vunpack.c.h.b16 %v4765
  %v4799 = vunpack.c.l.b16 %v4766
  %v4800 = vunpack.c.h.b16 %v4766
  %v4801 = vunpack.c.l.b16 %v4767
  %v4802 = vunpack.c.h.b16 %v4767
  %v4803 = vunpack.c.l.b16 %v4768
  %v4804 = vunpack.c.h.b16 %v4768
  %v4805 = vunpack.c.l.b16 %v4769
  %v4806 = vunpack.c.h.b16 %v4769
  %v4807 = vunpack.c.l.b16 %v4770
  %v4808 = vunpack.c.h.b16 %v4770
  %v4809 = vunpack.c.l.b16 %v4771
  %v4810 = vunpack.c.h.b16 %v4771
  %v4811 = vunpack.c.l.b16 %v4772
  %v4812 = vunpack.c.h.b16 %v4772
  %v4813 = vunpack.c.l.b16 %v4773
  %v4814 = vunpack.c.h.b16 %v4773
  %v4815 = vunpack.c.l.b16 %v4774
  %v4816 = vunpack.c.h.b16 %v4774
  %v4817 = vunpack.c.l.b16 %v4775
  %v4818 = vunpack.c.h.b16 %v4775
  %v4819 = vunpack.c.l.b16 %v4776
  %v4820 = vunpack.c.h.b16 %v4776
  %v4821 = vunpack.c.l.b16 %v4777
  %v4822 = vunpack.c.h.b16 %v4777
  %v4823 = vunpack.c.l.b16 %v4778
  %v4824 = vunpack.c.h.b16 %v4778
  %v4825 = vunpack.c.l.b16 %v4779
  %v4826 = vunpack.c.h.b16 %v4779
  %v4827 = vunpack.c.l.b16 %v4780
  %v4828 = vunpack.c.h.b16 %v4780
  %v4829 = vpack.c.b16 %v4801, %v4797
  %v4830 = vpack.c.b16 %v4802, %v4798
  %v4831 = vpack.c.b16 %v4803, %v4799
  %v4832 = vpack.c.b16 %v4804, %v4800
  %v4833 = vpack.c.b16 %v4809, %v4805
  %v4834 = vpack.c.b16 %v4810, %v4806
  %v4835 = vpack.c.b16 %v4811, %v4807
  %v4836 = vpack.c.b16 %v4812, %v4808
  %v4837 = vpack.c.b16 %v4817, %v4813
  %v4838 = vpack.c.b16 %v4818, %v4814
  %v4839 = vpack.c.b16 %v4819, %v4815
  %v4840 = vpack.c.b16 %v4820, %v4816
  %v4841 = vpack.c.b16 %v4825, %v4821
  %v4842 = vpack.c.b16 %v4826, %v4822
  %v4843 = vpack.c.b16 %v4827, %v4823
  %v4844 = vpack.c.b16 %v4828, %v4824
  %v4862 = vsel %vm1086, %v4763, 0
  %4864 = vmatprep.subr.bf16.mxu0 %v4830
  %4865 = vmatpush1.bf16.msra.mxu0 %v4829
  %4866 = vmatprep.subr.bf16.mxu0 %v4834
  %4867 = vmatpush1.bf16.msra.mxu0 %v4833
  %4868 = vmatprep.subr.bf16.mxu0 %v4838
  %4869 = vmatpush1.bf16.msra.mxu0 %v4837
  %4870 = vmatprep.subr.bf16.mxu0 %v4842
  %4871 = vmatpush1.bf16.msra.mxu0 %v4841
  %4872 = vmatprep.subr.bf16.mxu0 0
  %4873 = vmatpush1.bf16.msra.mxu0 0
  %4874 = vmatprep.subr.bf16.mxu0 0
  %4875 = vmatpush1.bf16.msra.mxu0 0
  %4876 = vmatprep.subr.bf16.mxu0 0
  %4877 = vmatpush1.bf16.msra.mxu0 0
  %4878 = vmatprep.subr.bf16.mxu0 0
  %4879 = vmatpush1.bf16.msra.mxu0 0
  %4880 = vmatprep.subr.bf16.mxu0 0
  %4881 = vmatpush1.bf16.msra.mxu0 0
  %4882 = vmatprep.subr.bf16.mxu0 0
  %4883 = vmatpush1.bf16.msra.mxu0 0
  %4884 = vmatprep.subr.bf16.mxu0 0
  %4885 = vmatpush1.bf16.msra.mxu0 0
  %4886 = vmatprep.subr.bf16.mxu0 0
  %4887 = vmatpush1.bf16.msra.mxu0 0
  %4888 = vmatprep.subr.bf16.mxu0 0
  %4889 = vmatpush1.bf16.msra.mxu0 0
  %4890 = vmatprep.subr.bf16.mxu0 0
  %4891 = vmatpush1.bf16.msra.mxu0 0
  %4892 = vmatprep.subr.bf16.mxu0 0
  %4893 = vmatpush1.bf16.msra.mxu0 0
  %4894 = vmatprep.subr.bf16.mxu0 0
  %4895 = vmatpush1.bf16.msra.mxu0 0
  %4896 = vmatprep.mubr.bf16.mxu0 0
  %4897 = vmatmul.mubr.bf16.gmra.mrb[0].mxu0 %v4862
  %v4898 = vpop.f32.mrb[0].mxu0
  %v4899 = vadd.f32 0.0, %v4898
  %v4900 = vpop.f32.mrb[0].mxu0
  %v4901 = vadd.f32 0.0, %v4900
  %v4902 = vpop.f32.mrb[0].mxu0
  %v4903 = vpop.f32.mrb[0].mxu0
  %4904 = vdwg.mxu0
  %4905 = vmatprep.subr.bf16.mxu0 %v4832
  %4906 = vmatpush1.bf16.msra.mxu0 %v4831
  %4907 = vmatprep.subr.bf16.mxu0 %v4836
  %4908 = vmatpush1.bf16.msra.mxu0 %v4835
  %4909 = vmatprep.subr.bf16.mxu0 %v4840
  %4910 = vmatpush1.bf16.msra.mxu0 %v4839
  %4911 = vmatprep.subr.bf16.mxu0 %v4844
  %4912 = vmatpush1.bf16.msra.mxu0 %v4843
  %4913 = vmatprep.subr.bf16.mxu0 0
  %4914 = vmatpush1.bf16.msra.mxu0 0
  %4915 = vmatprep.subr.bf16.mxu0 0
  %4916 = vmatpush1.bf16.msra.mxu0 0
  %4917 = vmatprep.subr.bf16.mxu0 0
  %4918 = vmatpush1.bf16.msra.mxu0 0
  %4919 = vmatprep.subr.bf16.mxu0 0
  %4920 = vmatpush1.bf16.msra.mxu0 0
  %4921 = vmatprep.subr.bf16.mxu0 0
  %4922 = vmatpush1.bf16.msra.mxu0 0
  %4923 = vmatprep.subr.bf16.mxu0 0
  %4924 = vmatpush1.bf16.msra.mxu0 0
  %4925 = vmatprep.subr.bf16.mxu0 0
  %4926 = vmatpush1.bf16.msra.mxu0 0
  %4927 = vmatprep.subr.bf16.mxu0 0
  %4928 = vmatpush1.bf16.msra.mxu0 0
  %4929 = vmatprep.subr.bf16.mxu0 0
  %4930 = vmatpush1.bf16.msra.mxu0 0
  %4931 = vmatprep.subr.bf16.mxu0 0
  %4932 = vmatpush1.bf16.msra.mxu0 0
  %4933 = vmatprep.subr.bf16.mxu0 0
  %4934 = vmatpush1.bf16.msra.mxu0 0
  %4935 = vmatprep.subr.bf16.mxu0 0
  %4936 = vmatpush1.bf16.msra.mxu0 0
  %4937 = vmatprep.mubr.bf16.mxu0 0
  %4938 = vmatmul.mubr.bf16.gmra.mrb[0].mxu0 %v4862
  %v4939 = vpop.f32.mrb[0].mxu0
  %v4940 = vadd.f32 0.0, %v4939
  %v4941 = vpop.f32.mrb[0].mxu0
  %v4942 = vadd.f32 0.0, %v4941
  %v4943 = vpop.f32.mrb[0].mxu0
  %v4944 = vpop.f32.mrb[0].mxu0
  %4945 = vdwg.mxu0
  %v4946 = vadd.f32 %v4759, %v4899
  %v4947 = vadd.f32 %v4760, %v4901
  %v4948 = vadd.f32 %v4761, %v4940
  %v4949 = vadd.f32 %v4762, %v4942
  %v4950 = vld [vmem:[#allocation2 + $0x3c] sm:$0xf]
  %s4951 = scalar_lea.vmem %s3, 1920
  %v4952 = vld [vmem:[%s4951] sm:$0xff]
  %v4953 = vld [vmem:[%s4951 + $0x8] sm:$0xff]
  %v4954 = vld [vmem:[%s4951 + $0x10] sm:$0xff]
  %v4955 = vld [vmem:[%s4951 + $0x18] sm:$0xff]
  %v4956 = vld [vmem:[%s4951 + $0x20] sm:$0xff]
  %v4957 = vld [vmem:[%s4951 + $0x28] sm:$0xff]
  %v4958 = vld [vmem:[%s4951 + $0x30] sm:$0xff]
  %v4959 = vld [vmem:[%s4951 + $0x38] sm:$0xff]
  %v4960 = vld [vmem:[%s4951 + $0x40] sm:$0xff]
  %v4961 = vld [vmem:[%s4951 + $0x48] sm:$0xff]
  %v4962 = vld [vmem:[%s4951 + $0x50] sm:$0xff]
  %v4963 = vld [vmem:[%s4951 + $0x58] sm:$0xff]
  %v4964 = vld [vmem:[%s4951 + $0x60] sm:$0xff]
  %v4965 = vld [vmem:[%s4951 + $0x68] sm:$0xff]
  %v4966 = vld [vmem:[%s4951 + $0x70] sm:$0xff]
  %v4967 = vld [vmem:[%s4951 + $0x78] sm:$0xff]
  %v4984 = vunpack.c.l.b16 %v4952
  %v4985 = vunpack.c.h.b16 %v4952
  %v4986 = vunpack.c.l.b16 %v4953
  %v4987 = vunpack.c.h.b16 %v4953
  %v4988 = vunpack.c.l.b16 %v4954
  %v4989 = vunpack.c.h.b16 %v4954
  %v4990 = vunpack.c.l.b16 %v4955
  %v4991 = vunpack.c.h.b16 %v4955
  %v4992 = vunpack.c.l.b16 %v4956
  %v4993 = vunpack.c.h.b16 %v4956
  %v4994 = vunpack.c.l.b16 %v4957
  %v4995 = vunpack.c.h.b16 %v4957
  %v4996 = vunpack.c.l.b16 %v4958
  %v4997 = vunpack.c.h.b16 %v4958
  %v4998 = vunpack.c.l.b16 %v4959
  %v4999 = vunpack.c.h.b16 %v4959
  %v5000 = vunpack.c.l.b16 %v4960
  %v5001 = vunpack.c.h.b16 %v4960
  %v5002 = vunpack.c.l.b16 %v4961
  %v5003 = vunpack.c.h.b16 %v4961
  %v5004 = vunpack.c.l.b16 %v4962
  %v5005 = vunpack.c.h.b16 %v4962
  %v5006 = vunpack.c.l.b16 %v4963
  %v5007 = vunpack.c.h.b16 %v4963
  %v5008 = vunpack.c.l.b16 %v4964
  %v5009 = vunpack.c.h.b16 %v4964
  %v5010 = vunpack.c.l.b16 %v4965
  %v5011 = vunpack.c.h.b16 %v4965
  %v5012 = vunpack.c.l.b16 %v4966
  %v5013 = vunpack.c.h.b16 %v4966
  %v5014 = vunpack.c.l.b16 %v4967
  %v5015 = vunpack.c.h.b16 %v4967
  %v5016 = vpack.c.b16 %v4988, %v4984
  %v5017 = vpack.c.b16 %v4989, %v4985
  %v5018 = vpack.c.b16 %v4990, %v4986
  %v5019 = vpack.c.b16 %v4991, %v4987
  %v5020 = vpack.c.b16 %v4996, %v4992
  %v5021 = vpack.c.b16 %v4997, %v4993
  %v5022 = vpack.c.b16 %v4998, %v4994
  %v5023 = vpack.c.b16 %v4999, %v4995
  %v5024 = vpack.c.b16 %v5004, %v5000
  %v5025 = vpack.c.b16 %v5005, %v5001
  %v5026 = vpack.c.b16 %v5006, %v5002
  %v5027 = vpack.c.b16 %v5007, %v5003
  %v5028 = vpack.c.b16 %v5012, %v5008
  %v5029 = vpack.c.b16 %v5013, %v5009
  %v5030 = vpack.c.b16 %v5014, %v5010
  %v5031 = vpack.c.b16 %v5015, %v5011
  %v5049 = vsel %vm1086, %v4950, 0
  %5051 = vmatprep.subr.bf16.mxu0 %v5017
  %5052 = vmatpush1.bf16.msra.mxu0 %v5016
  %5053 = vmatprep.subr.bf16.mxu0 %v5021
  %5054 = vmatpush1.bf16.msra.mxu0 %v5020
  %5055 = vmatprep.subr.bf16.mxu0 %v5025
  %5056 = vmatpush1.bf16.msra.mxu0 %v5024
  %5057 = vmatprep.subr.bf16.mxu0 %v5029
  %5058 = vmatpush1.bf16.msra.mxu0 %v5028
  %5059 = vmatprep.subr.bf16.mxu0 0
  %5060 = vmatpush1.bf16.msra.mxu0 0
  %5061 = vmatprep.subr.bf16.mxu0 0
  %5062 = vmatpush1.bf16.msra.mxu0 0
  %5063 = vmatprep.subr.bf16.mxu0 0
  %5064 = vmatpush1.bf16.msra.mxu0 0
  %5065 = vmatprep.subr.bf16.mxu0 0
  %5066 = vmatpush1.bf16.msra.mxu0 0
  %5067 = vmatprep.subr.bf16.mxu0 0
  %5068 = vmatpush1.bf16.msra.mxu0 0
  %5069 = vmatprep.subr.bf16.mxu0 0
  %5070 = vmatpush1.bf16.msra.mxu0 0
  %5071 = vmatprep.subr.bf16.mxu0 0
  %5072 = vmatpush1.bf16.msra.mxu0 0
  %5073 = vmatprep.subr.bf16.mxu0 0
  %5074 = vmatpush1.bf16.msra.mxu0 0
  %5075 = vmatprep.subr.bf16.mxu0 0
  %5076 = vmatpush1.bf16.msra.mxu0 0
  %5077 = vmatprep.subr.bf16.mxu0 0
  %5078 = vmatpush1.bf16.msra.mxu0 0
  %5079 = vmatprep.subr.bf16.mxu0 0
  %5080 = vmatpush1.bf16.msra.mxu0 0
  %5081 = vmatprep.subr.bf16.mxu0 0
  %5082 = vmatpush1.bf16.msra.mxu0 0
  %5083 = vmatprep.mubr.bf16.mxu0 0
  %5084 = vmatmul.mubr.bf16.gmra.mrb[0].mxu0 %v5049
  %v5085 = vpop.f32.mrb[0].mxu0
  %v5086 = vadd.f32 0.0, %v5085
  %v5087 = vpop.f32.mrb[0].mxu0
  %v5088 = vadd.f32 0.0, %v5087
  %v5089 = vpop.f32.mrb[0].mxu0
  %v5090 = vpop.f32.mrb[0].mxu0
  %5091 = vdwg.mxu0
  %5092 = vmatprep.subr.bf16.mxu0 %v5019
  %5093 = vmatpush1.bf16.msra.mxu0 %v5018
  %5094 = vmatprep.subr.bf16.mxu0 %v5023
  %5095 = vmatpush1.bf16.msra.mxu0 %v5022
  %5096 = vmatprep.subr.bf16.mxu0 %v5027
  %5097 = vmatpush1.bf16.msra.mxu0 %v5026
  %5098 = vmatprep.subr.bf16.mxu0 %v5031
  %5099 = vmatpush1.bf16.msra.mxu0 %v5030
  %5100 = vmatprep.subr.bf16.mxu0 0
  %5101 = vmatpush1.bf16.msra.mxu0 0
  %5102 = vmatprep.subr.bf16.mxu0 0
  %5103 = vmatpush1.bf16.msra.mxu0 0
  %5104 = vmatprep.subr.bf16.mxu0 0
  %5105 = vmatpush1.bf16.msra.mxu0 0
  %5106 = vmatprep.subr.bf16.mxu0 0
  %5107 = vmatpush1.bf16.msra.mxu0 0
  %5108 = vmatprep.subr.bf16.mxu0 0
  %5109 = vmatpush1.bf16.msra.mxu0 0
  %5110 = vmatprep.subr.bf16.mxu0 0
  %5111 = vmatpush1.bf16.msra.mxu0 0
  %5112 = vmatprep.subr.bf16.mxu0 0
  %5113 = vmatpush1.bf16.msra.mxu0 0
  %5114 = vmatprep.subr.bf16.mxu0 0
  %5115 = vmatpush1.bf16.msra.mxu0 0
  %5116 = vmatprep.subr.bf16.mxu0 0
  %5117 = vmatpush1.bf16.msra.mxu0 0
  %5118 = vmatprep.subr.bf16.mxu0 0
  %5119 = vmatpush1.bf16.msra.mxu0 0
  %5120 = vmatprep.subr.bf16.mxu0 0
  %5121 = vmatpush1.bf16.msra.mxu0 0
  %5122 = vmatprep.subr.bf16.mxu0 0
  %5123 = vmatpush1.bf16.msra.mxu0 0
  %5124 = vmatprep.mubr.bf16.mxu0 0
  %5125 = vmatmul.mubr.bf16.gmra.mrb[0].mxu0 %v5049
  %v5126 = vpop.f32.mrb[0].mxu0
  %v5127 = vadd.f32 0.0, %v5126
  %v5128 = vpop.f32.mrb[0].mxu0
  %v5129 = vadd.f32 0.0, %v5128
  %v5130 = vpop.f32.mrb[0].mxu0
  %v5131 = vpop.f32.mrb[0].mxu0
  %5132 = vdwg.mxu0
  %v5133 = vadd.f32 %v4946, %v5086
  %v5134 = vadd.f32 %v4947, %v5088
  %v5135 = vadd.f32 %v4948, %v5127
  %v5136 = vadd.f32 %v4949, %v5129
  %v5137 = vld [vmem:[#allocation2 + $0x40] sm:$0xf]
  %s5138 = scalar_lea.vmem %s3, 2048
  %v5139 = vld [vmem:[%s5138] sm:$0xff]
  %v5140 = vld [vmem:[%s5138 + $0x8] sm:$0xff]
  %v5141 = vld [vmem:[%s5138 + $0x10] sm:$0xff]
  %v5142 = vld [vmem:[%s5138 + $0x18] sm:$0xff]
  %v5143 = vld [vmem:[%s5138 + $0x20] sm:$0xff]
  %v5144 = vld [vmem:[%s5138 + $0x28] sm:$0xff]
  %v5145 = vld [vmem:[%s5138 + $0x30] sm:$0xff]
  %v5146 = vld [vmem:[%s5138 + $0x38] sm:$0xff]
  %v5147 = vld [vmem:[%s5138 + $0x40] sm:$0xff]
  %v5148 = vld [vmem:[%s5138 + $0x48] sm:$0xff]
  %v5149 = vld [vmem:[%s5138 + $0x50] sm:$0xff]
  %v5150 = vld [vmem:[%s5138 + $0x58] sm:$0xff]
  %v5151 = vld [vmem:[%s5138 + $0x60] sm:$0xff]
  %v5152 = vld [vmem:[%s5138 + $0x68] sm:$0xff]
  %v5153 = vld [vmem:[%s5138 + $0x70] sm:$0xff]
  %v5154 = vld [vmem:[%s5138 + $0x78] sm:$0xff]
  %v5171 = vunpack.c.l.b16 %v5139
  %v5172 = vunpack.c.h.b16 %v5139
  %v5173 = vunpack.c.l.b16 %v5140
  %v5174 = vunpack.c.h.b16 %v5140
  %v5175 = vunpack.c.l.b16 %v5141
  %v5176 = vunpack.c.h.b16 %v5141
  %v5177 = vunpack.c.l.b16 %v5142
  %v5178 = vunpack.c.h.b16 %v5142
  %v5179 = vunpack.c.l.b16 %v5143
  %v5180 = vunpack.c.h.b16 %v5143
  %v5181 = vunpack.c.l.b16 %v5144
  %v5182 = vunpack.c.h.b16 %v5144
  %v5183 = vunpack.c.l.b16 %v5145
  %v5184 = vunpack.c.h.b16 %v5145
  %v5185 = vunpack.c.l.b16 %v5146
  %v5186 = vunpack.c.h.b16 %v5146
  %v5187 = vunpack.c.l.b16 %v5147
  %v5188 = vunpack.c.h.b16 %v5147
  %v5189 = vunpack.c.l.b16 %v5148
  %v5190 = vunpack.c.h.b16 %v5148
  %v5191 = vunpack.c.l.b16 %v5149
  %v5192 = vunpack.c.h.b16 %v5149
  %v5193 = vunpack.c.l.b16 %v5150
  %v5194 = vunpack.c.h.b16 %v5150
  %v5195 = vunpack.c.l.b16 %v5151
  %v5196 = vunpack.c.h.b16 %v5151
  %v5197 = vunpack.c.l.b16 %v5152
  %v5198 = vunpack.c.h.b16 %v5152
  %v5199 = vunpack.c.l.b16 %v5153
  %v5200 = vunpack.c.h.b16 %v5153
  %v5201 = vunpack.c.l.b16 %v5154
  %v5202 = vunpack.c.h.b16 %v5154
  %v5203 = vpack.c.b16 %v5175, %v5171
  %v5204 = vpack.c.b16 %v5176, %v5172
  %v5205 = vpack.c.b16 %v5177, %v5173
  %v5206 = vpack.c.b16 %v5178, %v5174
  %v5207 = vpack.c.b16 %v5183, %v5179
  %v5208 = vpack.c.b16 %v5184, %v5180
  %v5209 = vpack.c.b16 %v5185, %v5181
  %v5210 = vpack.c.b16 %v5186, %v5182
  %v5211 = vpack.c.b16 %v5191, %v5187
  %v5212 = vpack.c.b16 %v5192, %v5188
  %v5213 = vpack.c.b16 %v5193, %v5189
  %v5214 = vpack.c.b16 %v5194, %v5190
  %v5215 = vpack.c.b16 %v5199, %v5195
  %v5216 = vpack.c.b16 %v5200, %v5196
  %v5217 = vpack.c.b16 %v5201, %v5197
  %v5218 = vpack.c.b16 %v5202, %v5198
  %v5236 = vsel %vm1086, %v5137, 0
  %5238 = vmatprep.subr.bf16.mxu0 %v5204
  %5239 = vmatpush1.bf16.msra.mxu0 %v5203
  %5240 = vmatprep.subr.bf16.mxu0 %v5208
  %5241 = vmatpush1.bf16.msra.mxu0 %v5207
  %5242 = vmatprep.subr.bf16.mxu0 %v5212
  %5243 = vmatpush1.bf16.msra.mxu0 %v5211
  %5244 = vmatprep.subr.bf16.mxu0 %v5216
  %5245 = vmatpush1.bf16.msra.mxu0 %v5215
  %5246 = vmatprep.subr.bf16.mxu0 0
  %5247 = vmatpush1.bf16.msra.mxu0 0
  %5248 = vmatprep.subr.bf16.mxu0 0
  %5249 = vmatpush1.bf16.msra.mxu0 0
  %5250 = vmatprep.subr.bf16.mxu0 0
  %5251 = vmatpush1.bf16.msra.mxu0 0
  %5252 = vmatprep.subr.bf16.mxu0 0
  %5253 = vmatpush1.bf16.msra.mxu0 0
  %5254 = vmatprep.subr.bf16.mxu0 0
  %5255 = vmatpush1.bf16.msra.mxu0 0
  %5256 = vmatprep.subr.bf16.mxu0 0
  %5257 = vmatpush1.bf16.msra.mxu0 0
  %5258 = vmatprep.subr.bf16.mxu0 0
  %5259 = vmatpush1.bf16.msra.mxu0 0
  %5260 = vmatprep.subr.bf16.mxu0 0
  %5261 = vmatpush1.bf16.msra.mxu0 0
  %5262 = vmatprep.subr.bf16.mxu0 0
  %5263 = vmatpush1.bf16.msra.mxu0 0
  %5264 = vmatprep.subr.bf16.mxu0 0
  %5265 = vmatpush1.bf16.msra.mxu0 0
  %5266 = vmatprep.subr.bf16.mxu0 0
  %5267 = vmatpush1.bf16.msra.mxu0 0
  %5268 = vmatprep.subr.bf16.mxu0 0
  %5269 = vmatpush1.bf16.msra.mxu0 0
  %5270 = vmatprep.mubr.bf16.mxu0 0
  %5271 = vmatmul.mubr.bf16.gmra.mrb[0].mxu0 %v5236
  %v5272 = vpop.f32.mrb[0].mxu0
  %v5273 = vadd.f32 0.0, %v5272
  %v5274 = vpop.f32.mrb[0].mxu0
  %v5275 = vadd.f32 0.0, %v5274
  %v5276 = vpop.f32.mrb[0].mxu0
  %v5277 = vpop.f32.mrb[0].mxu0
  %5278 = vdwg.mxu0
  %5279 = vmatprep.subr.bf16.mxu0 %v5206
  %5280 = vmatpush1.bf16.msra.mxu0 %v5205
  %5281 = vmatprep.subr.bf16.mxu0 %v5210
  %5282 = vmatpush1.bf16.msra.mxu0 %v5209
  %5283 = vmatprep.subr.bf16.mxu0 %v5214
  %5284 = vmatpush1.bf16.msra.mxu0 %v5213
  %5285 = vmatprep.subr.bf16.mxu0 %v5218
  %5286 = vmatpush1.bf16.msra.mxu0 %v5217
  %5287 = vmatprep.subr.bf16.mxu0 0
  %5288 = vmatpush1.bf16.msra.mxu0 0
  %5289 = vmatprep.subr.bf16.mxu0 0
  %5290 = vmatpush1.bf16.msra.mxu0 0
  %5291 = vmatprep.subr.bf16.mxu0 0
  %5292 = vmatpush1.bf16.msra.mxu0 0
  %5293 = vmatprep.subr.bf16.mxu0 0
  %5294 = vmatpush1.bf16.msra.mxu0 0
  %5295 = vmatprep.subr.bf16.mxu0 0
  %5296 = vmatpush1.bf16.msra.mxu0 0
  %5297 = vmatprep.subr.bf16.mxu0 0
  %5298 = vmatpush1.bf16.msra.mxu0 0
  %5299 = vmatprep.subr.bf16.mxu0 0
  %5300 = vmatpush1.bf16.msra.mxu0 0
  %5301 = vmatprep.subr.bf16.mxu0 0
  %5302 = vmatpush1.bf16.msra.mxu0 0
  %5303 = vmatprep.subr.bf16.mxu0 0
  %5304 = vmatpush1.bf16.msra.mxu0 0
  %5305 = vmatprep.subr.bf16.mxu0 0
  %5306 = vmatpush1.bf16.msra.mxu0 0
  %5307 = vmatprep.subr.bf16.mxu0 0
  %5308 = vmatpush1.bf16.msra.mxu0 0
  %5309 = vmatprep.subr.bf16.mxu0 0
  %5310 = vmatpush1.bf16.msra.mxu0 0
  %5311 = vmatprep.mubr.bf16.mxu0 0
  %5312 = vmatmul.mubr.bf16.gmra.mrb[0].mxu0 %v5236
  %v5313 = vpop.f32.mrb[0].mxu0
  %v5314 = vadd.f32 0.0, %v5313
  %v5315 = vpop.f32.mrb[0].mxu0
  %v5316 = vadd.f32 0.0, %v5315
  %v5317 = vpop.f32.mrb[0].mxu0
  %v5318 = vpop.f32.mrb[0].mxu0
  %5319 = vdwg.mxu0
  %v5320 = vadd.f32 %v5133, %v5273
  %v5321 = vadd.f32 %v5134, %v5275
  %v5322 = vadd.f32 %v5135, %v5314
  %v5323 = vadd.f32 %v5136, %v5316
  %v5324 = vld [vmem:[#allocation2 + $0x44] sm:$0xf]
  %s5325 = scalar_lea.vmem %s3, 2176
  %v5326 = vld [vmem:[%s5325] sm:$0xff]
  %v5327 = vld [vmem:[%s5325 + $0x8] sm:$0xff]
  %v5328 = vld [vmem:[%s5325 + $0x10] sm:$0xff]
  %v5329 = vld [vmem:[%s5325 + $0x18] sm:$0xff]
  %v5330 = vld [vmem:[%s5325 + $0x20] sm:$0xff]
  %v5331 = vld [vmem:[%s5325 + $0x28] sm:$0xff]
  %v5332 = vld [vmem:[%s5325 + $0x30] sm:$0xff]
  %v5333 = vld [vmem:[%s5325 + $0x38] sm:$0xff]
  %v5334 = vld [vmem:[%s5325 + $0x40] sm:$0xff]
  %v5335 = vld [vmem:[%s5325 + $0x48] sm:$0xff]
  %v5336 = vld [vmem:[%s5325 + $0x50] sm:$0xff]
  %v5337 = vld [vmem:[%s5325 + $0x58] sm:$0xff]
  %v5338 = vld [vmem:[%s5325 + $0x60] sm:$0xff]
  %v5339 = vld [vmem:[%s5325 + $0x68] sm:$0xff]
  %v5340 = vld [vmem:[%s5325 + $0x70] sm:$0xff]
  %v5341 = vld [vmem:[%s5325 + $0x78] sm:$0xff]
  %v5358 = vunpack.c.l.b16 %v5326
  %v5359 = vunpack.c.h.b16 %v5326
  %v5360 = vunpack.c.l.b16 %v5327
  %v5361 = vunpack.c.h.b16 %v5327
  %v5362 = vunpack.c.l.b16 %v5328
  %v5363 = vunpack.c.h.b16 %v5328
  %v5364 = vunpack.c.l.b16 %v5329
  %v5365 = vunpack.c.h.b16 %v5329
  %v5366 = vunpack.c.l.b16 %v5330
  %v5367 = vunpack.c.h.b16 %v5330
  %v5368 = vunpack.c.l.b16 %v5331
  %v5369 = vunpack.c.h.b16 %v5331
  %v5370 = vunpack.c.l.b16 %v5332
  %v5371 = vunpack.c.h.b16 %v5332
  %v5372 = vunpack.c.l.b16 %v5333
  %v5373 = vunpack.c.h.b16 %v5333
  %v5374 = vunpack.c.l.b16 %v5334
  %v5375 = vunpack.c.h.b16 %v5334
  %v5376 = vunpack.c.l.b16 %v5335
  %v5377 = vunpack.c.h.b16 %v5335
  %v5378 = vunpack.c.l.b16 %v5336
  %v5379 = vunpack.c.h.b16 %v5336
  %v5380 = vunpack.c.l.b16 %v5337
  %v5381 = vunpack.c.h.b16 %v5337
  %v5382 = vunpack.c.l.b16 %v5338
  %v5383 = vunpack.c.h.b16 %v5338
  %v5384 = vunpack.c.l.b16 %v5339
  %v5385 = vunpack.c.h.b16 %v5339
  %v5386 = vunpack.c.l.b16 %v5340
  %v5387 = vunpack.c.h.b16 %v5340
  %v5388 = vunpack.c.l.b16 %v5341
  %v5389 = vunpack.c.h.b16 %v5341
  %v5390 = vpack.c.b16 %v5362, %v5358
  %v5391 = vpack.c.b16 %v5363, %v5359
  %v5392 = vpack.c.b16 %v5364, %v5360
  %v5393 = vpack.c.b16 %v5365, %v5361
  %v5394 = vpack.c.b16 %v5370, %v5366
  %v5395 = vpack.c.b16 %v5371, %v5367
  %v5396 = vpack.c.b16 %v5372, %v5368
  %v5397 = vpack.c.b16 %v5373, %v5369
  %v5398 = vpack.c.b16 %v5378, %v5374
  %v5399 = vpack.c.b16 %v5379, %v5375
  %v5400 = vpack.c.b16 %v5380, %v5376
  %v5401 = vpack.c.b16 %v5381, %v5377
  %v5402 = vpack.c.b16 %v5386, %v5382
  %v5403 = vpack.c.b16 %v5387, %v5383
  %v5404 = vpack.c.b16 %v5388, %v5384
  %v5405 = vpack.c.b16 %v5389, %v5385
  %v5423 = vsel %vm1086, %v5324, 0
  %5425 = vmatprep.subr.bf16.mxu0 %v5391
  %5426 = vmatpush1.bf16.msra.mxu0 %v5390
  %5427 = vmatprep.subr.bf16.mxu0 %v5395
  %5428 = vmatpush1.bf16.msra.mxu0 %v5394
  %5429 = vmatprep.subr.bf16.mxu0 %v5399
  %5430 = vmatpush1.bf16.msra.mxu0 %v5398
  %5431 = vmatprep.subr.bf16.mxu0 %v5403
  %5432 = vmatpush1.bf16.msra.mxu0 %v5402
  %5433 = vmatprep.subr.bf16.mxu0 0
  %5434 = vmatpush1.bf16.msra.mxu0 0
  %5435 = vmatprep.subr.bf16.mxu0 0
  %5436 = vmatpush1.bf16.msra.mxu0 0
  %5437 = vmatprep.subr.bf16.mxu0 0
  %5438 = vmatpush1.bf16.msra.mxu0 0
  %5439 = vmatprep.subr.bf16.mxu0 0
  %5440 = vmatpush1.bf16.msra.mxu0 0
  %5441 = vmatprep.subr.bf16.mxu0 0
  %5442 = vmatpush1.bf16.msra.mxu0 0
  %5443 = vmatprep.subr.bf16.mxu0 0
  %5444 = vmatpush1.bf16.msra.mxu0 0
  %5445 = vmatprep.subr.bf16.mxu0 0
  %5446 = vmatpush1.bf16.msra.mxu0 0
  %5447 = vmatprep.subr.bf16.mxu0 0
  %5448 = vmatpush1.bf16.msra.mxu0 0
  %5449 = vmatprep.subr.bf16.mxu0 0
  %5450 = vmatpush1.bf16.msra.mxu0 0
  %5451 = vmatprep.subr.bf16.mxu0 0
  %5452 = vmatpush1.bf16.msra.mxu0 0
  %5453 = vmatprep.subr.bf16.mxu0 0
  %5454 = vmatpush1.bf16.msra.mxu0 0
  %5455 = vmatprep.subr.bf16.mxu0 0
  %5456 = vmatpush1.bf16.msra.mxu0 0
  %5457 = vmatprep.mubr.bf16.mxu0 0
  %5458 = vmatmul.mubr.bf16.gmra.mrb[0].mxu0 %v5423
  %v5459 = vpop.f32.mrb[0].mxu0
  %v5460 = vadd.f32 0.0, %v5459
  %v5461 = vpop.f32.mrb[0].mxu0
  %v5462 = vadd.f32 0.0, %v5461
  %v5463 = vpop.f32.mrb[0].mxu0
  %v5464 = vpop.f32.mrb[0].mxu0
  %5465 = vdwg.mxu0
  %5466 = vmatprep.subr.bf16.mxu0 %v5393
  %5467 = vmatpush1.bf16.msra.mxu0 %v5392
  %5468 = vmatprep.subr.bf16.mxu0 %v5397
  %5469 = vmatpush1.bf16.msra.mxu0 %v5396
  %5470 = vmatprep.subr.bf16.mxu0 %v5401
  %5471 = vmatpush1.bf16.msra.mxu0 %v5400
  %5472 = vmatprep.subr.bf16.mxu0 %v5405
  %5473 = vmatpush1.bf16.msra.mxu0 %v5404
  %5474 = vmatprep.subr.bf16.mxu0 0
  %5475 = vmatpush1.bf16.msra.mxu0 0
  %5476 = vmatprep.subr.bf16.mxu0 0
  %5477 = vmatpush1.bf16.msra.mxu0 0
  %5478 = vmatprep.subr.bf16.mxu0 0
  %5479 = vmatpush1.bf16.msra.mxu0 0
  %5480 = vmatprep.subr.bf16.mxu0 0
  %5481 = vmatpush1.bf16.msra.mxu0 0
  %5482 = vmatprep.subr.bf16.mxu0 0
  %5483 = vmatpush1.bf16.msra.mxu0 0
  %5484 = vmatprep.subr.bf16.mxu0 0
  %5485 = vmatpush1.bf16.msra.mxu0 0
  %5486 = vmatprep.subr.bf16.mxu0 0
  %5487 = vmatpush1.bf16.msra.mxu0 0
  %5488 = vmatprep.subr.bf16.mxu0 0
  %5489 = vmatpush1.bf16.msra.mxu0 0
  %5490 = vmatprep.subr.bf16.mxu0 0
  %5491 = vmatpush1.bf16.msra.mxu0 0
  %5492 = vmatprep.subr.bf16.mxu0 0
  %5493 = vmatpush1.bf16.msra.mxu0 0
  %5494 = vmatprep.subr.bf16.mxu0 0
  %5495 = vmatpush1.bf16.msra.mxu0 0
  %5496 = vmatprep.subr.bf16.mxu0 0
  %5497 = vmatpush1.bf16.msra.mxu0 0
  %5498 = vmatprep.mubr.bf16.mxu0 0
  %5499 = vmatmul.mubr.bf16.gmra.mrb[0].mxu0 %v5423
  %v5500 = vpop.f32.mrb[0].mxu0
  %v5501 = vadd.f32 0.0, %v5500
  %v5502 = vpop.f32.mrb[0].mxu0
  %v5503 = vadd.f32 0.0, %v5502
  %v5504 = vpop.f32.mrb[0].mxu0
  %v5505 = vpop.f32.mrb[0].mxu0
  %5506 = vdwg.mxu0
  %v5507 = vadd.f32 %v5320, %v5460
  %v5508 = vadd.f32 %v5321, %v5462
  %v5509 = vadd.f32 %v5322, %v5501
  %v5510 = vadd.f32 %v5323, %v5503
  %v5511 = vld [vmem:[#allocation2 + $0x48] sm:$0xf]
  %s5512 = scalar_lea.vmem %s3, 2304
  %v5513 = vld [vmem:[%s5512] sm:$0xff]
  %v5514 = vld [vmem:[%s5512 + $0x8] sm:$0xff]
  %v5515 = vld [vmem:[%s5512 + $0x10] sm:$0xff]
  %v5516 = vld [vmem:[%s5512 + $0x18] sm:$0xff]
  %v5517 = vld [vmem:[%s5512 + $0x20] sm:$0xff]
  %v5518 = vld [vmem:[%s5512 + $0x28] sm:$0xff]
  %v5519 = vld [vmem:[%s5512 + $0x30] sm:$0xff]
  %v5520 = vld [vmem:[%s5512 + $0x38] sm:$0xff]
  %v5521 = vld [vmem:[%s5512 + $0x40] sm:$0xff]
  %v5522 = vld [vmem:[%s5512 + $0x48] sm:$0xff]
  %v5523 = vld [vmem:[%s5512 + $0x50] sm:$0xff]
  %v5524 = vld [vmem:[%s5512 + $0x58] sm:$0xff]
  %v5525 = vld [vmem:[%s5512 + $0x60] sm:$0xff]
  %v5526 = vld [vmem:[%s5512 + $0x68] sm:$0xff]
  %v5527 = vld [vmem:[%s5512 + $0x70] sm:$0xff]
  %v5528 = vld [vmem:[%s5512 + $0x78] sm:$0xff]
  %v5545 = vunpack.c.l.b16 %v5513
  %v5546 = vunpack.c.h.b16 %v5513
  %v5547 = vunpack.c.l.b16 %v5514
  %v5548 = vunpack.c.h.b16 %v5514
  %v5549 = vunpack.c.l.b16 %v5515
  %v5550 = vunpack.c.h.b16 %v5515
  %v5551 = vunpack.c.l.b16 %v5516
  %v5552 = vunpack.c.h.b16 %v5516
  %v5553 = vunpack.c.l.b16 %v5517
  %v5554 = vunpack.c.h.b16 %v5517
  %v5555 = vunpack.c.l.b16 %v5518
  %v5556 = vunpack.c.h.b16 %v5518
  %v5557 = vunpack.c.l.b16 %v5519
  %v5558 = vunpack.c.h.b16 %v5519
  %v5559 = vunpack.c.l.b16 %v5520
  %v5560 = vunpack.c.h.b16 %v5520
  %v5561 = vunpack.c.l.b16 %v5521
  %v5562 = vunpack.c.h.b16 %v5521
  %v5563 = vunpack.c.l.b16 %v5522
  %v5564 = vunpack.c.h.b16 %v5522
  %v5565 = vunpack.c.l.b16 %v5523
  %v5566 = vunpack.c.h.b16 %v5523
  %v5567 = vunpack.c.l.b16 %v5524
  %v5568 = vunpack.c.h.b16 %v5524
  %v5569 = vunpack.c.l.b16 %v5525
  %v5570 = vunpack.c.h.b16 %v5525
  %v5571 = vunpack.c.l.b16 %v5526
  %v5572 = vunpack.c.h.b16 %v5526
  %v5573 = vunpack.c.l.b16 %v5527
  %v5574 = vunpack.c.h.b16 %v5527
  %v5575 = vunpack.c.l.b16 %v5528
  %v5576 = vunpack.c.h.b16 %v5528
  %v5577 = vpack.c.b16 %v5549, %v5545
  %v5578 = vpack.c.b16 %v5550, %v5546
  %v5579 = vpack.c.b16 %v5551, %v5547
  %v5580 = vpack.c.b16 %v5552, %v5548
  %v5581 = vpack.c.b16 %v5557, %v5553
  %v5582 = vpack.c.b16 %v5558, %v5554
  %v5583 = vpack.c.b16 %v5559, %v5555
  %v5584 = vpack.c.b16 %v5560, %v5556
  %v5585 = vpack.c.b16 %v5565, %v5561
  %v5586 = vpack.c.b16 %v5566, %v5562
  %v5587 = vpack.c.b16 %v5567, %v5563
  %v5588 = vpack.c.b16 %v5568, %v5564
  %v5589 = vpack.c.b16 %v5573, %v5569
  %v5590 = vpack.c.b16 %v5574, %v5570
  %v5591 = vpack.c.b16 %v5575, %v5571
  %v5592 = vpack.c.b16 %v5576, %v5572
  %v5610 = vsel %vm1086, %v5511, 0
  %5612 = vmatprep.subr.bf16.mxu0 %v5578
  %5613 = vmatpush1.bf16.msra.mxu0 %v5577
  %5614 = vmatprep.subr.bf16.mxu0 %v5582
  %5615 = vmatpush1.bf16.msra.mxu0 %v5581
  %5616 = vmatprep.subr.bf16.mxu0 %v5586
  %5617 = vmatpush1.bf16.msra.mxu0 %v5585
  %5618 = vmatprep.subr.bf16.mxu0 %v5590
  %5619 = vmatpush1.bf16.msra.mxu0 %v5589
  %5620 = vmatprep.subr.bf16.mxu0 0
  %5621 = vmatpush1.bf16.msra.mxu0 0
  %5622 = vmatprep.subr.bf16.mxu0 0
  %5623 = vmatpush1.bf16.msra.mxu0 0
  %5624 = vmatprep.subr.bf16.mxu0 0
  %5625 = vmatpush1.bf16.msra.mxu0 0
  %5626 = vmatprep.subr.bf16.mxu0 0
  %5627 = vmatpush1.bf16.msra.mxu0 0
  %5628 = vmatprep.subr.bf16.mxu0 0
  %5629 = vmatpush1.bf16.msra.mxu0 0
  %5630 = vmatprep.subr.bf16.mxu0 0
  %5631 = vmatpush1.bf16.msra.mxu0 0
  %5632 = vmatprep.subr.bf16.mxu0 0
  %5633 = vmatpush1.bf16.msra.mxu0 0
  %5634 = vmatprep.subr.bf16.mxu0 0
  %5635 = vmatpush1.bf16.msra.mxu0 0
  %5636 = vmatprep.subr.bf16.mxu0 0
  %5637 = vmatpush1.bf16.msra.mxu0 0
  %5638 = vmatprep.subr.bf16.mxu0 0
  %5639 = vmatpush1.bf16.msra.mxu0 0
  %5640 = vmatprep.subr.bf16.mxu0 0
  %5641 = vmatpush1.bf16.msra.mxu0 0
  %5642 = vmatprep.subr.bf16.mxu0 0
  %5643 = vmatpush1.bf16.msra.mxu0 0
  %5644 = vmatprep.mubr.bf16.mxu0 0
  %5645 = vmatmul.mubr.bf16.gmra.mrb[0].mxu0 %v5610
  %v5646 = vpop.f32.mrb[0].mxu0
  %v5647 = vadd.f32 0.0, %v5646
  %v5648 = vpop.f32.mrb[0].mxu0
  %v5649 = vadd.f32 0.0, %v5648
  %v5650 = vpop.f32.mrb[0].mxu0
  %v5651 = vpop.f32.mrb[0].mxu0
  %5652 = vdwg.mxu0
  %5653 = vmatprep.subr.bf16.mxu0 %v5580
  %5654 = vmatpush1.bf16.msra.mxu0 %v5579
  %5655 = vmatprep.subr.bf16.mxu0 %v5584
  %5656 = vmatpush1.bf16.msra.mxu0 %v5583
  %5657 = vmatprep.subr.bf16.mxu0 %v5588
  %5658 = vmatpush1.bf16.msra.mxu0 %v5587
  %5659 = vmatprep.subr.bf16.mxu0 %v5592
  %5660 = vmatpush1.bf16.msra.mxu0 %v5591
  %5661 = vmatprep.subr.bf16.mxu0 0
  %5662 = vmatpush1.bf16.msra.mxu0 0
  %5663 = vmatprep.subr.bf16.mxu0 0
  %5664 = vmatpush1.bf16.msra.mxu0 0
  %5665 = vmatprep.subr.bf16.mxu0 0
  %5666 = vmatpush1.bf16.msra.mxu0 0
  %5667 = vmatprep.subr.bf16.mxu0 0
  %5668 = vmatpush1.bf16.msra.mxu0 0
  %5669 = vmatprep.subr.bf16.mxu0 0
  %5670 = vmatpush1.bf16.msra.mxu0 0
  %5671 = vmatprep.subr.bf16.mxu0 0
  %5672 = vmatpush1.bf16.msra.mxu0 0
  %5673 = vmatprep.subr.bf16.mxu0 0
  %5674 = vmatpush1.bf16.msra.mxu0 0
  %5675 = vmatprep.subr.bf16.mxu0 0
  %5676 = vmatpush1.bf16.msra.mxu0 0
  %5677 = vmatprep.subr.bf16.mxu0 0
  %5678 = vmatpush1.bf16.msra.mxu0 0
  %5679 = vmatprep.subr.bf16.mxu0 0
  %5680 = vmatpush1.bf16.msra.mxu0 0
  %5681 = vmatprep.subr.bf16.mxu0 0
  %5682 = vmatpush1.bf16.msra.mxu0 0
  %5683 = vmatprep.subr.bf16.mxu0 0
  %5684 = vmatpush1.bf16.msra.mxu0 0
  %5685 = vmatprep.mubr.bf16.mxu0 0
  %5686 = vmatmul.mubr.bf16.gmra.mrb[0].mxu0 %v5610
  %v5687 = vpop.f32.mrb[0].mxu0
  %v5688 = vadd.f32 0.0, %v5687
  %v5689 = vpop.f32.mrb[0].mxu0
  %v5690 = vadd.f32 0.0, %v5689
  %v5691 = vpop.f32.mrb[0].mxu0
  %v5692 = vpop.f32.mrb[0].mxu0
  %5693 = vdwg.mxu0
  %v5694 = vadd.f32 %v5507, %v5647
  %v5695 = vadd.f32 %v5508, %v5649
  %v5696 = vadd.f32 %v5509, %v5688
  %v5697 = vadd.f32 %v5510, %v5690
  %v5698 = vld [vmem:[#allocation2 + $0x4c] sm:$0xf]
  %s5699 = scalar_lea.vmem %s3, 2432
  %v5700 = vld [vmem:[%s5699] sm:$0xff]
  %v5701 = vld [vmem:[%s5699 + $0x8] sm:$0xff]
  %v5702 = vld [vmem:[%s5699 + $0x10] sm:$0xff]
  %v5703 = vld [vmem:[%s5699 + $0x18] sm:$0xff]
  %v5704 = vld [vmem:[%s5699 + $0x20] sm:$0xff]
  %v5705 = vld [vmem:[%s5699 + $0x28] sm:$0xff]
  %v5706 = vld [vmem:[%s5699 + $0x30] sm:$0xff]
  %v5707 = vld [vmem:[%s5699 + $0x38] sm:$0xff]
  %v5708 = vld [vmem:[%s5699 + $0x40] sm:$0xff]
  %v5709 = vld [vmem:[%s5699 + $0x48] sm:$0xff]
  %v5710 = vld [vmem:[%s5699 + $0x50] sm:$0xff]
  %v5711 = vld [vmem:[%s5699 + $0x58] sm:$0xff]
  %v5712 = vld [vmem:[%s5699 + $0x60] sm:$0xff]
  %v5713 = vld [vmem:[%s5699 + $0x68] sm:$0xff]
  %v5714 = vld [vmem:[%s5699 + $0x70] sm:$0xff]
  %v5715 = vld [vmem:[%s5699 + $0x78] sm:$0xff]
  %v5732 = vunpack.c.l.b16 %v5700
  %v5733 = vunpack.c.h.b16 %v5700
  %v5734 = vunpack.c.l.b16 %v5701
  %v5735 = vunpack.c.h.b16 %v5701
  %v5736 = vunpack.c.l.b16 %v5702
  %v5737 = vunpack.c.h.b16 %v5702
  %v5738 = vunpack.c.l.b16 %v5703
  %v5739 = vunpack.c.h.b16 %v5703
  %v5740 = vunpack.c.l.b16 %v5704
  %v5741 = vunpack.c.h.b16 %v5704
  %v5742 = vunpack.c.l.b16 %v5705
  %v5743 = vunpack.c.h.b16 %v5705
  %v5744 = vunpack.c.l.b16 %v5706
  %v5745 = vunpack.c.h.b16 %v5706
  %v5746 = vunpack.c.l.b16 %v5707
  %v5747 = vunpack.c.h.b16 %v5707
  %v5748 = vunpack.c.l.b16 %v5708
  %v5749 = vunpack.c.h.b16 %v5708
  %v5750 = vunpack.c.l.b16 %v5709
  %v5751 = vunpack.c.h.b16 %v5709
  %v5752 = vunpack.c.l.b16 %v5710
  %v5753 = vunpack.c.h.b16 %v5710
  %v5754 = vunpack.c.l.b16 %v5711
  %v5755 = vunpack.c.h.b16 %v5711
  %v5756 = vunpack.c.l.b16 %v5712
  %v5757 = vunpack.c.h.b16 %v5712
  %v5758 = vunpack.c.l.b16 %v5713
  %v5759 = vunpack.c.h.b16 %v5713
  %v5760 = vunpack.c.l.b16 %v5714
  %v5761 = vunpack.c.h.b16 %v5714
  %v5762 = vunpack.c.l.b16 %v5715
  %v5763 = vunpack.c.h.b16 %v5715
  %v5764 = vpack.c.b16 %v5736, %v5732
  %v5765 = vpack.c.b16 %v5737, %v5733
  %v5766 = vpack.c.b16 %v5738, %v5734
  %v5767 = vpack.c.b16 %v5739, %v5735
  %v5768 = vpack.c.b16 %v5744, %v5740
  %v5769 = vpack.c.b16 %v5745, %v5741
  %v5770 = vpack.c.b16 %v5746, %v5742
  %v5771 = vpack.c.b16 %v5747, %v5743
  %v5772 = vpack.c.b16 %v5752, %v5748
  %v5773 = vpack.c.b16 %v5753, %v5749
  %v5774 = vpack.c.b16 %v5754, %v5750
  %v5775 = vpack.c.b16 %v5755, %v5751
  %v5776 = vpack.c.b16 %v5760, %v5756
  %v5777 = vpack.c.b16 %v5761, %v5757
  %v5778 = vpack.c.b16 %v5762, %v5758
  %v5779 = vpack.c.b16 %v5763, %v5759
  %v5797 = vsel %vm1086, %v5698, 0
  %5799 = vmatprep.subr.bf16.mxu0 %v5765
  %5800 = vmatpush1.bf16.msra.mxu0 %v5764
  %5801 = vmatprep.subr.bf16.mxu0 %v5769
  %5802 = vmatpush1.bf16.msra.mxu0 %v5768
  %5803 = vmatprep.subr.bf16.mxu0 %v5773
  %5804 = vmatpush1.bf16.msra.mxu0 %v5772
  %5805 = vmatprep.subr.bf16.mxu0 %v5777
  %5806 = vmatpush1.bf16.msra.mxu0 %v5776
  %5807 = vmatprep.subr.bf16.mxu0 0
  %5808 = vmatpush1.bf16.msra.mxu0 0
  %5809 = vmatprep.subr.bf16.mxu0 0
  %5810 = vmatpush1.bf16.msra.mxu0 0
  %5811 = vmatprep.subr.bf16.mxu0 0
  %5812 = vmatpush1.bf16.msra.mxu0 0
  %5813 = vmatprep.subr.bf16.mxu0 0
  %5814 = vmatpush1.bf16.msra.mxu0 0
  %5815 = vmatprep.subr.bf16.mxu0 0
  %5816 = vmatpush1.bf16.msra.mxu0 0
  %5817 = vmatprep.subr.bf16.mxu0 0
  %5818 = vmatpush1.bf16.msra.mxu0 0
  %5819 = vmatprep.subr.bf16.mxu0 0
  %5820 = vmatpush1.bf16.msra.mxu0 0
  %5821 = vmatprep.subr.bf16.mxu0 0
  %5822 = vmatpush1.bf16.msra.mxu0 0
  %5823 = vmatprep.subr.bf16.mxu0 0
  %5824 = vmatpush1.bf16.msra.mxu0 0
  %5825 = vmatprep.subr.bf16.mxu0 0
  %5826 = vmatpush1.bf16.msra.mxu0 0
  %5827 = vmatprep.subr.bf16.mxu0 0
  %5828 = vmatpush1.bf16.msra.mxu0 0
  %5829 = vmatprep.subr.bf16.mxu0 0
  %5830 = vmatpush1.bf16.msra.mxu0 0
  %5831 = vmatprep.mubr.bf16.mxu0 0
  %5832 = vmatmul.mubr.bf16.gmra.mrb[0].mxu0 %v5797
  %v5833 = vpop.f32.mrb[0].mxu0
  %v5834 = vadd.f32 0.0, %v5833
  %v5835 = vpop.f32.mrb[0].mxu0
  %v5836 = vadd.f32 0.0, %v5835
  %v5837 = vpop.f32.mrb[0].mxu0
  %v5838 = vpop.f32.mrb[0].mxu0
  %5839 = vdwg.mxu0
  %5840 = vmatprep.subr.bf16.mxu0 %v5767
  %5841 = vmatpush1.bf16.msra.mxu0 %v5766
  %5842 = vmatprep.subr.bf16.mxu0 %v5771
  %5843 = vmatpush1.bf16.msra.mxu0 %v5770
  %5844 = vmatprep.subr.bf16.mxu0 %v5775
  %5845 = vmatpush1.bf16.msra.mxu0 %v5774
  %5846 = vmatprep.subr.bf16.mxu0 %v5779
  %5847 = vmatpush1.bf16.msra.mxu0 %v5778
  %5848 = vmatprep.subr.bf16.mxu0 0
  %5849 = vmatpush1.bf16.msra.mxu0 0
  %5850 = vmatprep.subr.bf16.mxu0 0
  %5851 = vmatpush1.bf16.msra.mxu0 0
  %5852 = vmatprep.subr.bf16.mxu0 0
  %5853 = vmatpush1.bf16.msra.mxu0 0
  %5854 = vmatprep.subr.bf16.mxu0 0
  %5855 = vmatpush1.bf16.msra.mxu0 0
  %5856 = vmatprep.subr.bf16.mxu0 0
  %5857 = vmatpush1.bf16.msra.mxu0 0
  %5858 = vmatprep.subr.bf16.mxu0 0
  %5859 = vmatpush1.bf16.msra.mxu0 0
  %5860 = vmatprep.subr.bf16.mxu0 0
  %5861 = vmatpush1.bf16.msra.mxu0 0
  %5862 = vmatprep.subr.bf16.mxu0 0
  %5863 = vmatpush1.bf16.msra.mxu0 0
  %5864 = vmatprep.subr.bf16.mxu0 0
  %5865 = vmatpush1.bf16.msra.mxu0 0
  %5866 = vmatprep.subr.bf16.mxu0 0
  %5867 = vmatpush1.bf16.msra.mxu0 0
  %5868 = vmatprep.subr.bf16.mxu0 0
  %5869 = vmatpush1.bf16.msra.mxu0 0
  %5870 = vmatprep.subr.bf16.mxu0 0
  %5871 = vmatpush1.bf16.msra.mxu0 0
  %5872 = vmatprep.mubr.bf16.mxu0 0
  %5873 = vmatmul.mubr.bf16.gmra.mrb[0].mxu0 %v5797
  %v5874 = vpop.f32.mrb[0].mxu0
  %v5875 = vadd.f32 0.0, %v5874
  %v5876 = vpop.f32.mrb[0].mxu0
  %v5877 = vadd.f32 0.0, %v5876
  %v5878 = vpop.f32.mrb[0].mxu0
  %v5879 = vpop.f32.mrb[0].mxu0
  %5880 = vdwg.mxu0
  %v5881 = vadd.f32 %v5694, %v5834
  %v5882 = vadd.f32 %v5695, %v5836
  %v5883 = vadd.f32 %v5696, %v5875
  %v5884 = vadd.f32 %v5697, %v5877
  %v5885 = vld [vmem:[#allocation2 + $0x50] sm:$0xf]
  %s5886 = scalar_lea.vmem %s3, 2560
  %v5887 = vld [vmem:[%s5886] sm:$0xff]
  %v5888 = vld [vmem:[%s5886 + $0x8] sm:$0xff]
  %v5889 = vld [vmem:[%s5886 + $0x10] sm:$0xff]
  %v5890 = vld [vmem:[%s5886 + $0x18] sm:$0xff]
  %v5891 = vld [vmem:[%s5886 + $0x20] sm:$0xff]
  %v5892 = vld [vmem:[%s5886 + $0x28] sm:$0xff]
  %v5893 = vld [vmem:[%s5886 + $0x30] sm:$0xff]
  %v5894 = vld [vmem:[%s5886 + $0x38] sm:$0xff]
  %v5895 = vld [vmem:[%s5886 + $0x40] sm:$0xff]
  %v5896 = vld [vmem:[%s5886 + $0x48] sm:$0xff]
  %v5897 = vld [vmem:[%s5886 + $0x50] sm:$0xff]
  %v5898 = vld [vmem:[%s5886 + $0x58] sm:$0xff]
  %v5899 = vld [vmem:[%s5886 + $0x60] sm:$0xff]
  %v5900 = vld [vmem:[%s5886 + $0x68] sm:$0xff]
  %v5901 = vld [vmem:[%s5886 + $0x70] sm:$0xff]
  %v5902 = vld [vmem:[%s5886 + $0x78] sm:$0xff]
  %v5919 = vunpack.c.l.b16 %v5887
  %v5920 = vunpack.c.h.b16 %v5887
  %v5921 = vunpack.c.l.b16 %v5888
  %v5922 = vunpack.c.h.b16 %v5888
  %v5923 = vunpack.c.l.b16 %v5889
  %v5924 = vunpack.c.h.b16 %v5889
  %v5925 = vunpack.c.l.b16 %v5890
  %v5926 = vunpack.c.h.b16 %v5890
  %v5927 = vunpack.c.l.b16 %v5891
  %v5928 = vunpack.c.h.b16 %v5891
  %v5929 = vunpack.c.l.b16 %v5892
  %v5930 = vunpack.c.h.b16 %v5892
  %v5931 = vunpack.c.l.b16 %v5893
  %v5932 = vunpack.c.h.b16 %v5893
  %v5933 = vunpack.c.l.b16 %v5894
  %v5934 = vunpack.c.h.b16 %v5894
  %v5935 = vunpack.c.l.b16 %v5895
  %v5936 = vunpack.c.h.b16 %v5895
  %v5937 = vunpack.c.l.b16 %v5896
  %v5938 = vunpack.c.h.b16 %v5896
  %v5939 = vunpack.c.l.b16 %v5897
  %v5940 = vunpack.c.h.b16 %v5897
  %v5941 = vunpack.c.l.b16 %v5898
  %v5942 = vunpack.c.h.b16 %v5898
  %v5943 = vunpack.c.l.b16 %v5899
  %v5944 = vunpack.c.h.b16 %v5899
  %v5945 = vunpack.c.l.b16 %v5900
  %v5946 = vunpack.c.h.b16 %v5900
  %v5947 = vunpack.c.l.b16 %v5901
  %v5948 = vunpack.c.h.b16 %v5901
  %v5949 = vunpack.c.l.b16 %v5902
  %v5950 = vunpack.c.h.b16 %v5902
  %v5951 = vpack.c.b16 %v5923, %v5919
  %v5952 = vpack.c.b16 %v5924, %v5920
  %v5953 = vpack.c.b16 %v5925, %v5921
  %v5954 = vpack.c.b16 %v5926, %v5922
  %v5955 = vpack.c.b16 %v5931, %v5927
  %v5956 = vpack.c.b16 %v5932, %v5928
  %v5957 = vpack.c.b16 %v5933, %v5929
  %v5958 = vpack.c.b16 %v5934, %v5930
  %v5959 = vpack.c.b16 %v5939, %v5935
  %v5960 = vpack.c.b16 %v5940, %v5936
  %v5961 = vpack.c.b16 %v5941, %v5937
  %v5962 = vpack.c.b16 %v5942, %v5938
  %v5963 = vpack.c.b16 %v5947, %v5943
  %v5964 = vpack.c.b16 %v5948, %v5944
  %v5965 = vpack.c.b16 %v5949, %v5945
  %v5966 = vpack.c.b16 %v5950, %v5946
  %v5984 = vsel %vm1086, %v5885, 0
  %5986 = vmatprep.subr.bf16.mxu0 %v5952
  %5987 = vmatpush1.bf16.msra.mxu0 %v5951
  %5988 = vmatprep.subr.bf16.mxu0 %v5956
  %5989 = vmatpush1.bf16.msra.mxu0 %v5955
  %5990 = vmatprep.subr.bf16.mxu0 %v5960
  %5991 = vmatpush1.bf16.msra.mxu0 %v5959
  %5992 = vmatprep.subr.bf16.mxu0 %v5964
  %5993 = vmatpush1.bf16.msra.mxu0 %v5963
  %5994 = vmatprep.subr.bf16.mxu0 0
  %5995 = vmatpush1.bf16.msra.mxu0 0
  %5996 = vmatprep.subr.bf16.mxu0 0
  %5997 = vmatpush1.bf16.msra.mxu0 0
  %5998 = vmatprep.subr.bf16.mxu0 0
  %5999 = vmatpush1.bf16.msra.mxu0 0
  %6000 = vmatprep.subr.bf16.mxu0 0
  %6001 = vmatpush1.bf16.msra.mxu0 0
  %6002 = vmatprep.subr.bf16.mxu0 0
  %6003 = vmatpush1.bf16.msra.mxu0 0
  %6004 = vmatprep.subr.bf16.mxu0 0
  %6005 = vmatpush1.bf16.msra.mxu0 0
  %6006 = vmatprep.subr.bf16.mxu0 0
  %6007 = vmatpush1.bf16.msra.mxu0 0
  %6008 = vmatprep.subr.bf16.mxu0 0
  %6009 = vmatpush1.bf16.msra.mxu0 0
  %6010 = vmatprep.subr.bf16.mxu0 0
  %6011 = vmatpush1.bf16.msra.mxu0 0
  %6012 = vmatprep.subr.bf16.mxu0 0
  %6013 = vmatpush1.bf16.msra.mxu0 0
  %6014 = vmatprep.subr.bf16.mxu0 0
  %6015 = vmatpush1.bf16.msra.mxu0 0
  %6016 = vmatprep.subr.bf16.mxu0 0
  %6017 = vmatpush1.bf16.msra.mxu0 0
  %6018 = vmatprep.mubr.bf16.mxu0 0
  %6019 = vmatmul.mubr.bf16.gmra.mrb[0].mxu0 %v5984
  %v6020 = vpop.f32.mrb[0].mxu0
  %v6021 = vadd.f32 0.0, %v6020
  %v6022 = vpop.f32.mrb[0].mxu0
  %v6023 = vadd.f32 0.0, %v6022
  %v6024 = vpop.f32.mrb[0].mxu0
  %v6025 = vpop.f32.mrb[0].mxu0
  %6026 = vdwg.mxu0
  %6027 = vmatprep.subr.bf16.mxu0 %v5954
  %6028 = vmatpush1.bf16.msra.mxu0 %v5953
  %6029 = vmatprep.subr.bf16.mxu0 %v5958
  %6030 = vmatpush1.bf16.msra.mxu0 %v5957
  %6031 = vmatprep.subr.bf16.mxu0 %v5962
  %6032 = vmatpush1.bf16.msra.mxu0 %v5961
  %6033 = vmatprep.subr.bf16.mxu0 %v5966
  %6034 = vmatpush1.bf16.msra.mxu0 %v5965
  %6035 = vmatprep.subr.bf16.mxu0 0
  %6036 = vmatpush1.bf16.msra.mxu0 0
  %6037 = vmatprep.subr.bf16.mxu0 0
  %6038 = vmatpush1.bf16.msra.mxu0 0
  %6039 = vmatprep.subr.bf16.mxu0 0
  %6040 = vmatpush1.bf16.msra.mxu0 0
  %6041 = vmatprep.subr.bf16.mxu0 0
  %6042 = vmatpush1.bf16.msra.mxu0 0
  %6043 = vmatprep.subr.bf16.mxu0 0
  %6044 = vmatpush1.bf16.msra.mxu0 0
  %6045 = vmatprep.subr.bf16.mxu0 0
  %6046 = vmatpush1.bf16.msra.mxu0 0
  %6047 = vmatprep.subr.bf16.mxu0 0
  %6048 = vmatpush1.bf16.msra.mxu0 0
  %6049 = vmatprep.subr.bf16.mxu0 0
  %6050 = vmatpush1.bf16.msra.mxu0 0
  %6051 = vmatprep.subr.bf16.mxu0 0
  %6052 = vmatpush1.bf16.msra.mxu0 0
  %6053 = vmatprep.subr.bf16.mxu0 0
  %6054 = vmatpush1.bf16.msra.mxu0 0
  %6055 = vmatprep.subr.bf16.mxu0 0
  %6056 = vmatpush1.bf16.msra.mxu0 0
  %6057 = vmatprep.subr.bf16.mxu0 0
  %6058 = vmatpush1.bf16.msra.mxu0 0
  %6059 = vmatprep.mubr.bf16.mxu0 0
  %6060 = vmatmul.mubr.bf16.gmra.mrb[0].mxu0 %v5984
  %v6061 = vpop.f32.mrb[0].mxu0
  %v6062 = vadd.f32 0.0, %v6061
  %v6063 = vpop.f32.mrb[0].mxu0
  %v6064 = vadd.f32 0.0, %v6063
  %v6065 = vpop.f32.mrb[0].mxu0
  %v6066 = vpop.f32.mrb[0].mxu0
  %6067 = vdwg.mxu0
  %v6068 = vadd.f32 %v5881, %v6021
  %v6069 = vadd.f32 %v5882, %v6023
  %v6070 = vadd.f32 %v5883, %v6062
  %v6071 = vadd.f32 %v5884, %v6064
  %v6072 = vld [vmem:[#allocation2 + $0x54] sm:$0xf]
  %s6073 = scalar_lea.vmem %s3, 2688
  %v6074 = vld [vmem:[%s6073] sm:$0xff]
  %v6075 = vld [vmem:[%s6073 + $0x8] sm:$0xff]
  %v6076 = vld [vmem:[%s6073 + $0x10] sm:$0xff]
  %v6077 = vld [vmem:[%s6073 + $0x18] sm:$0xff]
  %v6078 = vld [vmem:[%s6073 + $0x20] sm:$0xff]
  %v6079 = vld [vmem:[%s6073 + $0x28] sm:$0xff]
  %v6080 = vld [vmem:[%s6073 + $0x30] sm:$0xff]
  %v6081 = vld [vmem:[%s6073 + $0x38] sm:$0xff]
  %v6082 = vld [vmem:[%s6073 + $0x40] sm:$0xff]
  %v6083 = vld [vmem:[%s6073 + $0x48] sm:$0xff]
  %v6084 = vld [vmem:[%s6073 + $0x50] sm:$0xff]
  %v6085 = vld [vmem:[%s6073 + $0x58] sm:$0xff]
  %v6086 = vld [vmem:[%s6073 + $0x60] sm:$0xff]
  %v6087 = vld [vmem:[%s6073 + $0x68] sm:$0xff]
  %v6088 = vld [vmem:[%s6073 + $0x70] sm:$0xff]
  %v6089 = vld [vmem:[%s6073 + $0x78] sm:$0xff]
  %v6106 = vunpack.c.l.b16 %v6074
  %v6107 = vunpack.c.h.b16 %v6074
  %v6108 = vunpack.c.l.b16 %v6075
  %v6109 = vunpack.c.h.b16 %v6075
  %v6110 = vunpack.c.l.b16 %v6076
  %v6111 = vunpack.c.h.b16 %v6076
  %v6112 = vunpack.c.l.b16 %v6077
  %v6113 = vunpack.c.h.b16 %v6077
  %v6114 = vunpack.c.l.b16 %v6078
  %v6115 = vunpack.c.h.b16 %v6078
  %v6116 = vunpack.c.l.b16 %v6079
  %v6117 = vunpack.c.h.b16 %v6079
  %v6118 = vunpack.c.l.b16 %v6080
  %v6119 = vunpack.c.h.b16 %v6080
  %v6120 = vunpack.c.l.b16 %v6081
  %v6121 = vunpack.c.h.b16 %v6081
  %v6122 = vunpack.c.l.b16 %v6082
  %v6123 = vunpack.c.h.b16 %v6082
  %v6124 = vunpack.c.l.b16 %v6083
  %v6125 = vunpack.c.h.b16 %v6083
  %v6126 = vunpack.c.l.b16 %v6084
  %v6127 = vunpack.c.h.b16 %v6084
  %v6128 = vunpack.c.l.b16 %v6085
  %v6129 = vunpack.c.h.b16 %v6085
  %v6130 = vunpack.c.l.b16 %v6086
  %v6131 = vunpack.c.h.b16 %v6086
  %v6132 = vunpack.c.l.b16 %v6087
  %v6133 = vunpack.c.h.b16 %v6087
  %v6134 = vunpack.c.l.b16 %v6088
  %v6135 = vunpack.c.h.b16 %v6088
  %v6136 = vunpack.c.l.b16 %v6089
  %v6137 = vunpack.c.h.b16 %v6089
  %v6138 = vpack.c.b16 %v6110, %v6106
  %v6139 = vpack.c.b16 %v6111, %v6107
  %v6140 = vpack.c.b16 %v6112, %v6108
  %v6141 = vpack.c.b16 %v6113, %v6109
  %v6142 = vpack.c.b16 %v6118, %v6114
  %v6143 = vpack.c.b16 %v6119, %v6115
  %v6144 = vpack.c.b16 %v6120, %v6116
  %v6145 = vpack.c.b16 %v6121, %v6117
  %v6146 = vpack.c.b16 %v6126, %v6122
  %v6147 = vpack.c.b16 %v6127, %v6123
  %v6148 = vpack.c.b16 %v6128, %v6124
  %v6149 = vpack.c.b16 %v6129, %v6125
  %v6150 = vpack.c.b16 %v6134, %v6130
  %v6151 = vpack.c.b16 %v6135, %v6131
  %v6152 = vpack.c.b16 %v6136, %v6132
  %v6153 = vpack.c.b16 %v6137, %v6133
  %v6171 = vsel %vm1086, %v6072, 0
  %6173 = vmatprep.subr.bf16.mxu0 %v6139
  %6174 = vmatpush1.bf16.msra.mxu0 %v6138
  %6175 = vmatprep.subr.bf16.mxu0 %v6143
  %6176 = vmatpush1.bf16.msra.mxu0 %v6142
  %6177 = vmatprep.subr.bf16.mxu0 %v6147
  %6178 = vmatpush1.bf16.msra.mxu0 %v6146
  %6179 = vmatprep.subr.bf16.mxu0 %v6151
  %6180 = vmatpush1.bf16.msra.mxu0 %v6150
  %6181 = vmatprep.subr.bf16.mxu0 0
  %6182 = vmatpush1.bf16.msra.mxu0 0
  %6183 = vmatprep.subr.bf16.mxu0 0
  %6184 = vmatpush1.bf16.msra.mxu0 0
  %6185 = vmatprep.subr.bf16.mxu0 0
  %6186 = vmatpush1.bf16.msra.mxu0 0
  %6187 = vmatprep.subr.bf16.mxu0 0
  %6188 = vmatpush1.bf16.msra.mxu0 0
  %6189 = vmatprep.subr.bf16.mxu0 0
  %6190 = vmatpush1.bf16.msra.mxu0 0
  %6191 = vmatprep.subr.bf16.mxu0 0
  %6192 = vmatpush1.bf16.msra.mxu0 0
  %6193 = vmatprep.subr.bf16.mxu0 0
  %6194 = vmatpush1.bf16.msra.mxu0 0
  %6195 = vmatprep.subr.bf16.mxu0 0
  %6196 = vmatpush1.bf16.msra.mxu0 0
  %6197 = vmatprep.subr.bf16.mxu0 0
  %6198 = vmatpush1.bf16.msra.mxu0 0
  %6199 = vmatprep.subr.bf16.mxu0 0
  %6200 = vmatpush1.bf16.msra.mxu0 0
  %6201 = vmatprep.subr.bf16.mxu0 0
  %6202 = vmatpush1.bf16.msra.mxu0 0
  %6203 = vmatprep.subr.bf16.mxu0 0
  %6204 = vmatpush1.bf16.msra.mxu0 0
  %6205 = vmatprep.mubr.bf16.mxu0 0
  %6206 = vmatmul.mubr.bf16.gmra.mrb[0].mxu0 %v6171
  %v6207 = vpop.f32.mrb[0].mxu0
  %v6208 = vadd.f32 0.0, %v6207
  %v6209 = vpop.f32.mrb[0].mxu0
  %v6210 = vadd.f32 0.0, %v6209
  %v6211 = vpop.f32.mrb[0].mxu0
  %v6212 = vpop.f32.mrb[0].mxu0
  %6213 = vdwg.mxu0
  %6214 = vmatprep.subr.bf16.mxu0 %v6141
  %6215 = vmatpush1.bf16.msra.mxu0 %v6140
  %6216 = vmatprep.subr.bf16.mxu0 %v6145
  %6217 = vmatpush1.bf16.msra.mxu0 %v6144
  %6218 = vmatprep.subr.bf16.mxu0 %v6149
  %6219 = vmatpush1.bf16.msra.mxu0 %v6148
  %6220 = vmatprep.subr.bf16.mxu0 %v6153
  %6221 = vmatpush1.bf16.msra.mxu0 %v6152
  %6222 = vmatprep.subr.bf16.mxu0 0
  %6223 = vmatpush1.bf16.msra.mxu0 0
  %6224 = vmatprep.subr.bf16.mxu0 0
  %6225 = vmatpush1.bf16.msra.mxu0 0
  %6226 = vmatprep.subr.bf16.mxu0 0
  %6227 = vmatpush1.bf16.msra.mxu0 0
  %6228 = vmatprep.subr.bf16.mxu0 0
  %6229 = vmatpush1.bf16.msra.mxu0 0
  %6230 = vmatprep.subr.bf16.mxu0 0
  %6231 = vmatpush1.bf16.msra.mxu0 0
  %6232 = vmatprep.subr.bf16.mxu0 0
  %6233 = vmatpush1.bf16.msra.mxu0 0
  %6234 = vmatprep.subr.bf16.mxu0 0
  %6235 = vmatpush1.bf16.msra.mxu0 0
  %6236 = vmatprep.subr.bf16.mxu0 0
  %6237 = vmatpush1.bf16.msra.mxu0 0
  %6238 = vmatprep.subr.bf16.mxu0 0
  %6239 = vmatpush1.bf16.msra.mxu0 0
  %6240 = vmatprep.subr.bf16.mxu0 0
  %6241 = vmatpush1.bf16.msra.mxu0 0
  %6242 = vmatprep.subr.bf16.mxu0 0
  %6243 = vmatpush1.bf16.msra.mxu0 0
  %6244 = vmatprep.subr.bf16.mxu0 0
  %6245 = vmatpush1.bf16.msra.mxu0 0
  %6246 = vmatprep.mubr.bf16.mxu0 0
  %6247 = vmatmul.mubr.bf16.gmra.mrb[0].mxu0 %v6171
  %v6248 = vpop.f32.mrb[0].mxu0
  %v6249 = vadd.f32 0.0, %v6248
  %v6250 = vpop.f32.mrb[0].mxu0
  %v6251 = vadd.f32 0.0, %v6250
  %v6252 = vpop.f32.mrb[0].mxu0
  %v6253 = vpop.f32.mrb[0].mxu0
  %6254 = vdwg.mxu0
  %v6255 = vadd.f32 %v6068, %v6208
  %v6256 = vadd.f32 %v6069, %v6210
  %v6257 = vadd.f32 %v6070, %v6249
  %v6258 = vadd.f32 %v6071, %v6251
  %v6259 = vld [vmem:[#allocation2 + $0x58] sm:$0xf]
  %s6260 = scalar_lea.vmem %s3, 2816
  %v6261 = vld [vmem:[%s6260] sm:$0xff]
  %v6262 = vld [vmem:[%s6260 + $0x8] sm:$0xff]
  %v6263 = vld [vmem:[%s6260 + $0x10] sm:$0xff]
  %v6264 = vld [vmem:[%s6260 + $0x18] sm:$0xff]
  %v6265 = vld [vmem:[%s6260 + $0x20] sm:$0xff]
  %v6266 = vld [vmem:[%s6260 + $0x28] sm:$0xff]
  %v6267 = vld [vmem:[%s6260 + $0x30] sm:$0xff]
  %v6268 = vld [vmem:[%s6260 + $0x38] sm:$0xff]
  %v6269 = vld [vmem:[%s6260 + $0x40] sm:$0xff]
  %v6270 = vld [vmem:[%s6260 + $0x48] sm:$0xff]
  %v6271 = vld [vmem:[%s6260 + $0x50] sm:$0xff]
  %v6272 = vld [vmem:[%s6260 + $0x58] sm:$0xff]
  %v6273 = vld [vmem:[%s6260 + $0x60] sm:$0xff]
  %v6274 = vld [vmem:[%s6260 + $0x68] sm:$0xff]
  %v6275 = vld [vmem:[%s6260 + $0x70] sm:$0xff]
  %v6276 = vld [vmem:[%s6260 + $0x78] sm:$0xff]
  %v6293 = vunpack.c.l.b16 %v6261
  %v6294 = vunpack.c.h.b16 %v6261
  %v6295 = vunpack.c.l.b16 %v6262
  %v6296 = vunpack.c.h.b16 %v6262
  %v6297 = vunpack.c.l.b16 %v6263
  %v6298 = vunpack.c.h.b16 %v6263
  %v6299 = vunpack.c.l.b16 %v6264
  %v6300 = vunpack.c.h.b16 %v6264
  %v6301 = vunpack.c.l.b16 %v6265
  %v6302 = vunpack.c.h.b16 %v6265
  %v6303 = vunpack.c.l.b16 %v6266
  %v6304 = vunpack.c.h.b16 %v6266
  %v6305 = vunpack.c.l.b16 %v6267
  %v6306 = vunpack.c.h.b16 %v6267
  %v6307 = vunpack.c.l.b16 %v6268
  %v6308 = vunpack.c.h.b16 %v6268
  %v6309 = vunpack.c.l.b16 %v6269
  %v6310 = vunpack.c.h.b16 %v6269
  %v6311 = vunpack.c.l.b16 %v6270
  %v6312 = vunpack.c.h.b16 %v6270
  %v6313 = vunpack.c.l.b16 %v6271
  %v6314 = vunpack.c.h.b16 %v6271
  %v6315 = vunpack.c.l.b16 %v6272
  %v6316 = vunpack.c.h.b16 %v6272
  %v6317 = vunpack.c.l.b16 %v6273
  %v6318 = vunpack.c.h.b16 %v6273
  %v6319 = vunpack.c.l.b16 %v6274
  %v6320 = vunpack.c.h.b16 %v6274
  %v6321 = vunpack.c.l.b16 %v6275
  %v6322 = vunpack.c.h.b16 %v6275
  %v6323 = vunpack.c.l.b16 %v6276
  %v6324 = vunpack.c.h.b16 %v6276
  %v6325 = vpack.c.b16 %v6297, %v6293
  %v6326 = vpack.c.b16 %v6298, %v6294
  %v6327 = vpack.c.b16 %v6299, %v6295
  %v6328 = vpack.c.b16 %v6300, %v6296
  %v6329 = vpack.c.b16 %v6305, %v6301
  %v6330 = vpack.c.b16 %v6306, %v6302
  %v6331 = vpack.c.b16 %v6307, %v6303
  %v6332 = vpack.c.b16 %v6308, %v6304
  %v6333 = vpack.c.b16 %v6313, %v6309
  %v6334 = vpack.c.b16 %v6314, %v6310
  %v6335 = vpack.c.b16 %v6315, %v6311
  %v6336 = vpack.c.b16 %v6316, %v6312
  %v6337 = vpack.c.b16 %v6321, %v6317
  %v6338 = vpack.c.b16 %v6322, %v6318
  %v6339 = vpack.c.b16 %v6323, %v6319
  %v6340 = vpack.c.b16 %v6324, %v6320
  %v6358 = vsel %vm1086, %v6259, 0
  %6360 = vmatprep.subr.bf16.mxu0 %v6326
  %6361 = vmatpush1.bf16.msra.mxu0 %v6325
  %6362 = vmatprep.subr.bf16.mxu0 %v6330
  %6363 = vmatpush1.bf16.msra.mxu0 %v6329
  %6364 = vmatprep.subr.bf16.mxu0 %v6334
  %6365 = vmatpush1.bf16.msra.mxu0 %v6333
  %6366 = vmatprep.subr.bf16.mxu0 %v6338
  %6367 = vmatpush1.bf16.msra.mxu0 %v6337
  %6368 = vmatprep.subr.bf16.mxu0 0
  %6369 = vmatpush1.bf16.msra.mxu0 0
  %6370 = vmatprep.subr.bf16.mxu0 0
  %6371 = vmatpush1.bf16.msra.mxu0 0
  %6372 = vmatprep.subr.bf16.mxu0 0
  %6373 = vmatpush1.bf16.msra.mxu0 0
  %6374 = vmatprep.subr.bf16.mxu0 0
  %6375 = vmatpush1.bf16.msra.mxu0 0
  %6376 = vmatprep.subr.bf16.mxu0 0
  %6377 = vmatpush1.bf16.msra.mxu0 0
  %6378 = vmatprep.subr.bf16.mxu0 0
  %6379 = vmatpush1.bf16.msra.mxu0 0
  %6380 = vmatprep.subr.bf16.mxu0 0
  %6381 = vmatpush1.bf16.msra.mxu0 0
  %6382 = vmatprep.subr.bf16.mxu0 0
  %6383 = vmatpush1.bf16.msra.mxu0 0
  %6384 = vmatprep.subr.bf16.mxu0 0
  %6385 = vmatpush1.bf16.msra.mxu0 0
  %6386 = vmatprep.subr.bf16.mxu0 0
  %6387 = vmatpush1.bf16.msra.mxu0 0
  %6388 = vmatprep.subr.bf16.mxu0 0
  %6389 = vmatpush1.bf16.msra.mxu0 0
  %6390 = vmatprep.subr.bf16.mxu0 0
  %6391 = vmatpush1.bf16.msra.mxu0 0
  %6392 = vmatprep.mubr.bf16.mxu0 0
  %6393 = vmatmul.mubr.bf16.gmra.mrb[0].mxu0 %v6358
  %v6394 = vpop.f32.mrb[0].mxu0
  %v6395 = vadd.f32 0.0, %v6394
  %v6396 = vpop.f32.mrb[0].mxu0
  %v6397 = vadd.f32 0.0, %v6396
  %v6398 = vpop.f32.mrb[0].mxu0
  %v6399 = vpop.f32.mrb[0].mxu0
  %6400 = vdwg.mxu0
  %6401 = vmatprep.subr.bf16.mxu0 %v6328
  %6402 = vmatpush1.bf16.msra.mxu0 %v6327
  %6403 = vmatprep.subr.bf16.mxu0 %v6332
  %6404 = vmatpush1.bf16.msra.mxu0 %v6331
  %6405 = vmatprep.subr.bf16.mxu0 %v6336
  %6406 = vmatpush1.bf16.msra.mxu0 %v6335
  %6407 = vmatprep.subr.bf16.mxu0 %v6340
  %6408 = vmatpush1.bf16.msra.mxu0 %v6339
  %6409 = vmatprep.subr.bf16.mxu0 0
  %6410 = vmatpush1.bf16.msra.mxu0 0
  %6411 = vmatprep.subr.bf16.mxu0 0
  %6412 = vmatpush1.bf16.msra.mxu0 0
  %6413 = vmatprep.subr.bf16.mxu0 0
  %6414 = vmatpush1.bf16.msra.mxu0 0
  %6415 = vmatprep.subr.bf16.mxu0 0
  %6416 = vmatpush1.bf16.msra.mxu0 0
  %6417 = vmatprep.subr.bf16.mxu0 0
  %6418 = vmatpush1.bf16.msra.mxu0 0
  %6419 = vmatprep.subr.bf16.mxu0 0
  %6420 = vmatpush1.bf16.msra.mxu0 0
  %6421 = vmatprep.subr.bf16.mxu0 0
  %6422 = vmatpush1.bf16.msra.mxu0 0
  %6423 = vmatprep.subr.bf16.mxu0 0
  %6424 = vmatpush1.bf16.msra.mxu0 0
  %6425 = vmatprep.subr.bf16.mxu0 0
  %6426 = vmatpush1.bf16.msra.mxu0 0
  %6427 = vmatprep.subr.bf16.mxu0 0
  %6428 = vmatpush1.bf16.msra.mxu0 0
  %6429 = vmatprep.subr.bf16.mxu0 0
  %6430 = vmatpush1.bf16.msra.mxu0 0
  %6431 = vmatprep.subr.bf16.mxu0 0
  %6432 = vmatpush1.bf16.msra.mxu0 0
  %6433 = vmatprep.mubr.bf16.mxu0 0
  %6434 = vmatmul.mubr.bf16.gmra.mrb[0].mxu0 %v6358
  %v6435 = vpop.f32.mrb[0].mxu0
  %v6436 = vadd.f32 0.0, %v6435
  %v6437 = vpop.f32.mrb[0].mxu0
  %v6438 = vadd.f32 0.0, %v6437
  %v6439 = vpop.f32.mrb[0].mxu0
  %v6440 = vpop.f32.mrb[0].mxu0
  %6441 = vdwg.mxu0
  %v6442 = vadd.f32 %v6255, %v6395
  %v6443 = vadd.f32 %v6256, %v6397
  %v6444 = vadd.f32 %v6257, %v6436
  %v6445 = vadd.f32 %v6258, %v6438
  %v6446 = vld [vmem:[#allocation2 + $0x5c] sm:$0xf]
  %s6447 = scalar_lea.vmem %s3, 2944
  %v6448 = vld [vmem:[%s6447] sm:$0xff]
  %v6449 = vld [vmem:[%s6447 + $0x8] sm:$0xff]
  %v6450 = vld [vmem:[%s6447 + $0x10] sm:$0xff]
  %v6451 = vld [vmem:[%s6447 + $0x18] sm:$0xff]
  %v6452 = vld [vmem:[%s6447 + $0x20] sm:$0xff]
  %v6453 = vld [vmem:[%s6447 + $0x28] sm:$0xff]
  %v6454 = vld [vmem:[%s6447 + $0x30] sm:$0xff]
  %v6455 = vld [vmem:[%s6447 + $0x38] sm:$0xff]
  %v6456 = vld [vmem:[%s6447 + $0x40] sm:$0xff]
  %v6457 = vld [vmem:[%s6447 + $0x48] sm:$0xff]
  %v6458 = vld [vmem:[%s6447 + $0x50] sm:$0xff]
  %v6459 = vld [vmem:[%s6447 + $0x58] sm:$0xff]
  %v6460 = vld [vmem:[%s6447 + $0x60] sm:$0xff]
  %v6461 = vld [vmem:[%s6447 + $0x68] sm:$0xff]
  %v6462 = vld [vmem:[%s6447 + $0x70] sm:$0xff]
  %v6463 = vld [vmem:[%s6447 + $0x78] sm:$0xff]
  %v6480 = vunpack.c.l.b16 %v6448
  %v6481 = vunpack.c.h.b16 %v6448
  %v6482 = vunpack.c.l.b16 %v6449
  %v6483 = vunpack.c.h.b16 %v6449
  %v6484 = vunpack.c.l.b16 %v6450
  %v6485 = vunpack.c.h.b16 %v6450
  %v6486 = vunpack.c.l.b16 %v6451
  %v6487 = vunpack.c.h.b16 %v6451
  %v6488 = vunpack.c.l.b16 %v6452
  %v6489 = vunpack.c.h.b16 %v6452
  %v6490 = vunpack.c.l.b16 %v6453
  %v6491 = vunpack.c.h.b16 %v6453
  %v6492 = vunpack.c.l.b16 %v6454
  %v6493 = vunpack.c.h.b16 %v6454
  %v6494 = vunpack.c.l.b16 %v6455
  %v6495 = vunpack.c.h.b16 %v6455
  %v6496 = vunpack.c.l.b16 %v6456
  %v6497 = vunpack.c.h.b16 %v6456
  %v6498 = vunpack.c.l.b16 %v6457
  %v6499 = vunpack.c.h.b16 %v6457
  %v6500 = vunpack.c.l.b16 %v6458
  %v6501 = vunpack.c.h.b16 %v6458
  %v6502 = vunpack.c.l.b16 %v6459
  %v6503 = vunpack.c.h.b16 %v6459
  %v6504 = vunpack.c.l.b16 %v6460
  %v6505 = vunpack.c.h.b16 %v6460
  %v6506 = vunpack.c.l.b16 %v6461
  %v6507 = vunpack.c.h.b16 %v6461
  %v6508 = vunpack.c.l.b16 %v6462
  %v6509 = vunpack.c.h.b16 %v6462
  %v6510 = vunpack.c.l.b16 %v6463
  %v6511 = vunpack.c.h.b16 %v6463
  %v6512 = vpack.c.b16 %v6484, %v6480
  %v6513 = vpack.c.b16 %v6485, %v6481
  %v6514 = vpack.c.b16 %v6486, %v6482
  %v6515 = vpack.c.b16 %v6487, %v6483
  %v6516 = vpack.c.b16 %v6492, %v6488
  %v6517 = vpack.c.b16 %v6493, %v6489
  %v6518 = vpack.c.b16 %v6494, %v6490
  %v6519 = vpack.c.b16 %v6495, %v6491
  %v6520 = vpack.c.b16 %v6500, %v6496
  %v6521 = vpack.c.b16 %v6501, %v6497
  %v6522 = vpack.c.b16 %v6502, %v6498
  %v6523 = vpack.c.b16 %v6503, %v6499
  %v6524 = vpack.c.b16 %v6508, %v6504
  %v6525 = vpack.c.b16 %v6509, %v6505
  %v6526 = vpack.c.b16 %v6510, %v6506
  %v6527 = vpack.c.b16 %v6511, %v6507
  %v6545 = vsel %vm1086, %v6446, 0
  %6547 = vmatprep.subr.bf16.mxu0 %v6513
  %6548 = vmatpush1.bf16.msra.mxu0 %v6512
  %6549 = vmatprep.subr.bf16.mxu0 %v6517
  %6550 = vmatpush1.bf16.msra.mxu0 %v6516
  %6551 = vmatprep.subr.bf16.mxu0 %v6521
  %6552 = vmatpush1.bf16.msra.mxu0 %v6520
  %6553 = vmatprep.subr.bf16.mxu0 %v6525
  %6554 = vmatpush1.bf16.msra.mxu0 %v6524
  %6555 = vmatprep.subr.bf16.mxu0 0
  %6556 = vmatpush1.bf16.msra.mxu0 0
  %6557 = vmatprep.subr.bf16.mxu0 0
  %6558 = vmatpush1.bf16.msra.mxu0 0
  %6559 = vmatprep.subr.bf16.mxu0 0
  %6560 = vmatpush1.bf16.msra.mxu0 0
  %6561 = vmatprep.subr.bf16.mxu0 0
  %6562 = vmatpush1.bf16.msra.mxu0 0
  %6563 = vmatprep.subr.bf16.mxu0 0
  %6564 = vmatpush1.bf16.msra.mxu0 0
  %6565 = vmatprep.subr.bf16.mxu0 0
  %6566 = vmatpush1.bf16.msra.mxu0 0
  %6567 = vmatprep.subr.bf16.mxu0 0
  %6568 = vmatpush1.bf16.msra.mxu0 0
  %6569 = vmatprep.subr.bf16.mxu0 0
  %6570 = vmatpush1.bf16.msra.mxu0 0
  %6571 = vmatprep.subr.bf16.mxu0 0
  %6572 = vmatpush1.bf16.msra.mxu0 0
  %6573 = vmatprep.subr.bf16.mxu0 0
  %6574 = vmatpush1.bf16.msra.mxu0 0
  %6575 = vmatprep.subr.bf16.mxu0 0
  %6576 = vmatpush1.bf16.msra.mxu0 0
  %6577 = vmatprep.subr.bf16.mxu0 0
  %6578 = vmatpush1.bf16.msra.mxu0 0
  %6579 = vmatprep.mubr.bf16.mxu0 0
  %6580 = vmatmul.mubr.bf16.gmra.mrb[0].mxu0 %v6545
  %v6581 = vpop.f32.mrb[0].mxu0
  %v6582 = vadd.f32 0.0, %v6581
  %v6583 = vpop.f32.mrb[0].mxu0
  %v6584 = vadd.f32 0.0, %v6583
  %v6585 = vpop.f32.mrb[0].mxu0
  %v6586 = vpop.f32.mrb[0].mxu0
  %6587 = vdwg.mxu0
  %6588 = vmatprep.subr.bf16.mxu0 %v6515
  %6589 = vmatpush1.bf16.msra.mxu0 %v6514
  %6590 = vmatprep.subr.bf16.mxu0 %v6519
  %6591 = vmatpush1.bf16.msra.mxu0 %v6518
  %6592 = vmatprep.subr.bf16.mxu0 %v6523
  %6593 = vmatpush1.bf16.msra.mxu0 %v6522
  %6594 = vmatprep.subr.bf16.mxu0 %v6527
  %6595 = vmatpush1.bf16.msra.mxu0 %v6526
  %6596 = vmatprep.subr.bf16.mxu0 0
  %6597 = vmatpush1.bf16.msra.mxu0 0
  %6598 = vmatprep.subr.bf16.mxu0 0
  %6599 = vmatpush1.bf16.msra.mxu0 0
  %6600 = vmatprep.subr.bf16.mxu0 0
  %6601 = vmatpush1.bf16.msra.mxu0 0
  %6602 = vmatprep.subr.bf16.mxu0 0
  %6603 = vmatpush1.bf16.msra.mxu0 0
  %6604 = vmatprep.subr.bf16.mxu0 0
  %6605 = vmatpush1.bf16.msra.mxu0 0
  %6606 = vmatprep.subr.bf16.mxu0 0
  %6607 = vmatpush1.bf16.msra.mxu0 0
  %6608 = vmatprep.subr.bf16.mxu0 0
  %6609 = vmatpush1.bf16.msra.mxu0 0
  %6610 = vmatprep.subr.bf16.mxu0 0
  %6611 = vmatpush1.bf16.msra.mxu0 0
  %6612 = vmatprep.subr.bf16.mxu0 0
  %6613 = vmatpush1.bf16.msra.mxu0 0
  %6614 = vmatprep.subr.bf16.mxu0 0
  %6615 = vmatpush1.bf16.msra.mxu0 0
  %6616 = vmatprep.subr.bf16.mxu0 0
  %6617 = vmatpush1.bf16.msra.mxu0 0
  %6618 = vmatprep.subr.bf16.mxu0 0
  %6619 = vmatpush1.bf16.msra.mxu0 0
  %6620 = vmatprep.mubr.bf16.mxu0 0
  %6621 = vmatmul.mubr.bf16.gmra.mrb[0].mxu0 %v6545
  %v6622 = vpop.f32.mrb[0].mxu0
  %v6623 = vadd.f32 0.0, %v6622
  %v6624 = vpop.f32.mrb[0].mxu0
  %v6625 = vadd.f32 0.0, %v6624
  %v6626 = vpop.f32.mrb[0].mxu0
  %v6627 = vpop.f32.mrb[0].mxu0
  %6628 = vdwg.mxu0
  %v6629 = vadd.f32 %v6442, %v6582
  %v6630 = vadd.f32 %v6443, %v6584
  %v6631 = vadd.f32 %v6444, %v6623
  %v6632 = vadd.f32 %v6445, %v6625
  %v6633 = vld [vmem:[#allocation2 + $0x60] sm:$0xf]
  %s6634 = scalar_lea.vmem %s3, 3072
  %v6635 = vld [vmem:[%s6634] sm:$0xff]
  %v6636 = vld [vmem:[%s6634 + $0x8] sm:$0xff]
  %v6637 = vld [vmem:[%s6634 + $0x10] sm:$0xff]
  %v6638 = vld [vmem:[%s6634 + $0x18] sm:$0xff]
  %v6639 = vld [vmem:[%s6634 + $0x20] sm:$0xff]
  %v6640 = vld [vmem:[%s6634 + $0x28] sm:$0xff]
  %v6641 = vld [vmem:[%s6634 + $0x30] sm:$0xff]
  %v6642 = vld [vmem:[%s6634 + $0x38] sm:$0xff]
  %v6643 = vld [vmem:[%s6634 + $0x40] sm:$0xff]
  %v6644 = vld [vmem:[%s6634 + $0x48] sm:$0xff]
  %v6645 = vld [vmem:[%s6634 + $0x50] sm:$0xff]
  %v6646 = vld [vmem:[%s6634 + $0x58] sm:$0xff]
  %v6647 = vld [vmem:[%s6634 + $0x60] sm:$0xff]
  %v6648 = vld [vmem:[%s6634 + $0x68] sm:$0xff]
  %v6649 = vld [vmem:[%s6634 + $0x70] sm:$0xff]
  %v6650 = vld [vmem:[%s6634 + $0x78] sm:$0xff]
  %v6667 = vunpack.c.l.b16 %v6635
  %v6668 = vunpack.c.h.b16 %v6635
  %v6669 = vunpack.c.l.b16 %v6636
  %v6670 = vunpack.c.h.b16 %v6636
  %v6671 = vunpack.c.l.b16 %v6637
  %v6672 = vunpack.c.h.b16 %v6637
  %v6673 = vunpack.c.l.b16 %v6638
  %v6674 = vunpack.c.h.b16 %v6638
  %v6675 = vunpack.c.l.b16 %v6639
  %v6676 = vunpack.c.h.b16 %v6639
  %v6677 = vunpack.c.l.b16 %v6640
  %v6678 = vunpack.c.h.b16 %v6640
  %v6679 = vunpack.c.l.b16 %v6641
  %v6680 = vunpack.c.h.b16 %v6641
  %v6681 = vunpack.c.l.b16 %v6642
  %v6682 = vunpack.c.h.b16 %v6642
  %v6683 = vunpack.c.l.b16 %v6643
  %v6684 = vunpack.c.h.b16 %v6643
  %v6685 = vunpack.c.l.b16 %v6644
  %v6686 = vunpack.c.h.b16 %v6644
  %v6687 = vunpack.c.l.b16 %v6645
  %v6688 = vunpack.c.h.b16 %v6645
  %v6689 = vunpack.c.l.b16 %v6646
  %v6690 = vunpack.c.h.b16 %v6646
  %v6691 = vunpack.c.l.b16 %v6647
  %v6692 = vunpack.c.h.b16 %v6647
  %v6693 = vunpack.c.l.b16 %v6648
  %v6694 = vunpack.c.h.b16 %v6648
  %v6695 = vunpack.c.l.b16 %v6649
  %v6696 = vunpack.c.h.b16 %v6649
  %v6697 = vunpack.c.l.b16 %v6650
  %v6698 = vunpack.c.h.b16 %v6650
  %v6699 = vpack.c.b16 %v6671, %v6667
  %v6700 = vpack.c.b16 %v6672, %v6668
  %v6701 = vpack.c.b16 %v6673, %v6669
  %v6702 = vpack.c.b16 %v6674, %v6670
  %v6703 = vpack.c.b16 %v6679, %v6675
  %v6704 = vpack.c.b16 %v6680, %v6676
  %v6705 = vpack.c.b16 %v6681, %v6677
  %v6706 = vpack.c.b16 %v6682, %v6678
  %v6707 = vpack.c.b16 %v6687, %v6683
  %v6708 = vpack.c.b16 %v6688, %v6684
  %v6709 = vpack.c.b16 %v6689, %v6685
  %v6710 = vpack.c.b16 %v6690, %v6686
  %v6711 = vpack.c.b16 %v6695, %v6691
  %v6712 = vpack.c.b16 %v6696, %v6692
  %v6713 = vpack.c.b16 %v6697, %v6693
  %v6714 = vpack.c.b16 %v6698, %v6694
  %v6732 = vsel %vm1086, %v6633, 0
  %6734 = vmatprep.subr.bf16.mxu0 %v6700
  %6735 = vmatpush1.bf16.msra.mxu0 %v6699
  %6736 = vmatprep.subr.bf16.mxu0 %v6704
  %6737 = vmatpush1.bf16.msra.mxu0 %v6703
  %6738 = vmatprep.subr.bf16.mxu0 %v6708
  %6739 = vmatpush1.bf16.msra.mxu0 %v6707
  %6740 = vmatprep.subr.bf16.mxu0 %v6712
  %6741 = vmatpush1.bf16.msra.mxu0 %v6711
  %6742 = vmatprep.subr.bf16.mxu0 0
  %6743 = vmatpush1.bf16.msra.mxu0 0
  %6744 = vmatprep.subr.bf16.mxu0 0
  %6745 = vmatpush1.bf16.msra.mxu0 0
  %6746 = vmatprep.subr.bf16.mxu0 0
  %6747 = vmatpush1.bf16.msra.mxu0 0
  %6748 = vmatprep.subr.bf16.mxu0 0
  %6749 = vmatpush1.bf16.msra.mxu0 0
  %6750 = vmatprep.subr.bf16.mxu0 0
  %6751 = vmatpush1.bf16.msra.mxu0 0
  %6752 = vmatprep.subr.bf16.mxu0 0
  %6753 = vmatpush1.bf16.msra.mxu0 0
  %6754 = vmatprep.subr.bf16.mxu0 0
  %6755 = vmatpush1.bf16.msra.mxu0 0
  %6756 = vmatprep.subr.bf16.mxu0 0
  %6757 = vmatpush1.bf16.msra.mxu0 0
  %6758 = vmatprep.subr.bf16.mxu0 0
  %6759 = vmatpush1.bf16.msra.mxu0 0
  %6760 = vmatprep.subr.bf16.mxu0 0
  %6761 = vmatpush1.bf16.msra.mxu0 0
  %6762 = vmatprep.subr.bf16.mxu0 0
  %6763 = vmatpush1.bf16.msra.mxu0 0
  %6764 = vmatprep.subr.bf16.mxu0 0
  %6765 = vmatpush1.bf16.msra.mxu0 0
  %6766 = vmatprep.mubr.bf16.mxu0 0
  %6767 = vmatmul.mubr.bf16.gmra.mrb[0].mxu0 %v6732
  %v6768 = vpop.f32.mrb[0].mxu0
  %v6769 = vadd.f32 0.0, %v6768
  %v6770 = vpop.f32.mrb[0].mxu0
  %v6771 = vadd.f32 0.0, %v6770
  %v6772 = vpop.f32.mrb[0].mxu0
  %v6773 = vpop.f32.mrb[0].mxu0
  %6774 = vdwg.mxu0
  %6775 = vmatprep.subr.bf16.mxu0 %v6702
  %6776 = vmatpush1.bf16.msra.mxu0 %v6701
  %6777 = vmatprep.subr.bf16.mxu0 %v6706
  %6778 = vmatpush1.bf16.msra.mxu0 %v6705
  %6779 = vmatprep.subr.bf16.mxu0 %v6710
  %6780 = vmatpush1.bf16.msra.mxu0 %v6709
  %6781 = vmatprep.subr.bf16.mxu0 %v6714
  %6782 = vmatpush1.bf16.msra.mxu0 %v6713
  %6783 = vmatprep.subr.bf16.mxu0 0
  %6784 = vmatpush1.bf16.msra.mxu0 0
  %6785 = vmatprep.subr.bf16.mxu0 0
  %6786 = vmatpush1.bf16.msra.mxu0 0
  %6787 = vmatprep.subr.bf16.mxu0 0
  %6788 = vmatpush1.bf16.msra.mxu0 0
  %6789 = vmatprep.subr.bf16.mxu0 0
  %6790 = vmatpush1.bf16.msra.mxu0 0
  %6791 = vmatprep.subr.bf16.mxu0 0
  %6792 = vmatpush1.bf16.msra.mxu0 0
  %6793 = vmatprep.subr.bf16.mxu0 0
  %6794 = vmatpush1.bf16.msra.mxu0 0
  %6795 = vmatprep.subr.bf16.mxu0 0
  %6796 = vmatpush1.bf16.msra.mxu0 0
  %6797 = vmatprep.subr.bf16.mxu0 0
  %6798 = vmatpush1.bf16.msra.mxu0 0
  %6799 = vmatprep.subr.bf16.mxu0 0
  %6800 = vmatpush1.bf16.msra.mxu0 0
  %6801 = vmatprep.subr.bf16.mxu0 0
  %6802 = vmatpush1.bf16.msra.mxu0 0
  %6803 = vmatprep.subr.bf16.mxu0 0
  %6804 = vmatpush1.bf16.msra.mxu0 0
  %6805 = vmatprep.subr.bf16.mxu0 0
  %6806 = vmatpush1.bf16.msra.mxu0 0
  %6807 = vmatprep.mubr.bf16.mxu0 0
  %6808 = vmatmul.mubr.bf16.gmra.mrb[0].mxu0 %v6732
  %v6809 = vpop.f32.mrb[0].mxu0
  %v6810 = vadd.f32 0.0, %v6809
  %v6811 = vpop.f32.mrb[0].mxu0
  %v6812 = vadd.f32 0.0, %v6811
  %v6813 = vpop.f32.mrb[0].mxu0
  %v6814 = vpop.f32.mrb[0].mxu0
  %6815 = vdwg.mxu0
  %v6816 = vadd.f32 %v6629, %v6769
  %v6817 = vadd.f32 %v6630, %v6771
  %v6818 = vadd.f32 %v6631, %v6810
  %v6819 = vadd.f32 %v6632, %v6812
  %v6820 = vld [vmem:[#allocation2 + $0x64] sm:$0xf]
  %s6821 = scalar_lea.vmem %s3, 3200
  %v6822 = vld [vmem:[%s6821] sm:$0xff]
  %v6823 = vld [vmem:[%s6821 + $0x8] sm:$0xff]
  %v6824 = vld [vmem:[%s6821 + $0x10] sm:$0xff]
  %v6825 = vld [vmem:[%s6821 + $0x18] sm:$0xff]
  %v6826 = vld [vmem:[%s6821 + $0x20] sm:$0xff]
  %v6827 = vld [vmem:[%s6821 + $0x28] sm:$0xff]
  %v6828 = vld [vmem:[%s6821 + $0x30] sm:$0xff]
  %v6829 = vld [vmem:[%s6821 + $0x38] sm:$0xff]
  %v6830 = vld [vmem:[%s6821 + $0x40] sm:$0xff]
  %v6831 = vld [vmem:[%s6821 + $0x48] sm:$0xff]
  %v6832 = vld [vmem:[%s6821 + $0x50] sm:$0xff]
  %v6833 = vld [vmem:[%s6821 + $0x58] sm:$0xff]
  %v6834 = vld [vmem:[%s6821 + $0x60] sm:$0xff]
  %v6835 = vld [vmem:[%s6821 + $0x68] sm:$0xff]
  %v6836 = vld [vmem:[%s6821 + $0x70] sm:$0xff]
  %v6837 = vld [vmem:[%s6821 + $0x78] sm:$0xff]
  %v6854 = vunpack.c.l.b16 %v6822
  %v6855 = vunpack.c.h.b16 %v6822
  %v6856 = vunpack.c.l.b16 %v6823
  %v6857 = vunpack.c.h.b16 %v6823
  %v6858 = vunpack.c.l.b16 %v6824
  %v6859 = vunpack.c.h.b16 %v6824
  %v6860 = vunpack.c.l.b16 %v6825
  %v6861 = vunpack.c.h.b16 %v6825
  %v6862 = vunpack.c.l.b16 %v6826
  %v6863 = vunpack.c.h.b16 %v6826
  %v6864 = vunpack.c.l.b16 %v6827
  %v6865 = vunpack.c.h.b16 %v6827
  %v6866 = vunpack.c.l.b16 %v6828
  %v6867 = vunpack.c.h.b16 %v6828
  %v6868 = vunpack.c.l.b16 %v6829
  %v6869 = vunpack.c.h.b16 %v6829
  %v6870 = vunpack.c.l.b16 %v6830
  %v6871 = vunpack.c.h.b16 %v6830
  %v6872 = vunpack.c.l.b16 %v6831
  %v6873 = vunpack.c.h.b16 %v6831
  %v6874 = vunpack.c.l.b16 %v6832
  %v6875 = vunpack.c.h.b16 %v6832
  %v6876 = vunpack.c.l.b16 %v6833
  %v6877 = vunpack.c.h.b16 %v6833
  %v6878 = vunpack.c.l.b16 %v6834
  %v6879 = vunpack.c.h.b16 %v6834
  %v6880 = vunpack.c.l.b16 %v6835
  %v6881 = vunpack.c.h.b16 %v6835
  %v6882 = vunpack.c.l.b16 %v6836
  %v6883 = vunpack.c.h.b16 %v6836
  %v6884 = vunpack.c.l.b16 %v6837
  %v6885 = vunpack.c.h.b16 %v6837
  %v6886 = vpack.c.b16 %v6858, %v6854
  %v6887 = vpack.c.b16 %v6859, %v6855
  %v6888 = vpack.c.b16 %v6860, %v6856
  %v6889 = vpack.c.b16 %v6861, %v6857
  %v6890 = vpack.c.b16 %v6866, %v6862
  %v6891 = vpack.c.b16 %v6867, %v6863
  %v6892 = vpack.c.b16 %v6868, %v6864
  %v6893 = vpack.c.b16 %v6869, %v6865
  %v6894 = vpack.c.b16 %v6874, %v6870
  %v6895 = vpack.c.b16 %v6875, %v6871
  %v6896 = vpack.c.b16 %v6876, %v6872
  %v6897 = vpack.c.b16 %v6877, %v6873
  %v6898 = vpack.c.b16 %v6882, %v6878
  %v6899 = vpack.c.b16 %v6883, %v6879
  %v6900 = vpack.c.b16 %v6884, %v6880
  %v6901 = vpack.c.b16 %v6885, %v6881
  %v6919 = vsel %vm1086, %v6820, 0
  %6921 = vmatprep.subr.bf16.mxu0 %v6887
  %6922 = vmatpush1.bf16.msra.mxu0 %v6886
  %6923 = vmatprep.subr.bf16.mxu0 %v6891
  %6924 = vmatpush1.bf16.msra.mxu0 %v6890
  %6925 = vmatprep.subr.bf16.mxu0 %v6895
  %6926 = vmatpush1.bf16.msra.mxu0 %v6894
  %6927 = vmatprep.subr.bf16.mxu0 %v6899
  %6928 = vmatpush1.bf16.msra.mxu0 %v6898
  %6929 = vmatprep.subr.bf16.mxu0 0
  %6930 = vmatpush1.bf16.msra.mxu0 0
  %6931 = vmatprep.subr.bf16.mxu0 0
  %6932 = vmatpush1.bf16.msra.mxu0 0
  %6933 = vmatprep.subr.bf16.mxu0 0
  %6934 = vmatpush1.bf16.msra.mxu0 0
  %6935 = vmatprep.subr.bf16.mxu0 0
  %6936 = vmatpush1.bf16.msra.mxu0 0
  %6937 = vmatprep.subr.bf16.mxu0 0
  %6938 = vmatpush1.bf16.msra.mxu0 0
  %6939 = vmatprep.subr.bf16.mxu0 0
  %6940 = vmatpush1.bf16.msra.mxu0 0
  %6941 = vmatprep.subr.bf16.mxu0 0
  %6942 = vmatpush1.bf16.msra.mxu0 0
  %6943 = vmatprep.subr.bf16.mxu0 0
  %6944 = vmatpush1.bf16.msra.mxu0 0
  %6945 = vmatprep.subr.bf16.mxu0 0
  %6946 = vmatpush1.bf16.msra.mxu0 0
  %6947 = vmatprep.subr.bf16.mxu0 0
  %6948 = vmatpush1.bf16.msra.mxu0 0
  %6949 = vmatprep.subr.bf16.mxu0 0
  %6950 = vmatpush1.bf16.msra.mxu0 0
  %6951 = vmatprep.subr.bf16.mxu0 0
  %6952 = vmatpush1.bf16.msra.mxu0 0
  %6953 = vmatprep.mubr.bf16.mxu0 0
  %6954 = vmatmul.mubr.bf16.gmra.mrb[0].mxu0 %v6919
  %v6955 = vpop.f32.mrb[0].mxu0
  %v6956 = vadd.f32 0.0, %v6955
  %v6957 = vpop.f32.mrb[0].mxu0
  %v6958 = vadd.f32 0.0, %v6957
  %v6959 = vpop.f32.mrb[0].mxu0
  %v6960 = vpop.f32.mrb[0].mxu0
  %6961 = vdwg.mxu0
  %6962 = vmatprep.subr.bf16.mxu0 %v6889
  %6963 = vmatpush1.bf16.msra.mxu0 %v6888
  %6964 = vmatprep.subr.bf16.mxu0 %v6893
  %6965 = vmatpush1.bf16.msra.mxu0 %v6892
  %6966 = vmatprep.subr.bf16.mxu0 %v6897
  %6967 = vmatpush1.bf16.msra.mxu0 %v6896
  %6968 = vmatprep.subr.bf16.mxu0 %v6901
  %6969 = vmatpush1.bf16.msra.mxu0 %v6900
  %6970 = vmatprep.subr.bf16.mxu0 0
  %6971 = vmatpush1.bf16.msra.mxu0 0
  %6972 = vmatprep.subr.bf16.mxu0 0
  %6973 = vmatpush1.bf16.msra.mxu0 0
  %6974 = vmatprep.subr.bf16.mxu0 0
  %6975 = vmatpush1.bf16.msra.mxu0 0
  %6976 = vmatprep.subr.bf16.mxu0 0
  %6977 = vmatpush1.bf16.msra.mxu0 0
  %6978 = vmatprep.subr.bf16.mxu0 0
  %6979 = vmatpush1.bf16.msra.mxu0 0
  %6980 = vmatprep.subr.bf16.mxu0 0
  %6981 = vmatpush1.bf16.msra.mxu0 0
  %6982 = vmatprep.subr.bf16.mxu0 0
  %6983 = vmatpush1.bf16.msra.mxu0 0
  %6984 = vmatprep.subr.bf16.mxu0 0
  %6985 = vmatpush1.bf16.msra.mxu0 0
  %6986 = vmatprep.subr.bf16.mxu0 0
  %6987 = vmatpush1.bf16.msra.mxu0 0
  %6988 = vmatprep.subr.bf16.mxu0 0
  %6989 = vmatpush1.bf16.msra.mxu0 0
  %6990 = vmatprep.subr.bf16.mxu0 0
  %6991 = vmatpush1.bf16.msra.mxu0 0
  %6992 = vmatprep.subr.bf16.mxu0 0
  %6993 = vmatpush1.bf16.msra.mxu0 0
  %6994 = vmatprep.mubr.bf16.mxu0 0
  %6995 = vmatmul.mubr.bf16.gmra.mrb[0].mxu0 %v6919
  %v6996 = vpop.f32.mrb[0].mxu0
  %v6997 = vadd.f32 0.0, %v6996
  %v6998 = vpop.f32.mrb[0].mxu0
  %v6999 = vadd.f32 0.0, %v6998
  %v7000 = vpop.f32.mrb[0].mxu0
  %v7001 = vpop.f32.mrb[0].mxu0
  %7002 = vdwg.mxu0
  %v7003 = vadd.f32 %v6816, %v6956
  %v7004 = vadd.f32 %v6817, %v6958
  %v7005 = vadd.f32 %v6818, %v6997
  %v7006 = vadd.f32 %v6819, %v6999
  %v7007 = vld [vmem:[#allocation2 + $0x68] sm:$0xf]
  %s7008 = scalar_lea.vmem %s3, 3328
  %v7009 = vld [vmem:[%s7008] sm:$0xff]
  %v7010 = vld [vmem:[%s7008 + $0x8] sm:$0xff]
  %v7011 = vld [vmem:[%s7008 + $0x10] sm:$0xff]
  %v7012 = vld [vmem:[%s7008 + $0x18] sm:$0xff]
  %v7013 = vld [vmem:[%s7008 + $0x20] sm:$0xff]
  %v7014 = vld [vmem:[%s7008 + $0x28] sm:$0xff]
  %v7015 = vld [vmem:[%s7008 + $0x30] sm:$0xff]
  %v7016 = vld [vmem:[%s7008 + $0x38] sm:$0xff]
  %v7017 = vld [vmem:[%s7008 + $0x40] sm:$0xff]
  %v7018 = vld [vmem:[%s7008 + $0x48] sm:$0xff]
  %v7019 = vld [vmem:[%s7008 + $0x50] sm:$0xff]
  %v7020 = vld [vmem:[%s7008 + $0x58] sm:$0xff]
  %v7021 = vld [vmem:[%s7008 + $0x60] sm:$0xff]
  %v7022 = vld [vmem:[%s7008 + $0x68] sm:$0xff]
  %v7023 = vld [vmem:[%s7008 + $0x70] sm:$0xff]
  %v7024 = vld [vmem:[%s7008 + $0x78] sm:$0xff]
  %v7041 = vunpack.c.l.b16 %v7009
  %v7042 = vunpack.c.h.b16 %v7009
  %v7043 = vunpack.c.l.b16 %v7010
  %v7044 = vunpack.c.h.b16 %v7010
  %v7045 = vunpack.c.l.b16 %v7011
  %v7046 = vunpack.c.h.b16 %v7011
  %v7047 = vunpack.c.l.b16 %v7012
  %v7048 = vunpack.c.h.b16 %v7012
  %v7049 = vunpack.c.l.b16 %v7013
  %v7050 = vunpack.c.h.b16 %v7013
  %v7051 = vunpack.c.l.b16 %v7014
  %v7052 = vunpack.c.h.b16 %v7014
  %v7053 = vunpack.c.l.b16 %v7015
  %v7054 = vunpack.c.h.b16 %v7015
  %v7055 = vunpack.c.l.b16 %v7016
  %v7056 = vunpack.c.h.b16 %v7016
  %v7057 = vunpack.c.l.b16 %v7017
  %v7058 = vunpack.c.h.b16 %v7017
  %v7059 = vunpack.c.l.b16 %v7018
  %v7060 = vunpack.c.h.b16 %v7018
  %v7061 = vunpack.c.l.b16 %v7019
  %v7062 = vunpack.c.h.b16 %v7019
  %v7063 = vunpack.c.l.b16 %v7020
  %v7064 = vunpack.c.h.b16 %v7020
  %v7065 = vunpack.c.l.b16 %v7021
  %v7066 = vunpack.c.h.b16 %v7021
  %v7067 = vunpack.c.l.b16 %v7022
  %v7068 = vunpack.c.h.b16 %v7022
  %v7069 = vunpack.c.l.b16 %v7023
  %v7070 = vunpack.c.h.b16 %v7023
  %v7071 = vunpack.c.l.b16 %v7024
  %v7072 = vunpack.c.h.b16 %v7024
  %v7073 = vpack.c.b16 %v7045, %v7041
  %v7074 = vpack.c.b16 %v7046, %v7042
  %v7075 = vpack.c.b16 %v7047, %v7043
  %v7076 = vpack.c.b16 %v7048, %v7044
  %v7077 = vpack.c.b16 %v7053, %v7049
  %v7078 = vpack.c.b16 %v7054, %v7050
  %v7079 = vpack.c.b16 %v7055, %v7051
  %v7080 = vpack.c.b16 %v7056, %v7052
  %v7081 = vpack.c.b16 %v7061, %v7057
  %v7082 = vpack.c.b16 %v7062, %v7058
  %v7083 = vpack.c.b16 %v7063, %v7059
  %v7084 = vpack.c.b16 %v7064, %v7060
  %v7085 = vpack.c.b16 %v7069, %v7065
  %v7086 = vpack.c.b16 %v7070, %v7066
  %v7087 = vpack.c.b16 %v7071, %v7067
  %v7088 = vpack.c.b16 %v7072, %v7068
  %v7106 = vsel %vm1086, %v7007, 0
  %7108 = vmatprep.subr.bf16.mxu0 %v7074
  %7109 = vmatpush1.bf16.msra.mxu0 %v7073
  %7110 = vmatprep.subr.bf16.mxu0 %v7078
  %7111 = vmatpush1.bf16.msra.mxu0 %v7077
  %7112 = vmatprep.subr.bf16.mxu0 %v7082
  %7113 = vmatpush1.bf16.msra.mxu0 %v7081
  %7114 = vmatprep.subr.bf16.mxu0 %v7086
  %7115 = vmatpush1.bf16.msra.mxu0 %v7085
  %7116 = vmatprep.subr.bf16.mxu0 0
  %7117 = vmatpush1.bf16.msra.mxu0 0
  %7118 = vmatprep.subr.bf16.mxu0 0
  %7119 = vmatpush1.bf16.msra.mxu0 0
  %7120 = vmatprep.subr.bf16.mxu0 0
  %7121 = vmatpush1.bf16.msra.mxu0 0
  %7122 = vmatprep.subr.bf16.mxu0 0
  %7123 = vmatpush1.bf16.msra.mxu0 0
  %7124 = vmatprep.subr.bf16.mxu0 0
  %7125 = vmatpush1.bf16.msra.mxu0 0
  %7126 = vmatprep.subr.bf16.mxu0 0
  %7127 = vmatpush1.bf16.msra.mxu0 0
  %7128 = vmatprep.subr.bf16.mxu0 0
  %7129 = vmatpush1.bf16.msra.mxu0 0
  %7130 = vmatprep.subr.bf16.mxu0 0
  %7131 = vmatpush1.bf16.msra.mxu0 0
  %7132 = vmatprep.subr.bf16.mxu0 0
  %7133 = vmatpush1.bf16.msra.mxu0 0
  %7134 = vmatprep.subr.bf16.mxu0 0
  %7135 = vmatpush1.bf16.msra.mxu0 0
  %7136 = vmatprep.subr.bf16.mxu0 0
  %7137 = vmatpush1.bf16.msra.mxu0 0
  %7138 = vmatprep.subr.bf16.mxu0 0
  %7139 = vmatpush1.bf16.msra.mxu0 0
  %7140 = vmatprep.mubr.bf16.mxu0 0
  %7141 = vmatmul.mubr.bf16.gmra.mrb[0].mxu0 %v7106
  %v7142 = vpop.f32.mrb[0].mxu0
  %v7143 = vadd.f32 0.0, %v7142
  %v7144 = vpop.f32.mrb[0].mxu0
  %v7145 = vadd.f32 0.0, %v7144
  %v7146 = vpop.f32.mrb[0].mxu0
  %v7147 = vpop.f32.mrb[0].mxu0
  %7148 = vdwg.mxu0
  %7149 = vmatprep.subr.bf16.mxu0 %v7076
  %7150 = vmatpush1.bf16.msra.mxu0 %v7075
  %7151 = vmatprep.subr.bf16.mxu0 %v7080
  %7152 = vmatpush1.bf16.msra.mxu0 %v7079
  %7153 = vmatprep.subr.bf16.mxu0 %v7084
  %7154 = vmatpush1.bf16.msra.mxu0 %v7083
  %7155 = vmatprep.subr.bf16.mxu0 %v7088
  %7156 = vmatpush1.bf16.msra.mxu0 %v7087
  %7157 = vmatprep.subr.bf16.mxu0 0
  %7158 = vmatpush1.bf16.msra.mxu0 0
  %7159 = vmatprep.subr.bf16.mxu0 0
  %7160 = vmatpush1.bf16.msra.mxu0 0
  %7161 = vmatprep.subr.bf16.mxu0 0
  %7162 = vmatpush1.bf16.msra.mxu0 0
  %7163 = vmatprep.subr.bf16.mxu0 0
  %7164 = vmatpush1.bf16.msra.mxu0 0
  %7165 = vmatprep.subr.bf16.mxu0 0
  %7166 = vmatpush1.bf16.msra.mxu0 0
  %7167 = vmatprep.subr.bf16.mxu0 0
  %7168 = vmatpush1.bf16.msra.mxu0 0
  %7169 = vmatprep.subr.bf16.mxu0 0
  %7170 = vmatpush1.bf16.msra.mxu0 0
  %7171 = vmatprep.subr.bf16.mxu0 0
  %7172 = vmatpush1.bf16.msra.mxu0 0
  %7173 = vmatprep.subr.bf16.mxu0 0
  %7174 = vmatpush1.bf16.msra.mxu0 0
  %7175 = vmatprep.subr.bf16.mxu0 0
  %7176 = vmatpush1.bf16.msra.mxu0 0
  %7177 = vmatprep.subr.bf16.mxu0 0
  %7178 = vmatpush1.bf16.msra.mxu0 0
  %7179 = vmatprep.subr.bf16.mxu0 0
  %7180 = vmatpush1.bf16.msra.mxu0 0
  %7181 = vmatprep.mubr.bf16.mxu0 0
  %7182 = vmatmul.mubr.bf16.gmra.mrb[0].mxu0 %v7106
  %v7183 = vpop.f32.mrb[0].mxu0
  %v7184 = vadd.f32 0.0, %v7183
  %v7185 = vpop.f32.mrb[0].mxu0
  %v7186 = vadd.f32 0.0, %v7185
  %v7187 = vpop.f32.mrb[0].mxu0
  %v7188 = vpop.f32.mrb[0].mxu0
  %7189 = vdwg.mxu0
  %v7190 = vadd.f32 %v7003, %v7143
  %v7191 = vadd.f32 %v7004, %v7145
  %v7192 = vadd.f32 %v7005, %v7184
  %v7193 = vadd.f32 %v7006, %v7186
  %v7194 = vld [vmem:[#allocation2 + $0x6c] sm:$0xf]
  %s7195 = scalar_lea.vmem %s3, 3456
  %v7196 = vld [vmem:[%s7195] sm:$0xff]
  %v7197 = vld [vmem:[%s7195 + $0x8] sm:$0xff]
  %v7198 = vld [vmem:[%s7195 + $0x10] sm:$0xff]
  %v7199 = vld [vmem:[%s7195 + $0x18] sm:$0xff]
  %v7200 = vld [vmem:[%s7195 + $0x20] sm:$0xff]
  %v7201 = vld [vmem:[%s7195 + $0x28] sm:$0xff]
  %v7202 = vld [vmem:[%s7195 + $0x30] sm:$0xff]
  %v7203 = vld [vmem:[%s7195 + $0x38] sm:$0xff]
  %v7204 = vld [vmem:[%s7195 + $0x40] sm:$0xff]
  %v7205 = vld [vmem:[%s7195 + $0x48] sm:$0xff]
  %v7206 = vld [vmem:[%s7195 + $0x50] sm:$0xff]
  %v7207 = vld [vmem:[%s7195 + $0x58] sm:$0xff]
  %v7208 = vld [vmem:[%s7195 + $0x60] sm:$0xff]
  %v7209 = vld [vmem:[%s7195 + $0x68] sm:$0xff]
  %v7210 = vld [vmem:[%s7195 + $0x70] sm:$0xff]
  %v7211 = vld [vmem:[%s7195 + $0x78] sm:$0xff]
  %v7228 = vunpack.c.l.b16 %v7196
  %v7229 = vunpack.c.h.b16 %v7196
  %v7230 = vunpack.c.l.b16 %v7197
  %v7231 = vunpack.c.h.b16 %v7197
  %v7232 = vunpack.c.l.b16 %v7198
  %v7233 = vunpack.c.h.b16 %v7198
  %v7234 = vunpack.c.l.b16 %v7199
  %v7235 = vunpack.c.h.b16 %v7199
  %v7236 = vunpack.c.l.b16 %v7200
  %v7237 = vunpack.c.h.b16 %v7200
  %v7238 = vunpack.c.l.b16 %v7201
  %v7239 = vunpack.c.h.b16 %v7201
  %v7240 = vunpack.c.l.b16 %v7202
  %v7241 = vunpack.c.h.b16 %v7202
  %v7242 = vunpack.c.l.b16 %v7203
  %v7243 = vunpack.c.h.b16 %v7203
  %v7244 = vunpack.c.l.b16 %v7204
  %v7245 = vunpack.c.h.b16 %v7204
  %v7246 = vunpack.c.l.b16 %v7205
  %v7247 = vunpack.c.h.b16 %v7205
  %v7248 = vunpack.c.l.b16 %v7206
  %v7249 = vunpack.c.h.b16 %v7206
  %v7250 = vunpack.c.l.b16 %v7207
  %v7251 = vunpack.c.h.b16 %v7207
  %v7252 = vunpack.c.l.b16 %v7208
  %v7253 = vunpack.c.h.b16 %v7208
  %v7254 = vunpack.c.l.b16 %v7209
  %v7255 = vunpack.c.h.b16 %v7209
  %v7256 = vunpack.c.l.b16 %v7210
  %v7257 = vunpack.c.h.b16 %v7210
  %v7258 = vunpack.c.l.b16 %v7211
  %v7259 = vunpack.c.h.b16 %v7211
  %v7260 = vpack.c.b16 %v7232, %v7228
  %v7261 = vpack.c.b16 %v7233, %v7229
  %v7262 = vpack.c.b16 %v7234, %v7230
  %v7263 = vpack.c.b16 %v7235, %v7231
  %v7264 = vpack.c.b16 %v7240, %v7236
  %v7265 = vpack.c.b16 %v7241, %v7237
  %v7266 = vpack.c.b16 %v7242, %v7238
  %v7267 = vpack.c.b16 %v7243, %v7239
  %v7268 = vpack.c.b16 %v7248, %v7244
  %v7269 = vpack.c.b16 %v7249, %v7245
  %v7270 = vpack.c.b16 %v7250, %v7246
  %v7271 = vpack.c.b16 %v7251, %v7247
  %v7272 = vpack.c.b16 %v7256, %v7252
  %v7273 = vpack.c.b16 %v7257, %v7253
  %v7274 = vpack.c.b16 %v7258, %v7254
  %v7275 = vpack.c.b16 %v7259, %v7255
  %v7293 = vsel %vm1086, %v7194, 0
  %7295 = vmatprep.subr.bf16.mxu0 %v7261
  %7296 = vmatpush1.bf16.msra.mxu0 %v7260
  %7297 = vmatprep.subr.bf16.mxu0 %v7265
  %7298 = vmatpush1.bf16.msra.mxu0 %v7264
  %7299 = vmatprep.subr.bf16.mxu0 %v7269
  %7300 = vmatpush1.bf16.msra.mxu0 %v7268
  %7301 = vmatprep.subr.bf16.mxu0 %v7273
  %7302 = vmatpush1.bf16.msra.mxu0 %v7272
  %7303 = vmatprep.subr.bf16.mxu0 0
  %7304 = vmatpush1.bf16.msra.mxu0 0
  %7305 = vmatprep.subr.bf16.mxu0 0
  %7306 = vmatpush1.bf16.msra.mxu0 0
  %7307 = vmatprep.subr.bf16.mxu0 0
  %7308 = vmatpush1.bf16.msra.mxu0 0
  %7309 = vmatprep.subr.bf16.mxu0 0
  %7310 = vmatpush1.bf16.msra.mxu0 0
  %7311 = vmatprep.subr.bf16.mxu0 0
  %7312 = vmatpush1.bf16.msra.mxu0 0
  %7313 = vmatprep.subr.bf16.mxu0 0
  %7314 = vmatpush1.bf16.msra.mxu0 0
  %7315 = vmatprep.subr.bf16.mxu0 0
  %7316 = vmatpush1.bf16.msra.mxu0 0
  %7317 = vmatprep.subr.bf16.mxu0 0
  %7318 = vmatpush1.bf16.msra.mxu0 0
  %7319 = vmatprep.subr.bf16.mxu0 0
  %7320 = vmatpush1.bf16.msra.mxu0 0
  %7321 = vmatprep.subr.bf16.mxu0 0
  %7322 = vmatpush1.bf16.msra.mxu0 0
  %7323 = vmatprep.subr.bf16.mxu0 0
  %7324 = vmatpush1.bf16.msra.mxu0 0
  %7325 = vmatprep.subr.bf16.mxu0 0
  %7326 = vmatpush1.bf16.msra.mxu0 0
  %7327 = vmatprep.mubr.bf16.mxu0 0
  %7328 = vmatmul.mubr.bf16.gmra.mrb[0].mxu0 %v7293
  %v7329 = vpop.f32.mrb[0].mxu0
  %v7330 = vadd.f32 0.0, %v7329
  %v7331 = vpop.f32.mrb[0].mxu0
  %v7332 = vadd.f32 0.0, %v7331
  %v7333 = vpop.f32.mrb[0].mxu0
  %v7334 = vpop.f32.mrb[0].mxu0
  %7335 = vdwg.mxu0
  %7336 = vmatprep.subr.bf16.mxu0 %v7263
  %7337 = vmatpush1.bf16.msra.mxu0 %v7262
  %7338 = vmatprep.subr.bf16.mxu0 %v7267
  %7339 = vmatpush1.bf16.msra.mxu0 %v7266
  %7340 = vmatprep.subr.bf16.mxu0 %v7271
  %7341 = vmatpush1.bf16.msra.mxu0 %v7270
  %7342 = vmatprep.subr.bf16.mxu0 %v7275
  %7343 = vmatpush1.bf16.msra.mxu0 %v7274
  %7344 = vmatprep.subr.bf16.mxu0 0
  %7345 = vmatpush1.bf16.msra.mxu0 0
  %7346 = vmatprep.subr.bf16.mxu0 0
  %7347 = vmatpush1.bf16.msra.mxu0 0
  %7348 = vmatprep.subr.bf16.mxu0 0
  %7349 = vmatpush1.bf16.msra.mxu0 0
  %7350 = vmatprep.subr.bf16.mxu0 0
  %7351 = vmatpush1.bf16.msra.mxu0 0
  %7352 = vmatprep.subr.bf16.mxu0 0
  %7353 = vmatpush1.bf16.msra.mxu0 0
  %7354 = vmatprep.subr.bf16.mxu0 0
  %7355 = vmatpush1.bf16.msra.mxu0 0
  %7356 = vmatprep.subr.bf16.mxu0 0
  %7357 = vmatpush1.bf16.msra.mxu0 0
  %7358 = vmatprep.subr.bf16.mxu0 0
  %7359 = vmatpush1.bf16.msra.mxu0 0
  %7360 = vmatprep.subr.bf16.mxu0 0
  %7361 = vmatpush1.bf16.msra.mxu0 0
  %7362 = vmatprep.subr.bf16.mxu0 0
  %7363 = vmatpush1.bf16.msra.mxu0 0
  %7364 = vmatprep.subr.bf16.mxu0 0
  %7365 = vmatpush1.bf16.msra.mxu0 0
  %7366 = vmatprep.subr.bf16.mxu0 0
  %7367 = vmatpush1.bf16.msra.mxu0 0
  %7368 = vmatprep.mubr.bf16.mxu0 0
  %7369 = vmatmul.mubr.bf16.gmra.mrb[0].mxu0 %v7293
  %v7370 = vpop.f32.mrb[0].mxu0
  %v7371 = vadd.f32 0.0, %v7370
  %v7372 = vpop.f32.mrb[0].mxu0
  %v7373 = vadd.f32 0.0, %v7372
  %v7374 = vpop.f32.mrb[0].mxu0
  %v7375 = vpop.f32.mrb[0].mxu0
  %7376 = vdwg.mxu0
  %v7377 = vadd.f32 %v7190, %v7330
  %v7378 = vadd.f32 %v7191, %v7332
  %v7379 = vadd.f32 %v7192, %v7371
  %v7380 = vadd.f32 %v7193, %v7373
  %v7381 = vld [vmem:[#allocation2 + $0x70] sm:$0xf]
  %s7382 = scalar_lea.vmem %s3, 3584
  %v7383 = vld [vmem:[%s7382] sm:$0xff]
  %v7384 = vld [vmem:[%s7382 + $0x8] sm:$0xff]
  %v7385 = vld [vmem:[%s7382 + $0x10] sm:$0xff]
  %v7386 = vld [vmem:[%s7382 + $0x18] sm:$0xff]
  %v7387 = vld [vmem:[%s7382 + $0x20] sm:$0xff]
  %v7388 = vld [vmem:[%s7382 + $0x28] sm:$0xff]
  %v7389 = vld [vmem:[%s7382 + $0x30] sm:$0xff]
  %v7390 = vld [vmem:[%s7382 + $0x38] sm:$0xff]
  %v7391 = vld [vmem:[%s7382 + $0x40] sm:$0xff]
  %v7392 = vld [vmem:[%s7382 + $0x48] sm:$0xff]
  %v7393 = vld [vmem:[%s7382 + $0x50] sm:$0xff]
  %v7394 = vld [vmem:[%s7382 + $0x58] sm:$0xff]
  %v7395 = vld [vmem:[%s7382 + $0x60] sm:$0xff]
  %v7396 = vld [vmem:[%s7382 + $0x68] sm:$0xff]
  %v7397 = vld [vmem:[%s7382 + $0x70] sm:$0xff]
  %v7398 = vld [vmem:[%s7382 + $0x78] sm:$0xff]
  %v7415 = vunpack.c.l.b16 %v7383
  %v7416 = vunpack.c.h.b16 %v7383
  %v7417 = vunpack.c.l.b16 %v7384
  %v7418 = vunpack.c.h.b16 %v7384
  %v7419 = vunpack.c.l.b16 %v7385
  %v7420 = vunpack.c.h.b16 %v7385
  %v7421 = vunpack.c.l.b16 %v7386
  %v7422 = vunpack.c.h.b16 %v7386
  %v7423 = vunpack.c.l.b16 %v7387
  %v7424 = vunpack.c.h.b16 %v7387
  %v7425 = vunpack.c.l.b16 %v7388
  %v7426 = vunpack.c.h.b16 %v7388
  %v7427 = vunpack.c.l.b16 %v7389
  %v7428 = vunpack.c.h.b16 %v7389
  %v7429 = vunpack.c.l.b16 %v7390
  %v7430 = vunpack.c.h.b16 %v7390
  %v7431 = vunpack.c.l.b16 %v7391
  %v7432 = vunpack.c.h.b16 %v7391
  %v7433 = vunpack.c.l.b16 %v7392
  %v7434 = vunpack.c.h.b16 %v7392
  %v7435 = vunpack.c.l.b16 %v7393
  %v7436 = vunpack.c.h.b16 %v7393
  %v7437 = vunpack.c.l.b16 %v7394
  %v7438 = vunpack.c.h.b16 %v7394
  %v7439 = vunpack.c.l.b16 %v7395
  %v7440 = vunpack.c.h.b16 %v7395
  %v7441 = vunpack.c.l.b16 %v7396
  %v7442 = vunpack.c.h.b16 %v7396
  %v7443 = vunpack.c.l.b16 %v7397
  %v7444 = vunpack.c.h.b16 %v7397
  %v7445 = vunpack.c.l.b16 %v7398
  %v7446 = vunpack.c.h.b16 %v7398
  %v7447 = vpack.c.b16 %v7419, %v7415
  %v7448 = vpack.c.b16 %v7420, %v7416
  %v7449 = vpack.c.b16 %v7421, %v7417
  %v7450 = vpack.c.b16 %v7422, %v7418
  %v7451 = vpack.c.b16 %v7427, %v7423
  %v7452 = vpack.c.b16 %v7428, %v7424
  %v7453 = vpack.c.b16 %v7429, %v7425
  %v7454 = vpack.c.b16 %v7430, %v7426
  %v7455 = vpack.c.b16 %v7435, %v7431
  %v7456 = vpack.c.b16 %v7436, %v7432
  %v7457 = vpack.c.b16 %v7437, %v7433
  %v7458 = vpack.c.b16 %v7438, %v7434
  %v7459 = vpack.c.b16 %v7443, %v7439
  %v7460 = vpack.c.b16 %v7444, %v7440
  %v7461 = vpack.c.b16 %v7445, %v7441
  %v7462 = vpack.c.b16 %v7446, %v7442
  %v7480 = vsel %vm1086, %v7381, 0
  %7482 = vmatprep.subr.bf16.mxu0 %v7448
  %7483 = vmatpush1.bf16.msra.mxu0 %v7447
  %7484 = vmatprep.subr.bf16.mxu0 %v7452
  %7485 = vmatpush1.bf16.msra.mxu0 %v7451
  %7486 = vmatprep.subr.bf16.mxu0 %v7456
  %7487 = vmatpush1.bf16.msra.mxu0 %v7455
  %7488 = vmatprep.subr.bf16.mxu0 %v7460
  %7489 = vmatpush1.bf16.msra.mxu0 %v7459
  %7490 = vmatprep.subr.bf16.mxu0 0
  %7491 = vmatpush1.bf16.msra.mxu0 0
  %7492 = vmatprep.subr.bf16.mxu0 0
  %7493 = vmatpush1.bf16.msra.mxu0 0
  %7494 = vmatprep.subr.bf16.mxu0 0
  %7495 = vmatpush1.bf16.msra.mxu0 0
  %7496 = vmatprep.subr.bf16.mxu0 0
  %7497 = vmatpush1.bf16.msra.mxu0 0
  %7498 = vmatprep.subr.bf16.mxu0 0
  %7499 = vmatpush1.bf16.msra.mxu0 0
  %7500 = vmatprep.subr.bf16.mxu0 0
  %7501 = vmatpush1.bf16.msra.mxu0 0
  %7502 = vmatprep.subr.bf16.mxu0 0
  %7503 = vmatpush1.bf16.msra.mxu0 0
  %7504 = vmatprep.subr.bf16.mxu0 0
  %7505 = vmatpush1.bf16.msra.mxu0 0
  %7506 = vmatprep.subr.bf16.mxu0 0
  %7507 = vmatpush1.bf16.msra.mxu0 0
  %7508 = vmatprep.subr.bf16.mxu0 0
  %7509 = vmatpush1.bf16.msra.mxu0 0
  %7510 = vmatprep.subr.bf16.mxu0 0
  %7511 = vmatpush1.bf16.msra.mxu0 0
  %7512 = vmatprep.subr.bf16.mxu0 0
  %7513 = vmatpush1.bf16.msra.mxu0 0
  %7514 = vmatprep.mubr.bf16.mxu0 0
  %7515 = vmatmul.mubr.bf16.gmra.mrb[0].mxu0 %v7480
  %v7516 = vpop.f32.mrb[0].mxu0
  %v7517 = vadd.f32 0.0, %v7516
  %v7518 = vpop.f32.mrb[0].mxu0
  %v7519 = vadd.f32 0.0, %v7518
  %v7520 = vpop.f32.mrb[0].mxu0
  %v7521 = vpop.f32.mrb[0].mxu0
  %7522 = vdwg.mxu0
  %7523 = vmatprep.subr.bf16.mxu0 %v7450
  %7524 = vmatpush1.bf16.msra.mxu0 %v7449
  %7525 = vmatprep.subr.bf16.mxu0 %v7454
  %7526 = vmatpush1.bf16.msra.mxu0 %v7453
  %7527 = vmatprep.subr.bf16.mxu0 %v7458
  %7528 = vmatpush1.bf16.msra.mxu0 %v7457
  %7529 = vmatprep.subr.bf16.mxu0 %v7462
  %7530 = vmatpush1.bf16.msra.mxu0 %v7461
  %7531 = vmatprep.subr.bf16.mxu0 0
  %7532 = vmatpush1.bf16.msra.mxu0 0
  %7533 = vmatprep.subr.bf16.mxu0 0
  %7534 = vmatpush1.bf16.msra.mxu0 0
  %7535 = vmatprep.subr.bf16.mxu0 0
  %7536 = vmatpush1.bf16.msra.mxu0 0
  %7537 = vmatprep.subr.bf16.mxu0 0
  %7538 = vmatpush1.bf16.msra.mxu0 0
  %7539 = vmatprep.subr.bf16.mxu0 0
  %7540 = vmatpush1.bf16.msra.mxu0 0
  %7541 = vmatprep.subr.bf16.mxu0 0
  %7542 = vmatpush1.bf16.msra.mxu0 0
  %7543 = vmatprep.subr.bf16.mxu0 0
  %7544 = vmatpush1.bf16.msra.mxu0 0
  %7545 = vmatprep.subr.bf16.mxu0 0
  %7546 = vmatpush1.bf16.msra.mxu0 0
  %7547 = vmatprep.subr.bf16.mxu0 0
  %7548 = vmatpush1.bf16.msra.mxu0 0
  %7549 = vmatprep.subr.bf16.mxu0 0
  %7550 = vmatpush1.bf16.msra.mxu0 0
  %7551 = vmatprep.subr.bf16.mxu0 0
  %7552 = vmatpush1.bf16.msra.mxu0 0
  %7553 = vmatprep.subr.bf16.mxu0 0
  %7554 = vmatpush1.bf16.msra.mxu0 0
  %7555 = vmatprep.mubr.bf16.mxu0 0
  %7556 = vmatmul.mubr.bf16.gmra.mrb[0].mxu0 %v7480
  %v7557 = vpop.f32.mrb[0].mxu0
  %v7558 = vadd.f32 0.0, %v7557
  %v7559 = vpop.f32.mrb[0].mxu0
  %v7560 = vadd.f32 0.0, %v7559
  %v7561 = vpop.f32.mrb[0].mxu0
  %v7562 = vpop.f32.mrb[0].mxu0
  %7563 = vdwg.mxu0
  %v7564 = vadd.f32 %v7377, %v7517
  %v7565 = vadd.f32 %v7378, %v7519
  %v7566 = vadd.f32 %v7379, %v7558
  %v7567 = vadd.f32 %v7380, %v7560
  %v7568 = vld [vmem:[#allocation2 + $0x74] sm:$0xf]
  %s7569 = scalar_lea.vmem %s3, 3712
  %v7570 = vld [vmem:[%s7569] sm:$0xff]
  %v7571 = vld [vmem:[%s7569 + $0x8] sm:$0xff]
  %v7572 = vld [vmem:[%s7569 + $0x10] sm:$0xff]
  %v7573 = vld [vmem:[%s7569 + $0x18] sm:$0xff]
  %v7574 = vld [vmem:[%s7569 + $0x20] sm:$0xff]
  %v7575 = vld [vmem:[%s7569 + $0x28] sm:$0xff]
  %v7576 = vld [vmem:[%s7569 + $0x30] sm:$0xff]
  %v7577 = vld [vmem:[%s7569 + $0x38] sm:$0xff]
  %v7578 = vld [vmem:[%s7569 + $0x40] sm:$0xff]
  %v7579 = vld [vmem:[%s7569 + $0x48] sm:$0xff]
  %v7580 = vld [vmem:[%s7569 + $0x50] sm:$0xff]
  %v7581 = vld [vmem:[%s7569 + $0x58] sm:$0xff]
  %v7582 = vld [vmem:[%s7569 + $0x60] sm:$0xff]
  %v7583 = vld [vmem:[%s7569 + $0x68] sm:$0xff]
  %v7584 = vld [vmem:[%s7569 + $0x70] sm:$0xff]
  %v7585 = vld [vmem:[%s7569 + $0x78] sm:$0xff]
  %v7602 = vunpack.c.l.b16 %v7570
  %v7603 = vunpack.c.h.b16 %v7570
  %v7604 = vunpack.c.l.b16 %v7571
  %v7605 = vunpack.c.h.b16 %v7571
  %v7606 = vunpack.c.l.b16 %v7572
  %v7607 = vunpack.c.h.b16 %v7572
  %v7608 = vunpack.c.l.b16 %v7573
  %v7609 = vunpack.c.h.b16 %v7573
  %v7610 = vunpack.c.l.b16 %v7574
  %v7611 = vunpack.c.h.b16 %v7574
  %v7612 = vunpack.c.l.b16 %v7575
  %v7613 = vunpack.c.h.b16 %v7575
  %v7614 = vunpack.c.l.b16 %v7576
  %v7615 = vunpack.c.h.b16 %v7576
  %v7616 = vunpack.c.l.b16 %v7577
  %v7617 = vunpack.c.h.b16 %v7577
  %v7618 = vunpack.c.l.b16 %v7578
  %v7619 = vunpack.c.h.b16 %v7578
  %v7620 = vunpack.c.l.b16 %v7579
  %v7621 = vunpack.c.h.b16 %v7579
  %v7622 = vunpack.c.l.b16 %v7580
  %v7623 = vunpack.c.h.b16 %v7580
  %v7624 = vunpack.c.l.b16 %v7581
  %v7625 = vunpack.c.h.b16 %v7581
  %v7626 = vunpack.c.l.b16 %v7582
  %v7627 = vunpack.c.h.b16 %v7582
  %v7628 = vunpack.c.l.b16 %v7583
  %v7629 = vunpack.c.h.b16 %v7583
  %v7630 = vunpack.c.l.b16 %v7584
  %v7631 = vunpack.c.h.b16 %v7584
  %v7632 = vunpack.c.l.b16 %v7585
  %v7633 = vunpack.c.h.b16 %v7585
  %v7634 = vpack.c.b16 %v7606, %v7602
  %v7635 = vpack.c.b16 %v7607, %v7603
  %v7636 = vpack.c.b16 %v7608, %v7604
  %v7637 = vpack.c.b16 %v7609, %v7605
  %v7638 = vpack.c.b16 %v7614, %v7610
  %v7639 = vpack.c.b16 %v7615, %v7611
  %v7640 = vpack.c.b16 %v7616, %v7612
  %v7641 = vpack.c.b16 %v7617, %v7613
  %v7642 = vpack.c.b16 %v7622, %v7618
  %v7643 = vpack.c.b16 %v7623, %v7619
  %v7644 = vpack.c.b16 %v7624, %v7620
  %v7645 = vpack.c.b16 %v7625, %v7621
  %v7646 = vpack.c.b16 %v7630, %v7626
  %v7647 = vpack.c.b16 %v7631, %v7627
  %v7648 = vpack.c.b16 %v7632, %v7628
  %v7649 = vpack.c.b16 %v7633, %v7629
  %v7667 = vsel %vm1086, %v7568, 0
  %7669 = vmatprep.subr.bf16.mxu0 %v7635
  %7670 = vmatpush1.bf16.msra.mxu0 %v7634
  %7671 = vmatprep.subr.bf16.mxu0 %v7639
  %7672 = vmatpush1.bf16.msra.mxu0 %v7638
  %7673 = vmatprep.subr.bf16.mxu0 %v7643
  %7674 = vmatpush1.bf16.msra.mxu0 %v7642
  %7675 = vmatprep.subr.bf16.mxu0 %v7647
  %7676 = vmatpush1.bf16.msra.mxu0 %v7646
  %7677 = vmatprep.subr.bf16.mxu0 0
  %7678 = vmatpush1.bf16.msra.mxu0 0
  %7679 = vmatprep.subr.bf16.mxu0 0
  %7680 = vmatpush1.bf16.msra.mxu0 0
  %7681 = vmatprep.subr.bf16.mxu0 0
  %7682 = vmatpush1.bf16.msra.mxu0 0
  %7683 = vmatprep.subr.bf16.mxu0 0
  %7684 = vmatpush1.bf16.msra.mxu0 0
  %7685 = vmatprep.subr.bf16.mxu0 0
  %7686 = vmatpush1.bf16.msra.mxu0 0
  %7687 = vmatprep.subr.bf16.mxu0 0
  %7688 = vmatpush1.bf16.msra.mxu0 0
  %7689 = vmatprep.subr.bf16.mxu0 0
  %7690 = vmatpush1.bf16.msra.mxu0 0
  %7691 = vmatprep.subr.bf16.mxu0 0
  %7692 = vmatpush1.bf16.msra.mxu0 0
  %7693 = vmatprep.subr.bf16.mxu0 0
  %7694 = vmatpush1.bf16.msra.mxu0 0
  %7695 = vmatprep.subr.bf16.mxu0 0
  %7696 = vmatpush1.bf16.msra.mxu0 0
  %7697 = vmatprep.subr.bf16.mxu0 0
  %7698 = vmatpush1.bf16.msra.mxu0 0
  %7699 = vmatprep.subr.bf16.mxu0 0
  %7700 = vmatpush1.bf16.msra.mxu0 0
  %7701 = vmatprep.mubr.bf16.mxu0 0
  %7702 = vmatmul.mubr.bf16.gmra.mrb[0].mxu0 %v7667
  %v7703 = vpop.f32.mrb[0].mxu0
  %v7704 = vadd.f32 0.0, %v7703
  %v7705 = vpop.f32.mrb[0].mxu0
  %v7706 = vadd.f32 0.0, %v7705
  %v7707 = vpop.f32.mrb[0].mxu0
  %v7708 = vpop.f32.mrb[0].mxu0
  %7709 = vdwg.mxu0
  %7710 = vmatprep.subr.bf16.mxu0 %v7637
  %7711 = vmatpush1.bf16.msra.mxu0 %v7636
  %7712 = vmatprep.subr.bf16.mxu0 %v7641
  %7713 = vmatpush1.bf16.msra.mxu0 %v7640
  %7714 = vmatprep.subr.bf16.mxu0 %v7645
  %7715 = vmatpush1.bf16.msra.mxu0 %v7644
  %7716 = vmatprep.subr.bf16.mxu0 %v7649
  %7717 = vmatpush1.bf16.msra.mxu0 %v7648
  %7718 = vmatprep.subr.bf16.mxu0 0
  %7719 = vmatpush1.bf16.msra.mxu0 0
  %7720 = vmatprep.subr.bf16.mxu0 0
  %7721 = vmatpush1.bf16.msra.mxu0 0
  %7722 = vmatprep.subr.bf16.mxu0 0
  %7723 = vmatpush1.bf16.msra.mxu0 0
  %7724 = vmatprep.subr.bf16.mxu0 0
  %7725 = vmatpush1.bf16.msra.mxu0 0
  %7726 = vmatprep.subr.bf16.mxu0 0
  %7727 = vmatpush1.bf16.msra.mxu0 0
  %7728 = vmatprep.subr.bf16.mxu0 0
  %7729 = vmatpush1.bf16.msra.mxu0 0
  %7730 = vmatprep.subr.bf16.mxu0 0
  %7731 = vmatpush1.bf16.msra.mxu0 0
  %7732 = vmatprep.subr.bf16.mxu0 0
  %7733 = vmatpush1.bf16.msra.mxu0 0
  %7734 = vmatprep.subr.bf16.mxu0 0
  %7735 = vmatpush1.bf16.msra.mxu0 0
  %7736 = vmatprep.subr.bf16.mxu0 0
  %7737 = vmatpush1.bf16.msra.mxu0 0
  %7738 = vmatprep.subr.bf16.mxu0 0
  %7739 = vmatpush1.bf16.msra.mxu0 0
  %7740 = vmatprep.subr.bf16.mxu0 0
  %7741 = vmatpush1.bf16.msra.mxu0 0
  %7742 = vmatprep.mubr.bf16.mxu0 0
  %7743 = vmatmul.mubr.bf16.gmra.mrb[0].mxu0 %v7667
  %v7744 = vpop.f32.mrb[0].mxu0
  %v7745 = vadd.f32 0.0, %v7744
  %v7746 = vpop.f32.mrb[0].mxu0
  %v7747 = vadd.f32 0.0, %v7746
  %v7748 = vpop.f32.mrb[0].mxu0
  %v7749 = vpop.f32.mrb[0].mxu0
  %7750 = vdwg.mxu0
  %v7751 = vadd.f32 %v7564, %v7704
  %v7752 = vadd.f32 %v7565, %v7706
  %v7753 = vadd.f32 %v7566, %v7745
  %v7754 = vadd.f32 %v7567, %v7747
  %v7755 = vld [vmem:[#allocation2 + $0x78] sm:$0xf]
  %s7756 = scalar_lea.vmem %s3, 3840
  %v7757 = vld [vmem:[%s7756] sm:$0xff]
  %v7758 = vld [vmem:[%s7756 + $0x8] sm:$0xff]
  %v7759 = vld [vmem:[%s7756 + $0x10] sm:$0xff]
  %v7760 = vld [vmem:[%s7756 + $0x18] sm:$0xff]
  %v7761 = vld [vmem:[%s7756 + $0x20] sm:$0xff]
  %v7762 = vld [vmem:[%s7756 + $0x28] sm:$0xff]
  %v7763 = vld [vmem:[%s7756 + $0x30] sm:$0xff]
  %v7764 = vld [vmem:[%s7756 + $0x38] sm:$0xff]
  %v7765 = vld [vmem:[%s7756 + $0x40] sm:$0xff]
  %v7766 = vld [vmem:[%s7756 + $0x48] sm:$0xff]
  %v7767 = vld [vmem:[%s7756 + $0x50] sm:$0xff]
  %v7768 = vld [vmem:[%s7756 + $0x58] sm:$0xff]
  %v7769 = vld [vmem:[%s7756 + $0x60] sm:$0xff]
  %v7770 = vld [vmem:[%s7756 + $0x68] sm:$0xff]
  %v7771 = vld [vmem:[%s7756 + $0x70] sm:$0xff]
  %v7772 = vld [vmem:[%s7756 + $0x78] sm:$0xff]
  %v7789 = vunpack.c.l.b16 %v7757
  %v7790 = vunpack.c.h.b16 %v7757
  %v7791 = vunpack.c.l.b16 %v7758
  %v7792 = vunpack.c.h.b16 %v7758
  %v7793 = vunpack.c.l.b16 %v7759
  %v7794 = vunpack.c.h.b16 %v7759
  %v7795 = vunpack.c.l.b16 %v7760
  %v7796 = vunpack.c.h.b16 %v7760
  %v7797 = vunpack.c.l.b16 %v7761
  %v7798 = vunpack.c.h.b16 %v7761
  %v7799 = vunpack.c.l.b16 %v7762
  %v7800 = vunpack.c.h.b16 %v7762
  %v7801 = vunpack.c.l.b16 %v7763
  %v7802 = vunpack.c.h.b16 %v7763
  %v7803 = vunpack.c.l.b16 %v7764
  %v7804 = vunpack.c.h.b16 %v7764
  %v7805 = vunpack.c.l.b16 %v7765
  %v7806 = vunpack.c.h.b16 %v7765
  %v7807 = vunpack.c.l.b16 %v7766
  %v7808 = vunpack.c.h.b16 %v7766
  %v7809 = vunpack.c.l.b16 %v7767
  %v7810 = vunpack.c.h.b16 %v7767
  %v7811 = vunpack.c.l.b16 %v7768
  %v7812 = vunpack.c.h.b16 %v7768
  %v7813 = vunpack.c.l.b16 %v7769
  %v7814 = vunpack.c.h.b16 %v7769
  %v7815 = vunpack.c.l.b16 %v7770
  %v7816 = vunpack.c.h.b16 %v7770
  %v7817 = vunpack.c.l.b16 %v7771
  %v7818 = vunpack.c.h.b16 %v7771
  %v7819 = vunpack.c.l.b16 %v7772
  %v7820 = vunpack.c.h.b16 %v7772
  %v7821 = vpack.c.b16 %v7793, %v7789
  %v7822 = vpack.c.b16 %v7794, %v7790
  %v7823 = vpack.c.b16 %v7795, %v7791
  %v7824 = vpack.c.b16 %v7796, %v7792
  %v7825 = vpack.c.b16 %v7801, %v7797
  %v7826 = vpack.c.b16 %v7802, %v7798
  %v7827 = vpack.c.b16 %v7803, %v7799
  %v7828 = vpack.c.b16 %v7804, %v7800
  %v7829 = vpack.c.b16 %v7809, %v7805
  %v7830 = vpack.c.b16 %v7810, %v7806
  %v7831 = vpack.c.b16 %v7811, %v7807
  %v7832 = vpack.c.b16 %v7812, %v7808
  %v7833 = vpack.c.b16 %v7817, %v7813
  %v7834 = vpack.c.b16 %v7818, %v7814
  %v7835 = vpack.c.b16 %v7819, %v7815
  %v7836 = vpack.c.b16 %v7820, %v7816
  %v7854 = vsel %vm1086, %v7755, 0
  %7856 = vmatprep.subr.bf16.mxu0 %v7822
  %7857 = vmatpush1.bf16.msra.mxu0 %v7821
  %7858 = vmatprep.subr.bf16.mxu0 %v7826
  %7859 = vmatpush1.bf16.msra.mxu0 %v7825
  %7860 = vmatprep.subr.bf16.mxu0 %v7830
  %7861 = vmatpush1.bf16.msra.mxu0 %v7829
  %7862 = vmatprep.subr.bf16.mxu0 %v7834
  %7863 = vmatpush1.bf16.msra.mxu0 %v7833
  %7864 = vmatprep.subr.bf16.mxu0 0
  %7865 = vmatpush1.bf16.msra.mxu0 0
  %7866 = vmatprep.subr.bf16.mxu0 0
  %7867 = vmatpush1.bf16.msra.mxu0 0
  %7868 = vmatprep.subr.bf16.mxu0 0
  %7869 = vmatpush1.bf16.msra.mxu0 0
  %7870 = vmatprep.subr.bf16.mxu0 0
  %7871 = vmatpush1.bf16.msra.mxu0 0
  %7872 = vmatprep.subr.bf16.mxu0 0
  %7873 = vmatpush1.bf16.msra.mxu0 0
  %7874 = vmatprep.subr.bf16.mxu0 0
  %7875 = vmatpush1.bf16.msra.mxu0 0
  %7876 = vmatprep.subr.bf16.mxu0 0
  %7877 = vmatpush1.bf16.msra.mxu0 0
  %7878 = vmatprep.subr.bf16.mxu0 0
  %7879 = vmatpush1.bf16.msra.mxu0 0
  %7880 = vmatprep.subr.bf16.mxu0 0
  %7881 = vmatpush1.bf16.msra.mxu0 0
  %7882 = vmatprep.subr.bf16.mxu0 0
  %7883 = vmatpush1.bf16.msra.mxu0 0
  %7884 = vmatprep.subr.bf16.mxu0 0
  %7885 = vmatpush1.bf16.msra.mxu0 0
  %7886 = vmatprep.subr.bf16.mxu0 0
  %7887 = vmatpush1.bf16.msra.mxu0 0
  %7888 = vmatprep.mubr.bf16.mxu0 0
  %7889 = vmatmul.mubr.bf16.gmra.mrb[0].mxu0 %v7854
  %v7890 = vpop.f32.mrb[0].mxu0
  %v7891 = vadd.f32 0.0, %v7890
  %v7892 = vpop.f32.mrb[0].mxu0
  %v7893 = vadd.f32 0.0, %v7892
  %v7894 = vpop.f32.mrb[0].mxu0
  %v7895 = vpop.f32.mrb[0].mxu0
  %7896 = vdwg.mxu0
  %7897 = vmatprep.subr.bf16.mxu0 %v7824
  %7898 = vmatpush1.bf16.msra.mxu0 %v7823
  %7899 = vmatprep.subr.bf16.mxu0 %v7828
  %7900 = vmatpush1.bf16.msra.mxu0 %v7827
  %7901 = vmatprep.subr.bf16.mxu0 %v7832
  %7902 = vmatpush1.bf16.msra.mxu0 %v7831
  %7903 = vmatprep.subr.bf16.mxu0 %v7836
  %7904 = vmatpush1.bf16.msra.mxu0 %v7835
  %7905 = vmatprep.subr.bf16.mxu0 0
  %7906 = vmatpush1.bf16.msra.mxu0 0
  %7907 = vmatprep.subr.bf16.mxu0 0
  %7908 = vmatpush1.bf16.msra.mxu0 0
  %7909 = vmatprep.subr.bf16.mxu0 0
  %7910 = vmatpush1.bf16.msra.mxu0 0
  %7911 = vmatprep.subr.bf16.mxu0 0
  %7912 = vmatpush1.bf16.msra.mxu0 0
  %7913 = vmatprep.subr.bf16.mxu0 0
  %7914 = vmatpush1.bf16.msra.mxu0 0
  %7915 = vmatprep.subr.bf16.mxu0 0
  %7916 = vmatpush1.bf16.msra.mxu0 0
  %7917 = vmatprep.subr.bf16.mxu0 0
  %7918 = vmatpush1.bf16.msra.mxu0 0
  %7919 = vmatprep.subr.bf16.mxu0 0
  %7920 = vmatpush1.bf16.msra.mxu0 0
  %7921 = vmatprep.subr.bf16.mxu0 0
  %7922 = vmatpush1.bf16.msra.mxu0 0
  %7923 = vmatprep.subr.bf16.mxu0 0
  %7924 = vmatpush1.bf16.msra.mxu0 0
  %7925 = vmatprep.subr.bf16.mxu0 0
  %7926 = vmatpush1.bf16.msra.mxu0 0
  %7927 = vmatprep.subr.bf16.mxu0 0
  %7928 = vmatpush1.bf16.msra.mxu0 0
  %7929 = vmatprep.mubr.bf16.mxu0 0
  %7930 = vmatmul.mubr.bf16.gmra.mrb[0].mxu0 %v7854
  %v7931 = vpop.f32.mrb[0].mxu0
  %v7932 = vadd.f32 0.0, %v7931
  %v7933 = vpop.f32.mrb[0].mxu0
  %v7934 = vadd.f32 0.0, %v7933
  %v7935 = vpop.f32.mrb[0].mxu0
  %v7936 = vpop.f32.mrb[0].mxu0
  %7937 = vdwg.mxu0
  %v7938 = vadd.f32 %v7751, %v7891
  %v7939 = vadd.f32 %v7752, %v7893
  %v7940 = vadd.f32 %v7753, %v7932
  %v7941 = vadd.f32 %v7754, %v7934
  %v7942 = vld [vmem:[#allocation2 + $0x7c] sm:$0xf]
  %s7943 = scalar_lea.vmem %s3, 3968
  %v7944 = vld [vmem:[%s7943] sm:$0xff]
  %v7945 = vld [vmem:[%s7943 + $0x8] sm:$0xff]
  %v7946 = vld [vmem:[%s7943 + $0x10] sm:$0xff]
  %v7947 = vld [vmem:[%s7943 + $0x18] sm:$0xff]
  %v7948 = vld [vmem:[%s7943 + $0x20] sm:$0xff]
  %v7949 = vld [vmem:[%s7943 + $0x28] sm:$0xff]
  %v7950 = vld [vmem:[%s7943 + $0x30] sm:$0xff]
  %v7951 = vld [vmem:[%s7943 + $0x38] sm:$0xff]
  %v7952 = vld [vmem:[%s7943 + $0x40] sm:$0xff]
  %v7953 = vld [vmem:[%s7943 + $0x48] sm:$0xff]
  %v7954 = vld [vmem:[%s7943 + $0x50] sm:$0xff]
  %v7955 = vld [vmem:[%s7943 + $0x58] sm:$0xff]
  %v7956 = vld [vmem:[%s7943 + $0x60] sm:$0xff]
  %v7957 = vld [vmem:[%s7943 + $0x68] sm:$0xff]
  %v7958 = vld [vmem:[%s7943 + $0x70] sm:$0xff]
  %v7959 = vld [vmem:[%s7943 + $0x78] sm:$0xff]
  %v7976 = vunpack.c.l.b16 %v7944
  %v7977 = vunpack.c.h.b16 %v7944
  %v7978 = vunpack.c.l.b16 %v7945
  %v7979 = vunpack.c.h.b16 %v7945
  %v7980 = vunpack.c.l.b16 %v7946
  %v7981 = vunpack.c.h.b16 %v7946
  %v7982 = vunpack.c.l.b16 %v7947
  %v7983 = vunpack.c.h.b16 %v7947
  %v7984 = vunpack.c.l.b16 %v7948
  %v7985 = vunpack.c.h.b16 %v7948
  %v7986 = vunpack.c.l.b16 %v7949
  %v7987 = vunpack.c.h.b16 %v7949
  %v7988 = vunpack.c.l.b16 %v7950
  %v7989 = vunpack.c.h.b16 %v7950
  %v7990 = vunpack.c.l.b16 %v7951
  %v7991 = vunpack.c.h.b16 %v7951
  %v7992 = vunpack.c.l.b16 %v7952
  %v7993 = vunpack.c.h.b16 %v7952
  %v7994 = vunpack.c.l.b16 %v7953
  %v7995 = vunpack.c.h.b16 %v7953
  %v7996 = vunpack.c.l.b16 %v7954
  %v7997 = vunpack.c.h.b16 %v7954
  %v7998 = vunpack.c.l.b16 %v7955
  %v7999 = vunpack.c.h.b16 %v7955
  %v8000 = vunpack.c.l.b16 %v7956
  %v8001 = vunpack.c.h.b16 %v7956
  %v8002 = vunpack.c.l.b16 %v7957
  %v8003 = vunpack.c.h.b16 %v7957
  %v8004 = vunpack.c.l.b16 %v7958
  %v8005 = vunpack.c.h.b16 %v7958
  %v8006 = vunpack.c.l.b16 %v7959
  %v8007 = vunpack.c.h.b16 %v7959
  %v8008 = vpack.c.b16 %v7980, %v7976
  %v8009 = vpack.c.b16 %v7981, %v7977
  %v8010 = vpack.c.b16 %v7982, %v7978
  %v8011 = vpack.c.b16 %v7983, %v7979
  %v8012 = vpack.c.b16 %v7988, %v7984
  %v8013 = vpack.c.b16 %v7989, %v7985
  %v8014 = vpack.c.b16 %v7990, %v7986
  %v8015 = vpack.c.b16 %v7991, %v7987
  %v8016 = vpack.c.b16 %v7996, %v7992
  %v8017 = vpack.c.b16 %v7997, %v7993
  %v8018 = vpack.c.b16 %v7998, %v7994
  %v8019 = vpack.c.b16 %v7999, %v7995
  %v8020 = vpack.c.b16 %v8004, %v8000
  %v8021 = vpack.c.b16 %v8005, %v8001
  %v8022 = vpack.c.b16 %v8006, %v8002
  %v8023 = vpack.c.b16 %v8007, %v8003
  %v8041 = vsel %vm1086, %v7942, 0
  %8043 = vmatprep.subr.bf16.mxu0 %v8009
  %8044 = vmatpush1.bf16.msra.mxu0 %v8008
  %8045 = vmatprep.subr.bf16.mxu0 %v8013
  %8046 = vmatpush1.bf16.msra.mxu0 %v8012
  %8047 = vmatprep.subr.bf16.mxu0 %v8017
  %8048 = vmatpush1.bf16.msra.mxu0 %v8016
  %8049 = vmatprep.subr.bf16.mxu0 %v8021
  %8050 = vmatpush1.bf16.msra.mxu0 %v8020
  %8051 = vmatprep.subr.bf16.mxu0 0
  %8052 = vmatpush1.bf16.msra.mxu0 0
  %8053 = vmatprep.subr.bf16.mxu0 0
  %8054 = vmatpush1.bf16.msra.mxu0 0
  %8055 = vmatprep.subr.bf16.mxu0 0
  %8056 = vmatpush1.bf16.msra.mxu0 0
  %8057 = vmatprep.subr.bf16.mxu0 0
  %8058 = vmatpush1.bf16.msra.mxu0 0
  %8059 = vmatprep.subr.bf16.mxu0 0
  %8060 = vmatpush1.bf16.msra.mxu0 0
  %8061 = vmatprep.subr.bf16.mxu0 0
  %8062 = vmatpush1.bf16.msra.mxu0 0
  %8063 = vmatprep.subr.bf16.mxu0 0
  %8064 = vmatpush1.bf16.msra.mxu0 0
  %8065 = vmatprep.subr.bf16.mxu0 0
  %8066 = vmatpush1.bf16.msra.mxu0 0
  %8067 = vmatprep.subr.bf16.mxu0 0
  %8068 = vmatpush1.bf16.msra.mxu0 0
  %8069 = vmatprep.subr.bf16.mxu0 0
  %8070 = vmatpush1.bf16.msra.mxu0 0
  %8071 = vmatprep.subr.bf16.mxu0 0
  %8072 = vmatpush1.bf16.msra.mxu0 0
  %8073 = vmatprep.subr.bf16.mxu0 0
  %8074 = vmatpush1.bf16.msra.mxu0 0
  %8075 = vmatprep.mubr.bf16.mxu0 0
  %8076 = vmatmul.mubr.bf16.gmra.mrb[0].mxu0 %v8041
  %v8077 = vpop.f32.mrb[0].mxu0
  %v8078 = vadd.f32 0.0, %v8077
  %v8079 = vpop.f32.mrb[0].mxu0
  %v8080 = vadd.f32 0.0, %v8079
  %v8081 = vpop.f32.mrb[0].mxu0
  %v8082 = vpop.f32.mrb[0].mxu0
  %8083 = vdwg.mxu0
  %8084 = vmatprep.subr.bf16.mxu0 %v8011
  %8085 = vmatpush1.bf16.msra.mxu0 %v8010
  %8086 = vmatprep.subr.bf16.mxu0 %v8015
  %8087 = vmatpush1.bf16.msra.mxu0 %v8014
  %8088 = vmatprep.subr.bf16.mxu0 %v8019
  %8089 = vmatpush1.bf16.msra.mxu0 %v8018
  %8090 = vmatprep.subr.bf16.mxu0 %v8023
  %8091 = vmatpush1.bf16.msra.mxu0 %v8022
  %8092 = vmatprep.subr.bf16.mxu0 0
  %8093 = vmatpush1.bf16.msra.mxu0 0
  %8094 = vmatprep.subr.bf16.mxu0 0
  %8095 = vmatpush1.bf16.msra.mxu0 0
  %8096 = vmatprep.subr.bf16.mxu0 0
  %8097 = vmatpush1.bf16.msra.mxu0 0
  %8098 = vmatprep.subr.bf16.mxu0 0
  %8099 = vmatpush1.bf16.msra.mxu0 0
  %8100 = vmatprep.subr.bf16.mxu0 0
  %8101 = vmatpush1.bf16.msra.mxu0 0
  %8102 = vmatprep.subr.bf16.mxu0 0
  %8103 = vmatpush1.bf16.msra.mxu0 0
  %8104 = vmatprep.subr.bf16.mxu0 0
  %8105 = vmatpush1.bf16.msra.mxu0 0
  %8106 = vmatprep.subr.bf16.mxu0 0
  %8107 = vmatpush1.bf16.msra.mxu0 0
  %8108 = vmatprep.subr.bf16.mxu0 0
  %8109 = vmatpush1.bf16.msra.mxu0 0
  %8110 = vmatprep.subr.bf16.mxu0 0
  %8111 = vmatpush1.bf16.msra.mxu0 0
  %8112 = vmatprep.subr.bf16.mxu0 0
  %8113 = vmatpush1.bf16.msra.mxu0 0
  %8114 = vmatprep.subr.bf16.mxu0 0
  %8115 = vmatpush1.bf16.msra.mxu0 0
  %8116 = vmatprep.mubr.bf16.mxu0 0
  %8117 = vmatmul.mubr.bf16.gmra.mrb[0].mxu0 %v8041
  %v8118 = vpop.f32.mrb[0].mxu0
  %v8119 = vadd.f32 0.0, %v8118
  %v8120 = vpop.f32.mrb[0].mxu0
  %v8121 = vadd.f32 0.0, %v8120
  %v8122 = vpop.f32.mrb[0].mxu0
  %v8123 = vpop.f32.mrb[0].mxu0
  %8124 = vdwg.mxu0
  %v8125 = vadd.f32 %v7938, %v8078
  %v8126 = vadd.f32 %v7939, %v8080
  %v8127 = vadd.f32 %v7940, %v8119
  %v8128 = vadd.f32 %v7941, %v8121
  %v8129 = vld [vmem:[#allocation2 + $0x80] sm:$0xf]
  %s8130 = scalar_lea.vmem %s3, 4096
  %v8131 = vld [vmem:[%s8130] sm:$0xff]
  %v8132 = vld [vmem:[%s8130 + $0x8] sm:$0xff]
  %v8133 = vld [vmem:[%s8130 + $0x10] sm:$0xff]
  %v8134 = vld [vmem:[%s8130 + $0x18] sm:$0xff]
  %v8135 = vld [vmem:[%s8130 + $0x20] sm:$0xff]
  %v8136 = vld [vmem:[%s8130 + $0x28] sm:$0xff]
  %v8137 = vld [vmem:[%s8130 + $0x30] sm:$0xff]
  %v8138 = vld [vmem:[%s8130 + $0x38] sm:$0xff]
  %v8139 = vld [vmem:[%s8130 + $0x40] sm:$0xff]
  %v8140 = vld [vmem:[%s8130 + $0x48] sm:$0xff]
  %v8141 = vld [vmem:[%s8130 + $0x50] sm:$0xff]
  %v8142 = vld [vmem:[%s8130 + $0x58] sm:$0xff]
  %v8143 = vld [vmem:[%s8130 + $0x60] sm:$0xff]
  %v8144 = vld [vmem:[%s8130 + $0x68] sm:$0xff]
  %v8145 = vld [vmem:[%s8130 + $0x70] sm:$0xff]
  %v8146 = vld [vmem:[%s8130 + $0x78] sm:$0xff]
  %v8163 = vunpack.c.l.b16 %v8131
  %v8164 = vunpack.c.h.b16 %v8131
  %v8165 = vunpack.c.l.b16 %v8132
  %v8166 = vunpack.c.h.b16 %v8132
  %v8167 = vunpack.c.l.b16 %v8133
  %v8168 = vunpack.c.h.b16 %v8133
  %v8169 = vunpack.c.l.b16 %v8134
  %v8170 = vunpack.c.h.b16 %v8134
  %v8171 = vunpack.c.l.b16 %v8135
  %v8172 = vunpack.c.h.b16 %v8135
  %v8173 = vunpack.c.l.b16 %v8136
  %v8174 = vunpack.c.h.b16 %v8136
  %v8175 = vunpack.c.l.b16 %v8137
  %v8176 = vunpack.c.h.b16 %v8137
  %v8177 = vunpack.c.l.b16 %v8138
  %v8178 = vunpack.c.h.b16 %v8138
  %v8179 = vunpack.c.l.b16 %v8139
  %v8180 = vunpack.c.h.b16 %v8139
  %v8181 = vunpack.c.l.b16 %v8140
  %v8182 = vunpack.c.h.b16 %v8140
  %v8183 = vunpack.c.l.b16 %v8141
  %v8184 = vunpack.c.h.b16 %v8141
  %v8185 = vunpack.c.l.b16 %v8142
  %v8186 = vunpack.c.h.b16 %v8142
  %v8187 = vunpack.c.l.b16 %v8143
  %v8188 = vunpack.c.h.b16 %v8143
  %v8189 = vunpack.c.l.b16 %v8144
  %v8190 = vunpack.c.h.b16 %v8144
  %v8191 = vunpack.c.l.b16 %v8145
  %v8192 = vunpack.c.h.b16 %v8145
  %v8193 = vunpack.c.l.b16 %v8146
  %v8194 = vunpack.c.h.b16 %v8146
  %v8195 = vpack.c.b16 %v8167, %v8163
  %v8196 = vpack.c.b16 %v8168, %v8164
  %v8197 = vpack.c.b16 %v8169, %v8165
  %v8198 = vpack.c.b16 %v8170, %v8166
  %v8199 = vpack.c.b16 %v8175, %v8171
  %v8200 = vpack.c.b16 %v8176, %v8172
  %v8201 = vpack.c.b16 %v8177, %v8173
  %v8202 = vpack.c.b16 %v8178, %v8174
  %v8203 = vpack.c.b16 %v8183, %v8179
  %v8204 = vpack.c.b16 %v8184, %v8180
  %v8205 = vpack.c.b16 %v8185, %v8181
  %v8206 = vpack.c.b16 %v8186, %v8182
  %v8207 = vpack.c.b16 %v8191, %v8187
  %v8208 = vpack.c.b16 %v8192, %v8188
  %v8209 = vpack.c.b16 %v8193, %v8189
  %v8210 = vpack.c.b16 %v8194, %v8190
  %v8228 = vsel %vm1086, %v8129, 0
  %8230 = vmatprep.subr.bf16.mxu0 %v8196
  %8231 = vmatpush1.bf16.msra.mxu0 %v8195
  %8232 = vmatprep.subr.bf16.mxu0 %v8200
  %8233 = vmatpush1.bf16.msra.mxu0 %v8199
  %8234 = vmatprep.subr.bf16.mxu0 %v8204
  %8235 = vmatpush1.bf16.msra.mxu0 %v8203
  %8236 = vmatprep.subr.bf16.mxu0 %v8208
  %8237 = vmatpush1.bf16.msra.mxu0 %v8207
  %8238 = vmatprep.subr.bf16.mxu0 0
  %8239 = vmatpush1.bf16.msra.mxu0 0
  %8240 = vmatprep.subr.bf16.mxu0 0
  %8241 = vmatpush1.bf16.msra.mxu0 0
  %8242 = vmatprep.subr.bf16.mxu0 0
  %8243 = vmatpush1.bf16.msra.mxu0 0
  %8244 = vmatprep.subr.bf16.mxu0 0
  %8245 = vmatpush1.bf16.msra.mxu0 0
  %8246 = vmatprep.subr.bf16.mxu0 0
  %8247 = vmatpush1.bf16.msra.mxu0 0
  %8248 = vmatprep.subr.bf16.mxu0 0
  %8249 = vmatpush1.bf16.msra.mxu0 0
  %8250 = vmatprep.subr.bf16.mxu0 0
  %8251 = vmatpush1.bf16.msra.mxu0 0
  %8252 = vmatprep.subr.bf16.mxu0 0
  %8253 = vmatpush1.bf16.msra.mxu0 0
  %8254 = vmatprep.subr.bf16.mxu0 0
  %8255 = vmatpush1.bf16.msra.mxu0 0
  %8256 = vmatprep.subr.bf16.mxu0 0
  %8257 = vmatpush1.bf16.msra.mxu0 0
  %8258 = vmatprep.subr.bf16.mxu0 0
  %8259 = vmatpush1.bf16.msra.mxu0 0
  %8260 = vmatprep.subr.bf16.mxu0 0
  %8261 = vmatpush1.bf16.msra.mxu0 0
  %8262 = vmatprep.mubr.bf16.mxu0 0
  %8263 = vmatmul.mubr.bf16.gmra.mrb[0].mxu0 %v8228
  %v8264 = vpop.f32.mrb[0].mxu0
  %v8265 = vadd.f32 0.0, %v8264
  %v8266 = vpop.f32.mrb[0].mxu0
  %v8267 = vadd.f32 0.0, %v8266
  %v8268 = vpop.f32.mrb[0].mxu0
  %v8269 = vpop.f32.mrb[0].mxu0
  %8270 = vdwg.mxu0
  %8271 = vmatprep.subr.bf16.mxu0 %v8198
  %8272 = vmatpush1.bf16.msra.mxu0 %v8197
  %8273 = vmatprep.subr.bf16.mxu0 %v8202
  %8274 = vmatpush1.bf16.msra.mxu0 %v8201
  %8275 = vmatprep.subr.bf16.mxu0 %v8206
  %8276 = vmatpush1.bf16.msra.mxu0 %v8205
  %8277 = vmatprep.subr.bf16.mxu0 %v8210
  %8278 = vmatpush1.bf16.msra.mxu0 %v8209
  %8279 = vmatprep.subr.bf16.mxu0 0
  %8280 = vmatpush1.bf16.msra.mxu0 0
  %8281 = vmatprep.subr.bf16.mxu0 0
  %8282 = vmatpush1.bf16.msra.mxu0 0
  %8283 = vmatprep.subr.bf16.mxu0 0
  %8284 = vmatpush1.bf16.msra.mxu0 0
  %8285 = vmatprep.subr.bf16.mxu0 0
  %8286 = vmatpush1.bf16.msra.mxu0 0
  %8287 = vmatprep.subr.bf16.mxu0 0
  %8288 = vmatpush1.bf16.msra.mxu0 0
  %8289 = vmatprep.subr.bf16.mxu0 0
  %8290 = vmatpush1.bf16.msra.mxu0 0
  %8291 = vmatprep.subr.bf16.mxu0 0
  %8292 = vmatpush1.bf16.msra.mxu0 0
  %8293 = vmatprep.subr.bf16.mxu0 0
  %8294 = vmatpush1.bf16.msra.mxu0 0
  %8295 = vmatprep.subr.bf16.mxu0 0
  %8296 = vmatpush1.bf16.msra.mxu0 0
  %8297 = vmatprep.subr.bf16.mxu0 0
  %8298 = vmatpush1.bf16.msra.mxu0 0
  %8299 = vmatprep.subr.bf16.mxu0 0
  %8300 = vmatpush1.bf16.msra.mxu0 0
  %8301 = vmatprep.subr.bf16.mxu0 0
  %8302 = vmatpush1.bf16.msra.mxu0 0
  %8303 = vmatprep.mubr.bf16.mxu0 0
  %8304 = vmatmul.mubr.bf16.gmra.mrb[0].mxu0 %v8228
  %v8305 = vpop.f32.mrb[0].mxu0
  %v8306 = vadd.f32 0.0, %v8305
  %v8307 = vpop.f32.mrb[0].mxu0
  %v8308 = vadd.f32 0.0, %v8307
  %v8309 = vpop.f32.mrb[0].mxu0
  %v8310 = vpop.f32.mrb[0].mxu0
  %8311 = vdwg.mxu0
  %v8312 = vadd.f32 %v8125, %v8265
  %v8313 = vadd.f32 %v8126, %v8267
  %v8314 = vadd.f32 %v8127, %v8306
  %v8315 = vadd.f32 %v8128, %v8308
  %v8316 = vld [vmem:[#allocation2 + $0x84] sm:$0xf]
  %s8317 = scalar_lea.vmem %s3, 4224
  %v8318 = vld [vmem:[%s8317] sm:$0xff]
  %v8319 = vld [vmem:[%s8317 + $0x8] sm:$0xff]
  %v8320 = vld [vmem:[%s8317 + $0x10] sm:$0xff]
  %v8321 = vld [vmem:[%s8317 + $0x18] sm:$0xff]
  %v8322 = vld [vmem:[%s8317 + $0x20] sm:$0xff]
  %v8323 = vld [vmem:[%s8317 + $0x28] sm:$0xff]
  %v8324 = vld [vmem:[%s8317 + $0x30] sm:$0xff]
  %v8325 = vld [vmem:[%s8317 + $0x38] sm:$0xff]
  %v8326 = vld [vmem:[%s8317 + $0x40] sm:$0xff]
  %v8327 = vld [vmem:[%s8317 + $0x48] sm:$0xff]
  %v8328 = vld [vmem:[%s8317 + $0x50] sm:$0xff]
  %v8329 = vld [vmem:[%s8317 + $0x58] sm:$0xff]
  %v8330 = vld [vmem:[%s8317 + $0x60] sm:$0xff]
  %v8331 = vld [vmem:[%s8317 + $0x68] sm:$0xff]
  %v8332 = vld [vmem:[%s8317 + $0x70] sm:$0xff]
  %v8333 = vld [vmem:[%s8317 + $0x78] sm:$0xff]
  %v8350 = vunpack.c.l.b16 %v8318
  %v8351 = vunpack.c.h.b16 %v8318
  %v8352 = vunpack.c.l.b16 %v8319
  %v8353 = vunpack.c.h.b16 %v8319
  %v8354 = vunpack.c.l.b16 %v8320
  %v8355 = vunpack.c.h.b16 %v8320
  %v8356 = vunpack.c.l.b16 %v8321
  %v8357 = vunpack.c.h.b16 %v8321
  %v8358 = vunpack.c.l.b16 %v8322
  %v8359 = vunpack.c.h.b16 %v8322
  %v8360 = vunpack.c.l.b16 %v8323
  %v8361 = vunpack.c.h.b16 %v8323
  %v8362 = vunpack.c.l.b16 %v8324
  %v8363 = vunpack.c.h.b16 %v8324
  %v8364 = vunpack.c.l.b16 %v8325
  %v8365 = vunpack.c.h.b16 %v8325
  %v8366 = vunpack.c.l.b16 %v8326
  %v8367 = vunpack.c.h.b16 %v8326
  %v8368 = vunpack.c.l.b16 %v8327
  %v8369 = vunpack.c.h.b16 %v8327
  %v8370 = vunpack.c.l.b16 %v8328
  %v8371 = vunpack.c.h.b16 %v8328
  %v8372 = vunpack.c.l.b16 %v8329
  %v8373 = vunpack.c.h.b16 %v8329
  %v8374 = vunpack.c.l.b16 %v8330
  %v8375 = vunpack.c.h.b16 %v8330
  %v8376 = vunpack.c.l.b16 %v8331
  %v8377 = vunpack.c.h.b16 %v8331
  %v8378 = vunpack.c.l.b16 %v8332
  %v8379 = vunpack.c.h.b16 %v8332
  %v8380 = vunpack.c.l.b16 %v8333
  %v8381 = vunpack.c.h.b16 %v8333
  %v8382 = vpack.c.b16 %v8354, %v8350
  %v8383 = vpack.c.b16 %v8355, %v8351
  %v8384 = vpack.c.b16 %v8356, %v8352
  %v8385 = vpack.c.b16 %v8357, %v8353
  %v8386 = vpack.c.b16 %v8362, %v8358
  %v8387 = vpack.c.b16 %v8363, %v8359
  %v8388 = vpack.c.b16 %v8364, %v8360
  %v8389 = vpack.c.b16 %v8365, %v8361
  %v8390 = vpack.c.b16 %v8370, %v8366
  %v8391 = vpack.c.b16 %v8371, %v8367
  %v8392 = vpack.c.b16 %v8372, %v8368
  %v8393 = vpack.c.b16 %v8373, %v8369
  %v8394 = vpack.c.b16 %v8378, %v8374
  %v8395 = vpack.c.b16 %v8379, %v8375
  %v8396 = vpack.c.b16 %v8380, %v8376
  %v8397 = vpack.c.b16 %v8381, %v8377
  %v8415 = vsel %vm1086, %v8316, 0
  %8417 = vmatprep.subr.bf16.mxu0 %v8383
  %8418 = vmatpush1.bf16.msra.mxu0 %v8382
  %8419 = vmatprep.subr.bf16.mxu0 %v8387
  %8420 = vmatpush1.bf16.msra.mxu0 %v8386
  %8421 = vmatprep.subr.bf16.mxu0 %v8391
  %8422 = vmatpush1.bf16.msra.mxu0 %v8390
  %8423 = vmatprep.subr.bf16.mxu0 %v8395
  %8424 = vmatpush1.bf16.msra.mxu0 %v8394
  %8425 = vmatprep.subr.bf16.mxu0 0
  %8426 = vmatpush1.bf16.msra.mxu0 0
  %8427 = vmatprep.subr.bf16.mxu0 0
  %8428 = vmatpush1.bf16.msra.mxu0 0
  %8429 = vmatprep.subr.bf16.mxu0 0
  %8430 = vmatpush1.bf16.msra.mxu0 0
  %8431 = vmatprep.subr.bf16.mxu0 0
  %8432 = vmatpush1.bf16.msra.mxu0 0
  %8433 = vmatprep.subr.bf16.mxu0 0
  %8434 = vmatpush1.bf16.msra.mxu0 0
  %8435 = vmatprep.subr.bf16.mxu0 0
  %8436 = vmatpush1.bf16.msra.mxu0 0
  %8437 = vmatprep.subr.bf16.mxu0 0
  %8438 = vmatpush1.bf16.msra.mxu0 0
  %8439 = vmatprep.subr.bf16.mxu0 0
  %8440 = vmatpush1.bf16.msra.mxu0 0
  %8441 = vmatprep.subr.bf16.mxu0 0
  %8442 = vmatpush1.bf16.msra.mxu0 0
  %8443 = vmatprep.subr.bf16.mxu0 0
  %8444 = vmatpush1.bf16.msra.mxu0 0
  %8445 = vmatprep.subr.bf16.mxu0 0
  %8446 = vmatpush1.bf16.msra.mxu0 0
  %8447 = vmatprep.subr.bf16.mxu0 0
  %8448 = vmatpush1.bf16.msra.mxu0 0
  %8449 = vmatprep.mubr.bf16.mxu0 0
  %8450 = vmatmul.mubr.bf16.gmra.mrb[0].mxu0 %v8415
  %v8451 = vpop.f32.mrb[0].mxu0
  %v8452 = vadd.f32 0.0, %v8451
  %v8453 = vpop.f32.mrb[0].mxu0
  %v8454 = vadd.f32 0.0, %v8453
  %v8455 = vpop.f32.mrb[0].mxu0
  %v8456 = vpop.f32.mrb[0].mxu0
  %8457 = vdwg.mxu0
  %8458 = vmatprep.subr.bf16.mxu0 %v8385
  %8459 = vmatpush1.bf16.msra.mxu0 %v8384
  %8460 = vmatprep.subr.bf16.mxu0 %v8389
  %8461 = vmatpush1.bf16.msra.mxu0 %v8388
  %8462 = vmatprep.subr.bf16.mxu0 %v8393
  %8463 = vmatpush1.bf16.msra.mxu0 %v8392
  %8464 = vmatprep.subr.bf16.mxu0 %v8397
  %8465 = vmatpush1.bf16.msra.mxu0 %v8396
  %8466 = vmatprep.subr.bf16.mxu0 0
  %8467 = vmatpush1.bf16.msra.mxu0 0
  %8468 = vmatprep.subr.bf16.mxu0 0
  %8469 = vmatpush1.bf16.msra.mxu0 0
  %8470 = vmatprep.subr.bf16.mxu0 0
  %8471 = vmatpush1.bf16.msra.mxu0 0
  %8472 = vmatprep.subr.bf16.mxu0 0
  %8473 = vmatpush1.bf16.msra.mxu0 0
  %8474 = vmatprep.subr.bf16.mxu0 0
  %8475 = vmatpush1.bf16.msra.mxu0 0
  %8476 = vmatprep.subr.bf16.mxu0 0
  %8477 = vmatpush1.bf16.msra.mxu0 0
  %8478 = vmatprep.subr.bf16.mxu0 0
  %8479 = vmatpush1.bf16.msra.mxu0 0
  %8480 = vmatprep.subr.bf16.mxu0 0
  %8481 = vmatpush1.bf16.msra.mxu0 0
  %8482 = vmatprep.subr.bf16.mxu0 0
  %8483 = vmatpush1.bf16.msra.mxu0 0
  %8484 = vmatprep.subr.bf16.mxu0 0
  %8485 = vmatpush1.bf16.msra.mxu0 0
  %8486 = vmatprep.subr.bf16.mxu0 0
  %8487 = vmatpush1.bf16.msra.mxu0 0
  %8488 = vmatprep.subr.bf16.mxu0 0
  %8489 = vmatpush1.bf16.msra.mxu0 0
  %8490 = vmatprep.mubr.bf16.mxu0 0
  %8491 = vmatmul.mubr.bf16.gmra.mrb[0].mxu0 %v8415
  %v8492 = vpop.f32.mrb[0].mxu0
  %v8493 = vadd.f32 0.0, %v8492
  %v8494 = vpop.f32.mrb[0].mxu0
  %v8495 = vadd.f32 0.0, %v8494
  %v8496 = vpop.f32.mrb[0].mxu0
  %v8497 = vpop.f32.mrb[0].mxu0
  %8498 = vdwg.mxu0
  %v8499 = vadd.f32 %v8312, %v8452
  %v8500 = vadd.f32 %v8313, %v8454
  %v8501 = vadd.f32 %v8314, %v8493
  %v8502 = vadd.f32 %v8315, %v8495
  %v8503 = vld [vmem:[#allocation2 + $0x88] sm:$0xf]
  %s8504 = scalar_lea.vmem %s3, 4352
  %v8505 = vld [vmem:[%s8504] sm:$0xff]
  %v8506 = vld [vmem:[%s8504 + $0x8] sm:$0xff]
  %v8507 = vld [vmem:[%s8504 + $0x10] sm:$0xff]
  %v8508 = vld [vmem:[%s8504 + $0x18] sm:$0xff]
  %v8509 = vld [vmem:[%s8504 + $0x20] sm:$0xff]
  %v8510 = vld [vmem:[%s8504 + $0x28] sm:$0xff]
  %v8511 = vld [vmem:[%s8504 + $0x30] sm:$0xff]
  %v8512 = vld [vmem:[%s8504 + $0x38] sm:$0xff]
  %v8513 = vld [vmem:[%s8504 + $0x40] sm:$0xff]
  %v8514 = vld [vmem:[%s8504 + $0x48] sm:$0xff]
  %v8515 = vld [vmem:[%s8504 + $0x50] sm:$0xff]
  %v8516 = vld [vmem:[%s8504 + $0x58] sm:$0xff]
  %v8517 = vld [vmem:[%s8504 + $0x60] sm:$0xff]
  %v8518 = vld [vmem:[%s8504 + $0x68] sm:$0xff]
  %v8519 = vld [vmem:[%s8504 + $0x70] sm:$0xff]
  %v8520 = vld [vmem:[%s8504 + $0x78] sm:$0xff]
  %v8537 = vunpack.c.l.b16 %v8505
  %v8538 = vunpack.c.h.b16 %v8505
  %v8539 = vunpack.c.l.b16 %v8506
  %v8540 = vunpack.c.h.b16 %v8506
  %v8541 = vunpack.c.l.b16 %v8507
  %v8542 = vunpack.c.h.b16 %v8507
  %v8543 = vunpack.c.l.b16 %v8508
  %v8544 = vunpack.c.h.b16 %v8508
  %v8545 = vunpack.c.l.b16 %v8509
  %v8546 = vunpack.c.h.b16 %v8509
  %v8547 = vunpack.c.l.b16 %v8510
  %v8548 = vunpack.c.h.b16 %v8510
  %v8549 = vunpack.c.l.b16 %v8511
  %v8550 = vunpack.c.h.b16 %v8511
  %v8551 = vunpack.c.l.b16 %v8512
  %v8552 = vunpack.c.h.b16 %v8512
  %v8553 = vunpack.c.l.b16 %v8513
  %v8554 = vunpack.c.h.b16 %v8513
  %v8555 = vunpack.c.l.b16 %v8514
  %v8556 = vunpack.c.h.b16 %v8514
  %v8557 = vunpack.c.l.b16 %v8515
  %v8558 = vunpack.c.h.b16 %v8515
  %v8559 = vunpack.c.l.b16 %v8516
  %v8560 = vunpack.c.h.b16 %v8516
  %v8561 = vunpack.c.l.b16 %v8517
  %v8562 = vunpack.c.h.b16 %v8517
  %v8563 = vunpack.c.l.b16 %v8518
  %v8564 = vunpack.c.h.b16 %v8518
  %v8565 = vunpack.c.l.b16 %v8519
  %v8566 = vunpack.c.h.b16 %v8519
  %v8567 = vunpack.c.l.b16 %v8520
  %v8568 = vunpack.c.h.b16 %v8520
  %v8569 = vpack.c.b16 %v8541, %v8537
  %v8570 = vpack.c.b16 %v8542, %v8538
  %v8571 = vpack.c.b16 %v8543, %v8539
  %v8572 = vpack.c.b16 %v8544, %v8540
  %v8573 = vpack.c.b16 %v8549, %v8545
  %v8574 = vpack.c.b16 %v8550, %v8546
  %v8575 = vpack.c.b16 %v8551, %v8547
  %v8576 = vpack.c.b16 %v8552, %v8548
  %v8577 = vpack.c.b16 %v8557, %v8553
  %v8578 = vpack.c.b16 %v8558, %v8554
  %v8579 = vpack.c.b16 %v8559, %v8555
  %v8580 = vpack.c.b16 %v8560, %v8556
  %v8581 = vpack.c.b16 %v8565, %v8561
  %v8582 = vpack.c.b16 %v8566, %v8562
  %v8583 = vpack.c.b16 %v8567, %v8563
  %v8584 = vpack.c.b16 %v8568, %v8564
  %v8602 = vsel %vm1086, %v8503, 0
  %8604 = vmatprep.subr.bf16.mxu0 %v8570
  %8605 = vmatpush1.bf16.msra.mxu0 %v8569
  %8606 = vmatprep.subr.bf16.mxu0 %v8574
  %8607 = vmatpush1.bf16.msra.mxu0 %v8573
  %8608 = vmatprep.subr.bf16.mxu0 %v8578
  %8609 = vmatpush1.bf16.msra.mxu0 %v8577
  %8610 = vmatprep.subr.bf16.mxu0 %v8582
  %8611 = vmatpush1.bf16.msra.mxu0 %v8581
  %8612 = vmatprep.subr.bf16.mxu0 0
  %8613 = vmatpush1.bf16.msra.mxu0 0
  %8614 = vmatprep.subr.bf16.mxu0 0
  %8615 = vmatpush1.bf16.msra.mxu0 0
  %8616 = vmatprep.subr.bf16.mxu0 0
  %8617 = vmatpush1.bf16.msra.mxu0 0
  %8618 = vmatprep.subr.bf16.mxu0 0
  %8619 = vmatpush1.bf16.msra.mxu0 0
  %8620 = vmatprep.subr.bf16.mxu0 0
  %8621 = vmatpush1.bf16.msra.mxu0 0
  %8622 = vmatprep.subr.bf16.mxu0 0
  %8623 = vmatpush1.bf16.msra.mxu0 0
  %8624 = vmatprep.subr.bf16.mxu0 0
  %8625 = vmatpush1.bf16.msra.mxu0 0
  %8626 = vmatprep.subr.bf16.mxu0 0
  %8627 = vmatpush1.bf16.msra.mxu0 0
  %8628 = vmatprep.subr.bf16.mxu0 0
  %8629 = vmatpush1.bf16.msra.mxu0 0
  %8630 = vmatprep.subr.bf16.mxu0 0
  %8631 = vmatpush1.bf16.msra.mxu0 0
  %8632 = vmatprep.subr.bf16.mxu0 0
  %8633 = vmatpush1.bf16.msra.mxu0 0
  %8634 = vmatprep.subr.bf16.mxu0 0
  %8635 = vmatpush1.bf16.msra.mxu0 0
  %8636 = vmatprep.mubr.bf16.mxu0 0
  %8637 = vmatmul.mubr.bf16.gmra.mrb[0].mxu0 %v8602
  %v8638 = vpop.f32.mrb[0].mxu0
  %v8639 = vadd.f32 0.0, %v8638
  %v8640 = vpop.f32.mrb[0].mxu0
  %v8641 = vadd.f32 0.0, %v8640
  %v8642 = vpop.f32.mrb[0].mxu0
  %v8643 = vpop.f32.mrb[0].mxu0
  %8644 = vdwg.mxu0
  %8645 = vmatprep.subr.bf16.mxu0 %v8572
  %8646 = vmatpush1.bf16.msra.mxu0 %v8571
  %8647 = vmatprep.subr.bf16.mxu0 %v8576
  %8648 = vmatpush1.bf16.msra.mxu0 %v8575
  %8649 = vmatprep.subr.bf16.mxu0 %v8580
  %8650 = vmatpush1.bf16.msra.mxu0 %v8579
  %8651 = vmatprep.subr.bf16.mxu0 %v8584
  %8652 = vmatpush1.bf16.msra.mxu0 %v8583
  %8653 = vmatprep.subr.bf16.mxu0 0
  %8654 = vmatpush1.bf16.msra.mxu0 0
  %8655 = vmatprep.subr.bf16.mxu0 0
  %8656 = vmatpush1.bf16.msra.mxu0 0
  %8657 = vmatprep.subr.bf16.mxu0 0
  %8658 = vmatpush1.bf16.msra.mxu0 0
  %8659 = vmatprep.subr.bf16.mxu0 0
  %8660 = vmatpush1.bf16.msra.mxu0 0
  %8661 = vmatprep.subr.bf16.mxu0 0
  %8662 = vmatpush1.bf16.msra.mxu0 0
  %8663 = vmatprep.subr.bf16.mxu0 0
  %8664 = vmatpush1.bf16.msra.mxu0 0
  %8665 = vmatprep.subr.bf16.mxu0 0
  %8666 = vmatpush1.bf16.msra.mxu0 0
  %8667 = vmatprep.subr.bf16.mxu0 0
  %8668 = vmatpush1.bf16.msra.mxu0 0
  %8669 = vmatprep.subr.bf16.mxu0 0
  %8670 = vmatpush1.bf16.msra.mxu0 0
  %8671 = vmatprep.subr.bf16.mxu0 0
  %8672 = vmatpush1.bf16.msra.mxu0 0
  %8673 = vmatprep.subr.bf16.mxu0 0
  %8674 = vmatpush1.bf16.msra.mxu0 0
  %8675 = vmatprep.subr.bf16.mxu0 0
  %8676 = vmatpush1.bf16.msra.mxu0 0
  %8677 = vmatprep.mubr.bf16.mxu0 0
  %8678 = vmatmul.mubr.bf16.gmra.mrb[0].mxu0 %v8602
  %v8679 = vpop.f32.mrb[0].mxu0
  %v8680 = vadd.f32 0.0, %v8679
  %v8681 = vpop.f32.mrb[0].mxu0
  %v8682 = vadd.f32 0.0, %v8681
  %v8683 = vpop.f32.mrb[0].mxu0
  %v8684 = vpop.f32.mrb[0].mxu0
  %8685 = vdwg.mxu0
  %v8686 = vadd.f32 %v8499, %v8639
  %v8687 = vadd.f32 %v8500, %v8641
  %v8688 = vadd.f32 %v8501, %v8680
  %v8689 = vadd.f32 %v8502, %v8682
  %v8690 = vld [vmem:[#allocation2 + $0x8c] sm:$0xf]
  %s8691 = scalar_lea.vmem %s3, 4480
  %v8692 = vld [vmem:[%s8691] sm:$0xff]
  %v8693 = vld [vmem:[%s8691 + $0x8] sm:$0xff]
  %v8694 = vld [vmem:[%s8691 + $0x10] sm:$0xff]
  %v8695 = vld [vmem:[%s8691 + $0x18] sm:$0xff]
  %v8696 = vld [vmem:[%s8691 + $0x20] sm:$0xff]
  %v8697 = vld [vmem:[%s8691 + $0x28] sm:$0xff]
  %v8698 = vld [vmem:[%s8691 + $0x30] sm:$0xff]
  %v8699 = vld [vmem:[%s8691 + $0x38] sm:$0xff]
  %v8700 = vld [vmem:[%s8691 + $0x40] sm:$0xff]
  %v8701 = vld [vmem:[%s8691 + $0x48] sm:$0xff]
  %v8702 = vld [vmem:[%s8691 + $0x50] sm:$0xff]
  %v8703 = vld [vmem:[%s8691 + $0x58] sm:$0xff]
  %v8704 = vld [vmem:[%s8691 + $0x60] sm:$0xff]
  %v8705 = vld [vmem:[%s8691 + $0x68] sm:$0xff]
  %v8706 = vld [vmem:[%s8691 + $0x70] sm:$0xff]
  %v8707 = vld [vmem:[%s8691 + $0x78] sm:$0xff]
  %v8724 = vunpack.c.l.b16 %v8692
  %v8725 = vunpack.c.h.b16 %v8692
  %v8726 = vunpack.c.l.b16 %v8693
  %v8727 = vunpack.c.h.b16 %v8693
  %v8728 = vunpack.c.l.b16 %v8694
  %v8729 = vunpack.c.h.b16 %v8694
  %v8730 = vunpack.c.l.b16 %v8695
  %v8731 = vunpack.c.h.b16 %v8695
  %v8732 = vunpack.c.l.b16 %v8696
  %v8733 = vunpack.c.h.b16 %v8696
  %v8734 = vunpack.c.l.b16 %v8697
  %v8735 = vunpack.c.h.b16 %v8697
  %v8736 = vunpack.c.l.b16 %v8698
  %v8737 = vunpack.c.h.b16 %v8698
  %v8738 = vunpack.c.l.b16 %v8699
  %v8739 = vunpack.c.h.b16 %v8699
  %v8740 = vunpack.c.l.b16 %v8700
  %v8741 = vunpack.c.h.b16 %v8700
  %v8742 = vunpack.c.l.b16 %v8701
  %v8743 = vunpack.c.h.b16 %v8701
  %v8744 = vunpack.c.l.b16 %v8702
  %v8745 = vunpack.c.h.b16 %v8702
  %v8746 = vunpack.c.l.b16 %v8703
  %v8747 = vunpack.c.h.b16 %v8703
  %v8748 = vunpack.c.l.b16 %v8704
  %v8749 = vunpack.c.h.b16 %v8704
  %v8750 = vunpack.c.l.b16 %v8705
  %v8751 = vunpack.c.h.b16 %v8705
  %v8752 = vunpack.c.l.b16 %v8706
  %v8753 = vunpack.c.h.b16 %v8706
  %v8754 = vunpack.c.l.b16 %v8707
  %v8755 = vunpack.c.h.b16 %v8707
  %v8756 = vpack.c.b16 %v8728, %v8724
  %v8757 = vpack.c.b16 %v8729, %v8725
  %v8758 = vpack.c.b16 %v8730, %v8726
  %v8759 = vpack.c.b16 %v8731, %v8727
  %v8760 = vpack.c.b16 %v8736, %v8732
  %v8761 = vpack.c.b16 %v8737, %v8733
  %v8762 = vpack.c.b16 %v8738, %v8734
  %v8763 = vpack.c.b16 %v8739, %v8735
  %v8764 = vpack.c.b16 %v8744, %v8740
  %v8765 = vpack.c.b16 %v8745, %v8741
  %v8766 = vpack.c.b16 %v8746, %v8742
  %v8767 = vpack.c.b16 %v8747, %v8743
  %v8768 = vpack.c.b16 %v8752, %v8748
  %v8769 = vpack.c.b16 %v8753, %v8749
  %v8770 = vpack.c.b16 %v8754, %v8750
  %v8771 = vpack.c.b16 %v8755, %v8751
  %v8789 = vsel %vm1086, %v8690, 0
  %8791 = vmatprep.subr.bf16.mxu0 %v8757
  %8792 = vmatpush1.bf16.msra.mxu0 %v8756
  %8793 = vmatprep.subr.bf16.mxu0 %v8761
  %8794 = vmatpush1.bf16.msra.mxu0 %v8760
  %8795 = vmatprep.subr.bf16.mxu0 %v8765
  %8796 = vmatpush1.bf16.msra.mxu0 %v8764
  %8797 = vmatprep.subr.bf16.mxu0 %v8769
  %8798 = vmatpush1.bf16.msra.mxu0 %v8768
  %8799 = vmatprep.subr.bf16.mxu0 0
  %8800 = vmatpush1.bf16.msra.mxu0 0
  %8801 = vmatprep.subr.bf16.mxu0 0
  %8802 = vmatpush1.bf16.msra.mxu0 0
  %8803 = vmatprep.subr.bf16.mxu0 0
  %8804 = vmatpush1.bf16.msra.mxu0 0
  %8805 = vmatprep.subr.bf16.mxu0 0
  %8806 = vmatpush1.bf16.msra.mxu0 0
  %8807 = vmatprep.subr.bf16.mxu0 0
  %8808 = vmatpush1.bf16.msra.mxu0 0
  %8809 = vmatprep.subr.bf16.mxu0 0
  %8810 = vmatpush1.bf16.msra.mxu0 0
  %8811 = vmatprep.subr.bf16.mxu0 0
  %8812 = vmatpush1.bf16.msra.mxu0 0
  %8813 = vmatprep.subr.bf16.mxu0 0
  %8814 = vmatpush1.bf16.msra.mxu0 0
  %8815 = vmatprep.subr.bf16.mxu0 0
  %8816 = vmatpush1.bf16.msra.mxu0 0
  %8817 = vmatprep.subr.bf16.mxu0 0
  %8818 = vmatpush1.bf16.msra.mxu0 0
  %8819 = vmatprep.subr.bf16.mxu0 0
  %8820 = vmatpush1.bf16.msra.mxu0 0
  %8821 = vmatprep.subr.bf16.mxu0 0
  %8822 = vmatpush1.bf16.msra.mxu0 0
  %8823 = vmatprep.mubr.bf16.mxu0 0
  %8824 = vmatmul.mubr.bf16.gmra.mrb[0].mxu0 %v8789
  %v8825 = vpop.f32.mrb[0].mxu0
  %v8826 = vadd.f32 0.0, %v8825
  %v8827 = vpop.f32.mrb[0].mxu0
  %v8828 = vadd.f32 0.0, %v8827
  %v8829 = vpop.f32.mrb[0].mxu0
  %v8830 = vpop.f32.mrb[0].mxu0
  %8831 = vdwg.mxu0
  %8832 = vmatprep.subr.bf16.mxu0 %v8759
  %8833 = vmatpush1.bf16.msra.mxu0 %v8758
  %8834 = vmatprep.subr.bf16.mxu0 %v8763
  %8835 = vmatpush1.bf16.msra.mxu0 %v8762
  %8836 = vmatprep.subr.bf16.mxu0 %v8767
  %8837 = vmatpush1.bf16.msra.mxu0 %v8766
  %8838 = vmatprep.subr.bf16.mxu0 %v8771
  %8839 = vmatpush1.bf16.msra.mxu0 %v8770
  %8840 = vmatprep.subr.bf16.mxu0 0
  %8841 = vmatpush1.bf16.msra.mxu0 0
  %8842 = vmatprep.subr.bf16.mxu0 0
  %8843 = vmatpush1.bf16.msra.mxu0 0
  %8844 = vmatprep.subr.bf16.mxu0 0
  %8845 = vmatpush1.bf16.msra.mxu0 0
  %8846 = vmatprep.subr.bf16.mxu0 0
  %8847 = vmatpush1.bf16.msra.mxu0 0
  %8848 = vmatprep.subr.bf16.mxu0 0
  %8849 = vmatpush1.bf16.msra.mxu0 0
  %8850 = vmatprep.subr.bf16.mxu0 0
  %8851 = vmatpush1.bf16.msra.mxu0 0
  %8852 = vmatprep.subr.bf16.mxu0 0
  %8853 = vmatpush1.bf16.msra.mxu0 0
  %8854 = vmatprep.subr.bf16.mxu0 0
  %8855 = vmatpush1.bf16.msra.mxu0 0
  %8856 = vmatprep.subr.bf16.mxu0 0
  %8857 = vmatpush1.bf16.msra.mxu0 0
  %8858 = vmatprep.subr.bf16.mxu0 0
  %8859 = vmatpush1.bf16.msra.mxu0 0
  %8860 = vmatprep.subr.bf16.mxu0 0
  %8861 = vmatpush1.bf16.msra.mxu0 0
  %8862 = vmatprep.subr.bf16.mxu0 0
  %8863 = vmatpush1.bf16.msra.mxu0 0
  %8864 = vmatprep.mubr.bf16.mxu0 0
  %8865 = vmatmul.mubr.bf16.gmra.mrb[0].mxu0 %v8789
  %v8866 = vpop.f32.mrb[0].mxu0
  %v8867 = vadd.f32 0.0, %v8866
  %v8868 = vpop.f32.mrb[0].mxu0
  %v8869 = vadd.f32 0.0, %v8868
  %v8870 = vpop.f32.mrb[0].mxu0
  %v8871 = vpop.f32.mrb[0].mxu0
  %8872 = vdwg.mxu0
  %v8873 = vadd.f32 %v8686, %v8826
  %v8874 = vadd.f32 %v8687, %v8828
  %v8875 = vadd.f32 %v8688, %v8867
  %v8876 = vadd.f32 %v8689, %v8869
  %v8877 = vld [vmem:[#allocation2 + $0x90] sm:$0xf]
  %s8878 = scalar_lea.vmem %s3, 4608
  %v8879 = vld [vmem:[%s8878] sm:$0xff]
  %v8880 = vld [vmem:[%s8878 + $0x8] sm:$0xff]
  %v8881 = vld [vmem:[%s8878 + $0x10] sm:$0xff]
  %v8882 = vld [vmem:[%s8878 + $0x18] sm:$0xff]
  %v8883 = vld [vmem:[%s8878 + $0x20] sm:$0xff]
  %v8884 = vld [vmem:[%s8878 + $0x28] sm:$0xff]
  %v8885 = vld [vmem:[%s8878 + $0x30] sm:$0xff]
  %v8886 = vld [vmem:[%s8878 + $0x38] sm:$0xff]
  %v8887 = vld [vmem:[%s8878 + $0x40] sm:$0xff]
  %v8888 = vld [vmem:[%s8878 + $0x48] sm:$0xff]
  %v8889 = vld [vmem:[%s8878 + $0x50] sm:$0xff]
  %v8890 = vld [vmem:[%s8878 + $0x58] sm:$0xff]
  %v8891 = vld [vmem:[%s8878 + $0x60] sm:$0xff]
  %v8892 = vld [vmem:[%s8878 + $0x68] sm:$0xff]
  %v8893 = vld [vmem:[%s8878 + $0x70] sm:$0xff]
  %v8894 = vld [vmem:[%s8878 + $0x78] sm:$0xff]
  %v8911 = vunpack.c.l.b16 %v8879
  %v8912 = vunpack.c.h.b16 %v8879
  %v8913 = vunpack.c.l.b16 %v8880
  %v8914 = vunpack.c.h.b16 %v8880
  %v8915 = vunpack.c.l.b16 %v8881
  %v8916 = vunpack.c.h.b16 %v8881
  %v8917 = vunpack.c.l.b16 %v8882
  %v8918 = vunpack.c.h.b16 %v8882
  %v8919 = vunpack.c.l.b16 %v8883
  %v8920 = vunpack.c.h.b16 %v8883
  %v8921 = vunpack.c.l.b16 %v8884
  %v8922 = vunpack.c.h.b16 %v8884
  %v8923 = vunpack.c.l.b16 %v8885
  %v8924 = vunpack.c.h.b16 %v8885
  %v8925 = vunpack.c.l.b16 %v8886
  %v8926 = vunpack.c.h.b16 %v8886
  %v8927 = vunpack.c.l.b16 %v8887
  %v8928 = vunpack.c.h.b16 %v8887
  %v8929 = vunpack.c.l.b16 %v8888
  %v8930 = vunpack.c.h.b16 %v8888
  %v8931 = vunpack.c.l.b16 %v8889
  %v8932 = vunpack.c.h.b16 %v8889
  %v8933 = vunpack.c.l.b16 %v8890
  %v8934 = vunpack.c.h.b16 %v8890
  %v8935 = vunpack.c.l.b16 %v8891
  %v8936 = vunpack.c.h.b16 %v8891
  %v8937 = vunpack.c.l.b16 %v8892
  %v8938 = vunpack.c.h.b16 %v8892
  %v8939 = vunpack.c.l.b16 %v8893
  %v8940 = vunpack.c.h.b16 %v8893
  %v8941 = vunpack.c.l.b16 %v8894
  %v8942 = vunpack.c.h.b16 %v8894
  %v8943 = vpack.c.b16 %v8915, %v8911
  %v8944 = vpack.c.b16 %v8916, %v8912
  %v8945 = vpack.c.b16 %v8917, %v8913
  %v8946 = vpack.c.b16 %v8918, %v8914
  %v8947 = vpack.c.b16 %v8923, %v8919
  %v8948 = vpack.c.b16 %v8924, %v8920
  %v8949 = vpack.c.b16 %v8925, %v8921
  %v8950 = vpack.c.b16 %v8926, %v8922
  %v8951 = vpack.c.b16 %v8931, %v8927
  %v8952 = vpack.c.b16 %v8932, %v8928
  %v8953 = vpack.c.b16 %v8933, %v8929
  %v8954 = vpack.c.b16 %v8934, %v8930
  %v8955 = vpack.c.b16 %v8939, %v8935
  %v8956 = vpack.c.b16 %v8940, %v8936
  %v8957 = vpack.c.b16 %v8941, %v8937
  %v8958 = vpack.c.b16 %v8942, %v8938
  %v8976 = vsel %vm1086, %v8877, 0
  %8978 = vmatprep.subr.bf16.mxu0 %v8944
  %8979 = vmatpush1.bf16.msra.mxu0 %v8943
  %8980 = vmatprep.subr.bf16.mxu0 %v8948
  %8981 = vmatpush1.bf16.msra.mxu0 %v8947
  %8982 = vmatprep.subr.bf16.mxu0 %v8952
  %8983 = vmatpush1.bf16.msra.mxu0 %v8951
  %8984 = vmatprep.subr.bf16.mxu0 %v8956
  %8985 = vmatpush1.bf16.msra.mxu0 %v8955
  %8986 = vmatprep.subr.bf16.mxu0 0
  %8987 = vmatpush1.bf16.msra.mxu0 0
  %8988 = vmatprep.subr.bf16.mxu0 0
  %8989 = vmatpush1.bf16.msra.mxu0 0
  %8990 = vmatprep.subr.bf16.mxu0 0
  %8991 = vmatpush1.bf16.msra.mxu0 0
  %8992 = vmatprep.subr.bf16.mxu0 0
  %8993 = vmatpush1.bf16.msra.mxu0 0
  %8994 = vmatprep.subr.bf16.mxu0 0
  %8995 = vmatpush1.bf16.msra.mxu0 0
  %8996 = vmatprep.subr.bf16.mxu0 0
  %8997 = vmatpush1.bf16.msra.mxu0 0
  %8998 = vmatprep.subr.bf16.mxu0 0
  %8999 = vmatpush1.bf16.msra.mxu0 0
  %9000 = vmatprep.subr.bf16.mxu0 0
  %9001 = vmatpush1.bf16.msra.mxu0 0
  %9002 = vmatprep.subr.bf16.mxu0 0
  %9003 = vmatpush1.bf16.msra.mxu0 0
  %9004 = vmatprep.subr.bf16.mxu0 0
  %9005 = vmatpush1.bf16.msra.mxu0 0
  %9006 = vmatprep.subr.bf16.mxu0 0
  %9007 = vmatpush1.bf16.msra.mxu0 0
  %9008 = vmatprep.subr.bf16.mxu0 0
  %9009 = vmatpush1.bf16.msra.mxu0 0
  %9010 = vmatprep.mubr.bf16.mxu0 0
  %9011 = vmatmul.mubr.bf16.gmra.mrb[0].mxu0 %v8976
  %v9012 = vpop.f32.mrb[0].mxu0
  %v9013 = vadd.f32 0.0, %v9012
  %v9014 = vpop.f32.mrb[0].mxu0
  %v9015 = vadd.f32 0.0, %v9014
  %v9016 = vpop.f32.mrb[0].mxu0
  %v9017 = vpop.f32.mrb[0].mxu0
  %9018 = vdwg.mxu0
  %9019 = vmatprep.subr.bf16.mxu0 %v8946
  %9020 = vmatpush1.bf16.msra.mxu0 %v8945
  %9021 = vmatprep.subr.bf16.mxu0 %v8950
  %9022 = vmatpush1.bf16.msra.mxu0 %v8949
  %9023 = vmatprep.subr.bf16.mxu0 %v8954
  %9024 = vmatpush1.bf16.msra.mxu0 %v8953
  %9025 = vmatprep.subr.bf16.mxu0 %v8958
  %9026 = vmatpush1.bf16.msra.mxu0 %v8957
  %9027 = vmatprep.subr.bf16.mxu0 0
  %9028 = vmatpush1.bf16.msra.mxu0 0
  %9029 = vmatprep.subr.bf16.mxu0 0
  %9030 = vmatpush1.bf16.msra.mxu0 0
  %9031 = vmatprep.subr.bf16.mxu0 0
  %9032 = vmatpush1.bf16.msra.mxu0 0
  %9033 = vmatprep.subr.bf16.mxu0 0
  %9034 = vmatpush1.bf16.msra.mxu0 0
  %9035 = vmatprep.subr.bf16.mxu0 0
  %9036 = vmatpush1.bf16.msra.mxu0 0
  %9037 = vmatprep.subr.bf16.mxu0 0
  %9038 = vmatpush1.bf16.msra.mxu0 0
  %9039 = vmatprep.subr.bf16.mxu0 0
  %9040 = vmatpush1.bf16.msra.mxu0 0
  %9041 = vmatprep.subr.bf16.mxu0 0
  %9042 = vmatpush1.bf16.msra.mxu0 0
  %9043 = vmatprep.subr.bf16.mxu0 0
  %9044 = vmatpush1.bf16.msra.mxu0 0
  %9045 = vmatprep.subr.bf16.mxu0 0
  %9046 = vmatpush1.bf16.msra.mxu0 0
  %9047 = vmatprep.subr.bf16.mxu0 0
  %9048 = vmatpush1.bf16.msra.mxu0 0
  %9049 = vmatprep.subr.bf16.mxu0 0
  %9050 = vmatpush1.bf16.msra.mxu0 0
  %9051 = vmatprep.mubr.bf16.mxu0 0
  %9052 = vmatmul.mubr.bf16.gmra.mrb[0].mxu0 %v8976
  %v9053 = vpop.f32.mrb[0].mxu0
  %v9054 = vadd.f32 0.0, %v9053
  %v9055 = vpop.f32.mrb[0].mxu0
  %v9056 = vadd.f32 0.0, %v9055
  %v9057 = vpop.f32.mrb[0].mxu0
  %v9058 = vpop.f32.mrb[0].mxu0
  %9059 = vdwg.mxu0
  %v9060 = vadd.f32 %v8873, %v9013
  %v9061 = vadd.f32 %v8874, %v9015
  %v9062 = vadd.f32 %v8875, %v9054
  %v9063 = vadd.f32 %v8876, %v9056
  %v9064 = vld [vmem:[#allocation2 + $0x94] sm:$0xf]
  %s9065 = scalar_lea.vmem %s3, 4736
  %v9066 = vld [vmem:[%s9065] sm:$0xff]
  %v9067 = vld [vmem:[%s9065 + $0x8] sm:$0xff]
  %v9068 = vld [vmem:[%s9065 + $0x10] sm:$0xff]
  %v9069 = vld [vmem:[%s9065 + $0x18] sm:$0xff]
  %v9070 = vld [vmem:[%s9065 + $0x20] sm:$0xff]
  %v9071 = vld [vmem:[%s9065 + $0x28] sm:$0xff]
  %v9072 = vld [vmem:[%s9065 + $0x30] sm:$0xff]
  %v9073 = vld [vmem:[%s9065 + $0x38] sm:$0xff]
  %v9074 = vld [vmem:[%s9065 + $0x40] sm:$0xff]
  %v9075 = vld [vmem:[%s9065 + $0x48] sm:$0xff]
  %v9076 = vld [vmem:[%s9065 + $0x50] sm:$0xff]
  %v9077 = vld [vmem:[%s9065 + $0x58] sm:$0xff]
  %v9078 = vld [vmem:[%s9065 + $0x60] sm:$0xff]
  %v9079 = vld [vmem:[%s9065 + $0x68] sm:$0xff]
  %v9080 = vld [vmem:[%s9065 + $0x70] sm:$0xff]
  %v9081 = vld [vmem:[%s9065 + $0x78] sm:$0xff]
  %v9098 = vunpack.c.l.b16 %v9066
  %v9099 = vunpack.c.h.b16 %v9066
  %v9100 = vunpack.c.l.b16 %v9067
  %v9101 = vunpack.c.h.b16 %v9067
  %v9102 = vunpack.c.l.b16 %v9068
  %v9103 = vunpack.c.h.b16 %v9068
  %v9104 = vunpack.c.l.b16 %v9069
  %v9105 = vunpack.c.h.b16 %v9069
  %v9106 = vunpack.c.l.b16 %v9070
  %v9107 = vunpack.c.h.b16 %v9070
  %v9108 = vunpack.c.l.b16 %v9071
  %v9109 = vunpack.c.h.b16 %v9071
  %v9110 = vunpack.c.l.b16 %v9072
  %v9111 = vunpack.c.h.b16 %v9072
  %v9112 = vunpack.c.l.b16 %v9073
  %v9113 = vunpack.c.h.b16 %v9073
  %v9114 = vunpack.c.l.b16 %v9074
  %v9115 = vunpack.c.h.b16 %v9074
  %v9116 = vunpack.c.l.b16 %v9075
  %v9117 = vunpack.c.h.b16 %v9075
  %v9118 = vunpack.c.l.b16 %v9076
  %v9119 = vunpack.c.h.b16 %v9076
  %v9120 = vunpack.c.l.b16 %v9077
  %v9121 = vunpack.c.h.b16 %v9077
  %v9122 = vunpack.c.l.b16 %v9078
  %v9123 = vunpack.c.h.b16 %v9078
  %v9124 = vunpack.c.l.b16 %v9079
  %v9125 = vunpack.c.h.b16 %v9079
  %v9126 = vunpack.c.l.b16 %v9080
  %v9127 = vunpack.c.h.b16 %v9080
  %v9128 = vunpack.c.l.b16 %v9081
  %v9129 = vunpack.c.h.b16 %v9081
  %v9130 = vpack.c.b16 %v9102, %v9098
  %v9131 = vpack.c.b16 %v9103, %v9099
  %v9132 = vpack.c.b16 %v9104, %v9100
  %v9133 = vpack.c.b16 %v9105, %v9101
  %v9134 = vpack.c.b16 %v9110, %v9106
  %v9135 = vpack.c.b16 %v9111, %v9107
  %v9136 = vpack.c.b16 %v9112, %v9108
  %v9137 = vpack.c.b16 %v9113, %v9109
  %v9138 = vpack.c.b16 %v9118, %v9114
  %v9139 = vpack.c.b16 %v9119, %v9115
  %v9140 = vpack.c.b16 %v9120, %v9116
  %v9141 = vpack.c.b16 %v9121, %v9117
  %v9142 = vpack.c.b16 %v9126, %v9122
  %v9143 = vpack.c.b16 %v9127, %v9123
  %v9144 = vpack.c.b16 %v9128, %v9124
  %v9145 = vpack.c.b16 %v9129, %v9125
  %v9163 = vsel %vm1086, %v9064, 0
  %9165 = vmatprep.subr.bf16.mxu0 %v9131
  %9166 = vmatpush1.bf16.msra.mxu0 %v9130
  %9167 = vmatprep.subr.bf16.mxu0 %v9135
  %9168 = vmatpush1.bf16.msra.mxu0 %v9134
  %9169 = vmatprep.subr.bf16.mxu0 %v9139
  %9170 = vmatpush1.bf16.msra.mxu0 %v9138
  %9171 = vmatprep.subr.bf16.mxu0 %v9143
  %9172 = vmatpush1.bf16.msra.mxu0 %v9142
  %9173 = vmatprep.subr.bf16.mxu0 0
  %9174 = vmatpush1.bf16.msra.mxu0 0
  %9175 = vmatprep.subr.bf16.mxu0 0
  %9176 = vmatpush1.bf16.msra.mxu0 0
  %9177 = vmatprep.subr.bf16.mxu0 0
  %9178 = vmatpush1.bf16.msra.mxu0 0
  %9179 = vmatprep.subr.bf16.mxu0 0
  %9180 = vmatpush1.bf16.msra.mxu0 0
  %9181 = vmatprep.subr.bf16.mxu0 0
  %9182 = vmatpush1.bf16.msra.mxu0 0
  %9183 = vmatprep.subr.bf16.mxu0 0
  %9184 = vmatpush1.bf16.msra.mxu0 0
  %9185 = vmatprep.subr.bf16.mxu0 0
  %9186 = vmatpush1.bf16.msra.mxu0 0
  %9187 = vmatprep.subr.bf16.mxu0 0
  %9188 = vmatpush1.bf16.msra.mxu0 0
  %9189 = vmatprep.subr.bf16.mxu0 0
  %9190 = vmatpush1.bf16.msra.mxu0 0
  %9191 = vmatprep.subr.bf16.mxu0 0
  %9192 = vmatpush1.bf16.msra.mxu0 0
  %9193 = vmatprep.subr.bf16.mxu0 0
  %9194 = vmatpush1.bf16.msra.mxu0 0
  %9195 = vmatprep.subr.bf16.mxu0 0
  %9196 = vmatpush1.bf16.msra.mxu0 0
  %9197 = vmatprep.mubr.bf16.mxu0 0
  %9198 = vmatmul.mubr.bf16.gmra.mrb[0].mxu0 %v9163
  %v9199 = vpop.f32.mrb[0].mxu0
  %v9200 = vadd.f32 0.0, %v9199
  %v9201 = vpop.f32.mrb[0].mxu0
  %v9202 = vadd.f32 0.0, %v9201
  %v9203 = vpop.f32.mrb[0].mxu0
  %v9204 = vpop.f32.mrb[0].mxu0
  %9205 = vdwg.mxu0
  %9206 = vmatprep.subr.bf16.mxu0 %v9133
  %9207 = vmatpush1.bf16.msra.mxu0 %v9132
  %9208 = vmatprep.subr.bf16.mxu0 %v9137
  %9209 = vmatpush1.bf16.msra.mxu0 %v9136
  %9210 = vmatprep.subr.bf16.mxu0 %v9141
  %9211 = vmatpush1.bf16.msra.mxu0 %v9140
  %9212 = vmatprep.subr.bf16.mxu0 %v9145
  %9213 = vmatpush1.bf16.msra.mxu0 %v9144
  %9214 = vmatprep.subr.bf16.mxu0 0
  %9215 = vmatpush1.bf16.msra.mxu0 0
  %9216 = vmatprep.subr.bf16.mxu0 0
  %9217 = vmatpush1.bf16.msra.mxu0 0
  %9218 = vmatprep.subr.bf16.mxu0 0
  %9219 = vmatpush1.bf16.msra.mxu0 0
  %9220 = vmatprep.subr.bf16.mxu0 0
  %9221 = vmatpush1.bf16.msra.mxu0 0
  %9222 = vmatprep.subr.bf16.mxu0 0
  %9223 = vmatpush1.bf16.msra.mxu0 0
  %9224 = vmatprep.subr.bf16.mxu0 0
  %9225 = vmatpush1.bf16.msra.mxu0 0
  %9226 = vmatprep.subr.bf16.mxu0 0
  %9227 = vmatpush1.bf16.msra.mxu0 0
  %9228 = vmatprep.subr.bf16.mxu0 0
  %9229 = vmatpush1.bf16.msra.mxu0 0
  %9230 = vmatprep.subr.bf16.mxu0 0
  %9231 = vmatpush1.bf16.msra.mxu0 0
  %9232 = vmatprep.subr.bf16.mxu0 0
  %9233 = vmatpush1.bf16.msra.mxu0 0
  %9234 = vmatprep.subr.bf16.mxu0 0
  %9235 = vmatpush1.bf16.msra.mxu0 0
  %9236 = vmatprep.subr.bf16.mxu0 0
  %9237 = vmatpush1.bf16.msra.mxu0 0
  %9238 = vmatprep.mubr.bf16.mxu0 0
  %9239 = vmatmul.mubr.bf16.gmra.mrb[0].mxu0 %v9163
  %v9240 = vpop.f32.mrb[0].mxu0
  %v9241 = vadd.f32 0.0, %v9240
  %v9242 = vpop.f32.mrb[0].mxu0
  %v9243 = vadd.f32 0.0, %v9242
  %v9244 = vpop.f32.mrb[0].mxu0
  %v9245 = vpop.f32.mrb[0].mxu0
  %9246 = vdwg.mxu0
  %v9247 = vadd.f32 %v9060, %v9200
  %v9248 = vadd.f32 %v9061, %v9202
  %v9249 = vadd.f32 %v9062, %v9241
  %v9250 = vadd.f32 %v9063, %v9243
  %v9251 = vld [vmem:[#allocation2 + $0x98] sm:$0xf]
  %s9252 = scalar_lea.vmem %s3, 4864
  %v9253 = vld [vmem:[%s9252] sm:$0xff]
  %v9254 = vld [vmem:[%s9252 + $0x8] sm:$0xff]
  %v9255 = vld [vmem:[%s9252 + $0x10] sm:$0xff]
  %v9256 = vld [vmem:[%s9252 + $0x18] sm:$0xff]
  %v9257 = vld [vmem:[%s9252 + $0x20] sm:$0xff]
  %v9258 = vld [vmem:[%s9252 + $0x28] sm:$0xff]
  %v9259 = vld [vmem:[%s9252 + $0x30] sm:$0xff]
  %v9260 = vld [vmem:[%s9252 + $0x38] sm:$0xff]
  %v9261 = vld [vmem:[%s9252 + $0x40] sm:$0xff]
  %v9262 = vld [vmem:[%s9252 + $0x48] sm:$0xff]
  %v9263 = vld [vmem:[%s9252 + $0x50] sm:$0xff]
  %v9264 = vld [vmem:[%s9252 + $0x58] sm:$0xff]
  %v9265 = vld [vmem:[%s9252 + $0x60] sm:$0xff]
  %v9266 = vld [vmem:[%s9252 + $0x68] sm:$0xff]
  %v9267 = vld [vmem:[%s9252 + $0x70] sm:$0xff]
  %v9268 = vld [vmem:[%s9252 + $0x78] sm:$0xff]
  %v9285 = vunpack.c.l.b16 %v9253
  %v9286 = vunpack.c.h.b16 %v9253
  %v9287 = vunpack.c.l.b16 %v9254
  %v9288 = vunpack.c.h.b16 %v9254
  %v9289 = vunpack.c.l.b16 %v9255
  %v9290 = vunpack.c.h.b16 %v9255
  %v9291 = vunpack.c.l.b16 %v9256
  %v9292 = vunpack.c.h.b16 %v9256
  %v9293 = vunpack.c.l.b16 %v9257
  %v9294 = vunpack.c.h.b16 %v9257
  %v9295 = vunpack.c.l.b16 %v9258
  %v9296 = vunpack.c.h.b16 %v9258
  %v9297 = vunpack.c.l.b16 %v9259
  %v9298 = vunpack.c.h.b16 %v9259
  %v9299 = vunpack.c.l.b16 %v9260
  %v9300 = vunpack.c.h.b16 %v9260
  %v9301 = vunpack.c.l.b16 %v9261
  %v9302 = vunpack.c.h.b16 %v9261
  %v9303 = vunpack.c.l.b16 %v9262
  %v9304 = vunpack.c.h.b16 %v9262
  %v9305 = vunpack.c.l.b16 %v9263
  %v9306 = vunpack.c.h.b16 %v9263
  %v9307 = vunpack.c.l.b16 %v9264
  %v9308 = vunpack.c.h.b16 %v9264
  %v9309 = vunpack.c.l.b16 %v9265
  %v9310 = vunpack.c.h.b16 %v9265
  %v9311 = vunpack.c.l.b16 %v9266
  %v9312 = vunpack.c.h.b16 %v9266
  %v9313 = vunpack.c.l.b16 %v9267
  %v9314 = vunpack.c.h.b16 %v9267
  %v9315 = vunpack.c.l.b16 %v9268
  %v9316 = vunpack.c.h.b16 %v9268
  %v9317 = vpack.c.b16 %v9289, %v9285
  %v9318 = vpack.c.b16 %v9290, %v9286
  %v9319 = vpack.c.b16 %v9291, %v9287
  %v9320 = vpack.c.b16 %v9292, %v9288
  %v9321 = vpack.c.b16 %v9297, %v9293
  %v9322 = vpack.c.b16 %v9298, %v9294
  %v9323 = vpack.c.b16 %v9299, %v9295
  %v9324 = vpack.c.b16 %v9300, %v9296
  %v9325 = vpack.c.b16 %v9305, %v9301
  %v9326 = vpack.c.b16 %v9306, %v9302
  %v9327 = vpack.c.b16 %v9307, %v9303
  %v9328 = vpack.c.b16 %v9308, %v9304
  %v9329 = vpack.c.b16 %v9313, %v9309
  %v9330 = vpack.c.b16 %v9314, %v9310
  %v9331 = vpack.c.b16 %v9315, %v9311
  %v9332 = vpack.c.b16 %v9316, %v9312
  %v9350 = vsel %vm1086, %v9251, 0
  %9352 = vmatprep.subr.bf16.mxu0 %v9318
  %9353 = vmatpush1.bf16.msra.mxu0 %v9317
  %9354 = vmatprep.subr.bf16.mxu0 %v9322
  %9355 = vmatpush1.bf16.msra.mxu0 %v9321
  %9356 = vmatprep.subr.bf16.mxu0 %v9326
  %9357 = vmatpush1.bf16.msra.mxu0 %v9325
  %9358 = vmatprep.subr.bf16.mxu0 %v9330
  %9359 = vmatpush1.bf16.msra.mxu0 %v9329
  %9360 = vmatprep.subr.bf16.mxu0 0
  %9361 = vmatpush1.bf16.msra.mxu0 0
  %9362 = vmatprep.subr.bf16.mxu0 0
  %9363 = vmatpush1.bf16.msra.mxu0 0
  %9364 = vmatprep.subr.bf16.mxu0 0
  %9365 = vmatpush1.bf16.msra.mxu0 0
  %9366 = vmatprep.subr.bf16.mxu0 0
  %9367 = vmatpush1.bf16.msra.mxu0 0
  %9368 = vmatprep.subr.bf16.mxu0 0
  %9369 = vmatpush1.bf16.msra.mxu0 0
  %9370 = vmatprep.subr.bf16.mxu0 0
  %9371 = vmatpush1.bf16.msra.mxu0 0
  %9372 = vmatprep.subr.bf16.mxu0 0
  %9373 = vmatpush1.bf16.msra.mxu0 0
  %9374 = vmatprep.subr.bf16.mxu0 0
  %9375 = vmatpush1.bf16.msra.mxu0 0
  %9376 = vmatprep.subr.bf16.mxu0 0
  %9377 = vmatpush1.bf16.msra.mxu0 0
  %9378 = vmatprep.subr.bf16.mxu0 0
  %9379 = vmatpush1.bf16.msra.mxu0 0
  %9380 = vmatprep.subr.bf16.mxu0 0
  %9381 = vmatpush1.bf16.msra.mxu0 0
  %9382 = vmatprep.subr.bf16.mxu0 0
  %9383 = vmatpush1.bf16.msra.mxu0 0
  %9384 = vmatprep.mubr.bf16.mxu0 0
  %9385 = vmatmul.mubr.bf16.gmra.mrb[0].mxu0 %v9350
  %v9386 = vpop.f32.mrb[0].mxu0
  %v9387 = vadd.f32 0.0, %v9386
  %v9388 = vpop.f32.mrb[0].mxu0
  %v9389 = vadd.f32 0.0, %v9388
  %v9390 = vpop.f32.mrb[0].mxu0
  %v9391 = vpop.f32.mrb[0].mxu0
  %9392 = vdwg.mxu0
  %9393 = vmatprep.subr.bf16.mxu0 %v9320
  %9394 = vmatpush1.bf16.msra.mxu0 %v9319
  %9395 = vmatprep.subr.bf16.mxu0 %v9324
  %9396 = vmatpush1.bf16.msra.mxu0 %v9323
  %9397 = vmatprep.subr.bf16.mxu0 %v9328
  %9398 = vmatpush1.bf16.msra.mxu0 %v9327
  %9399 = vmatprep.subr.bf16.mxu0 %v9332
  %9400 = vmatpush1.bf16.msra.mxu0 %v9331
  %9401 = vmatprep.subr.bf16.mxu0 0
  %9402 = vmatpush1.bf16.msra.mxu0 0
  %9403 = vmatprep.subr.bf16.mxu0 0
  %9404 = vmatpush1.bf16.msra.mxu0 0
  %9405 = vmatprep.subr.bf16.mxu0 0
  %9406 = vmatpush1.bf16.msra.mxu0 0
  %9407 = vmatprep.subr.bf16.mxu0 0
  %9408 = vmatpush1.bf16.msra.mxu0 0
  %9409 = vmatprep.subr.bf16.mxu0 0
  %9410 = vmatpush1.bf16.msra.mxu0 0
  %9411 = vmatprep.subr.bf16.mxu0 0
  %9412 = vmatpush1.bf16.msra.mxu0 0
  %9413 = vmatprep.subr.bf16.mxu0 0
  %9414 = vmatpush1.bf16.msra.mxu0 0
  %9415 = vmatprep.subr.bf16.mxu0 0
  %9416 = vmatpush1.bf16.msra.mxu0 0
  %9417 = vmatprep.subr.bf16.mxu0 0
  %9418 = vmatpush1.bf16.msra.mxu0 0
  %9419 = vmatprep.subr.bf16.mxu0 0
  %9420 = vmatpush1.bf16.msra.mxu0 0
  %9421 = vmatprep.subr.bf16.mxu0 0
  %9422 = vmatpush1.bf16.msra.mxu0 0
  %9423 = vmatprep.subr.bf16.mxu0 0
  %9424 = vmatpush1.bf16.msra.mxu0 0
  %9425 = vmatprep.mubr.bf16.mxu0 0
  %9426 = vmatmul.mubr.bf16.gmra.mrb[0].mxu0 %v9350
  %v9427 = vpop.f32.mrb[0].mxu0
  %v9428 = vadd.f32 0.0, %v9427
  %v9429 = vpop.f32.mrb[0].mxu0
  %v9430 = vadd.f32 0.0, %v9429
  %v9431 = vpop.f32.mrb[0].mxu0
  %v9432 = vpop.f32.mrb[0].mxu0
  %9433 = vdwg.mxu0
  %v9434 = vadd.f32 %v9247, %v9387
  %v9435 = vadd.f32 %v9248, %v9389
  %v9436 = vadd.f32 %v9249, %v9428
  %v9437 = vadd.f32 %v9250, %v9430
  %v9438 = vld [vmem:[#allocation2 + $0x9c] sm:$0xf]
  %s9439 = scalar_lea.vmem %s3, 4992
  %v9440 = vld [vmem:[%s9439] sm:$0xff]
  %v9441 = vld [vmem:[%s9439 + $0x8] sm:$0xff]
  %v9442 = vld [vmem:[%s9439 + $0x10] sm:$0xff]
  %v9443 = vld [vmem:[%s9439 + $0x18] sm:$0xff]
  %v9444 = vld [vmem:[%s9439 + $0x20] sm:$0xff]
  %v9445 = vld [vmem:[%s9439 + $0x28] sm:$0xff]
  %v9446 = vld [vmem:[%s9439 + $0x30] sm:$0xff]
  %v9447 = vld [vmem:[%s9439 + $0x38] sm:$0xff]
  %v9448 = vld [vmem:[%s9439 + $0x40] sm:$0xff]
  %v9449 = vld [vmem:[%s9439 + $0x48] sm:$0xff]
  %v9450 = vld [vmem:[%s9439 + $0x50] sm:$0xff]
  %v9451 = vld [vmem:[%s9439 + $0x58] sm:$0xff]
  %v9452 = vld [vmem:[%s9439 + $0x60] sm:$0xff]
  %v9453 = vld [vmem:[%s9439 + $0x68] sm:$0xff]
  %v9454 = vld [vmem:[%s9439 + $0x70] sm:$0xff]
  %v9455 = vld [vmem:[%s9439 + $0x78] sm:$0xff]
  %v9472 = vunpack.c.l.b16 %v9440
  %v9473 = vunpack.c.h.b16 %v9440
  %v9474 = vunpack.c.l.b16 %v9441
  %v9475 = vunpack.c.h.b16 %v9441
  %v9476 = vunpack.c.l.b16 %v9442
  %v9477 = vunpack.c.h.b16 %v9442
  %v9478 = vunpack.c.l.b16 %v9443
  %v9479 = vunpack.c.h.b16 %v9443
  %v9480 = vunpack.c.l.b16 %v9444
  %v9481 = vunpack.c.h.b16 %v9444
  %v9482 = vunpack.c.l.b16 %v9445
  %v9483 = vunpack.c.h.b16 %v9445
  %v9484 = vunpack.c.l.b16 %v9446
  %v9485 = vunpack.c.h.b16 %v9446
  %v9486 = vunpack.c.l.b16 %v9447
  %v9487 = vunpack.c.h.b16 %v9447
  %v9488 = vunpack.c.l.b16 %v9448
  %v9489 = vunpack.c.h.b16 %v9448
  %v9490 = vunpack.c.l.b16 %v9449
  %v9491 = vunpack.c.h.b16 %v9449
  %v9492 = vunpack.c.l.b16 %v9450
  %v9493 = vunpack.c.h.b16 %v9450
  %v9494 = vunpack.c.l.b16 %v9451
  %v9495 = vunpack.c.h.b16 %v9451
  %v9496 = vunpack.c.l.b16 %v9452
  %v9497 = vunpack.c.h.b16 %v9452
  %v9498 = vunpack.c.l.b16 %v9453
  %v9499 = vunpack.c.h.b16 %v9453
  %v9500 = vunpack.c.l.b16 %v9454
  %v9501 = vunpack.c.h.b16 %v9454
  %v9502 = vunpack.c.l.b16 %v9455
  %v9503 = vunpack.c.h.b16 %v9455
  %v9504 = vpack.c.b16 %v9476, %v9472
  %v9505 = vpack.c.b16 %v9477, %v9473
  %v9506 = vpack.c.b16 %v9478, %v9474
  %v9507 = vpack.c.b16 %v9479, %v9475
  %v9508 = vpack.c.b16 %v9484, %v9480
  %v9509 = vpack.c.b16 %v9485, %v9481
  %v9510 = vpack.c.b16 %v9486, %v9482
  %v9511 = vpack.c.b16 %v9487, %v9483
  %v9512 = vpack.c.b16 %v9492, %v9488
  %v9513 = vpack.c.b16 %v9493, %v9489
  %v9514 = vpack.c.b16 %v9494, %v9490
  %v9515 = vpack.c.b16 %v9495, %v9491
  %v9516 = vpack.c.b16 %v9500, %v9496
  %v9517 = vpack.c.b16 %v9501, %v9497
  %v9518 = vpack.c.b16 %v9502, %v9498
  %v9519 = vpack.c.b16 %v9503, %v9499
  %v9537 = vsel %vm1086, %v9438, 0
  %9539 = vmatprep.subr.bf16.mxu0 %v9505
  %9540 = vmatpush1.bf16.msra.mxu0 %v9504
  %9541 = vmatprep.subr.bf16.mxu0 %v9509
  %9542 = vmatpush1.bf16.msra.mxu0 %v9508
  %9543 = vmatprep.subr.bf16.mxu0 %v9513
  %9544 = vmatpush1.bf16.msra.mxu0 %v9512
  %9545 = vmatprep.subr.bf16.mxu0 %v9517
  %9546 = vmatpush1.bf16.msra.mxu0 %v9516
  %9547 = vmatprep.subr.bf16.mxu0 0
  %9548 = vmatpush1.bf16.msra.mxu0 0
  %9549 = vmatprep.subr.bf16.mxu0 0
  %9550 = vmatpush1.bf16.msra.mxu0 0
  %9551 = vmatprep.subr.bf16.mxu0 0
  %9552 = vmatpush1.bf16.msra.mxu0 0
  %9553 = vmatprep.subr.bf16.mxu0 0
  %9554 = vmatpush1.bf16.msra.mxu0 0
  %9555 = vmatprep.subr.bf16.mxu0 0
  %9556 = vmatpush1.bf16.msra.mxu0 0
  %9557 = vmatprep.subr.bf16.mxu0 0
  %9558 = vmatpush1.bf16.msra.mxu0 0
  %9559 = vmatprep.subr.bf16.mxu0 0
  %9560 = vmatpush1.bf16.msra.mxu0 0
  %9561 = vmatprep.subr.bf16.mxu0 0
  %9562 = vmatpush1.bf16.msra.mxu0 0
  %9563 = vmatprep.subr.bf16.mxu0 0
  %9564 = vmatpush1.bf16.msra.mxu0 0
  %9565 = vmatprep.subr.bf16.mxu0 0
  %9566 = vmatpush1.bf16.msra.mxu0 0
  %9567 = vmatprep.subr.bf16.mxu0 0
  %9568 = vmatpush1.bf16.msra.mxu0 0
  %9569 = vmatprep.subr.bf16.mxu0 0
  %9570 = vmatpush1.bf16.msra.mxu0 0
  %9571 = vmatprep.mubr.bf16.mxu0 0
  %9572 = vmatmul.mubr.bf16.gmra.mrb[0].mxu0 %v9537
  %v9573 = vpop.f32.mrb[0].mxu0
  %v9574 = vadd.f32 0.0, %v9573
  %v9575 = vpop.f32.mrb[0].mxu0
  %v9576 = vadd.f32 0.0, %v9575
  %v9577 = vpop.f32.mrb[0].mxu0
  %v9578 = vpop.f32.mrb[0].mxu0
  %9579 = vdwg.mxu0
  %9580 = vmatprep.subr.bf16.mxu0 %v9507
  %9581 = vmatpush1.bf16.msra.mxu0 %v9506
  %9582 = vmatprep.subr.bf16.mxu0 %v9511
  %9583 = vmatpush1.bf16.msra.mxu0 %v9510
  %9584 = vmatprep.subr.bf16.mxu0 %v9515
  %9585 = vmatpush1.bf16.msra.mxu0 %v9514
  %9586 = vmatprep.subr.bf16.mxu0 %v9519
  %9587 = vmatpush1.bf16.msra.mxu0 %v9518
  %9588 = vmatprep.subr.bf16.mxu0 0
  %9589 = vmatpush1.bf16.msra.mxu0 0
  %9590 = vmatprep.subr.bf16.mxu0 0
  %9591 = vmatpush1.bf16.msra.mxu0 0
  %9592 = vmatprep.subr.bf16.mxu0 0
  %9593 = vmatpush1.bf16.msra.mxu0 0
  %9594 = vmatprep.subr.bf16.mxu0 0
  %9595 = vmatpush1.bf16.msra.mxu0 0
  %9596 = vmatprep.subr.bf16.mxu0 0
  %9597 = vmatpush1.bf16.msra.mxu0 0
  %9598 = vmatprep.subr.bf16.mxu0 0
  %9599 = vmatpush1.bf16.msra.mxu0 0
  %9600 = vmatprep.subr.bf16.mxu0 0
  %9601 = vmatpush1.bf16.msra.mxu0 0
  %9602 = vmatprep.subr.bf16.mxu0 0
  %9603 = vmatpush1.bf16.msra.mxu0 0
  %9604 = vmatprep.subr.bf16.mxu0 0
  %9605 = vmatpush1.bf16.msra.mxu0 0
  %9606 = vmatprep.subr.bf16.mxu0 0
  %9607 = vmatpush1.bf16.msra.mxu0 0
  %9608 = vmatprep.subr.bf16.mxu0 0
  %9609 = vmatpush1.bf16.msra.mxu0 0
  %9610 = vmatprep.subr.bf16.mxu0 0
  %9611 = vmatpush1.bf16.msra.mxu0 0
  %9612 = vmatprep.mubr.bf16.mxu0 0
  %9613 = vmatmul.mubr.bf16.gmra.mrb[0].mxu0 %v9537
  %v9614 = vpop.f32.mrb[0].mxu0
  %v9615 = vadd.f32 0.0, %v9614
  %v9616 = vpop.f32.mrb[0].mxu0
  %v9617 = vadd.f32 0.0, %v9616
  %v9618 = vpop.f32.mrb[0].mxu0
  %v9619 = vpop.f32.mrb[0].mxu0
  %9620 = vdwg.mxu0
  %v9621 = vadd.f32 %v9434, %v9574
  %v9622 = vadd.f32 %v9435, %v9576
  %v9623 = vadd.f32 %v9436, %v9615
  %v9624 = vadd.f32 %v9437, %v9617
  %v9625 = vld [vmem:[#allocation2 + $0xa0] sm:$0xf]
  %s9626 = scalar_lea.vmem %s3, 5120
  %v9627 = vld [vmem:[%s9626] sm:$0xff]
  %v9628 = vld [vmem:[%s9626 + $0x8] sm:$0xff]
  %v9629 = vld [vmem:[%s9626 + $0x10] sm:$0xff]
  %v9630 = vld [vmem:[%s9626 + $0x18] sm:$0xff]
  %v9631 = vld [vmem:[%s9626 + $0x20] sm:$0xff]
  %v9632 = vld [vmem:[%s9626 + $0x28] sm:$0xff]
  %v9633 = vld [vmem:[%s9626 + $0x30] sm:$0xff]
  %v9634 = vld [vmem:[%s9626 + $0x38] sm:$0xff]
  %v9635 = vld [vmem:[%s9626 + $0x40] sm:$0xff]
  %v9636 = vld [vmem:[%s9626 + $0x48] sm:$0xff]
  %v9637 = vld [vmem:[%s9626 + $0x50] sm:$0xff]
  %v9638 = vld [vmem:[%s9626 + $0x58] sm:$0xff]
  %v9639 = vld [vmem:[%s9626 + $0x60] sm:$0xff]
  %v9640 = vld [vmem:[%s9626 + $0x68] sm:$0xff]
  %v9641 = vld [vmem:[%s9626 + $0x70] sm:$0xff]
  %v9642 = vld [vmem:[%s9626 + $0x78] sm:$0xff]
  %v9659 = vunpack.c.l.b16 %v9627
  %v9660 = vunpack.c.h.b16 %v9627
  %v9661 = vunpack.c.l.b16 %v9628
  %v9662 = vunpack.c.h.b16 %v9628
  %v9663 = vunpack.c.l.b16 %v9629
  %v9664 = vunpack.c.h.b16 %v9629
  %v9665 = vunpack.c.l.b16 %v9630
  %v9666 = vunpack.c.h.b16 %v9630
  %v9667 = vunpack.c.l.b16 %v9631
  %v9668 = vunpack.c.h.b16 %v9631
  %v9669 = vunpack.c.l.b16 %v9632
  %v9670 = vunpack.c.h.b16 %v9632
  %v9671 = vunpack.c.l.b16 %v9633
  %v9672 = vunpack.c.h.b16 %v9633
  %v9673 = vunpack.c.l.b16 %v9634
  %v9674 = vunpack.c.h.b16 %v9634
  %v9675 = vunpack.c.l.b16 %v9635
  %v9676 = vunpack.c.h.b16 %v9635
  %v9677 = vunpack.c.l.b16 %v9636
  %v9678 = vunpack.c.h.b16 %v9636
  %v9679 = vunpack.c.l.b16 %v9637
  %v9680 = vunpack.c.h.b16 %v9637
  %v9681 = vunpack.c.l.b16 %v9638
  %v9682 = vunpack.c.h.b16 %v9638
  %v9683 = vunpack.c.l.b16 %v9639
  %v9684 = vunpack.c.h.b16 %v9639
  %v9685 = vunpack.c.l.b16 %v9640
  %v9686 = vunpack.c.h.b16 %v9640
  %v9687 = vunpack.c.l.b16 %v9641
  %v9688 = vunpack.c.h.b16 %v9641
  %v9689 = vunpack.c.l.b16 %v9642
  %v9690 = vunpack.c.h.b16 %v9642
  %v9691 = vpack.c.b16 %v9663, %v9659
  %v9692 = vpack.c.b16 %v9664, %v9660
  %v9693 = vpack.c.b16 %v9665, %v9661
  %v9694 = vpack.c.b16 %v9666, %v9662
  %v9695 = vpack.c.b16 %v9671, %v9667
  %v9696 = vpack.c.b16 %v9672, %v9668
  %v9697 = vpack.c.b16 %v9673, %v9669
  %v9698 = vpack.c.b16 %v9674, %v9670
  %v9699 = vpack.c.b16 %v9679, %v9675
  %v9700 = vpack.c.b16 %v9680, %v9676
  %v9701 = vpack.c.b16 %v9681, %v9677
  %v9702 = vpack.c.b16 %v9682, %v9678
  %v9703 = vpack.c.b16 %v9687, %v9683
  %v9704 = vpack.c.b16 %v9688, %v9684
  %v9705 = vpack.c.b16 %v9689, %v9685
  %v9706 = vpack.c.b16 %v9690, %v9686
  %v9724 = vsel %vm1086, %v9625, 0
  %9726 = vmatprep.subr.bf16.mxu0 %v9692
  %9727 = vmatpush1.bf16.msra.mxu0 %v9691
  %9728 = vmatprep.subr.bf16.mxu0 %v9696
  %9729 = vmatpush1.bf16.msra.mxu0 %v9695
  %9730 = vmatprep.subr.bf16.mxu0 %v9700
  %9731 = vmatpush1.bf16.msra.mxu0 %v9699
  %9732 = vmatprep.subr.bf16.mxu0 %v9704
  %9733 = vmatpush1.bf16.msra.mxu0 %v9703
  %9734 = vmatprep.subr.bf16.mxu0 0
  %9735 = vmatpush1.bf16.msra.mxu0 0
  %9736 = vmatprep.subr.bf16.mxu0 0
  %9737 = vmatpush1.bf16.msra.mxu0 0
  %9738 = vmatprep.subr.bf16.mxu0 0
  %9739 = vmatpush1.bf16.msra.mxu0 0
  %9740 = vmatprep.subr.bf16.mxu0 0
  %9741 = vmatpush1.bf16.msra.mxu0 0
  %9742 = vmatprep.subr.bf16.mxu0 0
  %9743 = vmatpush1.bf16.msra.mxu0 0
  %9744 = vmatprep.subr.bf16.mxu0 0
  %9745 = vmatpush1.bf16.msra.mxu0 0
  %9746 = vmatprep.subr.bf16.mxu0 0
  %9747 = vmatpush1.bf16.msra.mxu0 0
  %9748 = vmatprep.subr.bf16.mxu0 0
  %9749 = vmatpush1.bf16.msra.mxu0 0
  %9750 = vmatprep.subr.bf16.mxu0 0
  %9751 = vmatpush1.bf16.msra.mxu0 0
  %9752 = vmatprep.subr.bf16.mxu0 0
  %9753 = vmatpush1.bf16.msra.mxu0 0
  %9754 = vmatprep.subr.bf16.mxu0 0
  %9755 = vmatpush1.bf16.msra.mxu0 0
  %9756 = vmatprep.subr.bf16.mxu0 0
  %9757 = vmatpush1.bf16.msra.mxu0 0
  %9758 = vmatprep.mubr.bf16.mxu0 0
  %9759 = vmatmul.mubr.bf16.gmra.mrb[0].mxu0 %v9724
  %v9760 = vpop.f32.mrb[0].mxu0
  %v9761 = vadd.f32 0.0, %v9760
  %v9762 = vpop.f32.mrb[0].mxu0
  %v9763 = vadd.f32 0.0, %v9762
  %v9764 = vpop.f32.mrb[0].mxu0
  %v9765 = vpop.f32.mrb[0].mxu0
  %9766 = vdwg.mxu0
  %9767 = vmatprep.subr.bf16.mxu0 %v9694
  %9768 = vmatpush1.bf16.msra.mxu0 %v9693
  %9769 = vmatprep.subr.bf16.mxu0 %v9698
  %9770 = vmatpush1.bf16.msra.mxu0 %v9697
  %9771 = vmatprep.subr.bf16.mxu0 %v9702
  %9772 = vmatpush1.bf16.msra.mxu0 %v9701
  %9773 = vmatprep.subr.bf16.mxu0 %v9706
  %9774 = vmatpush1.bf16.msra.mxu0 %v9705
  %9775 = vmatprep.subr.bf16.mxu0 0
  %9776 = vmatpush1.bf16.msra.mxu0 0
  %9777 = vmatprep.subr.bf16.mxu0 0
  %9778 = vmatpush1.bf16.msra.mxu0 0
  %9779 = vmatprep.subr.bf16.mxu0 0
  %9780 = vmatpush1.bf16.msra.mxu0 0
  %9781 = vmatprep.subr.bf16.mxu0 0
  %9782 = vmatpush1.bf16.msra.mxu0 0
  %9783 = vmatprep.subr.bf16.mxu0 0
  %9784 = vmatpush1.bf16.msra.mxu0 0
  %9785 = vmatprep.subr.bf16.mxu0 0
  %9786 = vmatpush1.bf16.msra.mxu0 0
  %9787 = vmatprep.subr.bf16.mxu0 0
  %9788 = vmatpush1.bf16.msra.mxu0 0
  %9789 = vmatprep.subr.bf16.mxu0 0
  %9790 = vmatpush1.bf16.msra.mxu0 0
  %9791 = vmatprep.subr.bf16.mxu0 0
  %9792 = vmatpush1.bf16.msra.mxu0 0
  %9793 = vmatprep.subr.bf16.mxu0 0
  %9794 = vmatpush1.bf16.msra.mxu0 0
  %9795 = vmatprep.subr.bf16.mxu0 0
  %9796 = vmatpush1.bf16.msra.mxu0 0
  %9797 = vmatprep.subr.bf16.mxu0 0
  %9798 = vmatpush1.bf16.msra.mxu0 0
  %9799 = vmatprep.mubr.bf16.mxu0 0
  %9800 = vmatmul.mubr.bf16.gmra.mrb[0].mxu0 %v9724
  %v9801 = vpop.f32.mrb[0].mxu0
  %v9802 = vadd.f32 0.0, %v9801
  %v9803 = vpop.f32.mrb[0].mxu0
  %v9804 = vadd.f32 0.0, %v9803
  %v9805 = vpop.f32.mrb[0].mxu0
  %v9806 = vpop.f32.mrb[0].mxu0
  %9807 = vdwg.mxu0
  %v9808 = vadd.f32 %v9621, %v9761
  %v9809 = vadd.f32 %v9622, %v9763
  %v9810 = vadd.f32 %v9623, %v9802
  %v9811 = vadd.f32 %v9624, %v9804
  %v9812 = vld [vmem:[#allocation2 + $0xa4] sm:$0xf]
  %s9813 = scalar_lea.vmem %s3, 5248
  %v9814 = vld [vmem:[%s9813] sm:$0xff]
  %v9815 = vld [vmem:[%s9813 + $0x8] sm:$0xff]
  %v9816 = vld [vmem:[%s9813 + $0x10] sm:$0xff]
  %v9817 = vld [vmem:[%s9813 + $0x18] sm:$0xff]
  %v9818 = vld [vmem:[%s9813 + $0x20] sm:$0xff]
  %v9819 = vld [vmem:[%s9813 + $0x28] sm:$0xff]
  %v9820 = vld [vmem:[%s9813 + $0x30] sm:$0xff]
  %v9821 = vld [vmem:[%s9813 + $0x38] sm:$0xff]
  %v9822 = vld [vmem:[%s9813 + $0x40] sm:$0xff]
  %v9823 = vld [vmem:[%s9813 + $0x48] sm:$0xff]
  %v9824 = vld [vmem:[%s9813 + $0x50] sm:$0xff]
  %v9825 = vld [vmem:[%s9813 + $0x58] sm:$0xff]
  %v9826 = vld [vmem:[%s9813 + $0x60] sm:$0xff]
  %v9827 = vld [vmem:[%s9813 + $0x68] sm:$0xff]
  %v9828 = vld [vmem:[%s9813 + $0x70] sm:$0xff]
  %v9829 = vld [vmem:[%s9813 + $0x78] sm:$0xff]
  %v9846 = vunpack.c.l.b16 %v9814
  %v9847 = vunpack.c.h.b16 %v9814
  %v9848 = vunpack.c.l.b16 %v9815
  %v9849 = vunpack.c.h.b16 %v9815
  %v9850 = vunpack.c.l.b16 %v9816
  %v9851 = vunpack.c.h.b16 %v9816
  %v9852 = vunpack.c.l.b16 %v9817
  %v9853 = vunpack.c.h.b16 %v9817
  %v9854 = vunpack.c.l.b16 %v9818
  %v9855 = vunpack.c.h.b16 %v9818
  %v9856 = vunpack.c.l.b16 %v9819
  %v9857 = vunpack.c.h.b16 %v9819
  %v9858 = vunpack.c.l.b16 %v9820
  %v9859 = vunpack.c.h.b16 %v9820
  %v9860 = vunpack.c.l.b16 %v9821
  %v9861 = vunpack.c.h.b16 %v9821
  %v9862 = vunpack.c.l.b16 %v9822
  %v9863 = vunpack.c.h.b16 %v9822
  %v9864 = vunpack.c.l.b16 %v9823
  %v9865 = vunpack.c.h.b16 %v9823
  %v9866 = vunpack.c.l.b16 %v9824
  %v9867 = vunpack.c.h.b16 %v9824
  %v9868 = vunpack.c.l.b16 %v9825
  %v9869 = vunpack.c.h.b16 %v9825
  %v9870 = vunpack.c.l.b16 %v9826
  %v9871 = vunpack.c.h.b16 %v9826
  %v9872 = vunpack.c.l.b16 %v9827
  %v9873 = vunpack.c.h.b16 %v9827
  %v9874 = vunpack.c.l.b16 %v9828
  %v9875 = vunpack.c.h.b16 %v9828
  %v9876 = vunpack.c.l.b16 %v9829
  %v9877 = vunpack.c.h.b16 %v9829
  %v9878 = vpack.c.b16 %v9850, %v9846
  %v9879 = vpack.c.b16 %v9851, %v9847
  %v9880 = vpack.c.b16 %v9852, %v9848
  %v9881 = vpack.c.b16 %v9853, %v9849
  %v9882 = vpack.c.b16 %v9858, %v9854
  %v9883 = vpack.c.b16 %v9859, %v9855
  %v9884 = vpack.c.b16 %v9860, %v9856
  %v9885 = vpack.c.b16 %v9861, %v9857
  %v9886 = vpack.c.b16 %v9866, %v9862
  %v9887 = vpack.c.b16 %v9867, %v9863
  %v9888 = vpack.c.b16 %v9868, %v9864
  %v9889 = vpack.c.b16 %v9869, %v9865
  %v9890 = vpack.c.b16 %v9874, %v9870
  %v9891 = vpack.c.b16 %v9875, %v9871
  %v9892 = vpack.c.b16 %v9876, %v9872
  %v9893 = vpack.c.b16 %v9877, %v9873
  %v9911 = vsel %vm1086, %v9812, 0
  %9913 = vmatprep.subr.bf16.mxu0 %v9879
  %9914 = vmatpush1.bf16.msra.mxu0 %v9878
  %9915 = vmatprep.subr.bf16.mxu0 %v9883
  %9916 = vmatpush1.bf16.msra.mxu0 %v9882
  %9917 = vmatprep.subr.bf16.mxu0 %v9887
  %9918 = vmatpush1.bf16.msra.mxu0 %v9886
  %9919 = vmatprep.subr.bf16.mxu0 %v9891
  %9920 = vmatpush1.bf16.msra.mxu0 %v9890
  %9921 = vmatprep.subr.bf16.mxu0 0
  %9922 = vmatpush1.bf16.msra.mxu0 0
  %9923 = vmatprep.subr.bf16.mxu0 0
  %9924 = vmatpush1.bf16.msra.mxu0 0
  %9925 = vmatprep.subr.bf16.mxu0 0
  %9926 = vmatpush1.bf16.msra.mxu0 0
  %9927 = vmatprep.subr.bf16.mxu0 0
  %9928 = vmatpush1.bf16.msra.mxu0 0
  %9929 = vmatprep.subr.bf16.mxu0 0
  %9930 = vmatpush1.bf16.msra.mxu0 0
  %9931 = vmatprep.subr.bf16.mxu0 0
  %9932 = vmatpush1.bf16.msra.mxu0 0
  %9933 = vmatprep.subr.bf16.mxu0 0
  %9934 = vmatpush1.bf16.msra.mxu0 0
  %9935 = vmatprep.subr.bf16.mxu0 0
  %9936 = vmatpush1.bf16.msra.mxu0 0
  %9937 = vmatprep.subr.bf16.mxu0 0
  %9938 = vmatpush1.bf16.msra.mxu0 0
  %9939 = vmatprep.subr.bf16.mxu0 0
  %9940 = vmatpush1.bf16.msra.mxu0 0
  %9941 = vmatprep.subr.bf16.mxu0 0
  %9942 = vmatpush1.bf16.msra.mxu0 0
  %9943 = vmatprep.subr.bf16.mxu0 0
  %9944 = vmatpush1.bf16.msra.mxu0 0
  %9945 = vmatprep.mubr.bf16.mxu0 0
  %9946 = vmatmul.mubr.bf16.gmra.mrb[0].mxu0 %v9911
  %v9947 = vpop.f32.mrb[0].mxu0
  %v9948 = vadd.f32 0.0, %v9947
  %v9949 = vpop.f32.mrb[0].mxu0
  %v9950 = vadd.f32 0.0, %v9949
  %v9951 = vpop.f32.mrb[0].mxu0
  %v9952 = vpop.f32.mrb[0].mxu0
  %9953 = vdwg.mxu0
  %9954 = vmatprep.subr.bf16.mxu0 %v9881
  %9955 = vmatpush1.bf16.msra.mxu0 %v9880
  %9956 = vmatprep.subr.bf16.mxu0 %v9885
  %9957 = vmatpush1.bf16.msra.mxu0 %v9884
  %9958 = vmatprep.subr.bf16.mxu0 %v9889
  %9959 = vmatpush1.bf16.msra.mxu0 %v9888
  %9960 = vmatprep.subr.bf16.mxu0 %v9893
  %9961 = vmatpush1.bf16.msra.mxu0 %v9892
  %9962 = vmatprep.subr.bf16.mxu0 0
  %9963 = vmatpush1.bf16.msra.mxu0 0
  %9964 = vmatprep.subr.bf16.mxu0 0
  %9965 = vmatpush1.bf16.msra.mxu0 0
  %9966 = vmatprep.subr.bf16.mxu0 0
  %9967 = vmatpush1.bf16.msra.mxu0 0
  %9968 = vmatprep.subr.bf16.mxu0 0
  %9969 = vmatpush1.bf16.msra.mxu0 0
  %9970 = vmatprep.subr.bf16.mxu0 0
  %9971 = vmatpush1.bf16.msra.mxu0 0
  %9972 = vmatprep.subr.bf16.mxu0 0
  %9973 = vmatpush1.bf16.msra.mxu0 0
  %9974 = vmatprep.subr.bf16.mxu0 0
  %9975 = vmatpush1.bf16.msra.mxu0 0
  %9976 = vmatprep.subr.bf16.mxu0 0
  %9977 = vmatpush1.bf16.msra.mxu0 0
  %9978 = vmatprep.subr.bf16.mxu0 0
  %9979 = vmatpush1.bf16.msra.mxu0 0
  %9980 = vmatprep.subr.bf16.mxu0 0
  %9981 = vmatpush1.bf16.msra.mxu0 0
  %9982 = vmatprep.subr.bf16.mxu0 0
  %9983 = vmatpush1.bf16.msra.mxu0 0
  %9984 = vmatprep.subr.bf16.mxu0 0
  %9985 = vmatpush1.bf16.msra.mxu0 0
  %9986 = vmatprep.mubr.bf16.mxu0 0
  %9987 = vmatmul.mubr.bf16.gmra.mrb[0].mxu0 %v9911
  %v9988 = vpop.f32.mrb[0].mxu0
  %v9989 = vadd.f32 0.0, %v9988
  %v9990 = vpop.f32.mrb[0].mxu0
  %v9991 = vadd.f32 0.0, %v9990
  %v9992 = vpop.f32.mrb[0].mxu0
  %v9993 = vpop.f32.mrb[0].mxu0
  %9994 = vdwg.mxu0
  %v9995 = vadd.f32 %v9808, %v9948
  %v9996 = vadd.f32 %v9809, %v9950
  %v9997 = vadd.f32 %v9810, %v9989
  %v9998 = vadd.f32 %v9811, %v9991
  %v9999 = vld [vmem:[#allocation2 + $0xa8] sm:$0xf]
  %s10000 = scalar_lea.vmem %s3, 5376
  %v10001 = vld [vmem:[%s10000] sm:$0xff]
  %v10002 = vld [vmem:[%s10000 + $0x8] sm:$0xff]
  %v10003 = vld [vmem:[%s10000 + $0x10] sm:$0xff]
  %v10004 = vld [vmem:[%s10000 + $0x18] sm:$0xff]
  %v10005 = vld [vmem:[%s10000 + $0x20] sm:$0xff]
  %v10006 = vld [vmem:[%s10000 + $0x28] sm:$0xff]
  %v10007 = vld [vmem:[%s10000 + $0x30] sm:$0xff]
  %v10008 = vld [vmem:[%s10000 + $0x38] sm:$0xff]
  %v10009 = vld [vmem:[%s10000 + $0x40] sm:$0xff]
  %v10010 = vld [vmem:[%s10000 + $0x48] sm:$0xff]
  %v10011 = vld [vmem:[%s10000 + $0x50] sm:$0xff]
  %v10012 = vld [vmem:[%s10000 + $0x58] sm:$0xff]
  %v10013 = vld [vmem:[%s10000 + $0x60] sm:$0xff]
  %v10014 = vld [vmem:[%s10000 + $0x68] sm:$0xff]
  %v10015 = vld [vmem:[%s10000 + $0x70] sm:$0xff]
  %v10016 = vld [vmem:[%s10000 + $0x78] sm:$0xff]
  %v10033 = vunpack.c.l.b16 %v10001
  %v10034 = vunpack.c.h.b16 %v10001
  %v10035 = vunpack.c.l.b16 %v10002
  %v10036 = vunpack.c.h.b16 %v10002
  %v10037 = vunpack.c.l.b16 %v10003
  %v10038 = vunpack.c.h.b16 %v10003
  %v10039 = vunpack.c.l.b16 %v10004
  %v10040 = vunpack.c.h.b16 %v10004
  %v10041 = vunpack.c.l.b16 %v10005
  %v10042 = vunpack.c.h.b16 %v10005
  %v10043 = vunpack.c.l.b16 %v10006
  %v10044 = vunpack.c.h.b16 %v10006
  %v10045 = vunpack.c.l.b16 %v10007
  %v10046 = vunpack.c.h.b16 %v10007
  %v10047 = vunpack.c.l.b16 %v10008
  %v10048 = vunpack.c.h.b16 %v10008
  %v10049 = vunpack.c.l.b16 %v10009
  %v10050 = vunpack.c.h.b16 %v10009
  %v10051 = vunpack.c.l.b16 %v10010
  %v10052 = vunpack.c.h.b16 %v10010
  %v10053 = vunpack.c.l.b16 %v10011
  %v10054 = vunpack.c.h.b16 %v10011
  %v10055 = vunpack.c.l.b16 %v10012
  %v10056 = vunpack.c.h.b16 %v10012
  %v10057 = vunpack.c.l.b16 %v10013
  %v10058 = vunpack.c.h.b16 %v10013
  %v10059 = vunpack.c.l.b16 %v10014
  %v10060 = vunpack.c.h.b16 %v10014
  %v10061 = vunpack.c.l.b16 %v10015
  %v10062 = vunpack.c.h.b16 %v10015
  %v10063 = vunpack.c.l.b16 %v10016
  %v10064 = vunpack.c.h.b16 %v10016
  %v10065 = vpack.c.b16 %v10037, %v10033
  %v10066 = vpack.c.b16 %v10038, %v10034
  %v10067 = vpack.c.b16 %v10039, %v10035
  %v10068 = vpack.c.b16 %v10040, %v10036
  %v10069 = vpack.c.b16 %v10045, %v10041
  %v10070 = vpack.c.b16 %v10046, %v10042
  %v10071 = vpack.c.b16 %v10047, %v10043
  %v10072 = vpack.c.b16 %v10048, %v10044
  %v10073 = vpack.c.b16 %v10053, %v10049
  %v10074 = vpack.c.b16 %v10054, %v10050
  %v10075 = vpack.c.b16 %v10055, %v10051
  %v10076 = vpack.c.b16 %v10056, %v10052
  %v10077 = vpack.c.b16 %v10061, %v10057
  %v10078 = vpack.c.b16 %v10062, %v10058
  %v10079 = vpack.c.b16 %v10063, %v10059
  %v10080 = vpack.c.b16 %v10064, %v10060
  %v10098 = vsel %vm1086, %v9999, 0
  %10100 = vmatprep.subr.bf16.mxu0 %v10066
  %10101 = vmatpush1.bf16.msra.mxu0 %v10065
  %10102 = vmatprep.subr.bf16.mxu0 %v10070
  %10103 = vmatpush1.bf16.msra.mxu0 %v10069
  %10104 = vmatprep.subr.bf16.mxu0 %v10074
  %10105 = vmatpush1.bf16.msra.mxu0 %v10073
  %10106 = vmatprep.subr.bf16.mxu0 %v10078
  %10107 = vmatpush1.bf16.msra.mxu0 %v10077
  %10108 = vmatprep.subr.bf16.mxu0 0
  %10109 = vmatpush1.bf16.msra.mxu0 0
  %10110 = vmatprep.subr.bf16.mxu0 0
  %10111 = vmatpush1.bf16.msra.mxu0 0
  %10112 = vmatprep.subr.bf16.mxu0 0
  %10113 = vmatpush1.bf16.msra.mxu0 0
  %10114 = vmatprep.subr.bf16.mxu0 0
  %10115 = vmatpush1.bf16.msra.mxu0 0
  %10116 = vmatprep.subr.bf16.mxu0 0
  %10117 = vmatpush1.bf16.msra.mxu0 0
  %10118 = vmatprep.subr.bf16.mxu0 0
  %10119 = vmatpush1.bf16.msra.mxu0 0
  %10120 = vmatprep.subr.bf16.mxu0 0
  %10121 = vmatpush1.bf16.msra.mxu0 0
  %10122 = vmatprep.subr.bf16.mxu0 0
  %10123 = vmatpush1.bf16.msra.mxu0 0
  %10124 = vmatprep.subr.bf16.mxu0 0
  %10125 = vmatpush1.bf16.msra.mxu0 0
  %10126 = vmatprep.subr.bf16.mxu0 0
  %10127 = vmatpush1.bf16.msra.mxu0 0
  %10128 = vmatprep.subr.bf16.mxu0 0
  %10129 = vmatpush1.bf16.msra.mxu0 0
  %10130 = vmatprep.subr.bf16.mxu0 0
  %10131 = vmatpush1.bf16.msra.mxu0 0
  %10132 = vmatprep.mubr.bf16.mxu0 0
  %10133 = vmatmul.mubr.bf16.gmra.mrb[0].mxu0 %v10098
  %v10134 = vpop.f32.mrb[0].mxu0
  %v10135 = vadd.f32 0.0, %v10134
  %v10136 = vpop.f32.mrb[0].mxu0
  %v10137 = vadd.f32 0.0, %v10136
  %v10138 = vpop.f32.mrb[0].mxu0
  %v10139 = vpop.f32.mrb[0].mxu0
  %10140 = vdwg.mxu0
  %10141 = vmatprep.subr.bf16.mxu0 %v10068
  %10142 = vmatpush1.bf16.msra.mxu0 %v10067
  %10143 = vmatprep.subr.bf16.mxu0 %v10072
  %10144 = vmatpush1.bf16.msra.mxu0 %v10071
  %10145 = vmatprep.subr.bf16.mxu0 %v10076
  %10146 = vmatpush1.bf16.msra.mxu0 %v10075
  %10147 = vmatprep.subr.bf16.mxu0 %v10080
  %10148 = vmatpush1.bf16.msra.mxu0 %v10079
  %10149 = vmatprep.subr.bf16.mxu0 0
  %10150 = vmatpush1.bf16.msra.mxu0 0
  %10151 = vmatprep.subr.bf16.mxu0 0
  %10152 = vmatpush1.bf16.msra.mxu0 0
  %10153 = vmatprep.subr.bf16.mxu0 0
  %10154 = vmatpush1.bf16.msra.mxu0 0
  %10155 = vmatprep.subr.bf16.mxu0 0
  %10156 = vmatpush1.bf16.msra.mxu0 0
  %10157 = vmatprep.subr.bf16.mxu0 0
  %10158 = vmatpush1.bf16.msra.mxu0 0
  %10159 = vmatprep.subr.bf16.mxu0 0
  %10160 = vmatpush1.bf16.msra.mxu0 0
  %10161 = vmatprep.subr.bf16.mxu0 0
  %10162 = vmatpush1.bf16.msra.mxu0 0
  %10163 = vmatprep.subr.bf16.mxu0 0
  %10164 = vmatpush1.bf16.msra.mxu0 0
  %10165 = vmatprep.subr.bf16.mxu0 0
  %10166 = vmatpush1.bf16.msra.mxu0 0
  %10167 = vmatprep.subr.bf16.mxu0 0
  %10168 = vmatpush1.bf16.msra.mxu0 0
  %10169 = vmatprep.subr.bf16.mxu0 0
  %10170 = vmatpush1.bf16.msra.mxu0 0
  %10171 = vmatprep.subr.bf16.mxu0 0
  %10172 = vmatpush1.bf16.msra.mxu0 0
  %10173 = vmatprep.mubr.bf16.mxu0 0
  %10174 = vmatmul.mubr.bf16.gmra.mrb[0].mxu0 %v10098
  %v10175 = vpop.f32.mrb[0].mxu0
  %v10176 = vadd.f32 0.0, %v10175
  %v10177 = vpop.f32.mrb[0].mxu0
  %v10178 = vadd.f32 0.0, %v10177
  %v10179 = vpop.f32.mrb[0].mxu0
  %v10180 = vpop.f32.mrb[0].mxu0
  %10181 = vdwg.mxu0
  %v10182 = vadd.f32 %v9995, %v10135
  %v10183 = vadd.f32 %v9996, %v10137
  %v10184 = vadd.f32 %v9997, %v10176
  %v10185 = vadd.f32 %v9998, %v10178
  %v10186 = vld [vmem:[#allocation2 + $0xac] sm:$0xf]
  %s10187 = scalar_lea.vmem %s3, 5504
  %v10188 = vld [vmem:[%s10187] sm:$0xff]
  %v10189 = vld [vmem:[%s10187 + $0x8] sm:$0xff]
  %v10190 = vld [vmem:[%s10187 + $0x10] sm:$0xff]
  %v10191 = vld [vmem:[%s10187 + $0x18] sm:$0xff]
  %v10192 = vld [vmem:[%s10187 + $0x20] sm:$0xff]
  %v10193 = vld [vmem:[%s10187 + $0x28] sm:$0xff]
  %v10194 = vld [vmem:[%s10187 + $0x30] sm:$0xff]
  %v10195 = vld [vmem:[%s10187 + $0x38] sm:$0xff]
  %v10196 = vld [vmem:[%s10187 + $0x40] sm:$0xff]
  %v10197 = vld [vmem:[%s10187 + $0x48] sm:$0xff]
  %v10198 = vld [vmem:[%s10187 + $0x50] sm:$0xff]
  %v10199 = vld [vmem:[%s10187 + $0x58] sm:$0xff]
  %v10200 = vld [vmem:[%s10187 + $0x60] sm:$0xff]
  %v10201 = vld [vmem:[%s10187 + $0x68] sm:$0xff]
  %v10202 = vld [vmem:[%s10187 + $0x70] sm:$0xff]
  %v10203 = vld [vmem:[%s10187 + $0x78] sm:$0xff]
  %v10220 = vunpack.c.l.b16 %v10188
  %v10221 = vunpack.c.h.b16 %v10188
  %v10222 = vunpack.c.l.b16 %v10189
  %v10223 = vunpack.c.h.b16 %v10189
  %v10224 = vunpack.c.l.b16 %v10190
  %v10225 = vunpack.c.h.b16 %v10190
  %v10226 = vunpack.c.l.b16 %v10191
  %v10227 = vunpack.c.h.b16 %v10191
  %v10228 = vunpack.c.l.b16 %v10192
  %v10229 = vunpack.c.h.b16 %v10192
  %v10230 = vunpack.c.l.b16 %v10193
  %v10231 = vunpack.c.h.b16 %v10193
  %v10232 = vunpack.c.l.b16 %v10194
  %v10233 = vunpack.c.h.b16 %v10194
  %v10234 = vunpack.c.l.b16 %v10195
  %v10235 = vunpack.c.h.b16 %v10195
  %v10236 = vunpack.c.l.b16 %v10196
  %v10237 = vunpack.c.h.b16 %v10196
  %v10238 = vunpack.c.l.b16 %v10197
  %v10239 = vunpack.c.h.b16 %v10197
  %v10240 = vunpack.c.l.b16 %v10198
  %v10241 = vunpack.c.h.b16 %v10198
  %v10242 = vunpack.c.l.b16 %v10199
  %v10243 = vunpack.c.h.b16 %v10199
  %v10244 = vunpack.c.l.b16 %v10200
  %v10245 = vunpack.c.h.b16 %v10200
  %v10246 = vunpack.c.l.b16 %v10201
  %v10247 = vunpack.c.h.b16 %v10201
  %v10248 = vunpack.c.l.b16 %v10202
  %v10249 = vunpack.c.h.b16 %v10202
  %v10250 = vunpack.c.l.b16 %v10203
  %v10251 = vunpack.c.h.b16 %v10203
  %v10252 = vpack.c.b16 %v10224, %v10220
  %v10253 = vpack.c.b16 %v10225, %v10221
  %v10254 = vpack.c.b16 %v10226, %v10222
  %v10255 = vpack.c.b16 %v10227, %v10223
  %v10256 = vpack.c.b16 %v10232, %v10228
  %v10257 = vpack.c.b16 %v10233, %v10229
  %v10258 = vpack.c.b16 %v10234, %v10230
  %v10259 = vpack.c.b16 %v10235, %v10231
  %v10260 = vpack.c.b16 %v10240, %v10236
  %v10261 = vpack.c.b16 %v10241, %v10237
  %v10262 = vpack.c.b16 %v10242, %v10238
  %v10263 = vpack.c.b16 %v10243, %v10239
  %v10264 = vpack.c.b16 %v10248, %v10244
  %v10265 = vpack.c.b16 %v10249, %v10245
  %v10266 = vpack.c.b16 %v10250, %v10246
  %v10267 = vpack.c.b16 %v10251, %v10247
  %v10285 = vsel %vm1086, %v10186, 0
  %10287 = vmatprep.subr.bf16.mxu0 %v10253
  %10288 = vmatpush1.bf16.msra.mxu0 %v10252
  %10289 = vmatprep.subr.bf16.mxu0 %v10257
  %10290 = vmatpush1.bf16.msra.mxu0 %v10256
  %10291 = vmatprep.subr.bf16.mxu0 %v10261
  %10292 = vmatpush1.bf16.msra.mxu0 %v10260
  %10293 = vmatprep.subr.bf16.mxu0 %v10265
  %10294 = vmatpush1.bf16.msra.mxu0 %v10264
  %10295 = vmatprep.subr.bf16.mxu0 0
  %10296 = vmatpush1.bf16.msra.mxu0 0
  %10297 = vmatprep.subr.bf16.mxu0 0
  %10298 = vmatpush1.bf16.msra.mxu0 0
  %10299 = vmatprep.subr.bf16.mxu0 0
  %10300 = vmatpush1.bf16.msra.mxu0 0
  %10301 = vmatprep.subr.bf16.mxu0 0
  %10302 = vmatpush1.bf16.msra.mxu0 0
  %10303 = vmatprep.subr.bf16.mxu0 0
  %10304 = vmatpush1.bf16.msra.mxu0 0
  %10305 = vmatprep.subr.bf16.mxu0 0
  %10306 = vmatpush1.bf16.msra.mxu0 0
  %10307 = vmatprep.subr.bf16.mxu0 0
  %10308 = vmatpush1.bf16.msra.mxu0 0
  %10309 = vmatprep.subr.bf16.mxu0 0
  %10310 = vmatpush1.bf16.msra.mxu0 0
  %10311 = vmatprep.subr.bf16.mxu0 0
  %10312 = vmatpush1.bf16.msra.mxu0 0
  %10313 = vmatprep.subr.bf16.mxu0 0
  %10314 = vmatpush1.bf16.msra.mxu0 0
  %10315 = vmatprep.subr.bf16.mxu0 0
  %10316 = vmatpush1.bf16.msra.mxu0 0
  %10317 = vmatprep.subr.bf16.mxu0 0
  %10318 = vmatpush1.bf16.msra.mxu0 0
  %10319 = vmatprep.mubr.bf16.mxu0 0
  %10320 = vmatmul.mubr.bf16.gmra.mrb[0].mxu0 %v10285
  %v10321 = vpop.f32.mrb[0].mxu0
  %v10322 = vadd.f32 0.0, %v10321
  %v10323 = vpop.f32.mrb[0].mxu0
  %v10324 = vadd.f32 0.0, %v10323
  %v10325 = vpop.f32.mrb[0].mxu0
  %v10326 = vpop.f32.mrb[0].mxu0
  %10327 = vdwg.mxu0
  %10328 = vmatprep.subr.bf16.mxu0 %v10255
  %10329 = vmatpush1.bf16.msra.mxu0 %v10254
  %10330 = vmatprep.subr.bf16.mxu0 %v10259
  %10331 = vmatpush1.bf16.msra.mxu0 %v10258
  %10332 = vmatprep.subr.bf16.mxu0 %v10263
  %10333 = vmatpush1.bf16.msra.mxu0 %v10262
  %10334 = vmatprep.subr.bf16.mxu0 %v10267
  %10335 = vmatpush1.bf16.msra.mxu0 %v10266
  %10336 = vmatprep.subr.bf16.mxu0 0
  %10337 = vmatpush1.bf16.msra.mxu0 0
  %10338 = vmatprep.subr.bf16.mxu0 0
  %10339 = vmatpush1.bf16.msra.mxu0 0
  %10340 = vmatprep.subr.bf16.mxu0 0
  %10341 = vmatpush1.bf16.msra.mxu0 0
  %10342 = vmatprep.subr.bf16.mxu0 0
  %10343 = vmatpush1.bf16.msra.mxu0 0
  %10344 = vmatprep.subr.bf16.mxu0 0
  %10345 = vmatpush1.bf16.msra.mxu0 0
  %10346 = vmatprep.subr.bf16.mxu0 0
  %10347 = vmatpush1.bf16.msra.mxu0 0
  %10348 = vmatprep.subr.bf16.mxu0 0
  %10349 = vmatpush1.bf16.msra.mxu0 0
  %10350 = vmatprep.subr.bf16.mxu0 0
  %10351 = vmatpush1.bf16.msra.mxu0 0
  %10352 = vmatprep.subr.bf16.mxu0 0
  %10353 = vmatpush1.bf16.msra.mxu0 0
  %10354 = vmatprep.subr.bf16.mxu0 0
  %10355 = vmatpush1.bf16.msra.mxu0 0
  %10356 = vmatprep.subr.bf16.mxu0 0
  %10357 = vmatpush1.bf16.msra.mxu0 0
  %10358 = vmatprep.subr.bf16.mxu0 0
  %10359 = vmatpush1.bf16.msra.mxu0 0
  %10360 = vmatprep.mubr.bf16.mxu0 0
  %10361 = vmatmul.mubr.bf16.gmra.mrb[0].mxu0 %v10285
  %v10362 = vpop.f32.mrb[0].mxu0
  %v10363 = vadd.f32 0.0, %v10362
  %v10364 = vpop.f32.mrb[0].mxu0
  %v10365 = vadd.f32 0.0, %v10364
  %v10366 = vpop.f32.mrb[0].mxu0
  %v10367 = vpop.f32.mrb[0].mxu0
  %10368 = vdwg.mxu0
  %v10369 = vadd.f32 %v10182, %v10322
  %v10370 = vadd.f32 %v10183, %v10324
  %v10371 = vadd.f32 %v10184, %v10363
  %v10372 = vadd.f32 %v10185, %v10365
  %v10373 = vld [vmem:[#allocation2 + $0xb0] sm:$0xf]
  %s10374 = scalar_lea.vmem %s3, 5632
  %v10375 = vld [vmem:[%s10374] sm:$0xff]
  %v10376 = vld [vmem:[%s10374 + $0x8] sm:$0xff]
  %v10377 = vld [vmem:[%s10374 + $0x10] sm:$0xff]
  %v10378 = vld [vmem:[%s10374 + $0x18] sm:$0xff]
  %v10379 = vld [vmem:[%s10374 + $0x20] sm:$0xff]
  %v10380 = vld [vmem:[%s10374 + $0x28] sm:$0xff]
  %v10381 = vld [vmem:[%s10374 + $0x30] sm:$0xff]
  %v10382 = vld [vmem:[%s10374 + $0x38] sm:$0xff]
  %v10383 = vld [vmem:[%s10374 + $0x40] sm:$0xff]
  %v10384 = vld [vmem:[%s10374 + $0x48] sm:$0xff]
  %v10385 = vld [vmem:[%s10374 + $0x50] sm:$0xff]
  %v10386 = vld [vmem:[%s10374 + $0x58] sm:$0xff]
  %v10387 = vld [vmem:[%s10374 + $0x60] sm:$0xff]
  %v10388 = vld [vmem:[%s10374 + $0x68] sm:$0xff]
  %v10389 = vld [vmem:[%s10374 + $0x70] sm:$0xff]
  %v10390 = vld [vmem:[%s10374 + $0x78] sm:$0xff]
  %v10407 = vunpack.c.l.b16 %v10375
  %v10408 = vunpack.c.h.b16 %v10375
  %v10409 = vunpack.c.l.b16 %v10376
  %v10410 = vunpack.c.h.b16 %v10376
  %v10411 = vunpack.c.l.b16 %v10377
  %v10412 = vunpack.c.h.b16 %v10377
  %v10413 = vunpack.c.l.b16 %v10378
  %v10414 = vunpack.c.h.b16 %v10378
  %v10415 = vunpack.c.l.b16 %v10379
  %v10416 = vunpack.c.h.b16 %v10379
  %v10417 = vunpack.c.l.b16 %v10380
  %v10418 = vunpack.c.h.b16 %v10380
  %v10419 = vunpack.c.l.b16 %v10381
  %v10420 = vunpack.c.h.b16 %v10381
  %v10421 = vunpack.c.l.b16 %v10382
  %v10422 = vunpack.c.h.b16 %v10382
  %v10423 = vunpack.c.l.b16 %v10383
  %v10424 = vunpack.c.h.b16 %v10383
  %v10425 = vunpack.c.l.b16 %v10384
  %v10426 = vunpack.c.h.b16 %v10384
  %v10427 = vunpack.c.l.b16 %v10385
  %v10428 = vunpack.c.h.b16 %v10385
  %v10429 = vunpack.c.l.b16 %v10386
  %v10430 = vunpack.c.h.b16 %v10386
  %v10431 = vunpack.c.l.b16 %v10387
  %v10432 = vunpack.c.h.b16 %v10387
  %v10433 = vunpack.c.l.b16 %v10388
  %v10434 = vunpack.c.h.b16 %v10388
  %v10435 = vunpack.c.l.b16 %v10389
  %v10436 = vunpack.c.h.b16 %v10389
  %v10437 = vunpack.c.l.b16 %v10390
  %v10438 = vunpack.c.h.b16 %v10390
  %v10439 = vpack.c.b16 %v10411, %v10407
  %v10440 = vpack.c.b16 %v10412, %v10408
  %v10441 = vpack.c.b16 %v10413, %v10409
  %v10442 = vpack.c.b16 %v10414, %v10410
  %v10443 = vpack.c.b16 %v10419, %v10415
  %v10444 = vpack.c.b16 %v10420, %v10416
  %v10445 = vpack.c.b16 %v10421, %v10417
  %v10446 = vpack.c.b16 %v10422, %v10418
  %v10447 = vpack.c.b16 %v10427, %v10423
  %v10448 = vpack.c.b16 %v10428, %v10424
  %v10449 = vpack.c.b16 %v10429, %v10425
  %v10450 = vpack.c.b16 %v10430, %v10426
  %v10451 = vpack.c.b16 %v10435, %v10431
  %v10452 = vpack.c.b16 %v10436, %v10432
  %v10453 = vpack.c.b16 %v10437, %v10433
  %v10454 = vpack.c.b16 %v10438, %v10434
  %v10472 = vsel %vm1086, %v10373, 0
  %10474 = vmatprep.subr.bf16.mxu0 %v10440
  %10475 = vmatpush1.bf16.msra.mxu0 %v10439
  %10476 = vmatprep.subr.bf16.mxu0 %v10444
  %10477 = vmatpush1.bf16.msra.mxu0 %v10443
  %10478 = vmatprep.subr.bf16.mxu0 %v10448
  %10479 = vmatpush1.bf16.msra.mxu0 %v10447
  %10480 = vmatprep.subr.bf16.mxu0 %v10452
  %10481 = vmatpush1.bf16.msra.mxu0 %v10451
  %10482 = vmatprep.subr.bf16.mxu0 0
  %10483 = vmatpush1.bf16.msra.mxu0 0
  %10484 = vmatprep.subr.bf16.mxu0 0
  %10485 = vmatpush1.bf16.msra.mxu0 0
  %10486 = vmatprep.subr.bf16.mxu0 0
  %10487 = vmatpush1.bf16.msra.mxu0 0
  %10488 = vmatprep.subr.bf16.mxu0 0
  %10489 = vmatpush1.bf16.msra.mxu0 0
  %10490 = vmatprep.subr.bf16.mxu0 0
  %10491 = vmatpush1.bf16.msra.mxu0 0
  %10492 = vmatprep.subr.bf16.mxu0 0
  %10493 = vmatpush1.bf16.msra.mxu0 0
  %10494 = vmatprep.subr.bf16.mxu0 0
  %10495 = vmatpush1.bf16.msra.mxu0 0
  %10496 = vmatprep.subr.bf16.mxu0 0
  %10497 = vmatpush1.bf16.msra.mxu0 0
  %10498 = vmatprep.subr.bf16.mxu0 0
  %10499 = vmatpush1.bf16.msra.mxu0 0
  %10500 = vmatprep.subr.bf16.mxu0 0
  %10501 = vmatpush1.bf16.msra.mxu0 0
  %10502 = vmatprep.subr.bf16.mxu0 0
  %10503 = vmatpush1.bf16.msra.mxu0 0
  %10504 = vmatprep.subr.bf16.mxu0 0
  %10505 = vmatpush1.bf16.msra.mxu0 0
  %10506 = vmatprep.mubr.bf16.mxu0 0
  %10507 = vmatmul.mubr.bf16.gmra.mrb[0].mxu0 %v10472
  %v10508 = vpop.f32.mrb[0].mxu0
  %v10509 = vadd.f32 0.0, %v10508
  %v10510 = vpop.f32.mrb[0].mxu0
  %v10511 = vadd.f32 0.0, %v10510
  %v10512 = vpop.f32.mrb[0].mxu0
  %v10513 = vpop.f32.mrb[0].mxu0
  %10514 = vdwg.mxu0
  %10515 = vmatprep.subr.bf16.mxu0 %v10442
  %10516 = vmatpush1.bf16.msra.mxu0 %v10441
  %10517 = vmatprep.subr.bf16.mxu0 %v10446
  %10518 = vmatpush1.bf16.msra.mxu0 %v10445
  %10519 = vmatprep.subr.bf16.mxu0 %v10450
  %10520 = vmatpush1.bf16.msra.mxu0 %v10449
  %10521 = vmatprep.subr.bf16.mxu0 %v10454
  %10522 = vmatpush1.bf16.msra.mxu0 %v10453
  %10523 = vmatprep.subr.bf16.mxu0 0
  %10524 = vmatpush1.bf16.msra.mxu0 0
  %10525 = vmatprep.subr.bf16.mxu0 0
  %10526 = vmatpush1.bf16.msra.mxu0 0
  %10527 = vmatprep.subr.bf16.mxu0 0
  %10528 = vmatpush1.bf16.msra.mxu0 0
  %10529 = vmatprep.subr.bf16.mxu0 0
  %10530 = vmatpush1.bf16.msra.mxu0 0
  %10531 = vmatprep.subr.bf16.mxu0 0
  %10532 = vmatpush1.bf16.msra.mxu0 0
  %10533 = vmatprep.subr.bf16.mxu0 0
  %10534 = vmatpush1.bf16.msra.mxu0 0
  %10535 = vmatprep.subr.bf16.mxu0 0
  %10536 = vmatpush1.bf16.msra.mxu0 0
  %10537 = vmatprep.subr.bf16.mxu0 0
  %10538 = vmatpush1.bf16.msra.mxu0 0
  %10539 = vmatprep.subr.bf16.mxu0 0
  %10540 = vmatpush1.bf16.msra.mxu0 0
  %10541 = vmatprep.subr.bf16.mxu0 0
  %10542 = vmatpush1.bf16.msra.mxu0 0
  %10543 = vmatprep.subr.bf16.mxu0 0
  %10544 = vmatpush1.bf16.msra.mxu0 0
  %10545 = vmatprep.subr.bf16.mxu0 0
  %10546 = vmatpush1.bf16.msra.mxu0 0
  %10547 = vmatprep.mubr.bf16.mxu0 0
  %10548 = vmatmul.mubr.bf16.gmra.mrb[0].mxu0 %v10472
  %v10549 = vpop.f32.mrb[0].mxu0
  %v10550 = vadd.f32 0.0, %v10549
  %v10551 = vpop.f32.mrb[0].mxu0
  %v10552 = vadd.f32 0.0, %v10551
  %v10553 = vpop.f32.mrb[0].mxu0
  %v10554 = vpop.f32.mrb[0].mxu0
  %10555 = vdwg.mxu0
  %v10556 = vadd.f32 %v10369, %v10509
  %v10557 = vadd.f32 %v10370, %v10511
  %v10558 = vadd.f32 %v10371, %v10550
  %v10559 = vadd.f32 %v10372, %v10552
  %v10560 = vld [vmem:[#allocation2 + $0xb4] sm:$0xf]
  %s10561 = scalar_lea.vmem %s3, 5760
  %v10562 = vld [vmem:[%s10561] sm:$0xff]
  %v10563 = vld [vmem:[%s10561 + $0x8] sm:$0xff]
  %v10564 = vld [vmem:[%s10561 + $0x10] sm:$0xff]
  %v10565 = vld [vmem:[%s10561 + $0x18] sm:$0xff]
  %v10566 = vld [vmem:[%s10561 + $0x20] sm:$0xff]
  %v10567 = vld [vmem:[%s10561 + $0x28] sm:$0xff]
  %v10568 = vld [vmem:[%s10561 + $0x30] sm:$0xff]
  %v10569 = vld [vmem:[%s10561 + $0x38] sm:$0xff]
  %v10570 = vld [vmem:[%s10561 + $0x40] sm:$0xff]
  %v10571 = vld [vmem:[%s10561 + $0x48] sm:$0xff]
  %v10572 = vld [vmem:[%s10561 + $0x50] sm:$0xff]
  %v10573 = vld [vmem:[%s10561 + $0x58] sm:$0xff]
  %v10574 = vld [vmem:[%s10561 + $0x60] sm:$0xff]
  %v10575 = vld [vmem:[%s10561 + $0x68] sm:$0xff]
  %v10576 = vld [vmem:[%s10561 + $0x70] sm:$0xff]
  %v10577 = vld [vmem:[%s10561 + $0x78] sm:$0xff]
  %v10594 = vunpack.c.l.b16 %v10562
  %v10595 = vunpack.c.h.b16 %v10562
  %v10596 = vunpack.c.l.b16 %v10563
  %v10597 = vunpack.c.h.b16 %v10563
  %v10598 = vunpack.c.l.b16 %v10564
  %v10599 = vunpack.c.h.b16 %v10564
  %v10600 = vunpack.c.l.b16 %v10565
  %v10601 = vunpack.c.h.b16 %v10565
  %v10602 = vunpack.c.l.b16 %v10566
  %v10603 = vunpack.c.h.b16 %v10566
  %v10604 = vunpack.c.l.b16 %v10567
  %v10605 = vunpack.c.h.b16 %v10567
  %v10606 = vunpack.c.l.b16 %v10568
  %v10607 = vunpack.c.h.b16 %v10568
  %v10608 = vunpack.c.l.b16 %v10569
  %v10609 = vunpack.c.h.b16 %v10569
  %v10610 = vunpack.c.l.b16 %v10570
  %v10611 = vunpack.c.h.b16 %v10570
  %v10612 = vunpack.c.l.b16 %v10571
  %v10613 = vunpack.c.h.b16 %v10571
  %v10614 = vunpack.c.l.b16 %v10572
  %v10615 = vunpack.c.h.b16 %v10572
  %v10616 = vunpack.c.l.b16 %v10573
  %v10617 = vunpack.c.h.b16 %v10573
  %v10618 = vunpack.c.l.b16 %v10574
  %v10619 = vunpack.c.h.b16 %v10574
  %v10620 = vunpack.c.l.b16 %v10575
  %v10621 = vunpack.c.h.b16 %v10575
  %v10622 = vunpack.c.l.b16 %v10576
  %v10623 = vunpack.c.h.b16 %v10576
  %v10624 = vunpack.c.l.b16 %v10577
  %v10625 = vunpack.c.h.b16 %v10577
  %v10626 = vpack.c.b16 %v10598, %v10594
  %v10627 = vpack.c.b16 %v10599, %v10595
  %v10628 = vpack.c.b16 %v10600, %v10596
  %v10629 = vpack.c.b16 %v10601, %v10597
  %v10630 = vpack.c.b16 %v10606, %v10602
  %v10631 = vpack.c.b16 %v10607, %v10603
  %v10632 = vpack.c.b16 %v10608, %v10604
  %v10633 = vpack.c.b16 %v10609, %v10605
  %v10634 = vpack.c.b16 %v10614, %v10610
  %v10635 = vpack.c.b16 %v10615, %v10611
  %v10636 = vpack.c.b16 %v10616, %v10612
  %v10637 = vpack.c.b16 %v10617, %v10613
  %v10638 = vpack.c.b16 %v10622, %v10618
  %v10639 = vpack.c.b16 %v10623, %v10619
  %v10640 = vpack.c.b16 %v10624, %v10620
  %v10641 = vpack.c.b16 %v10625, %v10621
  %v10659 = vsel %vm1086, %v10560, 0
  %10661 = vmatprep.subr.bf16.mxu0 %v10627
  %10662 = vmatpush1.bf16.msra.mxu0 %v10626
  %10663 = vmatprep.subr.bf16.mxu0 %v10631
  %10664 = vmatpush1.bf16.msra.mxu0 %v10630
  %10665 = vmatprep.subr.bf16.mxu0 %v10635
  %10666 = vmatpush1.bf16.msra.mxu0 %v10634
  %10667 = vmatprep.subr.bf16.mxu0 %v10639
  %10668 = vmatpush1.bf16.msra.mxu0 %v10638
  %10669 = vmatprep.subr.bf16.mxu0 0
  %10670 = vmatpush1.bf16.msra.mxu0 0
  %10671 = vmatprep.subr.bf16.mxu0 0
  %10672 = vmatpush1.bf16.msra.mxu0 0
  %10673 = vmatprep.subr.bf16.mxu0 0
  %10674 = vmatpush1.bf16.msra.mxu0 0
  %10675 = vmatprep.subr.bf16.mxu0 0
  %10676 = vmatpush1.bf16.msra.mxu0 0
  %10677 = vmatprep.subr.bf16.mxu0 0
  %10678 = vmatpush1.bf16.msra.mxu0 0
  %10679 = vmatprep.subr.bf16.mxu0 0
  %10680 = vmatpush1.bf16.msra.mxu0 0
  %10681 = vmatprep.subr.bf16.mxu0 0
  %10682 = vmatpush1.bf16.msra.mxu0 0
  %10683 = vmatprep.subr.bf16.mxu0 0
  %10684 = vmatpush1.bf16.msra.mxu0 0
  %10685 = vmatprep.subr.bf16.mxu0 0
  %10686 = vmatpush1.bf16.msra.mxu0 0
  %10687 = vmatprep.subr.bf16.mxu0 0
  %10688 = vmatpush1.bf16.msra.mxu0 0
  %10689 = vmatprep.subr.bf16.mxu0 0
  %10690 = vmatpush1.bf16.msra.mxu0 0
  %10691 = vmatprep.subr.bf16.mxu0 0
  %10692 = vmatpush1.bf16.msra.mxu0 0
  %10693 = vmatprep.mubr.bf16.mxu0 0
  %10694 = vmatmul.mubr.bf16.gmra.mrb[0].mxu0 %v10659
  %v10695 = vpop.f32.mrb[0].mxu0
  %v10696 = vadd.f32 0.0, %v10695
  %v10697 = vpop.f32.mrb[0].mxu0
  %v10698 = vadd.f32 0.0, %v10697
  %v10699 = vpop.f32.mrb[0].mxu0
  %v10700 = vpop.f32.mrb[0].mxu0
  %10701 = vdwg.mxu0
  %10702 = vmatprep.subr.bf16.mxu0 %v10629
  %10703 = vmatpush1.bf16.msra.mxu0 %v10628
  %10704 = vmatprep.subr.bf16.mxu0 %v10633
  %10705 = vmatpush1.bf16.msra.mxu0 %v10632
  %10706 = vmatprep.subr.bf16.mxu0 %v10637
  %10707 = vmatpush1.bf16.msra.mxu0 %v10636
  %10708 = vmatprep.subr.bf16.mxu0 %v10641
  %10709 = vmatpush1.bf16.msra.mxu0 %v10640
  %10710 = vmatprep.subr.bf16.mxu0 0
  %10711 = vmatpush1.bf16.msra.mxu0 0
  %10712 = vmatprep.subr.bf16.mxu0 0
  %10713 = vmatpush1.bf16.msra.mxu0 0
  %10714 = vmatprep.subr.bf16.mxu0 0
  %10715 = vmatpush1.bf16.msra.mxu0 0
  %10716 = vmatprep.subr.bf16.mxu0 0
  %10717 = vmatpush1.bf16.msra.mxu0 0
  %10718 = vmatprep.subr.bf16.mxu0 0
  %10719 = vmatpush1.bf16.msra.mxu0 0
  %10720 = vmatprep.subr.bf16.mxu0 0
  %10721 = vmatpush1.bf16.msra.mxu0 0
  %10722 = vmatprep.subr.bf16.mxu0 0
  %10723 = vmatpush1.bf16.msra.mxu0 0
  %10724 = vmatprep.subr.bf16.mxu0 0
  %10725 = vmatpush1.bf16.msra.mxu0 0
  %10726 = vmatprep.subr.bf16.mxu0 0
  %10727 = vmatpush1.bf16.msra.mxu0 0
  %10728 = vmatprep.subr.bf16.mxu0 0
  %10729 = vmatpush1.bf16.msra.mxu0 0
  %10730 = vmatprep.subr.bf16.mxu0 0
  %10731 = vmatpush1.bf16.msra.mxu0 0
  %10732 = vmatprep.subr.bf16.mxu0 0
  %10733 = vmatpush1.bf16.msra.mxu0 0
  %10734 = vmatprep.mubr.bf16.mxu0 0
  %10735 = vmatmul.mubr.bf16.gmra.mrb[0].mxu0 %v10659
  %v10736 = vpop.f32.mrb[0].mxu0
  %v10737 = vadd.f32 0.0, %v10736
  %v10738 = vpop.f32.mrb[0].mxu0
  %v10739 = vadd.f32 0.0, %v10738
  %v10740 = vpop.f32.mrb[0].mxu0
  %v10741 = vpop.f32.mrb[0].mxu0
  %10742 = vdwg.mxu0
  %v10743 = vadd.f32 %v10556, %v10696
  %v10744 = vadd.f32 %v10557, %v10698
  %v10745 = vadd.f32 %v10558, %v10737
  %v10746 = vadd.f32 %v10559, %v10739
  %v10747 = vld [vmem:[#allocation2 + $0xb8] sm:$0xf]
  %s10748 = scalar_lea.vmem %s3, 5888
  %v10749 = vld [vmem:[%s10748] sm:$0xff]
  %v10750 = vld [vmem:[%s10748 + $0x8] sm:$0xff]
  %v10751 = vld [vmem:[%s10748 + $0x10] sm:$0xff]
  %v10752 = vld [vmem:[%s10748 + $0x18] sm:$0xff]
  %v10753 = vld [vmem:[%s10748 + $0x20] sm:$0xff]
  %v10754 = vld [vmem:[%s10748 + $0x28] sm:$0xff]
  %v10755 = vld [vmem:[%s10748 + $0x30] sm:$0xff]
  %v10756 = vld [vmem:[%s10748 + $0x38] sm:$0xff]
  %v10757 = vld [vmem:[%s10748 + $0x40] sm:$0xff]
  %v10758 = vld [vmem:[%s10748 + $0x48] sm:$0xff]
  %v10759 = vld [vmem:[%s10748 + $0x50] sm:$0xff]
  %v10760 = vld [vmem:[%s10748 + $0x58] sm:$0xff]
  %v10761 = vld [vmem:[%s10748 + $0x60] sm:$0xff]
  %v10762 = vld [vmem:[%s10748 + $0x68] sm:$0xff]
  %v10763 = vld [vmem:[%s10748 + $0x70] sm:$0xff]
  %v10764 = vld [vmem:[%s10748 + $0x78] sm:$0xff]
  %v10781 = vunpack.c.l.b16 %v10749
  %v10782 = vunpack.c.h.b16 %v10749
  %v10783 = vunpack.c.l.b16 %v10750
  %v10784 = vunpack.c.h.b16 %v10750
  %v10785 = vunpack.c.l.b16 %v10751
  %v10786 = vunpack.c.h.b16 %v10751
  %v10787 = vunpack.c.l.b16 %v10752
  %v10788 = vunpack.c.h.b16 %v10752
  %v10789 = vunpack.c.l.b16 %v10753
  %v10790 = vunpack.c.h.b16 %v10753
  %v10791 = vunpack.c.l.b16 %v10754
  %v10792 = vunpack.c.h.b16 %v10754
  %v10793 = vunpack.c.l.b16 %v10755
  %v10794 = vunpack.c.h.b16 %v10755
  %v10795 = vunpack.c.l.b16 %v10756
  %v10796 = vunpack.c.h.b16 %v10756
  %v10797 = vunpack.c.l.b16 %v10757
  %v10798 = vunpack.c.h.b16 %v10757
  %v10799 = vunpack.c.l.b16 %v10758
  %v10800 = vunpack.c.h.b16 %v10758
  %v10801 = vunpack.c.l.b16 %v10759
  %v10802 = vunpack.c.h.b16 %v10759
  %v10803 = vunpack.c.l.b16 %v10760
  %v10804 = vunpack.c.h.b16 %v10760
  %v10805 = vunpack.c.l.b16 %v10761
  %v10806 = vunpack.c.h.b16 %v10761
  %v10807 = vunpack.c.l.b16 %v10762
  %v10808 = vunpack.c.h.b16 %v10762
  %v10809 = vunpack.c.l.b16 %v10763
  %v10810 = vunpack.c.h.b16 %v10763
  %v10811 = vunpack.c.l.b16 %v10764
  %v10812 = vunpack.c.h.b16 %v10764
  %v10813 = vpack.c.b16 %v10785, %v10781
  %v10814 = vpack.c.b16 %v10786, %v10782
  %v10815 = vpack.c.b16 %v10787, %v10783
  %v10816 = vpack.c.b16 %v10788, %v10784
  %v10817 = vpack.c.b16 %v10793, %v10789
  %v10818 = vpack.c.b16 %v10794, %v10790
  %v10819 = vpack.c.b16 %v10795, %v10791
  %v10820 = vpack.c.b16 %v10796, %v10792
  %v10821 = vpack.c.b16 %v10801, %v10797
  %v10822 = vpack.c.b16 %v10802, %v10798
  %v10823 = vpack.c.b16 %v10803, %v10799
  %v10824 = vpack.c.b16 %v10804, %v10800
  %v10825 = vpack.c.b16 %v10809, %v10805
  %v10826 = vpack.c.b16 %v10810, %v10806
  %v10827 = vpack.c.b16 %v10811, %v10807
  %v10828 = vpack.c.b16 %v10812, %v10808
  %v10846 = vsel %vm1086, %v10747, 0
  %10848 = vmatprep.subr.bf16.mxu0 %v10814
  %10849 = vmatpush1.bf16.msra.mxu0 %v10813
  %10850 = vmatprep.subr.bf16.mxu0 %v10818
  %10851 = vmatpush1.bf16.msra.mxu0 %v10817
  %10852 = vmatprep.subr.bf16.mxu0 %v10822
  %10853 = vmatpush1.bf16.msra.mxu0 %v10821
  %10854 = vmatprep.subr.bf16.mxu0 %v10826
  %10855 = vmatpush1.bf16.msra.mxu0 %v10825
  %10856 = vmatprep.subr.bf16.mxu0 0
  %10857 = vmatpush1.bf16.msra.mxu0 0
  %10858 = vmatprep.subr.bf16.mxu0 0
  %10859 = vmatpush1.bf16.msra.mxu0 0
  %10860 = vmatprep.subr.bf16.mxu0 0
  %10861 = vmatpush1.bf16.msra.mxu0 0
  %10862 = vmatprep.subr.bf16.mxu0 0
  %10863 = vmatpush1.bf16.msra.mxu0 0
  %10864 = vmatprep.subr.bf16.mxu0 0
  %10865 = vmatpush1.bf16.msra.mxu0 0
  %10866 = vmatprep.subr.bf16.mxu0 0
  %10867 = vmatpush1.bf16.msra.mxu0 0
  %10868 = vmatprep.subr.bf16.mxu0 0
  %10869 = vmatpush1.bf16.msra.mxu0 0
  %10870 = vmatprep.subr.bf16.mxu0 0
  %10871 = vmatpush1.bf16.msra.mxu0 0
  %10872 = vmatprep.subr.bf16.mxu0 0
  %10873 = vmatpush1.bf16.msra.mxu0 0
  %10874 = vmatprep.subr.bf16.mxu0 0
  %10875 = vmatpush1.bf16.msra.mxu0 0
  %10876 = vmatprep.subr.bf16.mxu0 0
  %10877 = vmatpush1.bf16.msra.mxu0 0
  %10878 = vmatprep.subr.bf16.mxu0 0
  %10879 = vmatpush1.bf16.msra.mxu0 0
  %10880 = vmatprep.mubr.bf16.mxu0 0
  %10881 = vmatmul.mubr.bf16.gmra.mrb[0].mxu0 %v10846
  %v10882 = vpop.f32.mrb[0].mxu0
  %v10883 = vadd.f32 0.0, %v10882
  %v10884 = vpop.f32.mrb[0].mxu0
  %v10885 = vadd.f32 0.0, %v10884
  %v10886 = vpop.f32.mrb[0].mxu0
  %v10887 = vpop.f32.mrb[0].mxu0
  %10888 = vdwg.mxu0
  %10889 = vmatprep.subr.bf16.mxu0 %v10816
  %10890 = vmatpush1.bf16.msra.mxu0 %v10815
  %10891 = vmatprep.subr.bf16.mxu0 %v10820
  %10892 = vmatpush1.bf16.msra.mxu0 %v10819
  %10893 = vmatprep.subr.bf16.mxu0 %v10824
  %10894 = vmatpush1.bf16.msra.mxu0 %v10823
  %10895 = vmatprep.subr.bf16.mxu0 %v10828
  %10896 = vmatpush1.bf16.msra.mxu0 %v10827
  %10897 = vmatprep.subr.bf16.mxu0 0
  %10898 = vmatpush1.bf16.msra.mxu0 0
  %10899 = vmatprep.subr.bf16.mxu0 0
  %10900 = vmatpush1.bf16.msra.mxu0 0
  %10901 = vmatprep.subr.bf16.mxu0 0
  %10902 = vmatpush1.bf16.msra.mxu0 0
  %10903 = vmatprep.subr.bf16.mxu0 0
  %10904 = vmatpush1.bf16.msra.mxu0 0
  %10905 = vmatprep.subr.bf16.mxu0 0
  %10906 = vmatpush1.bf16.msra.mxu0 0
  %10907 = vmatprep.subr.bf16.mxu0 0
  %10908 = vmatpush1.bf16.msra.mxu0 0
  %10909 = vmatprep.subr.bf16.mxu0 0
  %10910 = vmatpush1.bf16.msra.mxu0 0
  %10911 = vmatprep.subr.bf16.mxu0 0
  %10912 = vmatpush1.bf16.msra.mxu0 0
  %10913 = vmatprep.subr.bf16.mxu0 0
  %10914 = vmatpush1.bf16.msra.mxu0 0
  %10915 = vmatprep.subr.bf16.mxu0 0
  %10916 = vmatpush1.bf16.msra.mxu0 0
  %10917 = vmatprep.subr.bf16.mxu0 0
  %10918 = vmatpush1.bf16.msra.mxu0 0
  %10919 = vmatprep.subr.bf16.mxu0 0
  %10920 = vmatpush1.bf16.msra.mxu0 0
  %10921 = vmatprep.mubr.bf16.mxu0 0
  %10922 = vmatmul.mubr.bf16.gmra.mrb[0].mxu0 %v10846
  %v10923 = vpop.f32.mrb[0].mxu0
  %v10924 = vadd.f32 0.0, %v10923
  %v10925 = vpop.f32.mrb[0].mxu0
  %v10926 = vadd.f32 0.0, %v10925
  %v10927 = vpop.f32.mrb[0].mxu0
  %v10928 = vpop.f32.mrb[0].mxu0
  %10929 = vdwg.mxu0
  %v10930 = vadd.f32 %v10743, %v10883
  %v10931 = vadd.f32 %v10744, %v10885
  %v10932 = vadd.f32 %v10745, %v10924
  %v10933 = vadd.f32 %v10746, %v10926
  %v10934 = vld [vmem:[#allocation2 + $0xbc] sm:$0xf]
  %s10935 = scalar_lea.vmem %s3, 6016
  %v10936 = vld [vmem:[%s10935] sm:$0xff]
  %v10937 = vld [vmem:[%s10935 + $0x8] sm:$0xff]
  %v10938 = vld [vmem:[%s10935 + $0x10] sm:$0xff]
  %v10939 = vld [vmem:[%s10935 + $0x18] sm:$0xff]
  %v10940 = vld [vmem:[%s10935 + $0x20] sm:$0xff]
  %v10941 = vld [vmem:[%s10935 + $0x28] sm:$0xff]
  %v10942 = vld [vmem:[%s10935 + $0x30] sm:$0xff]
  %v10943 = vld [vmem:[%s10935 + $0x38] sm:$0xff]
  %v10944 = vld [vmem:[%s10935 + $0x40] sm:$0xff]
  %v10945 = vld [vmem:[%s10935 + $0x48] sm:$0xff]
  %v10946 = vld [vmem:[%s10935 + $0x50] sm:$0xff]
  %v10947 = vld [vmem:[%s10935 + $0x58] sm:$0xff]
  %v10948 = vld [vmem:[%s10935 + $0x60] sm:$0xff]
  %v10949 = vld [vmem:[%s10935 + $0x68] sm:$0xff]
  %v10950 = vld [vmem:[%s10935 + $0x70] sm:$0xff]
  %v10951 = vld [vmem:[%s10935 + $0x78] sm:$0xff]
  %v10968 = vunpack.c.l.b16 %v10936
  %v10969 = vunpack.c.h.b16 %v10936
  %v10970 = vunpack.c.l.b16 %v10937
  %v10971 = vunpack.c.h.b16 %v10937
  %v10972 = vunpack.c.l.b16 %v10938
  %v10973 = vunpack.c.h.b16 %v10938
  %v10974 = vunpack.c.l.b16 %v10939
  %v10975 = vunpack.c.h.b16 %v10939
  %v10976 = vunpack.c.l.b16 %v10940
  %v10977 = vunpack.c.h.b16 %v10940
  %v10978 = vunpack.c.l.b16 %v10941
  %v10979 = vunpack.c.h.b16 %v10941
  %v10980 = vunpack.c.l.b16 %v10942
  %v10981 = vunpack.c.h.b16 %v10942
  %v10982 = vunpack.c.l.b16 %v10943
  %v10983 = vunpack.c.h.b16 %v10943
  %v10984 = vunpack.c.l.b16 %v10944
  %v10985 = vunpack.c.h.b16 %v10944
  %v10986 = vunpack.c.l.b16 %v10945
  %v10987 = vunpack.c.h.b16 %v10945
  %v10988 = vunpack.c.l.b16 %v10946
  %v10989 = vunpack.c.h.b16 %v10946
  %v10990 = vunpack.c.l.b16 %v10947
  %v10991 = vunpack.c.h.b16 %v10947
  %v10992 = vunpack.c.l.b16 %v10948
  %v10993 = vunpack.c.h.b16 %v10948
  %v10994 = vunpack.c.l.b16 %v10949
  %v10995 = vunpack.c.h.b16 %v10949
  %v10996 = vunpack.c.l.b16 %v10950
  %v10997 = vunpack.c.h.b16 %v10950
  %v10998 = vunpack.c.l.b16 %v10951
  %v10999 = vunpack.c.h.b16 %v10951
  %v11000 = vpack.c.b16 %v10972, %v10968
  %v11001 = vpack.c.b16 %v10973, %v10969
  %v11002 = vpack.c.b16 %v10974, %v10970
  %v11003 = vpack.c.b16 %v10975, %v10971
  %v11004 = vpack.c.b16 %v10980, %v10976
  %v11005 = vpack.c.b16 %v10981, %v10977
  %v11006 = vpack.c.b16 %v10982, %v10978
  %v11007 = vpack.c.b16 %v10983, %v10979
  %v11008 = vpack.c.b16 %v10988, %v10984
  %v11009 = vpack.c.b16 %v10989, %v10985
  %v11010 = vpack.c.b16 %v10990, %v10986
  %v11011 = vpack.c.b16 %v10991, %v10987
  %v11012 = vpack.c.b16 %v10996, %v10992
  %v11013 = vpack.c.b16 %v10997, %v10993
  %v11014 = vpack.c.b16 %v10998, %v10994
  %v11015 = vpack.c.b16 %v10999, %v10995
  %v11033 = vsel %vm1086, %v10934, 0
  %11035 = vmatprep.subr.bf16.mxu0 %v11001
  %11036 = vmatpush1.bf16.msra.mxu0 %v11000
  %11037 = vmatprep.subr.bf16.mxu0 %v11005
  %11038 = vmatpush1.bf16.msra.mxu0 %v11004
  %11039 = vmatprep.subr.bf16.mxu0 %v11009
  %11040 = vmatpush1.bf16.msra.mxu0 %v11008
  %11041 = vmatprep.subr.bf16.mxu0 %v11013
  %11042 = vmatpush1.bf16.msra.mxu0 %v11012
  %11043 = vmatprep.subr.bf16.mxu0 0
  %11044 = vmatpush1.bf16.msra.mxu0 0
  %11045 = vmatprep.subr.bf16.mxu0 0
  %11046 = vmatpush1.bf16.msra.mxu0 0
  %11047 = vmatprep.subr.bf16.mxu0 0
  %11048 = vmatpush1.bf16.msra.mxu0 0
  %11049 = vmatprep.subr.bf16.mxu0 0
  %11050 = vmatpush1.bf16.msra.mxu0 0
  %11051 = vmatprep.subr.bf16.mxu0 0
  %11052 = vmatpush1.bf16.msra.mxu0 0
  %11053 = vmatprep.subr.bf16.mxu0 0
  %11054 = vmatpush1.bf16.msra.mxu0 0
  %11055 = vmatprep.subr.bf16.mxu0 0
  %11056 = vmatpush1.bf16.msra.mxu0 0
  %11057 = vmatprep.subr.bf16.mxu0 0
  %11058 = vmatpush1.bf16.msra.mxu0 0
  %11059 = vmatprep.subr.bf16.mxu0 0
  %11060 = vmatpush1.bf16.msra.mxu0 0
  %11061 = vmatprep.subr.bf16.mxu0 0
  %11062 = vmatpush1.bf16.msra.mxu0 0
  %11063 = vmatprep.subr.bf16.mxu0 0
  %11064 = vmatpush1.bf16.msra.mxu0 0
  %11065 = vmatprep.subr.bf16.mxu0 0
  %11066 = vmatpush1.bf16.msra.mxu0 0
  %11067 = vmatprep.mubr.bf16.mxu0 0
  %11068 = vmatmul.mubr.bf16.gmra.mrb[0].mxu0 %v11033
  %v11069 = vpop.f32.mrb[0].mxu0
  %v11070 = vadd.f32 0.0, %v11069
  %v11071 = vpop.f32.mrb[0].mxu0
  %v11072 = vadd.f32 0.0, %v11071
  %v11073 = vpop.f32.mrb[0].mxu0
  %v11074 = vpop.f32.mrb[0].mxu0
  %11075 = vdwg.mxu0
  %11076 = vmatprep.subr.bf16.mxu0 %v11003
  %11077 = vmatpush1.bf16.msra.mxu0 %v11002
  %11078 = vmatprep.subr.bf16.mxu0 %v11007
  %11079 = vmatpush1.bf16.msra.mxu0 %v11006
  %11080 = vmatprep.subr.bf16.mxu0 %v11011
  %11081 = vmatpush1.bf16.msra.mxu0 %v11010
  %11082 = vmatprep.subr.bf16.mxu0 %v11015
  %11083 = vmatpush1.bf16.msra.mxu0 %v11014
  %11084 = vmatprep.subr.bf16.mxu0 0
  %11085 = vmatpush1.bf16.msra.mxu0 0
  %11086 = vmatprep.subr.bf16.mxu0 0
  %11087 = vmatpush1.bf16.msra.mxu0 0
  %11088 = vmatprep.subr.bf16.mxu0 0
  %11089 = vmatpush1.bf16.msra.mxu0 0
  %11090 = vmatprep.subr.bf16.mxu0 0
  %11091 = vmatpush1.bf16.msra.mxu0 0
  %11092 = vmatprep.subr.bf16.mxu0 0
  %11093 = vmatpush1.bf16.msra.mxu0 0
  %11094 = vmatprep.subr.bf16.mxu0 0
  %11095 = vmatpush1.bf16.msra.mxu0 0
  %11096 = vmatprep.subr.bf16.mxu0 0
  %11097 = vmatpush1.bf16.msra.mxu0 0
  %11098 = vmatprep.subr.bf16.mxu0 0
  %11099 = vmatpush1.bf16.msra.mxu0 0
  %11100 = vmatprep.subr.bf16.mxu0 0
  %11101 = vmatpush1.bf16.msra.mxu0 0
  %11102 = vmatprep.subr.bf16.mxu0 0
  %11103 = vmatpush1.bf16.msra.mxu0 0
  %11104 = vmatprep.subr.bf16.mxu0 0
  %11105 = vmatpush1.bf16.msra.mxu0 0
  %11106 = vmatprep.subr.bf16.mxu0 0
  %11107 = vmatpush1.bf16.msra.mxu0 0
  %11108 = vmatprep.mubr.bf16.mxu0 0
  %11109 = vmatmul.mubr.bf16.gmra.mrb[0].mxu0 %v11033
  %v11110 = vpop.f32.mrb[0].mxu0
  %v11111 = vadd.f32 0.0, %v11110
  %v11112 = vpop.f32.mrb[0].mxu0
  %v11113 = vadd.f32 0.0, %v11112
  %v11114 = vpop.f32.mrb[0].mxu0
  %v11115 = vpop.f32.mrb[0].mxu0
  %11116 = vdwg.mxu0
  %v11117 = vadd.f32 %v10930, %v11070
  %v11118 = vadd.f32 %v10931, %v11072
  %v11119 = vadd.f32 %v10932, %v11111
  %v11120 = vadd.f32 %v10933, %v11113
  %v11121 = vld [vmem:[#allocation2 + $0xc0] sm:$0xf]
  %s11122 = scalar_lea.vmem %s3, 6144
  %v11123 = vld [vmem:[%s11122] sm:$0xff]
  %v11124 = vld [vmem:[%s11122 + $0x8] sm:$0xff]
  %v11125 = vld [vmem:[%s11122 + $0x10] sm:$0xff]
  %v11126 = vld [vmem:[%s11122 + $0x18] sm:$0xff]
  %v11127 = vld [vmem:[%s11122 + $0x20] sm:$0xff]
  %v11128 = vld [vmem:[%s11122 + $0x28] sm:$0xff]
  %v11129 = vld [vmem:[%s11122 + $0x30] sm:$0xff]
  %v11130 = vld [vmem:[%s11122 + $0x38] sm:$0xff]
  %v11131 = vld [vmem:[%s11122 + $0x40] sm:$0xff]
  %v11132 = vld [vmem:[%s11122 + $0x48] sm:$0xff]
  %v11133 = vld [vmem:[%s11122 + $0x50] sm:$0xff]
  %v11134 = vld [vmem:[%s11122 + $0x58] sm:$0xff]
  %v11135 = vld [vmem:[%s11122 + $0x60] sm:$0xff]
  %v11136 = vld [vmem:[%s11122 + $0x68] sm:$0xff]
  %v11137 = vld [vmem:[%s11122 + $0x70] sm:$0xff]
  %v11138 = vld [vmem:[%s11122 + $0x78] sm:$0xff]
  %v11155 = vunpack.c.l.b16 %v11123
  %v11156 = vunpack.c.h.b16 %v11123
  %v11157 = vunpack.c.l.b16 %v11124
  %v11158 = vunpack.c.h.b16 %v11124
  %v11159 = vunpack.c.l.b16 %v11125
  %v11160 = vunpack.c.h.b16 %v11125
  %v11161 = vunpack.c.l.b16 %v11126
  %v11162 = vunpack.c.h.b16 %v11126
  %v11163 = vunpack.c.l.b16 %v11127
  %v11164 = vunpack.c.h.b16 %v11127
  %v11165 = vunpack.c.l.b16 %v11128
  %v11166 = vunpack.c.h.b16 %v11128
  %v11167 = vunpack.c.l.b16 %v11129
  %v11168 = vunpack.c.h.b16 %v11129
  %v11169 = vunpack.c.l.b16 %v11130
  %v11170 = vunpack.c.h.b16 %v11130
  %v11171 = vunpack.c.l.b16 %v11131
  %v11172 = vunpack.c.h.b16 %v11131
  %v11173 = vunpack.c.l.b16 %v11132
  %v11174 = vunpack.c.h.b16 %v11132
  %v11175 = vunpack.c.l.b16 %v11133
  %v11176 = vunpack.c.h.b16 %v11133
  %v11177 = vunpack.c.l.b16 %v11134
  %v11178 = vunpack.c.h.b16 %v11134
  %v11179 = vunpack.c.l.b16 %v11135
  %v11180 = vunpack.c.h.b16 %v11135
  %v11181 = vunpack.c.l.b16 %v11136
  %v11182 = vunpack.c.h.b16 %v11136
  %v11183 = vunpack.c.l.b16 %v11137
  %v11184 = vunpack.c.h.b16 %v11137
  %v11185 = vunpack.c.l.b16 %v11138
  %v11186 = vunpack.c.h.b16 %v11138
  %v11187 = vpack.c.b16 %v11159, %v11155
  %v11188 = vpack.c.b16 %v11160, %v11156
  %v11189 = vpack.c.b16 %v11161, %v11157
  %v11190 = vpack.c.b16 %v11162, %v11158
  %v11191 = vpack.c.b16 %v11167, %v11163
  %v11192 = vpack.c.b16 %v11168, %v11164
  %v11193 = vpack.c.b16 %v11169, %v11165
  %v11194 = vpack.c.b16 %v11170, %v11166
  %v11195 = vpack.c.b16 %v11175, %v11171
  %v11196 = vpack.c.b16 %v11176, %v11172
  %v11197 = vpack.c.b16 %v11177, %v11173
  %v11198 = vpack.c.b16 %v11178, %v11174
  %v11199 = vpack.c.b16 %v11183, %v11179
  %v11200 = vpack.c.b16 %v11184, %v11180
  %v11201 = vpack.c.b16 %v11185, %v11181
  %v11202 = vpack.c.b16 %v11186, %v11182
  %v11220 = vsel %vm1086, %v11121, 0
  %11222 = vmatprep.subr.bf16.mxu0 %v11188
  %11223 = vmatpush1.bf16.msra.mxu0 %v11187
  %11224 = vmatprep.subr.bf16.mxu0 %v11192
  %11225 = vmatpush1.bf16.msra.mxu0 %v11191
  %11226 = vmatprep.subr.bf16.mxu0 %v11196
  %11227 = vmatpush1.bf16.msra.mxu0 %v11195
  %11228 = vmatprep.subr.bf16.mxu0 %v11200
  %11229 = vmatpush1.bf16.msra.mxu0 %v11199
  %11230 = vmatprep.subr.bf16.mxu0 0
  %11231 = vmatpush1.bf16.msra.mxu0 0
  %11232 = vmatprep.subr.bf16.mxu0 0
  %11233 = vmatpush1.bf16.msra.mxu0 0
  %11234 = vmatprep.subr.bf16.mxu0 0
  %11235 = vmatpush1.bf16.msra.mxu0 0
  %11236 = vmatprep.subr.bf16.mxu0 0
  %11237 = vmatpush1.bf16.msra.mxu0 0
  %11238 = vmatprep.subr.bf16.mxu0 0
  %11239 = vmatpush1.bf16.msra.mxu0 0
  %11240 = vmatprep.subr.bf16.mxu0 0
  %11241 = vmatpush1.bf16.msra.mxu0 0
  %11242 = vmatprep.subr.bf16.mxu0 0
  %11243 = vmatpush1.bf16.msra.mxu0 0
  %11244 = vmatprep.subr.bf16.mxu0 0
  %11245 = vmatpush1.bf16.msra.mxu0 0
  %11246 = vmatprep.subr.bf16.mxu0 0
  %11247 = vmatpush1.bf16.msra.mxu0 0
  %11248 = vmatprep.subr.bf16.mxu0 0
  %11249 = vmatpush1.bf16.msra.mxu0 0
  %11250 = vmatprep.subr.bf16.mxu0 0
  %11251 = vmatpush1.bf16.msra.mxu0 0
  %11252 = vmatprep.subr.bf16.mxu0 0
  %11253 = vmatpush1.bf16.msra.mxu0 0
  %11254 = vmatprep.mubr.bf16.mxu0 0
  %11255 = vmatmul.mubr.bf16.gmra.mrb[0].mxu0 %v11220
  %v11256 = vpop.f32.mrb[0].mxu0
  %v11257 = vadd.f32 0.0, %v11256
  %v11258 = vpop.f32.mrb[0].mxu0
  %v11259 = vadd.f32 0.0, %v11258
  %v11260 = vpop.f32.mrb[0].mxu0
  %v11261 = vpop.f32.mrb[0].mxu0
  %11262 = vdwg.mxu0
  %11263 = vmatprep.subr.bf16.mxu0 %v11190
  %11264 = vmatpush1.bf16.msra.mxu0 %v11189
  %11265 = vmatprep.subr.bf16.mxu0 %v11194
  %11266 = vmatpush1.bf16.msra.mxu0 %v11193
  %11267 = vmatprep.subr.bf16.mxu0 %v11198
  %11268 = vmatpush1.bf16.msra.mxu0 %v11197
  %11269 = vmatprep.subr.bf16.mxu0 %v11202
  %11270 = vmatpush1.bf16.msra.mxu0 %v11201
  %11271 = vmatprep.subr.bf16.mxu0 0
  %11272 = vmatpush1.bf16.msra.mxu0 0
  %11273 = vmatprep.subr.bf16.mxu0 0
  %11274 = vmatpush1.bf16.msra.mxu0 0
  %11275 = vmatprep.subr.bf16.mxu0 0
  %11276 = vmatpush1.bf16.msra.mxu0 0
  %11277 = vmatprep.subr.bf16.mxu0 0
  %11278 = vmatpush1.bf16.msra.mxu0 0
  %11279 = vmatprep.subr.bf16.mxu0 0
  %11280 = vmatpush1.bf16.msra.mxu0 0
  %11281 = vmatprep.subr.bf16.mxu0 0
  %11282 = vmatpush1.bf16.msra.mxu0 0
  %11283 = vmatprep.subr.bf16.mxu0 0
  %11284 = vmatpush1.bf16.msra.mxu0 0
  %11285 = vmatprep.subr.bf16.mxu0 0
  %11286 = vmatpush1.bf16.msra.mxu0 0
  %11287 = vmatprep.subr.bf16.mxu0 0
  %11288 = vmatpush1.bf16.msra.mxu0 0
  %11289 = vmatprep.subr.bf16.mxu0 0
  %11290 = vmatpush1.bf16.msra.mxu0 0
  %11291 = vmatprep.subr.bf16.mxu0 0
  %11292 = vmatpush1.bf16.msra.mxu0 0
  %11293 = vmatprep.subr.bf16.mxu0 0
  %11294 = vmatpush1.bf16.msra.mxu0 0
  %11295 = vmatprep.mubr.bf16.mxu0 0
  %11296 = vmatmul.mubr.bf16.gmra.mrb[0].mxu0 %v11220
  %v11297 = vpop.f32.mrb[0].mxu0
  %v11298 = vadd.f32 0.0, %v11297
  %v11299 = vpop.f32.mrb[0].mxu0
  %v11300 = vadd.f32 0.0, %v11299
  %v11301 = vpop.f32.mrb[0].mxu0
  %v11302 = vpop.f32.mrb[0].mxu0
  %11303 = vdwg.mxu0
  %v11304 = vadd.f32 %v11117, %v11257
  %v11305 = vadd.f32 %v11118, %v11259
  %v11306 = vadd.f32 %v11119, %v11298
  %v11307 = vadd.f32 %v11120, %v11300
  %v11308 = vld [vmem:[%s4] sm:$0xf]
  %v11310 = vlaneseq
  %v11311 = vshrl.u32 %v11310, 7
  %v11312 = vsub.s32 0, %v11311
  %v11313 = vrot.slane %v11308, %v11312
  %v11314 = vlaneseq
  %v11315 = vshrl.u32 %v11314, 7
  %v11316 = vsub.s32 1, %v11315
  %v11317 = vrot.slane %v11308, %v11316
  %v11318 = vlaneseq
  %v11319 = vshrl.u32 %v11318, 7
  %v11320 = vsub.s32 2, %v11319
  %v11321 = vrot.slane %v11308, %v11320
  %v11322 = vlaneseq
  %v11323 = vshrl.u32 %v11322, 7
  %v11324 = vsub.s32 3, %v11323
  %v11325 = vrot.slane %v11308, %v11324
  %v11330 = vadd.f32 %v11304, %v11313
  %v11331 = vadd.f32 %v11305, %v11317
  %v11332 = vadd.f32 %v11306, %v11321
  %v11333 = vadd.f32 %v11307, %v11325
  %v11334 = vmax.f32 %v11330, 0.0
  %v11335 = vmax.f32 %v11331, 0.0
  %v11336 = vmax.f32 %v11332, 0.0
  %v11337 = vmax.f32 %v11333, 0.0
  %v11338 = vld [vmem:[%s5] sm:$0xf]
  %v11339 = vld [vmem:[%s5 + $0x4] sm:$0xf]
  %v11340 = vld [vmem:[%s5 + $0x8] sm:$0xf]
  %v11341 = vld [vmem:[%s5 + $0xc] sm:$0xf]
  %v11342 = vld [vmem:[%s5 + $0x10] sm:$0xf]
  %v11343 = vld [vmem:[%s5 + $0x14] sm:$0xf]
  %v11344 = vld [vmem:[%s5 + $0x18] sm:$0xf]
  %v11345 = vld [vmem:[%s5 + $0x1c] sm:$0xf]
  %v11346 = vld [vmem:[%s5 + $0x20] sm:$0xf]
  %v11347 = vld [vmem:[%s5 + $0x24] sm:$0xf]
  %v11348 = vld [vmem:[%s5 + $0x28] sm:$0xf]
  %v11349 = vld [vmem:[%s5 + $0x2c] sm:$0xf]
  %v11350 = vld [vmem:[%s5 + $0x30] sm:$0xf]
  %v11351 = vld [vmem:[%s5 + $0x34] sm:$0xf]
  %v11352 = vld [vmem:[%s5 + $0x38] sm:$0xf]
  %v11353 = vld [vmem:[%s5 + $0x3c] sm:$0xf]
  %v11354 = vld [vmem:[%s5 + $0x40] sm:$0xf]
  %v11355 = vld [vmem:[%s5 + $0x44] sm:$0xf]
  %v11356 = vld [vmem:[%s5 + $0x48] sm:$0xf]
  %v11357 = vld [vmem:[%s5 + $0x4c] sm:$0xf]
  %v11358 = vld [vmem:[%s5 + $0x50] sm:$0xf]
  %v11359 = vld [vmem:[%s5 + $0x54] sm:$0xf]
  %v11360 = vld [vmem:[%s5 + $0x58] sm:$0xf]
  %v11361 = vld [vmem:[%s5 + $0x5c] sm:$0xf]
  %v11362 = vld [vmem:[%s5 + $0x60] sm:$0xf]
  %v11363 = vld [vmem:[%s5 + $0x64] sm:$0xf]
  %v11364 = vld [vmem:[%s5 + $0x68] sm:$0xf]
  %v11365 = vld [vmem:[%s5 + $0x6c] sm:$0xf]
  %v11366 = vld [vmem:[%s5 + $0x70] sm:$0xf]
  %v11367 = vld [vmem:[%s5 + $0x74] sm:$0xf]
  %v11368 = vld [vmem:[%s5 + $0x78] sm:$0xf]
  %v11369 = vld [vmem:[%s5 + $0x7c] sm:$0xf]
  %v11370 = vld [vmem:[%s5 + $0x80] sm:$0xf]
  %v11371 = vld [vmem:[%s5 + $0x84] sm:$0xf]
  %v11372 = vld [vmem:[%s5 + $0x88] sm:$0xf]
  %v11373 = vld [vmem:[%s5 + $0x8c] sm:$0xf]
  %v11374 = vld [vmem:[%s5 + $0x90] sm:$0xf]
  %v11375 = vld [vmem:[%s5 + $0x94] sm:$0xf]
  %v11376 = vld [vmem:[%s5 + $0x98] sm:$0xf]
  %v11377 = vld [vmem:[%s5 + $0x9c] sm:$0xf]
  %v11378 = vld [vmem:[%s5 + $0xa0] sm:$0xf]
  %v11379 = vld [vmem:[%s5 + $0xa4] sm:$0xf]
  %v11380 = vld [vmem:[%s5 + $0xa8] sm:$0xf]
  %v11381 = vld [vmem:[%s5 + $0xac] sm:$0xf]
  %v11382 = vld [vmem:[%s5 + $0xb0] sm:$0xf]
  %v11383 = vld [vmem:[%s5 + $0xb4] sm:$0xf]
  %v11384 = vld [vmem:[%s5 + $0xb8] sm:$0xf]
  %v11385 = vld [vmem:[%s5 + $0xbc] sm:$0xf]
  %v11386 = vld [vmem:[%s5 + $0xc0] sm:$0xf]
  %v11387 = vld [vmem:[%s5 + $0xc4] sm:$0xf]
  %v11388 = vld [vmem:[%s5 + $0xc8] sm:$0xf]
  %v11389 = vld [vmem:[%s5 + $0xcc] sm:$0xf]
  %v11390 = vld [vmem:[%s5 + $0xd0] sm:$0xf]
  %v11391 = vld [vmem:[%s5 + $0xd4] sm:$0xf]
  %v11392 = vld [vmem:[%s5 + $0xd8] sm:$0xf]
  %v11393 = vld [vmem:[%s5 + $0xdc] sm:$0xf]
  %v11394 = vld [vmem:[%s5 + $0xe0] sm:$0xf]
  %v11395 = vld [vmem:[%s5 + $0xe4] sm:$0xf]
  %v11396 = vld [vmem:[%s5 + $0xe8] sm:$0xf]
  %v11397 = vld [vmem:[%s5 + $0xec] sm:$0xf]
  %v11398 = vld [vmem:[%s5 + $0xf0] sm:$0xf]
  %v11399 = vld [vmem:[%s5 + $0xf4] sm:$0xf]
  %v11400 = vld [vmem:[%s5 + $0xf8] sm:$0xf]
  %v11401 = vld [vmem:[%s5 + $0xfc] sm:$0xf]
  %v11402 = vunpack.c.l.bf16 %v11338
  %v11403 = vunpack.c.l.bf16 %v11339
  %v11404 = vunpack.c.l.bf16 %v11340
  %v11405 = vunpack.c.l.bf16 %v11341
  %v11406 = vunpack.c.l.bf16 %v11342
  %v11407 = vunpack.c.l.bf16 %v11343
  %v11408 = vunpack.c.l.bf16 %v11344
  %v11409 = vunpack.c.l.bf16 %v11345
  %v11410 = vunpack.c.l.bf16 %v11346
  %v11411 = vunpack.c.l.bf16 %v11347
  %v11412 = vunpack.c.l.bf16 %v11348
  %v11413 = vunpack.c.l.bf16 %v11349
  %v11414 = vunpack.c.l.bf16 %v11350
  %v11415 = vunpack.c.l.bf16 %v11351
  %v11416 = vunpack.c.l.bf16 %v11352
  %v11417 = vunpack.c.l.bf16 %v11353
  %v11418 = vunpack.c.l.bf16 %v11354
  %v11419 = vunpack.c.l.bf16 %v11355
  %v11420 = vunpack.c.l.bf16 %v11356
  %v11421 = vunpack.c.l.bf16 %v11357
  %v11422 = vunpack.c.l.bf16 %v11358
  %v11423 = vunpack.c.l.bf16 %v11359
  %v11424 = vunpack.c.l.bf16 %v11360
  %v11425 = vunpack.c.l.bf16 %v11361
  %v11426 = vunpack.c.l.bf16 %v11362
  %v11427 = vunpack.c.l.bf16 %v11363
  %v11428 = vunpack.c.l.bf16 %v11364
  %v11429 = vunpack.c.l.bf16 %v11365
  %v11430 = vunpack.c.l.bf16 %v11366
  %v11431 = vunpack.c.l.bf16 %v11367
  %v11432 = vunpack.c.l.bf16 %v11368
  %v11433 = vunpack.c.l.bf16 %v11369
  %v11434 = vunpack.c.l.bf16 %v11370
  %v11435 = vunpack.c.l.bf16 %v11371
  %v11436 = vunpack.c.l.bf16 %v11372
  %v11437 = vunpack.c.l.bf16 %v11373
  %v11438 = vunpack.c.l.bf16 %v11374
  %v11439 = vunpack.c.l.bf16 %v11375
  %v11440 = vunpack.c.l.bf16 %v11376
  %v11441 = vunpack.c.l.bf16 %v11377
  %v11442 = vunpack.c.l.bf16 %v11378
  %v11443 = vunpack.c.l.bf16 %v11379
  %v11444 = vunpack.c.l.bf16 %v11380
  %v11445 = vunpack.c.l.bf16 %v11381
  %v11446 = vunpack.c.l.bf16 %v11382
  %v11447 = vunpack.c.l.bf16 %v11383
  %v11448 = vunpack.c.l.bf16 %v11384
  %v11449 = vunpack.c.l.bf16 %v11385
  %v11450 = vunpack.c.l.bf16 %v11386
  %v11451 = vunpack.c.l.bf16 %v11387
  %v11452 = vunpack.c.l.bf16 %v11388
  %v11453 = vunpack.c.l.bf16 %v11389
  %v11454 = vunpack.c.l.bf16 %v11390
  %v11455 = vunpack.c.l.bf16 %v11391
  %v11456 = vunpack.c.l.bf16 %v11392
  %v11457 = vunpack.c.l.bf16 %v11393
  %v11458 = vunpack.c.l.bf16 %v11394
  %v11459 = vunpack.c.l.bf16 %v11395
  %v11460 = vunpack.c.l.bf16 %v11396
  %v11461 = vunpack.c.l.bf16 %v11397
  %v11462 = vunpack.c.l.bf16 %v11398
  %v11463 = vunpack.c.l.bf16 %v11399
  %v11464 = vunpack.c.l.bf16 %v11400
  %v11465 = vunpack.c.l.bf16 %v11401
  %v11466 = vld [vmem:[%s6] sm:$0x1]
  %v11468 = vlaneseq
  %v11469 = vshrl.u32 %v11468, 7
  %v11470 = vsub.s32 0, %v11469
  %v11471 = vrot.slane %v11466, %v11470
  %11473 = vmatprep.subr.mxu0 0.0
  %11474 = vmatpush1.msra.mxu0 %v11402
  %11475 = vmatprep.subr.mxu0 0.0
  %11476 = vmatpush1.msra.mxu0 %v11403
  %11477 = vmatprep.subr.mxu0 0.0
  %11478 = vmatpush1.msra.mxu0 %v11404
  %11479 = vmatprep.subr.mxu0 0.0
  %11480 = vmatpush1.msra.mxu0 %v11405
  %11481 = vmatprep.subr.mxu0 0.0
  %11482 = vmatpush1.msra.mxu0 %v11406
  %11483 = vmatprep.subr.mxu0 0.0
  %11484 = vmatpush1.msra.mxu0 %v11407
  %11485 = vmatprep.subr.mxu0 0.0
  %11486 = vmatpush1.msra.mxu0 %v11408
  %11487 = vmatprep.subr.mxu0 0.0
  %11488 = vmatpush1.msra.mxu0 %v11409
  %11489 = vmatprep.subr.mxu0 0.0
  %11490 = vmatpush1.msra.mxu0 %v11410
  %11491 = vmatprep.subr.mxu0 0.0
  %11492 = vmatpush1.msra.mxu0 %v11411
  %11493 = vmatprep.subr.mxu0 0.0
  %11494 = vmatpush1.msra.mxu0 %v11412
  %11495 = vmatprep.subr.mxu0 0.0
  %11496 = vmatpush1.msra.mxu0 %v11413
  %11497 = vmatprep.subr.mxu0 0.0
  %11498 = vmatpush1.msra.mxu0 %v11414
  %11499 = vmatprep.subr.mxu0 0.0
  %11500 = vmatpush1.msra.mxu0 %v11415
  %11501 = vmatprep.subr.mxu0 0.0
  %11502 = vmatpush1.msra.mxu0 %v11416
  %11503 = vmatprep.subr.mxu0 0.0
  %11504 = vmatpush1.msra.mxu0 %v11417
  %11505 = vmatprep.subr.mxu0 0.0
  %11506 = vmatpush1.msra.mxu0 %v11418
  %11507 = vmatprep.subr.mxu0 0.0
  %11508 = vmatpush1.msra.mxu0 %v11419
  %11509 = vmatprep.subr.mxu0 0.0
  %11510 = vmatpush1.msra.mxu0 %v11420
  %11511 = vmatprep.subr.mxu0 0.0
  %11512 = vmatpush1.msra.mxu0 %v11421
  %11513 = vmatprep.subr.mxu0 0.0
  %11514 = vmatpush1.msra.mxu0 %v11422
  %11515 = vmatprep.subr.mxu0 0.0
  %11516 = vmatpush1.msra.mxu0 %v11423
  %11517 = vmatprep.subr.mxu0 0.0
  %11518 = vmatpush1.msra.mxu0 %v11424
  %11519 = vmatprep.subr.mxu0 0.0
  %11520 = vmatpush1.msra.mxu0 %v11425
  %11521 = vmatprep.subr.mxu0 0.0
  %11522 = vmatpush1.msra.mxu0 %v11426
  %11523 = vmatprep.subr.mxu0 0.0
  %11524 = vmatpush1.msra.mxu0 %v11427
  %11525 = vmatprep.subr.mxu0 0.0
  %11526 = vmatpush1.msra.mxu0 %v11428
  %11527 = vmatprep.subr.mxu0 0.0
  %11528 = vmatpush1.msra.mxu0 %v11429
  %11529 = vmatprep.subr.mxu0 0.0
  %11530 = vmatpush1.msra.mxu0 %v11430
  %11531 = vmatprep.subr.mxu0 0.0
  %11532 = vmatpush1.msra.mxu0 %v11431
  %11533 = vmatprep.subr.mxu0 0.0
  %11534 = vmatpush1.msra.mxu0 %v11432
  %11535 = vmatprep.subr.mxu0 0.0
  %11536 = vmatpush1.msra.mxu0 %v11433
  %11537 = vmatprep.mubr.f32.mxu0 %v11335
  %11538 = vmatmul.mubr.f32.gmra.mrb[0].mxu0 %v11334
  %v11539 = vpop.f32.mrb[0].mxu0
  %v11540 = vadd.f32 %v11471, %v11539
  %v11541 = vpop.f32.mrb[0].mxu0
  %11542 = vdwg.mxu0
  %11543 = vmatprep.subr.mxu0 0.0
  %11544 = vmatpush1.msra.mxu0 %v11434
  %11545 = vmatprep.subr.mxu0 0.0
  %11546 = vmatpush1.msra.mxu0 %v11435
  %11547 = vmatprep.subr.mxu0 0.0
  %11548 = vmatpush1.msra.mxu0 %v11436
  %11549 = vmatprep.subr.mxu0 0.0
  %11550 = vmatpush1.msra.mxu0 %v11437
  %11551 = vmatprep.subr.mxu0 0.0
  %11552 = vmatpush1.msra.mxu0 %v11438
  %11553 = vmatprep.subr.mxu0 0.0
  %11554 = vmatpush1.msra.mxu0 %v11439
  %11555 = vmatprep.subr.mxu0 0.0
  %11556 = vmatpush1.msra.mxu0 %v11440
  %11557 = vmatprep.subr.mxu0 0.0
  %11558 = vmatpush1.msra.mxu0 %v11441
  %11559 = vmatprep.subr.mxu0 0.0
  %11560 = vmatpush1.msra.mxu0 %v11442
  %11561 = vmatprep.subr.mxu0 0.0
  %11562 = vmatpush1.msra.mxu0 %v11443
  %11563 = vmatprep.subr.mxu0 0.0
  %11564 = vmatpush1.msra.mxu0 %v11444
  %11565 = vmatprep.subr.mxu0 0.0
  %11566 = vmatpush1.msra.mxu0 %v11445
  %11567 = vmatprep.subr.mxu0 0.0
  %11568 = vmatpush1.msra.mxu0 %v11446
  %11569 = vmatprep.subr.mxu0 0.0
  %11570 = vmatpush1.msra.mxu0 %v11447
  %11571 = vmatprep.subr.mxu0 0.0
  %11572 = vmatpush1.msra.mxu0 %v11448
  %11573 = vmatprep.subr.mxu0 0.0
  %11574 = vmatpush1.msra.mxu0 %v11449
  %11575 = vmatprep.subr.mxu0 0.0
  %11576 = vmatpush1.msra.mxu0 %v11450
  %11577 = vmatprep.subr.mxu0 0.0
  %11578 = vmatpush1.msra.mxu0 %v11451
  %11579 = vmatprep.subr.mxu0 0.0
  %11580 = vmatpush1.msra.mxu0 %v11452
  %11581 = vmatprep.subr.mxu0 0.0
  %11582 = vmatpush1.msra.mxu0 %v11453
  %11583 = vmatprep.subr.mxu0 0.0
  %11584 = vmatpush1.msra.mxu0 %v11454
  %11585 = vmatprep.subr.mxu0 0.0
  %11586 = vmatpush1.msra.mxu0 %v11455
  %11587 = vmatprep.subr.mxu0 0.0
  %11588 = vmatpush1.msra.mxu0 %v11456
  %11589 = vmatprep.subr.mxu0 0.0
  %11590 = vmatpush1.msra.mxu0 %v11457
  %11591 = vmatprep.subr.mxu0 0.0
  %11592 = vmatpush1.msra.mxu0 %v11458
  %11593 = vmatprep.subr.mxu0 0.0
  %11594 = vmatpush1.msra.mxu0 %v11459
  %11595 = vmatprep.subr.mxu0 0.0
  %11596 = vmatpush1.msra.mxu0 %v11460
  %11597 = vmatprep.subr.mxu0 0.0
  %11598 = vmatpush1.msra.mxu0 %v11461
  %11599 = vmatprep.subr.mxu0 0.0
  %11600 = vmatpush1.msra.mxu0 %v11462
  %11601 = vmatprep.subr.mxu0 0.0
  %11602 = vmatpush1.msra.mxu0 %v11463
  %11603 = vmatprep.subr.mxu0 0.0
  %11604 = vmatpush1.msra.mxu0 %v11464
  %11605 = vmatprep.subr.mxu0 0.0
  %11606 = vmatpush1.msra.mxu0 %v11465
  %11607 = vmatprep.mubr.f32.mxu0 %v11337
  %11608 = vmatmul.mubr.f32.gmra.mrb[0].mxu0 %v11336
  %v11609 = vpop.f32.mrb[0].mxu0
  %v11610 = vadd.f32 %v11540, %v11609
  %v11611 = vpop.f32.mrb[0].mxu0
  %11612 = vdwg.mxu0
  %11613 = vst [vmem:[%s7] sm:$0xff] %v11610
  // Predicated region
  $region30: #{forward.5} parent=0 // pred_check
    _
  $region31: #{forward.5} parent=0 // pred_check_branch
    %11615 = sbr.rel (0) target = $region33
  $region32: #{forward.5} parent=0 // pred_region
    _
  $region33: #{forward.5} parent=0 // pred_fallthru
    _
  // Predicated region
  $region34: #{forward.5} parent=0 // pred_check
    _
  $region35: #{forward.5} parent=0 // pred_check_branch
    %11617 = sbr.rel (0) target = $region37
  $region36: #{forward.5} parent=0 // pred_region
    _
  $region37: #{forward.5} parent=0 // pred_fallthru
    _

</llo_original>
